<compile_context>
chip_gen: v7x
topology: tpu7x:2x2x1
jax: 0.10.0
libtpu: 0.0.40
codegen_flags: <defaults>
</compile_context>

<pallas_src>
import functools
import math

import numpy as np
import jax
import jax.numpy as jnp
from jax.experimental import pallas as pl
from jax.experimental.pallas import tpu as pltpu


_VMEM_LIMIT = 32 * 1024 * 1024  # conservative scoped-VMEM limit (v7x-safe)
_NEG_INF = -1e9


def _round_up(x, m):
    return ((x + m - 1) // m) * m


def _pad2d(a, rows, cols):
    r, c = a.shape
    if r == rows and c == cols:
        return a
    return jnp.pad(a, ((0, rows - r), (0, cols - c)))


# ------------------------------ Norm (shared) --------------------------------
# Reference Norm: alpha * (x - mean) / (std + eps) + bias with UNBIASED std.
# x arrives as an f32 tile whose lanes beyond d_real are zero; alpha/bias are
# zero there too, so stats are exact and padded output lanes stay zero.

def _norm_rows(x, alpha, bias, eps, d_real):
    s1 = jnp.sum(x, axis=-1, keepdims=True)
    s2 = jnp.sum(x * x, axis=-1, keepdims=True)
    mean = s1 * (1.0 / d_real)
    var = (s2 - d_real * mean * mean) * (1.0 / (d_real - 1))
    std = jnp.sqrt(jnp.maximum(var, 0.0))
    inv = pl.reciprocal(std + eps, approx=True)
    return alpha * (x - mean) * inv + bias


# -------------------- Fused attention block (QKV -> wo -> add+norm) ----------

def _mha_core(xq, xkv, madd, wq_ref, bq_ref, wk_ref, bk_ref, wv_ref, bv_ref,
              wo_ref, bo_ref, heads):
    """xq: (Sq, Dp) bf16, xkv: (Skv, Dp) bf16, madd: (1|Sq, Skv) f32 additive.

    Per-head weights are indexed along the leading (cheap) axis; the 1/sqrt(dk)
    scale is already folded into wq/bq.  Returns the projected (Sq, Dp) f32
    attention output (wo applied, bo added).
    """
    sq = xq.shape[0]
    dp = wo_ref.shape[2]
    acc = jnp.zeros((sq, dp), jnp.float32)
    for h in range(heads):
        qh = jnp.dot(xq, wq_ref[h], preferred_element_type=jnp.float32) + bq_ref[h]
        kh = jnp.dot(xkv, wk_ref[h], preferred_element_type=jnp.float32) + bk_ref[h]
        vh = jnp.dot(xkv, wv_ref[h], preferred_element_type=jnp.float32) + bv_ref[h]
        s = jax.lax.dot_general(qh.astype(jnp.bfloat16), kh.astype(jnp.bfloat16),
                                (((1,), (1,)), ((), ())),
                                preferred_element_type=jnp.float32)
        s = s + madd
        s = s - jnp.max(s, axis=-1, keepdims=True)
        p = jnp.exp(s)
        p = p * pl.reciprocal(jnp.sum(p, axis=-1, keepdims=True), approx=True)
        oh = jnp.dot(p.astype(jnp.bfloat16), vh.astype(jnp.bfloat16),
                     preferred_element_type=jnp.float32)
        acc = acc + jnp.dot(oh.astype(jnp.bfloat16), wo_ref[h],
                            preferred_element_type=jnp.float32)
    return acc + bo_ref[...]


def _self_attn_kernel(x_ref, m_ref, wq_ref, bq_ref, wk_ref, bk_ref, wv_ref,
                      bv_ref, wo_ref, bo_ref, na_ref, nb_ref, o_ref,
                      *, heads, d_real, eps):
    x = x_ref[0]
    y = _mha_core(x, x, m_ref[0], wq_ref, bq_ref, wk_ref, bk_ref, wv_ref,
                  bv_ref, wo_ref, bo_ref, heads)
    z = x.astype(jnp.float32) + y                       # fused residual add
    o_ref[0] = _norm_rows(z, na_ref[...], nb_ref[...], eps, d_real).astype(o_ref.dtype)


def _cross_attn_kernel(xq_ref, xkv_ref, m_ref, wq_ref, bq_ref, wk_ref, bk_ref,
                       wv_ref, bv_ref, wo_ref, bo_ref, na_ref, nb_ref, o_ref,
                       *, heads, d_real, eps):
    xq = xq_ref[0]
    y = _mha_core(xq, xkv_ref[0], m_ref[0], wq_ref, bq_ref, wk_ref, bk_ref,
                  wv_ref, bv_ref, wo_ref, bo_ref, heads)
    z = xq.astype(jnp.float32) + y
    o_ref[0] = _norm_rows(z, na_ref[...], nb_ref[...], eps, d_real).astype(o_ref.dtype)


def _mha_weight_specs(p):
    c3 = lambda b: (0, 0, 0)
    c2 = lambda b: (0, 0)
    return [
        pl.BlockSpec(p["wq"].shape, c3), pl.BlockSpec(p["bq"].shape, c3),
        pl.BlockSpec(p["wk"].shape, c3), pl.BlockSpec(p["bk"].shape, c3),
        pl.BlockSpec(p["wv"].shape, c3), pl.BlockSpec(p["bv"].shape, c3),
        pl.BlockSpec(p["wo"].shape, c3), pl.BlockSpec(p["bo"].shape, c2),
    ]


def _vec_spec(a):
    return pl.BlockSpec(a.shape, lambda b: (0, 0))


def self_attn_add_norm(p, x, mask_add, na, nb, heads, d_model, eps=1e-6):
    """norm(x + MHA(x, x, x)) in one pallas_call. x: (B, S, Dp) bf16."""
    B, S, Dp = x.shape
    mr = mask_add.shape[1]
    kern = functools.partial(_self_attn_kernel, heads=heads, d_real=d_model, eps=eps)
    in_specs = ([pl.BlockSpec((1, S, Dp), lambda b: (b, 0, 0)),
                 pl.BlockSpec((1, mr, S), lambda b: (b, 0, 0))]
                + _mha_weight_specs(p) + [_vec_spec(na), _vec_spec(nb)])
    return pl.pallas_call(
        kern,
        out_shape=jax.ShapeDtypeStruct((B, S, Dp), jnp.bfloat16),
        grid=(B,),
        in_specs=in_specs,
        out_specs=pl.BlockSpec((1, S, Dp), lambda b: (b, 0, 0)),
        compiler_params=pltpu.CompilerParams(
            dimension_semantics=("parallel",), vmem_limit_bytes=_VMEM_LIMIT),
    )(x, mask_add, p["wq"], p["bq"], p["wk"], p["bk"], p["wv"], p["bv"],
      p["wo"], p["bo"], na, nb)


def cross_attn_add_norm(p, x, enc_out, mask_add, na, nb, heads, d_model, eps=1e-6):
    """norm(x + MHA(x, enc_out, enc_out)) in one pallas_call."""
    B, Sq, Dp = x.shape
    Skv = enc_out.shape[1]
    mr = mask_add.shape[1]
    kern = functools.partial(_cross_attn_kernel, heads=heads, d_real=d_model, eps=eps)
    in_specs = ([pl.BlockSpec((1, Sq, Dp), lambda b: (b, 0, 0)),
                 pl.BlockSpec((1, Skv, Dp), lambda b: (b, 0, 0)),
                 pl.BlockSpec((1, mr, Skv), lambda b: (b, 0, 0))]
                + _mha_weight_specs(p) + [_vec_spec(na), _vec_spec(nb)])
    return pl.pallas_call(
        kern,
        out_shape=jax.ShapeDtypeStruct((B, Sq, Dp), jnp.bfloat16),
        grid=(B,),
        in_specs=in_specs,
        out_specs=pl.BlockSpec((1, Sq, Dp), lambda b: (b, 0, 0)),
        compiler_params=pltpu.CompilerParams(
            dimension_semantics=("parallel",), vmem_limit_bytes=_VMEM_LIMIT),
    )(x, enc_out, mask_add, p["wq"], p["bq"], p["wk"], p["bk"], p["wv"],
      p["bv"], p["wo"], p["bo"], na, nb)


# ------------------------ Fused FFN (+ residual + norm) ----------------------

def _ffn_kernel(x_ref, w1_ref, b1_ref, w2_ref, b2_ref, na_ref, nb_ref, o_ref,
                *, d_real, eps):
    x = x_ref[0]                                         # (S, Dp) bf16
    h = jnp.dot(x, w1_ref[...], preferred_element_type=jnp.float32) + b1_ref[...]
    h = jnp.maximum(h, 0.0)
    y = jnp.dot(h.astype(jnp.bfloat16), w2_ref[...],
                preferred_element_type=jnp.float32) + b2_ref[...]
    z = x.astype(jnp.float32) + y                        # fused residual add
    o_ref[0] = _norm_rows(z, na_ref[...], nb_ref[...], eps, d_real).astype(o_ref.dtype)


def ffn_add_norm(p, x, na, nb, d_model, eps=1e-6):
    """norm(x + FFN(x)); hidden activation and residual never leave VMEM."""
    B, S, Dp = x.shape
    Fp = p["w1"].shape[1]
    kern = functools.partial(_ffn_kernel, d_real=d_model, eps=eps)
    return pl.pallas_call(
        kern,
        out_shape=jax.ShapeDtypeStruct((B, S, Dp), jnp.bfloat16),
        grid=(B,),
        in_specs=[
            pl.BlockSpec((1, S, Dp), lambda b: (b, 0, 0)),
            pl.BlockSpec((Dp, Fp), lambda b: (0, 0)),
            pl.BlockSpec((1, Fp), lambda b: (0, 0)),
            pl.BlockSpec((Fp, Dp), lambda b: (0, 0)),
            pl.BlockSpec((1, Dp), lambda b: (0, 0)),
            _vec_spec(na), _vec_spec(nb),
        ],
        out_specs=pl.BlockSpec((1, S, Dp), lambda b: (b, 0, 0)),
        compiler_params=pltpu.CompilerParams(
            dimension_semantics=("parallel",), vmem_limit_bytes=_VMEM_LIMIT),
    )(x, p["w1"], p["b1"], p["w2"], p["b2"], na, nb)


# ---------------------------- Standalone Norm --------------------------------

def _norm_kernel(x_ref, na_ref, nb_ref, o_ref, *, d_real, eps):
    z = x_ref[0].astype(jnp.float32)
    o_ref[0] = _norm_rows(z, na_ref[...], nb_ref[...], eps, d_real).astype(o_ref.dtype)


def norm_block(x, na, nb, d_model, eps=1e-6):
    B, S, Dp = x.shape
    kern = functools.partial(_norm_kernel, d_real=d_model, eps=eps)
    return pl.pallas_call(
        kern,
        out_shape=jax.ShapeDtypeStruct((B, S, Dp), jnp.bfloat16),
        grid=(B,),
        in_specs=[pl.BlockSpec((1, S, Dp), lambda b: (b, 0, 0)),
                  _vec_spec(na), _vec_spec(nb)],
        out_specs=pl.BlockSpec((1, S, Dp), lambda b: (b, 0, 0)),
        compiler_params=pltpu.CompilerParams(
            dimension_semantics=("parallel",), vmem_limit_bytes=_VMEM_LIMIT),
    )(x, na, nb)


# --------------------- Final vocab projection (tiled matmul) -----------------

def _linear_kernel(x_ref, w_ref, b_ref, o_ref, acc_ref):
    @pl.when(pl.program_id(2) == 0)
    def _():
        acc_ref[...] = jnp.zeros_like(acc_ref)

    acc_ref[...] += jnp.dot(x_ref[...], w_ref[...],
                            preferred_element_type=jnp.float32)

    @pl.when(pl.program_id(2) == pl.num_programs(2) - 1)
    def _():
        o_ref[...] = (acc_ref[...] + b_ref[...]).astype(o_ref.dtype)


def logits_linear(x2d, w, b, n_real):
    """x2d: (M, Kp) bf16 (padded), w: (Kp, Np) bf16, b: (1, Np) f32 -> (M, n_real) f32."""
    M, Kp = x2d.shape
    Np = w.shape[1]
    tm = min(256, _round_up(M, 16))          # bf16 sublane packing (16 rows)
    Mp = _round_up(M, tm)
    tn = 256 if Np % 256 == 0 else 128
    if Kp <= 512:
        tk = Kp
    else:
        tk = 512 if Kp % 512 == 0 else (256 if Kp % 256 == 0 else 128)
    x_p = x2d if Mp == M else jnp.pad(x2d, ((0, Mp - M), (0, 0)))
    y = pl.pallas_call(
        _linear_kernel,
        out_shape=jax.ShapeDtypeStruct((Mp, Np), jnp.float32),
        grid=(Mp // tm, Np // tn, Kp // tk),
        in_specs=[
            pl.BlockSpec((tm, tk), lambda i, j, k: (i, k)),
            pl.BlockSpec((tk, tn), lambda i, j, k: (k, j)),
            pl.BlockSpec((1, tn), lambda i, j, k: (0, j)),
        ],
        out_specs=pl.BlockSpec((tm, tn), lambda i, j, k: (i, j)),
        scratch_shapes=[pltpu.VMEM((tm, tn), jnp.float32)],
        compiler_params=pltpu.CompilerParams(
            dimension_semantics=("parallel", "parallel", "arbitrary"),
            vmem_limit_bytes=_VMEM_LIMIT),
    )(x_p, w, b)
    return y[:M, :n_real]


# ------------------------------ Model (glue) ---------------------------------

def embed_pe(emb_p, pe_p, tokens, d_model):
    # Embedding gather + positional encoding stay as XLA glue (tiny, mem-bound);
    # emb/pe are stored pre-padded to Dp so the result is already lane-dense.
    x = jnp.take(emb_p, tokens, axis=0)                  # (B, S, Dp) f32
    x = x * math.sqrt(float(d_model)) + pe_p[None, :tokens.shape[1], :]
    return x.astype(jnp.bfloat16)


def encoder_fwd(p, src, src_mask_add, heads, d_model):
    x = embed_pe(p["emb"], p["pe"], src, d_model)
    for lp in p["layers"]:
        x = self_attn_add_norm(lp["attn"], x, src_mask_add,
                               lp["n1_a"], lp["n1_b"], heads, d_model)
        x = ffn_add_norm(lp["ff"], x, lp["n2_a"], lp["n2_b"], d_model)
    return norm_block(x, p["n_a"], p["n_b"], d_model)


def decoder_fwd(p, trg, enc_out, src_mask_add, trg_mask_add, heads, d_model):
    x = embed_pe(p["emb"], p["pe"], trg, d_model)
    for lp in p["layers"]:
        x = self_attn_add_norm(lp["attn1"], x, trg_mask_add,
                               lp["n1_a"], lp["n1_b"], heads, d_model)
        x = cross_attn_add_norm(lp["attn2"], x, enc_out, src_mask_add,
                                lp["n2_a"], lp["n2_b"], heads, d_model)
        x = ffn_add_norm(lp["ff"], x, lp["n3_a"], lp["n3_b"], d_model)
    return norm_block(x, p["n_a"], p["n_b"], d_model)


def transformer_fwd(params, src, trg, src_mask, trg_mask, heads, d_model, trg_vocab):
    B = src.shape[0]
    # Precompute additive (0 / -1e9) masks once, outside the kernels; supports
    # (B, 1, Skv) padding masks and (B, Sq, Skv) causal masks.
    src_mask_add = jnp.broadcast_to(
        jnp.where(src_mask == 0.0, _NEG_INF, 0.0).astype(jnp.float32),
        (B,) + src_mask.shape[1:])
    trg_mask_add = jnp.broadcast_to(
        jnp.where(trg_mask == 0.0, _NEG_INF, 0.0).astype(jnp.float32),
        (B,) + trg_mask.shape[1:])

    enc_out = encoder_fwd(params["encoder"], src, src_mask_add, heads, d_model)
    dec_out = decoder_fwd(params["decoder"], trg, enc_out,
                          src_mask_add, trg_mask_add, heads, d_model)
    Bd, S, Dp = dec_out.shape
    logits = logits_linear(dec_out.reshape(Bd * S, Dp),
                           params["out_w"], params["out_b"], trg_vocab)
    return logits.reshape(Bd, S, trg_vocab)


# --------------------- Parameter init (kernel-ready layouts) -----------------

def make_pe(max_seq_len, d_model, dp):
    pe = np.zeros((max_seq_len, dp), np.float32)
    pos = np.arange(max_seq_len, dtype=np.float64)[:, None]
    i = np.arange(0, d_model, 2, dtype=np.float64)
    angle = pos / (10000.0 ** (i / d_model))
    pe[:, 0:d_model:2] = np.sin(angle)
    cos_cols = np.arange(1, d_model, 2)
    pe[:, cos_cols] = np.cos(angle[:, :len(cos_cols)])
    return jnp.asarray(pe)


def _norm_params(d_model, dp):
    a = jnp.pad(jnp.ones((d_model,), jnp.float32), (0, dp - d_model)).reshape(1, dp)
    b = jnp.zeros((1, dp), jnp.float32)
    return a, b


def _init_mha(key, d_model, heads, dp):
    dk = d_model // heads
    scale = 1.0 / math.sqrt(dk)
    ks = jax.random.split(key, 4)

    def lin(k):
        kw, kb = jax.random.split(k)
        return (jax.random.normal(kw, (d_model, d_model), jnp.float32) * 0.05,
                jax.random.normal(kb, (d_model,), jnp.float32) * 0.05)

    (wq, bq), (wk, bk), (wv, bv), (wo, bo) = [lin(k) for k in ks]

    def head_in(w, b, s):
        # (D, D) -> head-major (heads, Dp, dk); scale folded into Q at prep time.
        w3 = (w * s).reshape(d_model, heads, dk).transpose(1, 0, 2)
        w3 = jnp.pad(w3, ((0, 0), (0, dp - d_model), (0, 0))).astype(jnp.bfloat16)
        b3 = (b * s).reshape(heads, 1, dk).astype(jnp.float32)
        return w3, b3

    wq3, bq3 = head_in(wq, bq, scale)
    wk3, bk3 = head_in(wk, bk, 1.0)
    wv3, bv3 = head_in(wv, bv, 1.0)
    wo3 = jnp.pad(wo.reshape(heads, dk, d_model),
                  ((0, 0), (0, 0), (0, dp - d_model))).astype(jnp.bfloat16)
    bo2 = jnp.pad(bo, (0, dp - d_model)).reshape(1, dp).astype(jnp.float32)
    return {"wq": wq3, "bq": bq3, "wk": wk3, "bk": bk3, "wv": wv3, "bv": bv3,
            "wo": wo3, "bo": bo2}


def _init_ff(key, d_model, d_ff, dp, fp):
    k1, k2, k3, k4 = jax.random.split(key, 4)
    w1 = jax.random.normal(k1, (d_model, d_ff), jnp.float32) * 0.05
    b1 = jax.random.normal(k2, (d_ff,), jnp.float32) * 0.05
    w2 = jax.random.normal(k3, (d_ff, d_model), jnp.float32) * 0.05
    b2 = jax.random.normal(k4, (d_model,), jnp.float32) * 0.05
    return {"w1": _pad2d(w1, dp, fp).astype(jnp.bfloat16),
            "b1": _pad2d(b1.reshape(1, d_ff), 1, fp).astype(jnp.float32),
            "w2": _pad2d(w2, fp, dp).astype(jnp.bfloat16),
            "b2": _pad2d(b2.reshape(1, d_model), 1, dp).astype(jnp.float32)}


def _init_enc_layer(key, d_model, heads, d_ff, dp, fp):
    k1, k2 = jax.random.split(key)
    n1a, n1b = _norm_params(d_model, dp)
    n2a, n2b = _norm_params(d_model, dp)
    return {"attn": _init_mha(k1, d_model, heads, dp),
            "ff": _init_ff(k2, d_model, d_ff, dp, fp),
            "n1_a": n1a, "n1_b": n1b, "n2_a": n2a, "n2_b": n2b}


def _init_dec_layer(key, d_model, heads, d_ff, dp, fp):
    k1, k2, k3 = jax.random.split(key, 3)
    n1a, n1b = _norm_params(d_model, dp)
    n2a, n2b = _norm_params(d_model, dp)
    n3a, n3b = _norm_params(d_model, dp)
    return {"attn1": _init_mha(k1, d_model, heads, dp),
            "attn2": _init_mha(k2, d_model, heads, dp),
            "ff": _init_ff(k3, d_model, d_ff, dp, fp),
            "n1_a": n1a, "n1_b": n1b, "n2_a": n2a, "n2_b": n2b,
            "n3_a": n3a, "n3_b": n3b}


def init_transformer(key, src_vocab, trg_vocab, d_model, N, heads, d_ff,
                     max_seq_len=80):
    dp = _round_up(d_model, 128)
    fp = _round_up(d_ff, 128)
    vp = _round_up(trg_vocab, 128)
    k_ee, k_de, k_enc, k_dec, k_ow, k_ob = jax.random.split(key, 6)
    pe = make_pe(max_seq_len, d_model, dp)

    def pad_emb(k, vocab):
        e = jax.random.normal(k, (vocab, d_model), jnp.float32) * 0.05
        return _pad2d(e, vocab, dp)

    na, nb = _norm_params(d_model, dp)
    na2, nb2 = _norm_params(d_model, dp)
    enc = {"emb": pad_emb(k_ee, src_vocab), "pe": pe,
           "layers": [_init_enc_layer(k, d_model, heads, d_ff, dp, fp)
                      for k in jax.random.split(k_enc, N)],
           "n_a": na, "n_b": nb}
    dec = {"emb": pad_emb(k_de, trg_vocab), "pe": pe,
           "layers": [_init_dec_layer(k, d_model, heads, d_ff, dp, fp)
                      for k in jax.random.split(k_dec, N)],
           "n_a": na2, "n_b": nb2}
    out_w = jax.random.normal(k_ow, (d_model, trg_vocab), jnp.float32) * 0.05
    out_b = jax.random.normal(k_ob, (trg_vocab,), jnp.float32) * 0.05
    return {"encoder": enc, "decoder": dec,
            "out_w": _pad2d(out_w, dp, vp).astype(jnp.bfloat16),
            "out_b": _pad2d(out_b.reshape(1, trg_vocab), 1, vp).astype(jnp.float32)}


# ---------------------------------- main --------------------------------------

if __name__ == "__main__":
    # TODO(synk): dropout is stochastic in the PyTorch train-mode forward; it is
    # treated as identity here (eval/inference semantics).
    src_vocab, trg_vocab = 11, 13
    d_model, N, heads, d_ff = 32, 2, 4, 64
    B, src_len, trg_len = 2, 8, 8

    key = jax.random.PRNGKey(0)
    k_params, k_src, k_trg = jax.random.split(key, 3)
    params = init_transformer(k_params, src_vocab, trg_vocab, d_model, N, heads, d_ff)

    src = jax.random.randint(k_src, (B, src_len), 0, src_vocab, dtype=jnp.int32)
    trg = jax.random.randint(k_trg, (B, trg_len), 0, trg_vocab, dtype=jnp.int32)
    # Padding mask for the source (batch 1 has two padded tokens).
    src_mask = jnp.ones((B, 1, src_len), jnp.float32).at[1, 0, -2:].set(0.0)
    # Causal (look-ahead) mask for the target, shape (B, trg_len, trg_len).
    trg_mask = jnp.broadcast_to(
        jnp.tril(jnp.ones((trg_len, trg_len), jnp.float32)),
        (B, trg_len, trg_len))

    fwd = jax.jit(functools.partial(transformer_fwd, heads=heads,
                                    d_model=d_model, trg_vocab=trg_vocab))
    out = fwd(params, src, trg, src_mask, trg_mask)
    out = jax.block_until_ready(out)

    assert out.shape == (B, trg_len, trg_vocab), out.shape
    assert bool(jnp.all(jnp.isfinite(out)))
    print("KERNEL_OK")
</pallas_src>

<mosaic_0001>
module attributes {stable_mosaic.version = 11 : i64} {
  func.func @_self_attn_kernel(%arg0: i32, %arg1: memref<1x8x128xbf16, #tpu.memory_space<vmem>>, %arg2: memref<1x8x8xf32, #tpu.memory_space<vmem>>, %arg3: memref<4x128x8xbf16, #tpu.memory_space<vmem>>, %arg4: memref<4x1x8xf32, #tpu.memory_space<vmem>>, %arg5: memref<4x128x8xbf16, #tpu.memory_space<vmem>>, %arg6: memref<4x1x8xf32, #tpu.memory_space<vmem>>, %arg7: memref<4x128x8xbf16, #tpu.memory_space<vmem>>, %arg8: memref<4x1x8xf32, #tpu.memory_space<vmem>>, %arg9: memref<4x8x128xbf16, #tpu.memory_space<vmem>>, %arg10: memref<1x128xf32, #tpu.memory_space<vmem>>, %arg11: memref<1x128xf32, #tpu.memory_space<vmem>>, %arg12: memref<1x128xf32, #tpu.memory_space<vmem>>, %arg13: memref<1x8x128xbf16, #tpu.memory_space<vmem>>) attributes {dimension_semantics = [#tpu.dimension_semantics<parallel>], iteration_bounds = array<i64: 2>, scalar_prefetch = 0 : i64, scratch_operands = 0 : i64, tpu.core_type = #tpu.core_type<tc>, window_params = [{transform_indices = @transform_0, window_bounds = array<i64: 1, 8, 128>}, {transform_indices = @transform_1, window_bounds = array<i64: 1, 8, 8>}, {pipeline_mode = #tpu.pipeline_mode<synchronous>, transform_indices = @transform_2, window_bounds = array<i64: 4, 128, 8>}, {pipeline_mode = #tpu.pipeline_mode<synchronous>, transform_indices = @transform_3, window_bounds = array<i64: 4, 1, 8>}, {pipeline_mode = #tpu.pipeline_mode<synchronous>, transform_indices = @transform_4, window_bounds = array<i64: 4, 128, 8>}, {pipeline_mode = #tpu.pipeline_mode<synchronous>, transform_indices = @transform_5, window_bounds = array<i64: 4, 1, 8>}, {pipeline_mode = #tpu.pipeline_mode<synchronous>, transform_indices = @transform_6, window_bounds = array<i64: 4, 128, 8>}, {pipeline_mode = #tpu.pipeline_mode<synchronous>, transform_indices = @transform_7, window_bounds = array<i64: 4, 1, 8>}, {pipeline_mode = #tpu.pipeline_mode<synchronous>, transform_indices = @transform_8, window_bounds = array<i64: 4, 8, 128>}, {pipeline_mode = #tpu.pipeline_mode<synchronous>, transform_indices = @transform_9, window_bounds = array<i64: 1, 128>}, {pipeline_mode = #tpu.pipeline_mode<synchronous>, transform_indices = @transform_10, window_bounds = array<i64: 1, 128>}, {pipeline_mode = #tpu.pipeline_mode<synchronous>, transform_indices = @transform_11, window_bounds = array<i64: 1, 128>}, {transform_indices = @transform_12, window_bounds = array<i64: 1, 8, 128>}]} {
    %c0 = arith.constant 0 : index
    %c0_0 = arith.constant 0 : index
    %c0_1 = arith.constant 0 : index
    %0 = vector.load %arg1[%c0, %c0_0, %c0_1] : memref<1x8x128xbf16, #tpu.memory_space<vmem>>, vector<1x8x128xbf16>
    %1 = vector.shape_cast %0 : vector<1x8x128xbf16> to vector<8x128xbf16>
    %c0_2 = arith.constant 0 : index
    %c0_3 = arith.constant 0 : index
    %c0_4 = arith.constant 0 : index
    %2 = vector.load %arg2[%c0_2, %c0_3, %c0_4] : memref<1x8x8xf32, #tpu.memory_space<vmem>>, vector<1x8x8xf32>
    %3 = vector.shape_cast %2 : vector<1x8x8xf32> to vector<8x8xf32>
    %cst = arith.constant 0.000000e+00 : f32
    %4 = vector.broadcast %cst : f32 to vector<8x128xf32>
    %c0_5 = arith.constant 0 : index
    %c0_6 = arith.constant 0 : index
    %c0_7 = arith.constant 0 : index
    %5 = vector.load %arg3[%c0_5, %c0_6, %c0_7] : memref<4x128x8xbf16, #tpu.memory_space<vmem>>, vector<1x128x8xbf16>
    %6 = vector.shape_cast %5 : vector<1x128x8xbf16> to vector<128x8xbf16>
    %cst_8 = arith.constant dense<0.000000e+00> : vector<8x8xf32>
    %7 = tpu.matmul %1, %6, %cst_8 {dimension_numbers = #tpu.dot_dimension_numbers<[1], [0], [0], [1], [0, 0, 1, 1], [], []>} : vector<8x128xbf16>, vector<128x8xbf16>, vector<8x8xf32> -> vector<8x8xf32>
    %c0_9 = arith.constant 0 : index
    %c0_10 = arith.constant 0 : index
    %c0_11 = arith.constant 0 : index
    %8 = vector.load %arg4[%c0_9, %c0_10, %c0_11] : memref<4x1x8xf32, #tpu.memory_space<vmem>>, vector<1x1x8xf32>
    %9 = vector.shape_cast %8 : vector<1x1x8xf32> to vector<1x8xf32>
    %10 = vector.broadcast %9 : vector<1x8xf32> to vector<8x8xf32>
    %11 = arith.addf %7, %10 : vector<8x8xf32>
    %c0_12 = arith.constant 0 : index
    %c0_13 = arith.constant 0 : index
    %c0_14 = arith.constant 0 : index
    %12 = vector.load %arg5[%c0_12, %c0_13, %c0_14] : memref<4x128x8xbf16, #tpu.memory_space<vmem>>, vector<1x128x8xbf16>
    %13 = vector.shape_cast %12 : vector<1x128x8xbf16> to vector<128x8xbf16>
    %cst_15 = arith.constant dense<0.000000e+00> : vector<8x8xf32>
    %14 = tpu.matmul %1, %13, %cst_15 {dimension_numbers = #tpu.dot_dimension_numbers<[1], [0], [0], [1], [0, 0, 1, 1], [], []>} : vector<8x128xbf16>, vector<128x8xbf16>, vector<8x8xf32> -> vector<8x8xf32>
    %c0_16 = arith.constant 0 : index
    %c0_17 = arith.constant 0 : index
    %c0_18 = arith.constant 0 : index
    %15 = vector.load %arg6[%c0_16, %c0_17, %c0_18] : memref<4x1x8xf32, #tpu.memory_space<vmem>>, vector<1x1x8xf32>
    %16 = vector.shape_cast %15 : vector<1x1x8xf32> to vector<1x8xf32>
    %17 = vector.broadcast %16 : vector<1x8xf32> to vector<8x8xf32>
    %18 = arith.addf %14, %17 : vector<8x8xf32>
    %c0_19 = arith.constant 0 : index
    %c0_20 = arith.constant 0 : index
    %c0_21 = arith.constant 0 : index
    %19 = vector.load %arg7[%c0_19, %c0_20, %c0_21] : memref<4x128x8xbf16, #tpu.memory_space<vmem>>, vector<1x128x8xbf16>
    %20 = vector.shape_cast %19 : vector<1x128x8xbf16> to vector<128x8xbf16>
    %cst_22 = arith.constant dense<0.000000e+00> : vector<8x8xf32>
    %21 = tpu.matmul %1, %20, %cst_22 {dimension_numbers = #tpu.dot_dimension_numbers<[1], [0], [0], [1], [0, 0, 1, 1], [], []>} : vector<8x128xbf16>, vector<128x8xbf16>, vector<8x8xf32> -> vector<8x8xf32>
    %c0_23 = arith.constant 0 : index
    %c0_24 = arith.constant 0 : index
    %c0_25 = arith.constant 0 : index
    %22 = vector.load %arg8[%c0_23, %c0_24, %c0_25] : memref<4x1x8xf32, #tpu.memory_space<vmem>>, vector<1x1x8xf32>
    %23 = vector.shape_cast %22 : vector<1x1x8xf32> to vector<1x8xf32>
    %24 = vector.broadcast %23 : vector<1x8xf32> to vector<8x8xf32>
    %25 = arith.addf %21, %24 : vector<8x8xf32>
    %26 = arith.truncf %11 : vector<8x8xf32> to vector<8x8xbf16>
    %27 = arith.truncf %18 : vector<8x8xf32> to vector<8x8xbf16>
    %cst_26 = arith.constant dense<0.000000e+00> : vector<8x8xf32>
    %28 = tpu.matmul %26, %27, %cst_26 {dimension_numbers = #tpu.dot_dimension_numbers<[1], [1], [0], [0], [0, 0, 1, 0], [], []>} : vector<8x8xbf16>, vector<8x8xbf16>, vector<8x8xf32> -> vector<8x8xf32>
    %29 = arith.addf %28, %3 : vector<8x8xf32>
    %cst_27 = arith.constant dense<0xFF800000> : vector<8xf32>
    %30 = vector.multi_reduction <maximumf>, %29, %cst_27 [1] : vector<8x8xf32> to vector<8xf32>
    %31 = vector.shape_cast %30 : vector<8xf32> to vector<8x1xf32>
    %32 = vector.broadcast %31 : vector<8x1xf32> to vector<8x8xf32>
    %33 = arith.subf %29, %32 : vector<8x8xf32>
    %34 = math.exp %33 : vector<8x8xf32>
    %cst_28 = arith.constant dense<0.000000e+00> : vector<8xf32>
    %35 = vector.multi_reduction <add>, %34, %cst_28 [1] : vector<8x8xf32> to vector<8xf32>
    %36 = vector.shape_cast %35 : vector<8xf32> to vector<8x1xf32>
    %37 = tpu.reciprocal %36 {approx = true} : vector<8x1xf32> -> vector<8x1xf32>
    %38 = vector.broadcast %37 : vector<8x1xf32> to vector<8x8xf32>
    %39 = arith.mulf %34, %38 : vector<8x8xf32>
    %40 = arith.truncf %39 : vector<8x8xf32> to vector<8x8xbf16>
    %41 = arith.truncf %25 : vector<8x8xf32> to vector<8x8xbf16>
    %cst_29 = arith.constant dense<0.000000e+00> : vector<8x8xf32>
    %42 = tpu.matmul %40, %41, %cst_29 {dimension_numbers = #tpu.dot_dimension_numbers<[1], [0], [0], [1], [0, 0, 1, 1], [], []>} : vector<8x8xbf16>, vector<8x8xbf16>, vector<8x8xf32> -> vector<8x8xf32>
    %43 = arith.truncf %42 : vector<8x8xf32> to vector<8x8xbf16>
    %c0_30 = arith.constant 0 : index
    %c0_31 = arith.constant 0 : index
    %c0_32 = arith.constant 0 : index
    %44 = vector.load %arg9[%c0_30, %c0_31, %c0_32] : memref<4x8x128xbf16, #tpu.memory_space<vmem>>, vector<1x8x128xbf16>
    %45 = vector.shape_cast %44 : vector<1x8x128xbf16> to vector<8x128xbf16>
    %cst_33 = arith.constant dense<0.000000e+00> : vector<8x128xf32>
    %46 = tpu.matmul %43, %45, %cst_33 {dimension_numbers = #tpu.dot_dimension_numbers<[1], [0], [0], [1], [0, 0, 1, 1], [], []>} : vector<8x8xbf16>, vector<8x128xbf16>, vector<8x128xf32> -> vector<8x128xf32>
    %47 = arith.addf %4, %46 : vector<8x128xf32>
    %c1 = arith.constant 1 : index
    %c0_34 = arith.constant 0 : index
    %c0_35 = arith.constant 0 : index
    %48 = vector.load %arg3[%c1, %c0_34, %c0_35] : memref<4x128x8xbf16, #tpu.memory_space<vmem>>, vector<1x128x8xbf16>
    %49 = vector.shape_cast %48 : vector<1x128x8xbf16> to vector<128x8xbf16>
    %cst_36 = arith.constant dense<0.000000e+00> : vector<8x8xf32>
    %50 = tpu.matmul %1, %49, %cst_36 {dimension_numbers = #tpu.dot_dimension_numbers<[1], [0], [0], [1], [0, 0, 1, 1], [], []>} : vector<8x128xbf16>, vector<128x8xbf16>, vector<8x8xf32> -> vector<8x8xf32>
    %c1_37 = arith.constant 1 : index
    %c0_38 = arith.constant 0 : index
    %c0_39 = arith.constant 0 : index
    %51 = vector.load %arg4[%c1_37, %c0_38, %c0_39] : memref<4x1x8xf32, #tpu.memory_space<vmem>>, vector<1x1x8xf32>
    %52 = vector.shape_cast %51 : vector<1x1x8xf32> to vector<1x8xf32>
    %53 = vector.broadcast %52 : vector<1x8xf32> to vector<8x8xf32>
    %54 = arith.addf %50, %53 : vector<8x8xf32>
    %c1_40 = arith.constant 1 : index
    %c0_41 = arith.constant 0 : index
    %c0_42 = arith.constant 0 : index
    %55 = vector.load %arg5[%c1_40, %c0_41, %c0_42] : memref<4x128x8xbf16, #tpu.memory_space<vmem>>, vector<1x128x8xbf16>
    %56 = vector.shape_cast %55 : vector<1x128x8xbf16> to vector<128x8xbf16>
    %cst_43 = arith.constant dense<0.000000e+00> : vector<8x8xf32>
    %57 = tpu.matmul %1, %56, %cst_43 {dimension_numbers = #tpu.dot_dimension_numbers<[1], [0], [0], [1], [0, 0, 1, 1], [], []>} : vector<8x128xbf16>, vector<128x8xbf16>, vector<8x8xf32> -> vector<8x8xf32>
    %c1_44 = arith.constant 1 : index
    %c0_45 = arith.constant 0 : index
    %c0_46 = arith.constant 0 : index
    %58 = vector.load %arg6[%c1_44, %c0_45, %c0_46] : memref<4x1x8xf32, #tpu.memory_space<vmem>>, vector<1x1x8xf32>
    %59 = vector.shape_cast %58 : vector<1x1x8xf32> to vector<1x8xf32>
    %60 = vector.broadcast %59 : vector<1x8xf32> to vector<8x8xf32>
    %61 = arith.addf %57, %60 : vector<8x8xf32>
    %c1_47 = arith.constant 1 : index
    %c0_48 = arith.constant 0 : index
    %c0_49 = arith.constant 0 : index
    %62 = vector.load %arg7[%c1_47, %c0_48, %c0_49] : memref<4x128x8xbf16, #tpu.memory_space<vmem>>, vector<1x128x8xbf16>
    %63 = vector.shape_cast %62 : vector<1x128x8xbf16> to vector<128x8xbf16>
    %cst_50 = arith.constant dense<0.000000e+00> : vector<8x8xf32>
    %64 = tpu.matmul %1, %63, %cst_50 {dimension_numbers = #tpu.dot_dimension_numbers<[1], [0], [0], [1], [0, 0, 1, 1], [], []>} : vector<8x128xbf16>, vector<128x8xbf16>, vector<8x8xf32> -> vector<8x8xf32>
    %c1_51 = arith.constant 1 : index
    %c0_52 = arith.constant 0 : index
    %c0_53 = arith.constant 0 : index
    %65 = vector.load %arg8[%c1_51, %c0_52, %c0_53] : memref<4x1x8xf32, #tpu.memory_space<vmem>>, vector<1x1x8xf32>
    %66 = vector.shape_cast %65 : vector<1x1x8xf32> to vector<1x8xf32>
    %67 = vector.broadcast %66 : vector<1x8xf32> to vector<8x8xf32>
    %68 = arith.addf %64, %67 : vector<8x8xf32>
    %69 = arith.truncf %54 : vector<8x8xf32> to vector<8x8xbf16>
    %70 = arith.truncf %61 : vector<8x8xf32> to vector<8x8xbf16>
    %cst_54 = arith.constant dense<0.000000e+00> : vector<8x8xf32>
    %71 = tpu.matmul %69, %70, %cst_54 {dimension_numbers = #tpu.dot_dimension_numbers<[1], [1], [0], [0], [0, 0, 1, 0], [], []>} : vector<8x8xbf16>, vector<8x8xbf16>, vector<8x8xf32> -> vector<8x8xf32>
    %72 = arith.addf %71, %3 : vector<8x8xf32>
    %cst_55 = arith.constant dense<0xFF800000> : vector<8xf32>
    %73 = vector.multi_reduction <maximumf>, %72, %cst_55 [1] : vector<8x8xf32> to vector<8xf32>
    %74 = vector.shape_cast %73 : vector<8xf32> to vector<8x1xf32>
    %75 = vector.broadcast %74 : vector<8x1xf32> to vector<8x8xf32>
    %76 = arith.subf %72, %75 : vector<8x8xf32>
    %77 = math.exp %76 : vector<8x8xf32>
    %cst_56 = arith.constant dense<0.000000e+00> : vector<8xf32>
    %78 = vector.multi_reduction <add>, %77, %cst_56 [1] : vector<8x8xf32> to vector<8xf32>
    %79 = vector.shape_cast %78 : vector<8xf32> to vector<8x1xf32>
    %80 = tpu.reciprocal %79 {approx = true} : vector<8x1xf32> -> vector<8x1xf32>
    %81 = vector.broadcast %80 : vector<8x1xf32> to vector<8x8xf32>
    %82 = arith.mulf %77, %81 : vector<8x8xf32>
    %83 = arith.truncf %82 : vector<8x8xf32> to vector<8x8xbf16>
    %84 = arith.truncf %68 : vector<8x8xf32> to vector<8x8xbf16>
    %cst_57 = arith.constant dense<0.000000e+00> : vector<8x8xf32>
    %85 = tpu.matmul %83, %84, %cst_57 {dimension_numbers = #tpu.dot_dimension_numbers<[1], [0], [0], [1], [0, 0, 1, 1], [], []>} : vector<8x8xbf16>, vector<8x8xbf16>, vector<8x8xf32> -> vector<8x8xf32>
    %86 = arith.truncf %85 : vector<8x8xf32> to vector<8x8xbf16>
    %c1_58 = arith.constant 1 : index
    %c0_59 = arith.constant 0 : index
    %c0_60 = arith.constant 0 : index
    %87 = vector.load %arg9[%c1_58, %c0_59, %c0_60] : memref<4x8x128xbf16, #tpu.memory_space<vmem>>, vector<1x8x128xbf16>
    %88 = vector.shape_cast %87 : vector<1x8x128xbf16> to vector<8x128xbf16>
    %cst_61 = arith.constant dense<0.000000e+00> : vector<8x128xf32>
    %89 = tpu.matmul %86, %88, %cst_61 {dimension_numbers = #tpu.dot_dimension_numbers<[1], [0], [0], [1], [0, 0, 1, 1], [], []>} : vector<8x8xbf16>, vector<8x128xbf16>, vector<8x128xf32> -> vector<8x128xf32>
    %90 = arith.addf %47, %89 : vector<8x128xf32>
    %c2 = arith.constant 2 : index
    %c0_62 = arith.constant 0 : index
    %c0_63 = arith.constant 0 : index
    %91 = vector.load %arg3[%c2, %c0_62, %c0_63] : memref<4x128x8xbf16, #tpu.memory_space<vmem>>, vector<1x128x8xbf16>
    %92 = vector.shape_cast %91 : vector<1x128x8xbf16> to vector<128x8xbf16>
    %cst_64 = arith.constant dense<0.000000e+00> : vector<8x8xf32>
    %93 = tpu.matmul %1, %92, %cst_64 {dimension_numbers = #tpu.dot_dimension_numbers<[1], [0], [0], [1], [0, 0, 1, 1], [], []>} : vector<8x128xbf16>, vector<128x8xbf16>, vector<8x8xf32> -> vector<8x8xf32>
    %c2_65 = arith.constant 2 : index
    %c0_66 = arith.constant 0 : index
    %c0_67 = arith.constant 0 : index
    %94 = vector.load %arg4[%c2_65, %c0_66, %c0_67] : memref<4x1x8xf32, #tpu.memory_space<vmem>>, vector<1x1x8xf32>
    %95 = vector.shape_cast %94 : vector<1x1x8xf32> to vector<1x8xf32>
    %96 = vector.broadcast %95 : vector<1x8xf32> to vector<8x8xf32>
    %97 = arith.addf %93, %96 : vector<8x8xf32>
    %c2_68 = arith.constant 2 : index
    %c0_69 = arith.constant 0 : index
    %c0_70 = arith.constant 0 : index
    %98 = vector.load %arg5[%c2_68, %c0_69, %c0_70] : memref<4x128x8xbf16, #tpu.memory_space<vmem>>, vector<1x128x8xbf16>
    %99 = vector.shape_cast %98 : vector<1x128x8xbf16> to vector<128x8xbf16>
    %cst_71 = arith.constant dense<0.000000e+00> : vector<8x8xf32>
    %100 = tpu.matmul %1, %99, %cst_71 {dimension_numbers = #tpu.dot_dimension_numbers<[1], [0], [0], [1], [0, 0, 1, 1], [], []>} : vector<8x128xbf16>, vector<128x8xbf16>, vector<8x8xf32> -> vector<8x8xf32>
    %c2_72 = arith.constant 2 : index
    %c0_73 = arith.constant 0 : index
    %c0_74 = arith.constant 0 : index
    %101 = vector.load %arg6[%c2_72, %c0_73, %c0_74] : memref<4x1x8xf32, #tpu.memory_space<vmem>>, vector<1x1x8xf32>
    %102 = vector.shape_cast %101 : vector<1x1x8xf32> to vector<1x8xf32>
    %103 = vector.broadcast %102 : vector<1x8xf32> to vector<8x8xf32>
    %104 = arith.addf %100, %103 : vector<8x8xf32>
    %c2_75 = arith.constant 2 : index
    %c0_76 = arith.constant 0 : index
    %c0_77 = arith.constant 0 : index
    %105 = vector.load %arg7[%c2_75, %c0_76, %c0_77] : memref<4x128x8xbf16, #tpu.memory_space<vmem>>, vector<1x128x8xbf16>
    %106 = vector.shape_cast %105 : vector<1x128x8xbf16> to vector<128x8xbf16>
    %cst_78 = arith.constant dense<0.000000e+00> : vector<8x8xf32>
    %107 = tpu.matmul %1, %106, %cst_78 {dimension_numbers = #tpu.dot_dimension_numbers<[1], [0], [0], [1], [0, 0, 1, 1], [], []>} : vector<8x128xbf16>, vector<128x8xbf16>, vector<8x8xf32> -> vector<8x8xf32>
    %c2_79 = arith.constant 2 : index
    %c0_80 = arith.constant 0 : index
    %c0_81 = arith.constant 0 : index
    %108 = vector.load %arg8[%c2_79, %c0_80, %c0_81] : memref<4x1x8xf32, #tpu.memory_space<vmem>>, vector<1x1x8xf32>
    %109 = vector.shape_cast %108 : vector<1x1x8xf32> to vector<1x8xf32>
    %110 = vector.broadcast %109 : vector<1x8xf32> to vector<8x8xf32>
    %111 = arith.addf %107, %110 : vector<8x8xf32>
    %112 = arith.truncf %97 : vector<8x8xf32> to vector<8x8xbf16>
    %113 = arith.truncf %104 : vector<8x8xf32> to vector<8x8xbf16>
    %cst_82 = arith.constant dense<0.000000e+00> : vector<8x8xf32>
    %114 = tpu.matmul %112, %113, %cst_82 {dimension_numbers = #tpu.dot_dimension_numbers<[1], [1], [0], [0], [0, 0, 1, 0], [], []>} : vector<8x8xbf16>, vector<8x8xbf16>, vector<8x8xf32> -> vector<8x8xf32>
    %115 = arith.addf %114, %3 : vector<8x8xf32>
    %cst_83 = arith.constant dense<0xFF800000> : vector<8xf32>
    %116 = vector.multi_reduction <maximumf>, %115, %cst_83 [1] : vector<8x8xf32> to vector<8xf32>
    %117 = vector.shape_cast %116 : vector<8xf32> to vector<8x1xf32>
    %118 = vector.broadcast %117 : vector<8x1xf32> to vector<8x8xf32>
    %119 = arith.subf %115, %118 : vector<8x8xf32>
    %120 = math.exp %119 : vector<8x8xf32>
    %cst_84 = arith.constant dense<0.000000e+00> : vector<8xf32>
    %121 = vector.multi_reduction <add>, %120, %cst_84 [1] : vector<8x8xf32> to vector<8xf32>
    %122 = vector.shape_cast %121 : vector<8xf32> to vector<8x1xf32>
    %123 = tpu.reciprocal %122 {approx = true} : vector<8x1xf32> -> vector<8x1xf32>
    %124 = vector.broadcast %123 : vector<8x1xf32> to vector<8x8xf32>
    %125 = arith.mulf %120, %124 : vector<8x8xf32>
    %126 = arith.truncf %125 : vector<8x8xf32> to vector<8x8xbf16>
    %127 = arith.truncf %111 : vector<8x8xf32> to vector<8x8xbf16>
    %cst_85 = arith.constant dense<0.000000e+00> : vector<8x8xf32>
    %128 = tpu.matmul %126, %127, %cst_85 {dimension_numbers = #tpu.dot_dimension_numbers<[1], [0], [0], [1], [0, 0, 1, 1], [], []>} : vector<8x8xbf16>, vector<8x8xbf16>, vector<8x8xf32> -> vector<8x8xf32>
    %129 = arith.truncf %128 : vector<8x8xf32> to vector<8x8xbf16>
    %c2_86 = arith.constant 2 : index
    %c0_87 = arith.constant 0 : index
    %c0_88 = arith.constant 0 : index
    %130 = vector.load %arg9[%c2_86, %c0_87, %c0_88] : memref<4x8x128xbf16, #tpu.memory_space<vmem>>, vector<1x8x128xbf16>
    %131 = vector.shape_cast %130 : vector<1x8x128xbf16> to vector<8x128xbf16>
    %cst_89 = arith.constant dense<0.000000e+00> : vector<8x128xf32>
    %132 = tpu.matmul %129, %131, %cst_89 {dimension_numbers = #tpu.dot_dimension_numbers<[1], [0], [0], [1], [0, 0, 1, 1], [], []>} : vector<8x8xbf16>, vector<8x128xbf16>, vector<8x128xf32> -> vector<8x128xf32>
    %133 = arith.addf %90, %132 : vector<8x128xf32>
    %c3 = arith.constant 3 : index
    %c0_90 = arith.constant 0 : index
    %c0_91 = arith.constant 0 : index
    %134 = vector.load %arg3[%c3, %c0_90, %c0_91] : memref<4x128x8xbf16, #tpu.memory_space<vmem>>, vector<1x128x8xbf16>
    %135 = vector.shape_cast %134 : vector<1x128x8xbf16> to vector<128x8xbf16>
    %cst_92 = arith.constant dense<0.000000e+00> : vector<8x8xf32>
    %136 = tpu.matmul %1, %135, %cst_92 {dimension_numbers = #tpu.dot_dimension_numbers<[1], [0], [0], [1], [0, 0, 1, 1], [], []>} : vector<8x128xbf16>, vector<128x8xbf16>, vector<8x8xf32> -> vector<8x8xf32>
    %c3_93 = arith.constant 3 : index
    %c0_94 = arith.constant 0 : index
    %c0_95 = arith.constant 0 : index
    %137 = vector.load %arg4[%c3_93, %c0_94, %c0_95] : memref<4x1x8xf32, #tpu.memory_space<vmem>>, vector<1x1x8xf32>
    %138 = vector.shape_cast %137 : vector<1x1x8xf32> to vector<1x8xf32>
    %139 = vector.broadcast %138 : vector<1x8xf32> to vector<8x8xf32>
    %140 = arith.addf %136, %139 : vector<8x8xf32>
    %c3_96 = arith.constant 3 : index
    %c0_97 = arith.constant 0 : index
    %c0_98 = arith.constant 0 : index
    %141 = vector.load %arg5[%c3_96, %c0_97, %c0_98] : memref<4x128x8xbf16, #tpu.memory_space<vmem>>, vector<1x128x8xbf16>
    %142 = vector.shape_cast %141 : vector<1x128x8xbf16> to vector<128x8xbf16>
    %cst_99 = arith.constant dense<0.000000e+00> : vector<8x8xf32>
    %143 = tpu.matmul %1, %142, %cst_99 {dimension_numbers = #tpu.dot_dimension_numbers<[1], [0], [0], [1], [0, 0, 1, 1], [], []>} : vector<8x128xbf16>, vector<128x8xbf16>, vector<8x8xf32> -> vector<8x8xf32>
    %c3_100 = arith.constant 3 : index
    %c0_101 = arith.constant 0 : index
    %c0_102 = arith.constant 0 : index
    %144 = vector.load %arg6[%c3_100, %c0_101, %c0_102] : memref<4x1x8xf32, #tpu.memory_space<vmem>>, vector<1x1x8xf32>
    %145 = vector.shape_cast %144 : vector<1x1x8xf32> to vector<1x8xf32>
    %146 = vector.broadcast %145 : vector<1x8xf32> to vector<8x8xf32>
    %147 = arith.addf %143, %146 : vector<8x8xf32>
    %c3_103 = arith.constant 3 : index
    %c0_104 = arith.constant 0 : index
    %c0_105 = arith.constant 0 : index
    %148 = vector.load %arg7[%c3_103, %c0_104, %c0_105] : memref<4x128x8xbf16, #tpu.memory_space<vmem>>, vector<1x128x8xbf16>
    %149 = vector.shape_cast %148 : vector<1x128x8xbf16> to vector<128x8xbf16>
    %cst_106 = arith.constant dense<0.000000e+00> : vector<8x8xf32>
    %150 = tpu.matmul %1, %149, %cst_106 {dimension_numbers = #tpu.dot_dimension_numbers<[1], [0], [0], [1], [0, 0, 1, 1], [], []>} : vector<8x128xbf16>, vector<128x8xbf16>, vector<8x8xf32> -> vector<8x8xf32>
    %c3_107 = arith.constant 3 : index
    %c0_108 = arith.constant 0 : index
    %c0_109 = arith.constant 0 : index
    %151 = vector.load %arg8[%c3_107, %c0_108, %c0_109] : memref<4x1x8xf32, #tpu.memory_space<vmem>>, vector<1x1x8xf32>
    %152 = vector.shape_cast %151 : vector<1x1x8xf32> to vector<1x8xf32>
    %153 = vector.broadcast %152 : vector<1x8xf32> to vector<8x8xf32>
    %154 = arith.addf %150, %153 : vector<8x8xf32>
    %155 = arith.truncf %140 : vector<8x8xf32> to vector<8x8xbf16>
    %156 = arith.truncf %147 : vector<8x8xf32> to vector<8x8xbf16>
    %cst_110 = arith.constant dense<0.000000e+00> : vector<8x8xf32>
    %157 = tpu.matmul %155, %156, %cst_110 {dimension_numbers = #tpu.dot_dimension_numbers<[1], [1], [0], [0], [0, 0, 1, 0], [], []>} : vector<8x8xbf16>, vector<8x8xbf16>, vector<8x8xf32> -> vector<8x8xf32>
    %158 = arith.addf %157, %3 : vector<8x8xf32>
    %cst_111 = arith.constant dense<0xFF800000> : vector<8xf32>
    %159 = vector.multi_reduction <maximumf>, %158, %cst_111 [1] : vector<8x8xf32> to vector<8xf32>
    %160 = vector.shape_cast %159 : vector<8xf32> to vector<8x1xf32>
    %161 = vector.broadcast %160 : vector<8x1xf32> to vector<8x8xf32>
    %162 = arith.subf %158, %161 : vector<8x8xf32>
    %163 = math.exp %162 : vector<8x8xf32>
    %cst_112 = arith.constant dense<0.000000e+00> : vector<8xf32>
    %164 = vector.multi_reduction <add>, %163, %cst_112 [1] : vector<8x8xf32> to vector<8xf32>
    %165 = vector.shape_cast %164 : vector<8xf32> to vector<8x1xf32>
    %166 = tpu.reciprocal %165 {approx = true} : vector<8x1xf32> -> vector<8x1xf32>
    %167 = vector.broadcast %166 : vector<8x1xf32> to vector<8x8xf32>
    %168 = arith.mulf %163, %167 : vector<8x8xf32>
    %169 = arith.truncf %168 : vector<8x8xf32> to vector<8x8xbf16>
    %170 = arith.truncf %154 : vector<8x8xf32> to vector<8x8xbf16>
    %cst_113 = arith.constant dense<0.000000e+00> : vector<8x8xf32>
    %171 = tpu.matmul %169, %170, %cst_113 {dimension_numbers = #tpu.dot_dimension_numbers<[1], [0], [0], [1], [0, 0, 1, 1], [], []>} : vector<8x8xbf16>, vector<8x8xbf16>, vector<8x8xf32> -> vector<8x8xf32>
    %172 = arith.truncf %171 : vector<8x8xf32> to vector<8x8xbf16>
    %c3_114 = arith.constant 3 : index
    %c0_115 = arith.constant 0 : index
    %c0_116 = arith.constant 0 : index
    %173 = vector.load %arg9[%c3_114, %c0_115, %c0_116] : memref<4x8x128xbf16, #tpu.memory_space<vmem>>, vector<1x8x128xbf16>
    %174 = vector.shape_cast %173 : vector<1x8x128xbf16> to vector<8x128xbf16>
    %cst_117 = arith.constant dense<0.000000e+00> : vector<8x128xf32>
    %175 = tpu.matmul %172, %174, %cst_117 {dimension_numbers = #tpu.dot_dimension_numbers<[1], [0], [0], [1], [0, 0, 1, 1], [], []>} : vector<8x8xbf16>, vector<8x128xbf16>, vector<8x128xf32> -> vector<8x128xf32>
    %176 = arith.addf %133, %175 : vector<8x128xf32>
    %c0_118 = arith.constant 0 : index
    %c0_119 = arith.constant 0 : index
    %177 = vector.load %arg10[%c0_118, %c0_119] : memref<1x128xf32, #tpu.memory_space<vmem>>, vector<1x128xf32>
    %178 = vector.broadcast %177 : vector<1x128xf32> to vector<8x128xf32>
    %179 = arith.addf %176, %178 : vector<8x128xf32>
    %180 = arith.extf %1 : vector<8x128xbf16> to vector<8x128xf32>
    %181 = arith.addf %180, %179 : vector<8x128xf32>
    %c0_120 = arith.constant 0 : index
    %c0_121 = arith.constant 0 : index
    %182 = vector.load %arg11[%c0_120, %c0_121] : memref<1x128xf32, #tpu.memory_space<vmem>>, vector<1x128xf32>
    %c0_122 = arith.constant 0 : index
    %c0_123 = arith.constant 0 : index
    %183 = vector.load %arg12[%c0_122, %c0_123] : memref<1x128xf32, #tpu.memory_space<vmem>>, vector<1x128xf32>
    %cst_124 = arith.constant dense<0.000000e+00> : vector<8xf32>
    %184 = vector.multi_reduction <add>, %181, %cst_124 [1] : vector<8x128xf32> to vector<8xf32>
    %185 = vector.shape_cast %184 : vector<8xf32> to vector<8x1xf32>
    %186 = arith.mulf %181, %181 : vector<8x128xf32>
    %cst_125 = arith.constant dense<0.000000e+00> : vector<8xf32>
    %187 = vector.multi_reduction <add>, %186, %cst_125 [1] : vector<8x128xf32> to vector<8xf32>
    %188 = vector.shape_cast %187 : vector<8xf32> to vector<8x1xf32>
    %cst_126 = arith.constant 3.125000e-02 : f32
    %189 = vector.broadcast %cst_126 : f32 to vector<8x1xf32>
    %190 = arith.mulf %185, %189 : vector<8x1xf32>
    %cst_127 = arith.constant 3.200000e+01 : f32
    %191 = vector.broadcast %cst_127 : f32 to vector<8x1xf32>
    %192 = arith.mulf %191, %190 : vector<8x1xf32>
    %193 = arith.mulf %192, %190 : vector<8x1xf32>
    %194 = arith.subf %188, %193 : vector<8x1xf32>
    %cst_128 = arith.constant 0.0322580636 : f32
    %195 = vector.broadcast %cst_128 : f32 to vector<8x1xf32>
    %196 = arith.mulf %194, %195 : vector<8x1xf32>
    %cst_129 = arith.constant 0.000000e+00 : f32
    %197 = vector.broadcast %cst_129 : f32 to vector<8x1xf32>
    %198 = arith.maximumf %196, %197 : vector<8x1xf32>
    %199 = math.sqrt %198 : vector<8x1xf32>
    %cst_130 = arith.constant 9.99999997E-7 : f32
    %200 = vector.broadcast %cst_130 : f32 to vector<8x1xf32>
    %201 = arith.addf %199, %200 : vector<8x1xf32>
    %202 = tpu.reciprocal %201 {approx = true} : vector<8x1xf32> -> vector<8x1xf32>
    %203 = vector.broadcast %190 : vector<8x1xf32> to vector<8x128xf32>
    %204 = arith.subf %181, %203 : vector<8x128xf32>
    %205 = vector.broadcast %182 : vector<1x128xf32> to vector<8x128xf32>
    %206 = arith.mulf %205, %204 : vector<8x128xf32>
    %207 = vector.broadcast %202 : vector<8x1xf32> to vector<8x128xf32>
    %208 = arith.mulf %206, %207 : vector<8x128xf32>
    %209 = vector.broadcast %183 : vector<1x128xf32> to vector<8x128xf32>
    %210 = arith.addf %208, %209 : vector<8x128xf32>
    %211 = arith.truncf %210 : vector<8x128xf32> to vector<8x128xbf16>
    %c0_131 = arith.constant 0 : index
    %c0_132 = arith.constant 0 : index
    %c0_133 = arith.constant 0 : index
    %212 = vector.load %arg13[%c0_131, %c0_132, %c0_133] : memref<1x8x128xbf16, #tpu.memory_space<vmem>>, vector<1x8x128xbf16>
    %213 = vector.shape_cast %212 : vector<1x8x128xbf16> to vector<8x128xbf16>
    %214 = vector.shape_cast %211 : vector<8x128xbf16> to vector<1x8x128xbf16>
    tpu.vector_store %arg13[%c0_131, %c0_132, %c0_133], %214 {strides = array<i32>} : memref<1x8x128xbf16, #tpu.memory_space<vmem>>, vector<1x8x128xbf16>,
    return
  }
  func.func @transform_0(%arg0: i32) -> (i32, i32, i32) {
    %c0_i32 = arith.constant 0 : i32
    %c0_i32_0 = arith.constant 0 : i32
    %c0_i32_1 = arith.constant 0 : i32
    return %arg0, %c0_i32, %c0_i32_0 : i32, i32, i32
  }
  func.func @transform_1(%arg0: i32) -> (i32, i32, i32) {
    %c0_i32 = arith.constant 0 : i32
    %c0_i32_0 = arith.constant 0 : i32
    %c0_i32_1 = arith.constant 0 : i32
    return %arg0, %c0_i32, %c0_i32_0 : i32, i32, i32
  }
  func.func @transform_2(%arg0: i32) -> (i32, i32, i32) {
    %c0_i32 = arith.constant 0 : i32
    %c0_i32_0 = arith.constant 0 : i32
    %c0_i32_1 = arith.constant 0 : i32
    %c0_i32_2 = arith.constant 0 : i32
    return %c0_i32, %c0_i32_0, %c0_i32_1 : i32, i32, i32
  }
  func.func @transform_3(%arg0: i32) -> (i32, i32, i32) {
    %c0_i32 = arith.constant 0 : i32
    %c0_i32_0 = arith.constant 0 : i32
    %c0_i32_1 = arith.constant 0 : i32
    %c0_i32_2 = arith.constant 0 : i32
    return %c0_i32, %c0_i32_0, %c0_i32_1 : i32, i32, i32
  }
  func.func @transform_4(%arg0: i32) -> (i32, i32, i32) {
    %c0_i32 = arith.constant 0 : i32
    %c0_i32_0 = arith.constant 0 : i32
    %c0_i32_1 = arith.constant 0 : i32
    %c0_i32_2 = arith.constant 0 : i32
    return %c0_i32, %c0_i32_0, %c0_i32_1 : i32, i32, i32
  }
  func.func @transform_5(%arg0: i32) -> (i32, i32, i32) {
    %c0_i32 = arith.constant 0 : i32
    %c0_i32_0 = arith.constant 0 : i32
    %c0_i32_1 = arith.constant 0 : i32
    %c0_i32_2 = arith.constant 0 : i32
    return %c0_i32, %c0_i32_0, %c0_i32_1 : i32, i32, i32
  }
  func.func @transform_6(%arg0: i32) -> (i32, i32, i32) {
    %c0_i32 = arith.constant 0 : i32
    %c0_i32_0 = arith.constant 0 : i32
    %c0_i32_1 = arith.constant 0 : i32
    %c0_i32_2 = arith.constant 0 : i32
    return %c0_i32, %c0_i32_0, %c0_i32_1 : i32, i32, i32
  }
  func.func @transform_7(%arg0: i32) -> (i32, i32, i32) {
    %c0_i32 = arith.constant 0 : i32
    %c0_i32_0 = arith.constant 0 : i32
    %c0_i32_1 = arith.constant 0 : i32
    %c0_i32_2 = arith.constant 0 : i32
    return %c0_i32, %c0_i32_0, %c0_i32_1 : i32, i32, i32
  }
  func.func @transform_8(%arg0: i32) -> (i32, i32, i32) {
    %c0_i32 = arith.constant 0 : i32
    %c0_i32_0 = arith.constant 0 : i32
    %c0_i32_1 = arith.constant 0 : i32
    %c0_i32_2 = arith.constant 0 : i32
    return %c0_i32, %c0_i32_0, %c0_i32_1 : i32, i32, i32
  }
  func.func @transform_9(%arg0: i32) -> (i32, i32) {
    %c0_i32 = arith.constant 0 : i32
    %c0_i32_0 = arith.constant 0 : i32
    %c0_i32_1 = arith.constant 0 : i32
    return %c0_i32, %c0_i32_0 : i32, i32
  }
  func.func @transform_10(%arg0: i32) -> (i32, i32) {
    %c0_i32 = arith.constant 0 : i32
    %c0_i32_0 = arith.constant 0 : i32
    %c0_i32_1 = arith.constant 0 : i32
    return %c0_i32, %c0_i32_0 : i32, i32
  }
  func.func @transform_11(%arg0: i32) -> (i32, i32) {
    %c0_i32 = arith.constant 0 : i32
    %c0_i32_0 = arith.constant 0 : i32
    %c0_i32_1 = arith.constant 0 : i32
    return %c0_i32, %c0_i32_0 : i32, i32
  }
  func.func @transform_12(%arg0: i32) -> (i32, i32, i32) {
    %c0_i32 = arith.constant 0 : i32
    %c0_i32_0 = arith.constant 0 : i32
    %c0_i32_1 = arith.constant 0 : i32
    return %arg0, %c0_i32, %c0_i32_0 : i32, i32, i32
  }
}

module attributes {stable_mosaic.version = 11 : i64} {
  func.func @_ffn_kernel(%arg0: i32, %arg1: memref<1x8x128xbf16, #tpu.memory_space<vmem>>, %arg2: memref<128x128xbf16, #tpu.memory_space<vmem>>, %arg3: memref<1x128xf32, #tpu.memory_space<vmem>>, %arg4: memref<128x128xbf16, #tpu.memory_space<vmem>>, %arg5: memref<1x128xf32, #tpu.memory_space<vmem>>, %arg6: memref<1x128xf32, #tpu.memory_space<vmem>>, %arg7: memref<1x128xf32, #tpu.memory_space<vmem>>, %arg8: memref<1x8x128xbf16, #tpu.memory_space<vmem>>) attributes {dimension_semantics = [#tpu.dimension_semantics<parallel>], iteration_bounds = array<i64: 2>, scalar_prefetch = 0 : i64, scratch_operands = 0 : i64, tpu.core_type = #tpu.core_type<tc>, window_params = [{transform_indices = @transform_0, window_bounds = array<i64: 1, 8, 128>}, {pipeline_mode = #tpu.pipeline_mode<synchronous>, transform_indices = @transform_1, window_bounds = array<i64: 128, 128>}, {pipeline_mode = #tpu.pipeline_mode<synchronous>, transform_indices = @transform_2, window_bounds = array<i64: 1, 128>}, {pipeline_mode = #tpu.pipeline_mode<synchronous>, transform_indices = @transform_3, window_bounds = array<i64: 128, 128>}, {pipeline_mode = #tpu.pipeline_mode<synchronous>, transform_indices = @transform_4, window_bounds = array<i64: 1, 128>}, {pipeline_mode = #tpu.pipeline_mode<synchronous>, transform_indices = @transform_5, window_bounds = array<i64: 1, 128>}, {pipeline_mode = #tpu.pipeline_mode<synchronous>, transform_indices = @transform_6, window_bounds = array<i64: 1, 128>}, {transform_indices = @transform_7, window_bounds = array<i64: 1, 8, 128>}]} {
    %c0 = arith.constant 0 : index
    %c0_0 = arith.constant 0 : index
    %c0_1 = arith.constant 0 : index
    %0 = vector.load %arg1[%c0, %c0_0, %c0_1] : memref<1x8x128xbf16, #tpu.memory_space<vmem>>, vector<1x8x128xbf16>
    %1 = vector.shape_cast %0 : vector<1x8x128xbf16> to vector<8x128xbf16>
    %c0_2 = arith.constant 0 : index
    %c0_3 = arith.constant 0 : index
    %2 = vector.load %arg2[%c0_2, %c0_3] : memref<128x128xbf16, #tpu.memory_space<vmem>>, vector<128x128xbf16>
    %cst = arith.constant dense<0.000000e+00> : vector<8x128xf32>
    %3 = tpu.matmul %1, %2, %cst {dimension_numbers = #tpu.dot_dimension_numbers<[1], [0], [0], [1], [0, 0, 1, 1], [], []>} : vector<8x128xbf16>, vector<128x128xbf16>, vector<8x128xf32> -> vector<8x128xf32>
    %c0_4 = arith.constant 0 : index
    %c0_5 = arith.constant 0 : index
    %4 = vector.load %arg3[%c0_4, %c0_5] : memref<1x128xf32, #tpu.memory_space<vmem>>, vector<1x128xf32>
    %5 = vector.broadcast %4 : vector<1x128xf32> to vector<8x128xf32>
    %6 = arith.addf %3, %5 : vector<8x128xf32>
    %cst_6 = arith.constant 0.000000e+00 : f32
    %7 = vector.broadcast %cst_6 : f32 to vector<8x128xf32>
    %8 = arith.maximumf %6, %7 : vector<8x128xf32>
    %9 = arith.truncf %8 : vector<8x128xf32> to vector<8x128xbf16>
    %c0_7 = arith.constant 0 : index
    %c0_8 = arith.constant 0 : index
    %10 = vector.load %arg4[%c0_7, %c0_8] : memref<128x128xbf16, #tpu.memory_space<vmem>>, vector<128x128xbf16>
    %cst_9 = arith.constant dense<0.000000e+00> : vector<8x128xf32>
    %11 = tpu.matmul %9, %10, %cst_9 {dimension_numbers = #tpu.dot_dimension_numbers<[1], [0], [0], [1], [0, 0, 1, 1], [], []>} : vector<8x128xbf16>, vector<128x128xbf16>, vector<8x128xf32> -> vector<8x128xf32>
    %c0_10 = arith.constant 0 : index
    %c0_11 = arith.constant 0 : index
    %12 = vector.load %arg5[%c0_10, %c0_11] : memref<1x128xf32, #tpu.memory_space<vmem>>, vector<1x128xf32>
    %13 = vector.broadcast %12 : vector<1x128xf32> to vector<8x128xf32>
    %14 = arith.addf %11, %13 : vector<8x128xf32>
    %15 = arith.extf %1 : vector<8x128xbf16> to vector<8x128xf32>
    %16 = arith.addf %15, %14 : vector<8x128xf32>
    %c0_12 = arith.constant 0 : index
    %c0_13 = arith.constant 0 : index
    %17 = vector.load %arg6[%c0_12, %c0_13] : memref<1x128xf32, #tpu.memory_space<vmem>>, vector<1x128xf32>
    %c0_14 = arith.constant 0 : index
    %c0_15 = arith.constant 0 : index
    %18 = vector.load %arg7[%c0_14, %c0_15] : memref<1x128xf32, #tpu.memory_space<vmem>>, vector<1x128xf32>
    %cst_16 = arith.constant dense<0.000000e+00> : vector<8xf32>
    %19 = vector.multi_reduction <add>, %16, %cst_16 [1] : vector<8x128xf32> to vector<8xf32>
    %20 = vector.shape_cast %19 : vector<8xf32> to vector<8x1xf32>
    %21 = arith.mulf %16, %16 : vector<8x128xf32>
    %cst_17 = arith.constant dense<0.000000e+00> : vector<8xf32>
    %22 = vector.multi_reduction <add>, %21, %cst_17 [1] : vector<8x128xf32> to vector<8xf32>
    %23 = vector.shape_cast %22 : vector<8xf32> to vector<8x1xf32>
    %cst_18 = arith.constant 3.125000e-02 : f32
    %24 = vector.broadcast %cst_18 : f32 to vector<8x1xf32>
    %25 = arith.mulf %20, %24 : vector<8x1xf32>
    %cst_19 = arith.constant 3.200000e+01 : f32
    %26 = vector.broadcast %cst_19 : f32 to vector<8x1xf32>
    %27 = arith.mulf %26, %25 : vector<8x1xf32>
    %28 = arith.mulf %27, %25 : vector<8x1xf32>
    %29 = arith.subf %23, %28 : vector<8x1xf32>
    %cst_20 = arith.constant 0.0322580636 : f32
    %30 = vector.broadcast %cst_20 : f32 to vector<8x1xf32>
    %31 = arith.mulf %29, %30 : vector<8x1xf32>
    %cst_21 = arith.constant 0.000000e+00 : f32
    %32 = vector.broadcast %cst_21 : f32 to vector<8x1xf32>
    %33 = arith.maximumf %31, %32 : vector<8x1xf32>
    %34 = math.sqrt %33 : vector<8x1xf32>
    %cst_22 = arith.constant 9.99999997E-7 : f32
    %35 = vector.broadcast %cst_22 : f32 to vector<8x1xf32>
    %36 = arith.addf %34, %35 : vector<8x1xf32>
    %37 = tpu.reciprocal %36 {approx = true} : vector<8x1xf32> -> vector<8x1xf32>
    %38 = vector.broadcast %25 : vector<8x1xf32> to vector<8x128xf32>
    %39 = arith.subf %16, %38 : vector<8x128xf32>
    %40 = vector.broadcast %17 : vector<1x128xf32> to vector<8x128xf32>
    %41 = arith.mulf %40, %39 : vector<8x128xf32>
    %42 = vector.broadcast %37 : vector<8x1xf32> to vector<8x128xf32>
    %43 = arith.mulf %41, %42 : vector<8x128xf32>
    %44 = vector.broadcast %18 : vector<1x128xf32> to vector<8x128xf32>
    %45 = arith.addf %43, %44 : vector<8x128xf32>
    %46 = arith.truncf %45 : vector<8x128xf32> to vector<8x128xbf16>
    %c0_23 = arith.constant 0 : index
    %c0_24 = arith.constant 0 : index
    %c0_25 = arith.constant 0 : index
    %47 = vector.load %arg8[%c0_23, %c0_24, %c0_25] : memref<1x8x128xbf16, #tpu.memory_space<vmem>>, vector<1x8x128xbf16>
    %48 = vector.shape_cast %47 : vector<1x8x128xbf16> to vector<8x128xbf16>
    %49 = vector.shape_cast %46 : vector<8x128xbf16> to vector<1x8x128xbf16>
    tpu.vector_store %arg8[%c0_23, %c0_24, %c0_25], %49 {strides = array<i32>} : memref<1x8x128xbf16, #tpu.memory_space<vmem>>, vector<1x8x128xbf16>,
    return
  }
  func.func @transform_0(%arg0: i32) -> (i32, i32, i32) {
    %c0_i32 = arith.constant 0 : i32
    %c0_i32_0 = arith.constant 0 : i32
    %c0_i32_1 = arith.constant 0 : i32
    return %arg0, %c0_i32, %c0_i32_0 : i32, i32, i32
  }
  func.func @transform_1(%arg0: i32) -> (i32, i32) {
    %c0_i32 = arith.constant 0 : i32
    %c0_i32_0 = arith.constant 0 : i32
    %c0_i32_1 = arith.constant 0 : i32
    return %c0_i32, %c0_i32_0 : i32, i32
  }
  func.func @transform_2(%arg0: i32) -> (i32, i32) {
    %c0_i32 = arith.constant 0 : i32
    %c0_i32_0 = arith.constant 0 : i32
    %c0_i32_1 = arith.constant 0 : i32
    return %c0_i32, %c0_i32_0 : i32, i32
  }
  func.func @transform_3(%arg0: i32) -> (i32, i32) {
    %c0_i32 = arith.constant 0 : i32
    %c0_i32_0 = arith.constant 0 : i32
    %c0_i32_1 = arith.constant 0 : i32
    return %c0_i32, %c0_i32_0 : i32, i32
  }
  func.func @transform_4(%arg0: i32) -> (i32, i32) {
    %c0_i32 = arith.constant 0 : i32
    %c0_i32_0 = arith.constant 0 : i32
    %c0_i32_1 = arith.constant 0 : i32
    return %c0_i32, %c0_i32_0 : i32, i32
  }
  func.func @transform_5(%arg0: i32) -> (i32, i32) {
    %c0_i32 = arith.constant 0 : i32
    %c0_i32_0 = arith.constant 0 : i32
    %c0_i32_1 = arith.constant 0 : i32
    return %c0_i32, %c0_i32_0 : i32, i32
  }
  func.func @transform_6(%arg0: i32) -> (i32, i32) {
    %c0_i32 = arith.constant 0 : i32
    %c0_i32_0 = arith.constant 0 : i32
    %c0_i32_1 = arith.constant 0 : i32
    return %c0_i32, %c0_i32_0 : i32, i32
  }
  func.func @transform_7(%arg0: i32) -> (i32, i32, i32) {
    %c0_i32 = arith.constant 0 : i32
    %c0_i32_0 = arith.constant 0 : i32
    %c0_i32_1 = arith.constant 0 : i32
    return %arg0, %c0_i32, %c0_i32_0 : i32, i32, i32
  }
}

module attributes {stable_mosaic.version = 11 : i64} {
  func.func @_norm_kernel(%arg0: i32, %arg1: memref<1x8x128xbf16, #tpu.memory_space<vmem>>, %arg2: memref<1x128xf32, #tpu.memory_space<vmem>>, %arg3: memref<1x128xf32, #tpu.memory_space<vmem>>, %arg4: memref<1x8x128xbf16, #tpu.memory_space<vmem>>) attributes {dimension_semantics = [#tpu.dimension_semantics<parallel>], iteration_bounds = array<i64: 2>, scalar_prefetch = 0 : i64, scratch_operands = 0 : i64, tpu.core_type = #tpu.core_type<tc>, window_params = [{transform_indices = @transform_0, window_bounds = array<i64: 1, 8, 128>}, {pipeline_mode = #tpu.pipeline_mode<synchronous>, transform_indices = @transform_1, window_bounds = array<i64: 1, 128>}, {pipeline_mode = #tpu.pipeline_mode<synchronous>, transform_indices = @transform_2, window_bounds = array<i64: 1, 128>}, {transform_indices = @transform_3, window_bounds = array<i64: 1, 8, 128>}]} {
    %c0 = arith.constant 0 : index
    %c0_0 = arith.constant 0 : index
    %c0_1 = arith.constant 0 : index
    %0 = vector.load %arg1[%c0, %c0_0, %c0_1] : memref<1x8x128xbf16, #tpu.memory_space<vmem>>, vector<1x8x128xbf16>
    %1 = vector.shape_cast %0 : vector<1x8x128xbf16> to vector<8x128xbf16>
    %2 = arith.extf %1 : vector<8x128xbf16> to vector<8x128xf32>
    %c0_2 = arith.constant 0 : index
    %c0_3 = arith.constant 0 : index
    %3 = vector.load %arg2[%c0_2, %c0_3] : memref<1x128xf32, #tpu.memory_space<vmem>>, vector<1x128xf32>
    %c0_4 = arith.constant 0 : index
    %c0_5 = arith.constant 0 : index
    %4 = vector.load %arg3[%c0_4, %c0_5] : memref<1x128xf32, #tpu.memory_space<vmem>>, vector<1x128xf32>
    %cst = arith.constant dense<0.000000e+00> : vector<8xf32>
    %5 = vector.multi_reduction <add>, %2, %cst [1] : vector<8x128xf32> to vector<8xf32>
    %6 = vector.shape_cast %5 : vector<8xf32> to vector<8x1xf32>
    %7 = arith.mulf %2, %2 : vector<8x128xf32>
    %cst_6 = arith.constant dense<0.000000e+00> : vector<8xf32>
    %8 = vector.multi_reduction <add>, %7, %cst_6 [1] : vector<8x128xf32> to vector<8xf32>
    %9 = vector.shape_cast %8 : vector<8xf32> to vector<8x1xf32>
    %cst_7 = arith.constant 3.125000e-02 : f32
    %10 = vector.broadcast %cst_7 : f32 to vector<8x1xf32>
    %11 = arith.mulf %6, %10 : vector<8x1xf32>
    %cst_8 = arith.constant 3.200000e+01 : f32
    %12 = vector.broadcast %cst_8 : f32 to vector<8x1xf32>
    %13 = arith.mulf %12, %11 : vector<8x1xf32>
    %14 = arith.mulf %13, %11 : vector<8x1xf32>
    %15 = arith.subf %9, %14 : vector<8x1xf32>
    %cst_9 = arith.constant 0.0322580636 : f32
    %16 = vector.broadcast %cst_9 : f32 to vector<8x1xf32>
    %17 = arith.mulf %15, %16 : vector<8x1xf32>
    %cst_10 = arith.constant 0.000000e+00 : f32
    %18 = vector.broadcast %cst_10 : f32 to vector<8x1xf32>
    %19 = arith.maximumf %17, %18 : vector<8x1xf32>
    %20 = math.sqrt %19 : vector<8x1xf32>
    %cst_11 = arith.constant 9.99999997E-7 : f32
    %21 = vector.broadcast %cst_11 : f32 to vector<8x1xf32>
    %22 = arith.addf %20, %21 : vector<8x1xf32>
    %23 = tpu.reciprocal %22 {approx = true} : vector<8x1xf32> -> vector<8x1xf32>
    %24 = vector.broadcast %11 : vector<8x1xf32> to vector<8x128xf32>
    %25 = arith.subf %2, %24 : vector<8x128xf32>
    %26 = vector.broadcast %3 : vector<1x128xf32> to vector<8x128xf32>
    %27 = arith.mulf %26, %25 : vector<8x128xf32>
    %28 = vector.broadcast %23 : vector<8x1xf32> to vector<8x128xf32>
    %29 = arith.mulf %27, %28 : vector<8x128xf32>
    %30 = vector.broadcast %4 : vector<1x128xf32> to vector<8x128xf32>
    %31 = arith.addf %29, %30 : vector<8x128xf32>
    %32 = arith.truncf %31 : vector<8x128xf32> to vector<8x128xbf16>
    %c0_12 = arith.constant 0 : index
    %c0_13 = arith.constant 0 : index
    %c0_14 = arith.constant 0 : index
    %33 = vector.load %arg4[%c0_12, %c0_13, %c0_14] : memref<1x8x128xbf16, #tpu.memory_space<vmem>>, vector<1x8x128xbf16>
    %34 = vector.shape_cast %33 : vector<1x8x128xbf16> to vector<8x128xbf16>
    %35 = vector.shape_cast %32 : vector<8x128xbf16> to vector<1x8x128xbf16>
    tpu.vector_store %arg4[%c0_12, %c0_13, %c0_14], %35 {strides = array<i32>} : memref<1x8x128xbf16, #tpu.memory_space<vmem>>, vector<1x8x128xbf16>,
    return
  }
  func.func @transform_0(%arg0: i32) -> (i32, i32, i32) {
    %c0_i32 = arith.constant 0 : i32
    %c0_i32_0 = arith.constant 0 : i32
    %c0_i32_1 = arith.constant 0 : i32
    return %arg0, %c0_i32, %c0_i32_0 : i32, i32, i32
  }
  func.func @transform_1(%arg0: i32) -> (i32, i32) {
    %c0_i32 = arith.constant 0 : i32
    %c0_i32_0 = arith.constant 0 : i32
    %c0_i32_1 = arith.constant 0 : i32
    return %c0_i32, %c0_i32_0 : i32, i32
  }
  func.func @transform_2(%arg0: i32) -> (i32, i32) {
    %c0_i32 = arith.constant 0 : i32
    %c0_i32_0 = arith.constant 0 : i32
    %c0_i32_1 = arith.constant 0 : i32
    return %c0_i32, %c0_i32_0 : i32, i32
  }
  func.func @transform_3(%arg0: i32) -> (i32, i32, i32) {
    %c0_i32 = arith.constant 0 : i32
    %c0_i32_0 = arith.constant 0 : i32
    %c0_i32_1 = arith.constant 0 : i32
    return %arg0, %c0_i32, %c0_i32_0 : i32, i32, i32
  }
}

module attributes {stable_mosaic.version = 11 : i64} {
  func.func @_self_attn_kernel(%arg0: i32, %arg1: memref<1x8x128xbf16, #tpu.memory_space<vmem>>, %arg2: memref<1x1x8xf32, #tpu.memory_space<vmem>>, %arg3: memref<4x128x8xbf16, #tpu.memory_space<vmem>>, %arg4: memref<4x1x8xf32, #tpu.memory_space<vmem>>, %arg5: memref<4x128x8xbf16, #tpu.memory_space<vmem>>, %arg6: memref<4x1x8xf32, #tpu.memory_space<vmem>>, %arg7: memref<4x128x8xbf16, #tpu.memory_space<vmem>>, %arg8: memref<4x1x8xf32, #tpu.memory_space<vmem>>, %arg9: memref<4x8x128xbf16, #tpu.memory_space<vmem>>, %arg10: memref<1x128xf32, #tpu.memory_space<vmem>>, %arg11: memref<1x128xf32, #tpu.memory_space<vmem>>, %arg12: memref<1x128xf32, #tpu.memory_space<vmem>>, %arg13: memref<1x8x128xbf16, #tpu.memory_space<vmem>>) attributes {dimension_semantics = [#tpu.dimension_semantics<parallel>], iteration_bounds = array<i64: 2>, scalar_prefetch = 0 : i64, scratch_operands = 0 : i64, tpu.core_type = #tpu.core_type<tc>, window_params = [{transform_indices = @transform_0, window_bounds = array<i64: 1, 8, 128>}, {transform_indices = @transform_1, window_bounds = array<i64: 1, 1, 8>}, {pipeline_mode = #tpu.pipeline_mode<synchronous>, transform_indices = @transform_2, window_bounds = array<i64: 4, 128, 8>}, {pipeline_mode = #tpu.pipeline_mode<synchronous>, transform_indices = @transform_3, window_bounds = array<i64: 4, 1, 8>}, {pipeline_mode = #tpu.pipeline_mode<synchronous>, transform_indices = @transform_4, window_bounds = array<i64: 4, 128, 8>}, {pipeline_mode = #tpu.pipeline_mode<synchronous>, transform_indices = @transform_5, window_bounds = array<i64: 4, 1, 8>}, {pipeline_mode = #tpu.pipeline_mode<synchronous>, transform_indices = @transform_6, window_bounds = array<i64: 4, 128, 8>}, {pipeline_mode = #tpu.pipeline_mode<synchronous>, transform_indices = @transform_7, window_bounds = array<i64: 4, 1, 8>}, {pipeline_mode = #tpu.pipeline_mode<synchronous>, transform_indices = @transform_8, window_bounds = array<i64: 4, 8, 128>}, {pipeline_mode = #tpu.pipeline_mode<synchronous>, transform_indices = @transform_9, window_bounds = array<i64: 1, 128>}, {pipeline_mode = #tpu.pipeline_mode<synchronous>, transform_indices = @transform_10, window_bounds = array<i64: 1, 128>}, {pipeline_mode = #tpu.pipeline_mode<synchronous>, transform_indices = @transform_11, window_bounds = array<i64: 1, 128>}, {transform_indices = @transform_12, window_bounds = array<i64: 1, 8, 128>}]} {
    %c0 = arith.constant 0 : index
    %c0_0 = arith.constant 0 : index
    %c0_1 = arith.constant 0 : index
    %0 = vector.load %arg1[%c0, %c0_0, %c0_1] : memref<1x8x128xbf16, #tpu.memory_space<vmem>>, vector<1x8x128xbf16>
    %1 = vector.shape_cast %0 : vector<1x8x128xbf16> to vector<8x128xbf16>
    %c0_2 = arith.constant 0 : index
    %c0_3 = arith.constant 0 : index
    %c0_4 = arith.constant 0 : index
    %2 = vector.load %arg2[%c0_2, %c0_3, %c0_4] : memref<1x1x8xf32, #tpu.memory_space<vmem>>, vector<1x1x8xf32>
    %3 = vector.shape_cast %2 : vector<1x1x8xf32> to vector<1x8xf32>
    %cst = arith.constant 0.000000e+00 : f32
    %4 = vector.broadcast %cst : f32 to vector<8x128xf32>
    %c0_5 = arith.constant 0 : index
    %c0_6 = arith.constant 0 : index
    %c0_7 = arith.constant 0 : index
    %5 = vector.load %arg3[%c0_5, %c0_6, %c0_7] : memref<4x128x8xbf16, #tpu.memory_space<vmem>>, vector<1x128x8xbf16>
    %6 = vector.shape_cast %5 : vector<1x128x8xbf16> to vector<128x8xbf16>
    %cst_8 = arith.constant dense<0.000000e+00> : vector<8x8xf32>
    %7 = tpu.matmul %1, %6, %cst_8 {dimension_numbers = #tpu.dot_dimension_numbers<[1], [0], [0], [1], [0, 0, 1, 1], [], []>} : vector<8x128xbf16>, vector<128x8xbf16>, vector<8x8xf32> -> vector<8x8xf32>
    %c0_9 = arith.constant 0 : index
    %c0_10 = arith.constant 0 : index
    %c0_11 = arith.constant 0 : index
    %8 = vector.load %arg4[%c0_9, %c0_10, %c0_11] : memref<4x1x8xf32, #tpu.memory_space<vmem>>, vector<1x1x8xf32>
    %9 = vector.shape_cast %8 : vector<1x1x8xf32> to vector<1x8xf32>
    %10 = vector.broadcast %9 : vector<1x8xf32> to vector<8x8xf32>
    %11 = arith.addf %7, %10 : vector<8x8xf32>
    %c0_12 = arith.constant 0 : index
    %c0_13 = arith.constant 0 : index
    %c0_14 = arith.constant 0 : index
    %12 = vector.load %arg5[%c0_12, %c0_13, %c0_14] : memref<4x128x8xbf16, #tpu.memory_space<vmem>>, vector<1x128x8xbf16>
    %13 = vector.shape_cast %12 : vector<1x128x8xbf16> to vector<128x8xbf16>
    %cst_15 = arith.constant dense<0.000000e+00> : vector<8x8xf32>
    %14 = tpu.matmul %1, %13, %cst_15 {dimension_numbers = #tpu.dot_dimension_numbers<[1], [0], [0], [1], [0, 0, 1, 1], [], []>} : vector<8x128xbf16>, vector<128x8xbf16>, vector<8x8xf32> -> vector<8x8xf32>
    %c0_16 = arith.constant 0 : index
    %c0_17 = arith.constant 0 : index
    %c0_18 = arith.constant 0 : index
    %15 = vector.load %arg6[%c0_16, %c0_17, %c0_18] : memref<4x1x8xf32, #tpu.memory_space<vmem>>, vector<1x1x8xf32>
    %16 = vector.shape_cast %15 : vector<1x1x8xf32> to vector<1x8xf32>
    %17 = vector.broadcast %16 : vector<1x8xf32> to vector<8x8xf32>
    %18 = arith.addf %14, %17 : vector<8x8xf32>
    %c0_19 = arith.constant 0 : index
    %c0_20 = arith.constant 0 : index
    %c0_21 = arith.constant 0 : index
    %19 = vector.load %arg7[%c0_19, %c0_20, %c0_21] : memref<4x128x8xbf16, #tpu.memory_space<vmem>>, vector<1x128x8xbf16>
    %20 = vector.shape_cast %19 : vector<1x128x8xbf16> to vector<128x8xbf16>
    %cst_22 = arith.constant dense<0.000000e+00> : vector<8x8xf32>
    %21 = tpu.matmul %1, %20, %cst_22 {dimension_numbers = #tpu.dot_dimension_numbers<[1], [0], [0], [1], [0, 0, 1, 1], [], []>} : vector<8x128xbf16>, vector<128x8xbf16>, vector<8x8xf32> -> vector<8x8xf32>
    %c0_23 = arith.constant 0 : index
    %c0_24 = arith.constant 0 : index
    %c0_25 = arith.constant 0 : index
    %22 = vector.load %arg8[%c0_23, %c0_24, %c0_25] : memref<4x1x8xf32, #tpu.memory_space<vmem>>, vector<1x1x8xf32>
    %23 = vector.shape_cast %22 : vector<1x1x8xf32> to vector<1x8xf32>
    %24 = vector.broadcast %23 : vector<1x8xf32> to vector<8x8xf32>
    %25 = arith.addf %21, %24 : vector<8x8xf32>
    %26 = arith.truncf %11 : vector<8x8xf32> to vector<8x8xbf16>
    %27 = arith.truncf %18 : vector<8x8xf32> to vector<8x8xbf16>
    %cst_26 = arith.constant dense<0.000000e+00> : vector<8x8xf32>
    %28 = tpu.matmul %26, %27, %cst_26 {dimension_numbers = #tpu.dot_dimension_numbers<[1], [1], [0], [0], [0, 0, 1, 0], [], []>} : vector<8x8xbf16>, vector<8x8xbf16>, vector<8x8xf32> -> vector<8x8xf32>
    %29 = vector.broadcast %3 : vector<1x8xf32> to vector<8x8xf32>
    %30 = arith.addf %28, %29 : vector<8x8xf32>
    %cst_27 = arith.constant dense<0xFF800000> : vector<8xf32>
    %31 = vector.multi_reduction <maximumf>, %30, %cst_27 [1] : vector<8x8xf32> to vector<8xf32>
    %32 = vector.shape_cast %31 : vector<8xf32> to vector<8x1xf32>
    %33 = vector.broadcast %32 : vector<8x1xf32> to vector<8x8xf32>
    %34 = arith.subf %30, %33 : vector<8x8xf32>
    %35 = math.exp %34 : vector<8x8xf32>
    %cst_28 = arith.constant dense<0.000000e+00> : vector<8xf32>
    %36 = vector.multi_reduction <add>, %35, %cst_28 [1] : vector<8x8xf32> to vector<8xf32>
    %37 = vector.shape_cast %36 : vector<8xf32> to vector<8x1xf32>
    %38 = tpu.reciprocal %37 {approx = true} : vector<8x1xf32> -> vector<8x1xf32>
    %39 = vector.broadcast %38 : vector<8x1xf32> to vector<8x8xf32>
    %40 = arith.mulf %35, %39 : vector<8x8xf32>
    %41 = arith.truncf %40 : vector<8x8xf32> to vector<8x8xbf16>
    %42 = arith.truncf %25 : vector<8x8xf32> to vector<8x8xbf16>
    %cst_29 = arith.constant dense<0.000000e+00> : vector<8x8xf32>
    %43 = tpu.matmul %41, %42, %cst_29 {dimension_numbers = #tpu.dot_dimension_numbers<[1], [0], [0], [1], [0, 0, 1, 1], [], []>} : vector<8x8xbf16>, vector<8x8xbf16>, vector<8x8xf32> -> vector<8x8xf32>
    %44 = arith.truncf %43 : vector<8x8xf32> to vector<8x8xbf16>
    %c0_30 = arith.constant 0 : index
    %c0_31 = arith.constant 0 : index
    %c0_32 = arith.constant 0 : index
    %45 = vector.load %arg9[%c0_30, %c0_31, %c0_32] : memref<4x8x128xbf16, #tpu.memory_space<vmem>>, vector<1x8x128xbf16>
    %46 = vector.shape_cast %45 : vector<1x8x128xbf16> to vector<8x128xbf16>
    %cst_33 = arith.constant dense<0.000000e+00> : vector<8x128xf32>
    %47 = tpu.matmul %44, %46, %cst_33 {dimension_numbers = #tpu.dot_dimension_numbers<[1], [0], [0], [1], [0, 0, 1, 1], [], []>} : vector<8x8xbf16>, vector<8x128xbf16>, vector<8x128xf32> -> vector<8x128xf32>
    %48 = arith.addf %4, %47 : vector<8x128xf32>
    %c1 = arith.constant 1 : index
    %c0_34 = arith.constant 0 : index
    %c0_35 = arith.constant 0 : index
    %49 = vector.load %arg3[%c1, %c0_34, %c0_35] : memref<4x128x8xbf16, #tpu.memory_space<vmem>>, vector<1x128x8xbf16>
    %50 = vector.shape_cast %49 : vector<1x128x8xbf16> to vector<128x8xbf16>
    %cst_36 = arith.constant dense<0.000000e+00> : vector<8x8xf32>
    %51 = tpu.matmul %1, %50, %cst_36 {dimension_numbers = #tpu.dot_dimension_numbers<[1], [0], [0], [1], [0, 0, 1, 1], [], []>} : vector<8x128xbf16>, vector<128x8xbf16>, vector<8x8xf32> -> vector<8x8xf32>
    %c1_37 = arith.constant 1 : index
    %c0_38 = arith.constant 0 : index
    %c0_39 = arith.constant 0 : index
    %52 = vector.load %arg4[%c1_37, %c0_38, %c0_39] : memref<4x1x8xf32, #tpu.memory_space<vmem>>, vector<1x1x8xf32>
    %53 = vector.shape_cast %52 : vector<1x1x8xf32> to vector<1x8xf32>
    %54 = vector.broadcast %53 : vector<1x8xf32> to vector<8x8xf32>
    %55 = arith.addf %51, %54 : vector<8x8xf32>
    %c1_40 = arith.constant 1 : index
    %c0_41 = arith.constant 0 : index
    %c0_42 = arith.constant 0 : index
    %56 = vector.load %arg5[%c1_40, %c0_41, %c0_42] : memref<4x128x8xbf16, #tpu.memory_space<vmem>>, vector<1x128x8xbf16>
    %57 = vector.shape_cast %56 : vector<1x128x8xbf16> to vector<128x8xbf16>
    %cst_43 = arith.constant dense<0.000000e+00> : vector<8x8xf32>
    %58 = tpu.matmul %1, %57, %cst_43 {dimension_numbers = #tpu.dot_dimension_numbers<[1], [0], [0], [1], [0, 0, 1, 1], [], []>} : vector<8x128xbf16>, vector<128x8xbf16>, vector<8x8xf32> -> vector<8x8xf32>
    %c1_44 = arith.constant 1 : index
    %c0_45 = arith.constant 0 : index
    %c0_46 = arith.constant 0 : index
    %59 = vector.load %arg6[%c1_44, %c0_45, %c0_46] : memref<4x1x8xf32, #tpu.memory_space<vmem>>, vector<1x1x8xf32>
    %60 = vector.shape_cast %59 : vector<1x1x8xf32> to vector<1x8xf32>
    %61 = vector.broadcast %60 : vector<1x8xf32> to vector<8x8xf32>
    %62 = arith.addf %58, %61 : vector<8x8xf32>
    %c1_47 = arith.constant 1 : index
    %c0_48 = arith.constant 0 : index
    %c0_49 = arith.constant 0 : index
    %63 = vector.load %arg7[%c1_47, %c0_48, %c0_49] : memref<4x128x8xbf16, #tpu.memory_space<vmem>>, vector<1x128x8xbf16>
    %64 = vector.shape_cast %63 : vector<1x128x8xbf16> to vector<128x8xbf16>
    %cst_50 = arith.constant dense<0.000000e+00> : vector<8x8xf32>
    %65 = tpu.matmul %1, %64, %cst_50 {dimension_numbers = #tpu.dot_dimension_numbers<[1], [0], [0], [1], [0, 0, 1, 1], [], []>} : vector<8x128xbf16>, vector<128x8xbf16>, vector<8x8xf32> -> vector<8x8xf32>
    %c1_51 = arith.constant 1 : index
    %c0_52 = arith.constant 0 : index
    %c0_53 = arith.constant 0 : index
    %66 = vector.load %arg8[%c1_51, %c0_52, %c0_53] : memref<4x1x8xf32, #tpu.memory_space<vmem>>, vector<1x1x8xf32>
    %67 = vector.shape_cast %66 : vector<1x1x8xf32> to vector<1x8xf32>
    %68 = vector.broadcast %67 : vector<1x8xf32> to vector<8x8xf32>
    %69 = arith.addf %65, %68 : vector<8x8xf32>
    %70 = arith.truncf %55 : vector<8x8xf32> to vector<8x8xbf16>
    %71 = arith.truncf %62 : vector<8x8xf32> to vector<8x8xbf16>
    %cst_54 = arith.constant dense<0.000000e+00> : vector<8x8xf32>
    %72 = tpu.matmul %70, %71, %cst_54 {dimension_numbers = #tpu.dot_dimension_numbers<[1], [1], [0], [0], [0, 0, 1, 0], [], []>} : vector<8x8xbf16>, vector<8x8xbf16>, vector<8x8xf32> -> vector<8x8xf32>
    %73 = vector.broadcast %3 : vector<1x8xf32> to vector<8x8xf32>
    %74 = arith.addf %72, %73 : vector<8x8xf32>
    %cst_55 = arith.constant dense<0xFF800000> : vector<8xf32>
    %75 = vector.multi_reduction <maximumf>, %74, %cst_55 [1] : vector<8x8xf32> to vector<8xf32>
    %76 = vector.shape_cast %75 : vector<8xf32> to vector<8x1xf32>
    %77 = vector.broadcast %76 : vector<8x1xf32> to vector<8x8xf32>
    %78 = arith.subf %74, %77 : vector<8x8xf32>
    %79 = math.exp %78 : vector<8x8xf32>
    %cst_56 = arith.constant dense<0.000000e+00> : vector<8xf32>
    %80 = vector.multi_reduction <add>, %79, %cst_56 [1] : vector<8x8xf32> to vector<8xf32>
    %81 = vector.shape_cast %80 : vector<8xf32> to vector<8x1xf32>
    %82 = tpu.reciprocal %81 {approx = true} : vector<8x1xf32> -> vector<8x1xf32>
    %83 = vector.broadcast %82 : vector<8x1xf32> to vector<8x8xf32>
    %84 = arith.mulf %79, %83 : vector<8x8xf32>
    %85 = arith.truncf %84 : vector<8x8xf32> to vector<8x8xbf16>
    %86 = arith.truncf %69 : vector<8x8xf32> to vector<8x8xbf16>
    %cst_57 = arith.constant dense<0.000000e+00> : vector<8x8xf32>
    %87 = tpu.matmul %85, %86, %cst_57 {dimension_numbers = #tpu.dot_dimension_numbers<[1], [0], [0], [1], [0, 0, 1, 1], [], []>} : vector<8x8xbf16>, vector<8x8xbf16>, vector<8x8xf32> -> vector<8x8xf32>
    %88 = arith.truncf %87 : vector<8x8xf32> to vector<8x8xbf16>
    %c1_58 = arith.constant 1 : index
    %c0_59 = arith.constant 0 : index
    %c0_60 = arith.constant 0 : index
    %89 = vector.load %arg9[%c1_58, %c0_59, %c0_60] : memref<4x8x128xbf16, #tpu.memory_space<vmem>>, vector<1x8x128xbf16>
    %90 = vector.shape_cast %89 : vector<1x8x128xbf16> to vector<8x128xbf16>
    %cst_61 = arith.constant dense<0.000000e+00> : vector<8x128xf32>
    %91 = tpu.matmul %88, %90, %cst_61 {dimension_numbers = #tpu.dot_dimension_numbers<[1], [0], [0], [1], [0, 0, 1, 1], [], []>} : vector<8x8xbf16>, vector<8x128xbf16>, vector<8x128xf32> -> vector<8x128xf32>
    %92 = arith.addf %48, %91 : vector<8x128xf32>
    %c2 = arith.constant 2 : index
    %c0_62 = arith.constant 0 : index
    %c0_63 = arith.constant 0 : index
    %93 = vector.load %arg3[%c2, %c0_62, %c0_63] : memref<4x128x8xbf16, #tpu.memory_space<vmem>>, vector<1x128x8xbf16>
    %94 = vector.shape_cast %93 : vector<1x128x8xbf16> to vector<128x8xbf16>
    %cst_64 = arith.constant dense<0.000000e+00> : vector<8x8xf32>
    %95 = tpu.matmul %1, %94, %cst_64 {dimension_numbers = #tpu.dot_dimension_numbers<[1], [0], [0], [1], [0, 0, 1, 1], [], []>} : vector<8x128xbf16>, vector<128x8xbf16>, vector<8x8xf32> -> vector<8x8xf32>
    %c2_65 = arith.constant 2 : index
    %c0_66 = arith.constant 0 : index
    %c0_67 = arith.constant 0 : index
    %96 = vector.load %arg4[%c2_65, %c0_66, %c0_67] : memref<4x1x8xf32, #tpu.memory_space<vmem>>, vector<1x1x8xf32>
    %97 = vector.shape_cast %96 : vector<1x1x8xf32> to vector<1x8xf32>
    %98 = vector.broadcast %97 : vector<1x8xf32> to vector<8x8xf32>
    %99 = arith.addf %95, %98 : vector<8x8xf32>
    %c2_68 = arith.constant 2 : index
    %c0_69 = arith.constant 0 : index
    %c0_70 = arith.constant 0 : index
    %100 = vector.load %arg5[%c2_68, %c0_69, %c0_70] : memref<4x128x8xbf16, #tpu.memory_space<vmem>>, vector<1x128x8xbf16>
    %101 = vector.shape_cast %100 : vector<1x128x8xbf16> to vector<128x8xbf16>
    %cst_71 = arith.constant dense<0.000000e+00> : vector<8x8xf32>
    %102 = tpu.matmul %1, %101, %cst_71 {dimension_numbers = #tpu.dot_dimension_numbers<[1], [0], [0], [1], [0, 0, 1, 1], [], []>} : vector<8x128xbf16>, vector<128x8xbf16>, vector<8x8xf32> -> vector<8x8xf32>
    %c2_72 = arith.constant 2 : index
    %c0_73 = arith.constant 0 : index
    %c0_74 = arith.constant 0 : index
    %103 = vector.load %arg6[%c2_72, %c0_73, %c0_74] : memref<4x1x8xf32, #tpu.memory_space<vmem>>, vector<1x1x8xf32>
    %104 = vector.shape_cast %103 : vector<1x1x8xf32> to vector<1x8xf32>
    %105 = vector.broadcast %104 : vector<1x8xf32> to vector<8x8xf32>
    %106 = arith.addf %102, %105 : vector<8x8xf32>
    %c2_75 = arith.constant 2 : index
    %c0_76 = arith.constant 0 : index
    %c0_77 = arith.constant 0 : index
    %107 = vector.load %arg7[%c2_75, %c0_76, %c0_77] : memref<4x128x8xbf16, #tpu.memory_space<vmem>>, vector<1x128x8xbf16>
    %108 = vector.shape_cast %107 : vector<1x128x8xbf16> to vector<128x8xbf16>
    %cst_78 = arith.constant dense<0.000000e+00> : vector<8x8xf32>
    %109 = tpu.matmul %1, %108, %cst_78 {dimension_numbers = #tpu.dot_dimension_numbers<[1], [0], [0], [1], [0, 0, 1, 1], [], []>} : vector<8x128xbf16>, vector<128x8xbf16>, vector<8x8xf32> -> vector<8x8xf32>
    %c2_79 = arith.constant 2 : index
    %c0_80 = arith.constant 0 : index
    %c0_81 = arith.constant 0 : index
    %110 = vector.load %arg8[%c2_79, %c0_80, %c0_81] : memref<4x1x8xf32, #tpu.memory_space<vmem>>, vector<1x1x8xf32>
    %111 = vector.shape_cast %110 : vector<1x1x8xf32> to vector<1x8xf32>
    %112 = vector.broadcast %111 : vector<1x8xf32> to vector<8x8xf32>
    %113 = arith.addf %109, %112 : vector<8x8xf32>
    %114 = arith.truncf %99 : vector<8x8xf32> to vector<8x8xbf16>
    %115 = arith.truncf %106 : vector<8x8xf32> to vector<8x8xbf16>
    %cst_82 = arith.constant dense<0.000000e+00> : vector<8x8xf32>
    %116 = tpu.matmul %114, %115, %cst_82 {dimension_numbers = #tpu.dot_dimension_numbers<[1], [1], [0], [0], [0, 0, 1, 0], [], []>} : vector<8x8xbf16>, vector<8x8xbf16>, vector<8x8xf32> -> vector<8x8xf32>
    %117 = vector.broadcast %3 : vector<1x8xf32> to vector<8x8xf32>
    %118 = arith.addf %116, %117 : vector<8x8xf32>
    %cst_83 = arith.constant dense<0xFF800000> : vector<8xf32>
    %119 = vector.multi_reduction <maximumf>, %118, %cst_83 [1] : vector<8x8xf32> to vector<8xf32>
    %120 = vector.shape_cast %119 : vector<8xf32> to vector<8x1xf32>
    %121 = vector.broadcast %120 : vector<8x1xf32> to vector<8x8xf32>
    %122 = arith.subf %118, %121 : vector<8x8xf32>
    %123 = math.exp %122 : vector<8x8xf32>
    %cst_84 = arith.constant dense<0.000000e+00> : vector<8xf32>
    %124 = vector.multi_reduction <add>, %123, %cst_84 [1] : vector<8x8xf32> to vector<8xf32>
    %125 = vector.shape_cast %124 : vector<8xf32> to vector<8x1xf32>
    %126 = tpu.reciprocal %125 {approx = true} : vector<8x1xf32> -> vector<8x1xf32>
    %127 = vector.broadcast %126 : vector<8x1xf32> to vector<8x8xf32>
    %128 = arith.mulf %123, %127 : vector<8x8xf32>
    %129 = arith.truncf %128 : vector<8x8xf32> to vector<8x8xbf16>
    %130 = arith.truncf %113 : vector<8x8xf32> to vector<8x8xbf16>
    %cst_85 = arith.constant dense<0.000000e+00> : vector<8x8xf32>
    %131 = tpu.matmul %129, %130, %cst_85 {dimension_numbers = #tpu.dot_dimension_numbers<[1], [0], [0], [1], [0, 0, 1, 1], [], []>} : vector<8x8xbf16>, vector<8x8xbf16>, vector<8x8xf32> -> vector<8x8xf32>
    %132 = arith.truncf %131 : vector<8x8xf32> to vector<8x8xbf16>
    %c2_86 = arith.constant 2 : index
    %c0_87 = arith.constant 0 : index
    %c0_88 = arith.constant 0 : index
    %133 = vector.load %arg9[%c2_86, %c0_87, %c0_88] : memref<4x8x128xbf16, #tpu.memory_space<vmem>>, vector<1x8x128xbf16>
    %134 = vector.shape_cast %133 : vector<1x8x128xbf16> to vector<8x128xbf16>
    %cst_89 = arith.constant dense<0.000000e+00> : vector<8x128xf32>
    %135 = tpu.matmul %132, %134, %cst_89 {dimension_numbers = #tpu.dot_dimension_numbers<[1], [0], [0], [1], [0, 0, 1, 1], [], []>} : vector<8x8xbf16>, vector<8x128xbf16>, vector<8x128xf32> -> vector<8x128xf32>
    %136 = arith.addf %92, %135 : vector<8x128xf32>
    %c3 = arith.constant 3 : index
    %c0_90 = arith.constant 0 : index
    %c0_91 = arith.constant 0 : index
    %137 = vector.load %arg3[%c3, %c0_90, %c0_91] : memref<4x128x8xbf16, #tpu.memory_space<vmem>>, vector<1x128x8xbf16>
    %138 = vector.shape_cast %137 : vector<1x128x8xbf16> to vector<128x8xbf16>
    %cst_92 = arith.constant dense<0.000000e+00> : vector<8x8xf32>
    %139 = tpu.matmul %1, %138, %cst_92 {dimension_numbers = #tpu.dot_dimension_numbers<[1], [0], [0], [1], [0, 0, 1, 1], [], []>} : vector<8x128xbf16>, vector<128x8xbf16>, vector<8x8xf32> -> vector<8x8xf32>
    %c3_93 = arith.constant 3 : index
    %c0_94 = arith.constant 0 : index
    %c0_95 = arith.constant 0 : index
    %140 = vector.load %arg4[%c3_93, %c0_94, %c0_95] : memref<4x1x8xf32, #tpu.memory_space<vmem>>, vector<1x1x8xf32>
    %141 = vector.shape_cast %140 : vector<1x1x8xf32> to vector<1x8xf32>
    %142 = vector.broadcast %141 : vector<1x8xf32> to vector<8x8xf32>
    %143 = arith.addf %139, %142 : vector<8x8xf32>
    %c3_96 = arith.constant 3 : index
    %c0_97 = arith.constant 0 : index
    %c0_98 = arith.constant 0 : index
    %144 = vector.load %arg5[%c3_96, %c0_97, %c0_98] : memref<4x128x8xbf16, #tpu.memory_space<vmem>>, vector<1x128x8xbf16>
    %145 = vector.shape_cast %144 : vector<1x128x8xbf16> to vector<128x8xbf16>
    %cst_99 = arith.constant dense<0.000000e+00> : vector<8x8xf32>
    %146 = tpu.matmul %1, %145, %cst_99 {dimension_numbers = #tpu.dot_dimension_numbers<[1], [0], [0], [1], [0, 0, 1, 1], [], []>} : vector<8x128xbf16>, vector<128x8xbf16>, vector<8x8xf32> -> vector<8x8xf32>
    %c3_100 = arith.constant 3 : index
    %c0_101 = arith.constant 0 : index
    %c0_102 = arith.constant 0 : index
    %147 = vector.load %arg6[%c3_100, %c0_101, %c0_102] : memref<4x1x8xf32, #tpu.memory_space<vmem>>, vector<1x1x8xf32>
    %148 = vector.shape_cast %147 : vector<1x1x8xf32> to vector<1x8xf32>
    %149 = vector.broadcast %148 : vector<1x8xf32> to vector<8x8xf32>
    %150 = arith.addf %146, %149 : vector<8x8xf32>
    %c3_103 = arith.constant 3 : index
    %c0_104 = arith.constant 0 : index
    %c0_105 = arith.constant 0 : index
    %151 = vector.load %arg7[%c3_103, %c0_104, %c0_105] : memref<4x128x8xbf16, #tpu.memory_space<vmem>>, vector<1x128x8xbf16>
    %152 = vector.shape_cast %151 : vector<1x128x8xbf16> to vector<128x8xbf16>
    %cst_106 = arith.constant dense<0.000000e+00> : vector<8x8xf32>
    %153 = tpu.matmul %1, %152, %cst_106 {dimension_numbers = #tpu.dot_dimension_numbers<[1], [0], [0], [1], [0, 0, 1, 1], [], []>} : vector<8x128xbf16>, vector<128x8xbf16>, vector<8x8xf32> -> vector<8x8xf32>
    %c3_107 = arith.constant 3 : index
    %c0_108 = arith.constant 0 : index
    %c0_109 = arith.constant 0 : index
    %154 = vector.load %arg8[%c3_107, %c0_108, %c0_109] : memref<4x1x8xf32, #tpu.memory_space<vmem>>, vector<1x1x8xf32>
    %155 = vector.shape_cast %154 : vector<1x1x8xf32> to vector<1x8xf32>
    %156 = vector.broadcast %155 : vector<1x8xf32> to vector<8x8xf32>
    %157 = arith.addf %153, %156 : vector<8x8xf32>
    %158 = arith.truncf %143 : vector<8x8xf32> to vector<8x8xbf16>
    %159 = arith.truncf %150 : vector<8x8xf32> to vector<8x8xbf16>
    %cst_110 = arith.constant dense<0.000000e+00> : vector<8x8xf32>
    %160 = tpu.matmul %158, %159, %cst_110 {dimension_numbers = #tpu.dot_dimension_numbers<[1], [1], [0], [0], [0, 0, 1, 0], [], []>} : vector<8x8xbf16>, vector<8x8xbf16>, vector<8x8xf32> -> vector<8x8xf32>
    %161 = vector.broadcast %3 : vector<1x8xf32> to vector<8x8xf32>
    %162 = arith.addf %160, %161 : vector<8x8xf32>
    %cst_111 = arith.constant dense<0xFF800000> : vector<8xf32>
    %163 = vector.multi_reduction <maximumf>, %162, %cst_111 [1] : vector<8x8xf32> to vector<8xf32>
    %164 = vector.shape_cast %163 : vector<8xf32> to vector<8x1xf32>
    %165 = vector.broadcast %164 : vector<8x1xf32> to vector<8x8xf32>
    %166 = arith.subf %162, %165 : vector<8x8xf32>
    %167 = math.exp %166 : vector<8x8xf32>
    %cst_112 = arith.constant dense<0.000000e+00> : vector<8xf32>
    %168 = vector.multi_reduction <add>, %167, %cst_112 [1] : vector<8x8xf32> to vector<8xf32>
    %169 = vector.shape_cast %168 : vector<8xf32> to vector<8x1xf32>
    %170 = tpu.reciprocal %169 {approx = true} : vector<8x1xf32> -> vector<8x1xf32>
    %171 = vector.broadcast %170 : vector<8x1xf32> to vector<8x8xf32>
    %172 = arith.mulf %167, %171 : vector<8x8xf32>
    %173 = arith.truncf %172 : vector<8x8xf32> to vector<8x8xbf16>
    %174 = arith.truncf %157 : vector<8x8xf32> to vector<8x8xbf16>
    %cst_113 = arith.constant dense<0.000000e+00> : vector<8x8xf32>
    %175 = tpu.matmul %173, %174, %cst_113 {dimension_numbers = #tpu.dot_dimension_numbers<[1], [0], [0], [1], [0, 0, 1, 1], [], []>} : vector<8x8xbf16>, vector<8x8xbf16>, vector<8x8xf32> -> vector<8x8xf32>
    %176 = arith.truncf %175 : vector<8x8xf32> to vector<8x8xbf16>
    %c3_114 = arith.constant 3 : index
    %c0_115 = arith.constant 0 : index
    %c0_116 = arith.constant 0 : index
    %177 = vector.load %arg9[%c3_114, %c0_115, %c0_116] : memref<4x8x128xbf16, #tpu.memory_space<vmem>>, vector<1x8x128xbf16>
    %178 = vector.shape_cast %177 : vector<1x8x128xbf16> to vector<8x128xbf16>
    %cst_117 = arith.constant dense<0.000000e+00> : vector<8x128xf32>
    %179 = tpu.matmul %176, %178, %cst_117 {dimension_numbers = #tpu.dot_dimension_numbers<[1], [0], [0], [1], [0, 0, 1, 1], [], []>} : vector<8x8xbf16>, vector<8x128xbf16>, vector<8x128xf32> -> vector<8x128xf32>
    %180 = arith.addf %136, %179 : vector<8x128xf32>
    %c0_118 = arith.constant 0 : index
    %c0_119 = arith.constant 0 : index
    %181 = vector.load %arg10[%c0_118, %c0_119] : memref<1x128xf32, #tpu.memory_space<vmem>>, vector<1x128xf32>
    %182 = vector.broadcast %181 : vector<1x128xf32> to vector<8x128xf32>
    %183 = arith.addf %180, %182 : vector<8x128xf32>
    %184 = arith.extf %1 : vector<8x128xbf16> to vector<8x128xf32>
    %185 = arith.addf %184, %183 : vector<8x128xf32>
    %c0_120 = arith.constant 0 : index
    %c0_121 = arith.constant 0 : index
    %186 = vector.load %arg11[%c0_120, %c0_121] : memref<1x128xf32, #tpu.memory_space<vmem>>, vector<1x128xf32>
    %c0_122 = arith.constant 0 : index
    %c0_123 = arith.constant 0 : index
    %187 = vector.load %arg12[%c0_122, %c0_123] : memref<1x128xf32, #tpu.memory_space<vmem>>, vector<1x128xf32>
    %cst_124 = arith.constant dense<0.000000e+00> : vector<8xf32>
    %188 = vector.multi_reduction <add>, %185, %cst_124 [1] : vector<8x128xf32> to vector<8xf32>
    %189 = vector.shape_cast %188 : vector<8xf32> to vector<8x1xf32>
    %190 = arith.mulf %185, %185 : vector<8x128xf32>
    %cst_125 = arith.constant dense<0.000000e+00> : vector<8xf32>
    %191 = vector.multi_reduction <add>, %190, %cst_125 [1] : vector<8x128xf32> to vector<8xf32>
    %192 = vector.shape_cast %191 : vector<8xf32> to vector<8x1xf32>
    %cst_126 = arith.constant 3.125000e-02 : f32
    %193 = vector.broadcast %cst_126 : f32 to vector<8x1xf32>
    %194 = arith.mulf %189, %193 : vector<8x1xf32>
    %cst_127 = arith.constant 3.200000e+01 : f32
    %195 = vector.broadcast %cst_127 : f32 to vector<8x1xf32>
    %196 = arith.mulf %195, %194 : vector<8x1xf32>
    %197 = arith.mulf %196, %194 : vector<8x1xf32>
    %198 = arith.subf %192, %197 : vector<8x1xf32>
    %cst_128 = arith.constant 0.0322580636 : f32
    %199 = vector.broadcast %cst_128 : f32 to vector<8x1xf32>
    %200 = arith.mulf %198, %199 : vector<8x1xf32>
    %cst_129 = arith.constant 0.000000e+00 : f32
    %201 = vector.broadcast %cst_129 : f32 to vector<8x1xf32>
    %202 = arith.maximumf %200, %201 : vector<8x1xf32>
    %203 = math.sqrt %202 : vector<8x1xf32>
    %cst_130 = arith.constant 9.99999997E-7 : f32
    %204 = vector.broadcast %cst_130 : f32 to vector<8x1xf32>
    %205 = arith.addf %203, %204 : vector<8x1xf32>
    %206 = tpu.reciprocal %205 {approx = true} : vector<8x1xf32> -> vector<8x1xf32>
    %207 = vector.broadcast %194 : vector<8x1xf32> to vector<8x128xf32>
    %208 = arith.subf %185, %207 : vector<8x128xf32>
    %209 = vector.broadcast %186 : vector<1x128xf32> to vector<8x128xf32>
    %210 = arith.mulf %209, %208 : vector<8x128xf32>
    %211 = vector.broadcast %206 : vector<8x1xf32> to vector<8x128xf32>
    %212 = arith.mulf %210, %211 : vector<8x128xf32>
    %213 = vector.broadcast %187 : vector<1x128xf32> to vector<8x128xf32>
    %214 = arith.addf %212, %213 : vector<8x128xf32>
    %215 = arith.truncf %214 : vector<8x128xf32> to vector<8x128xbf16>
    %c0_131 = arith.constant 0 : index
    %c0_132 = arith.constant 0 : index
    %c0_133 = arith.constant 0 : index
    %216 = vector.load %arg13[%c0_131, %c0_132, %c0_133] : memref<1x8x128xbf16, #tpu.memory_space<vmem>>, vector<1x8x128xbf16>
    %217 = vector.shape_cast %216 : vector<1x8x128xbf16> to vector<8x128xbf16>
    %218 = vector.shape_cast %215 : vector<8x128xbf16> to vector<1x8x128xbf16>
    tpu.vector_store %arg13[%c0_131, %c0_132, %c0_133], %218 {strides = array<i32>} : memref<1x8x128xbf16, #tpu.memory_space<vmem>>, vector<1x8x128xbf16>,
    return
  }
  func.func @transform_0(%arg0: i32) -> (i32, i32, i32) {
    %c0_i32 = arith.constant 0 : i32
    %c0_i32_0 = arith.constant 0 : i32
    %c0_i32_1 = arith.constant 0 : i32
    return %arg0, %c0_i32, %c0_i32_0 : i32, i32, i32
  }
  func.func @transform_1(%arg0: i32) -> (i32, i32, i32) {
    %c0_i32 = arith.constant 0 : i32
    %c0_i32_0 = arith.constant 0 : i32
    %c0_i32_1 = arith.constant 0 : i32
    return %arg0, %c0_i32, %c0_i32_0 : i32, i32, i32
  }
  func.func @transform_2(%arg0: i32) -> (i32, i32, i32) {
    %c0_i32 = arith.constant 0 : i32
    %c0_i32_0 = arith.constant 0 : i32
    %c0_i32_1 = arith.constant 0 : i32
    %c0_i32_2 = arith.constant 0 : i32
    return %c0_i32, %c0_i32_0, %c0_i32_1 : i32, i32, i32
  }
  func.func @transform_3(%arg0: i32) -> (i32, i32, i32) {
    %c0_i32 = arith.constant 0 : i32
    %c0_i32_0 = arith.constant 0 : i32
    %c0_i32_1 = arith.constant 0 : i32
    %c0_i32_2 = arith.constant 0 : i32
    return %c0_i32, %c0_i32_0, %c0_i32_1 : i32, i32, i32
  }
  func.func @transform_4(%arg0: i32) -> (i32, i32, i32) {
    %c0_i32 = arith.constant 0 : i32
    %c0_i32_0 = arith.constant 0 : i32
    %c0_i32_1 = arith.constant 0 : i32
    %c0_i32_2 = arith.constant 0 : i32
    return %c0_i32, %c0_i32_0, %c0_i32_1 : i32, i32, i32
  }
  func.func @transform_5(%arg0: i32) -> (i32, i32, i32) {
    %c0_i32 = arith.constant 0 : i32
    %c0_i32_0 = arith.constant 0 : i32
    %c0_i32_1 = arith.constant 0 : i32
    %c0_i32_2 = arith.constant 0 : i32
    return %c0_i32, %c0_i32_0, %c0_i32_1 : i32, i32, i32
  }
  func.func @transform_6(%arg0: i32) -> (i32, i32, i32) {
    %c0_i32 = arith.constant 0 : i32
    %c0_i32_0 = arith.constant 0 : i32
    %c0_i32_1 = arith.constant 0 : i32
    %c0_i32_2 = arith.constant 0 : i32
    return %c0_i32, %c0_i32_0, %c0_i32_1 : i32, i32, i32
  }
  func.func @transform_7(%arg0: i32) -> (i32, i32, i32) {
    %c0_i32 = arith.constant 0 : i32
    %c0_i32_0 = arith.constant 0 : i32
    %c0_i32_1 = arith.constant 0 : i32
    %c0_i32_2 = arith.constant 0 : i32
    return %c0_i32, %c0_i32_0, %c0_i32_1 : i32, i32, i32
  }
  func.func @transform_8(%arg0: i32) -> (i32, i32, i32) {
    %c0_i32 = arith.constant 0 : i32
    %c0_i32_0 = arith.constant 0 : i32
    %c0_i32_1 = arith.constant 0 : i32
    %c0_i32_2 = arith.constant 0 : i32
    return %c0_i32, %c0_i32_0, %c0_i32_1 : i32, i32, i32
  }
  func.func @transform_9(%arg0: i32) -> (i32, i32) {
    %c0_i32 = arith.constant 0 : i32
    %c0_i32_0 = arith.constant 0 : i32
    %c0_i32_1 = arith.constant 0 : i32
    return %c0_i32, %c0_i32_0 : i32, i32
  }
  func.func @transform_10(%arg0: i32) -> (i32, i32) {
    %c0_i32 = arith.constant 0 : i32
    %c0_i32_0 = arith.constant 0 : i32
    %c0_i32_1 = arith.constant 0 : i32
    return %c0_i32, %c0_i32_0 : i32, i32
  }
  func.func @transform_11(%arg0: i32) -> (i32, i32) {
    %c0_i32 = arith.constant 0 : i32
    %c0_i32_0 = arith.constant 0 : i32
    %c0_i32_1 = arith.constant 0 : i32
    return %c0_i32, %c0_i32_0 : i32, i32
  }
  func.func @transform_12(%arg0: i32) -> (i32, i32, i32) {
    %c0_i32 = arith.constant 0 : i32
    %c0_i32_0 = arith.constant 0 : i32
    %c0_i32_1 = arith.constant 0 : i32
    return %arg0, %c0_i32, %c0_i32_0 : i32, i32, i32
  }
}

module attributes {stable_mosaic.version = 11 : i64} {
  func.func @_linear_kernel(%arg0: i32, %arg1: i32, %arg2: i32, %arg3: memref<16x128xbf16, #tpu.memory_space<vmem>>, %arg4: memref<128x128xbf16, #tpu.memory_space<vmem>>, %arg5: memref<1x128xf32, #tpu.memory_space<vmem>>, %arg6: memref<16x128xf32, #tpu.memory_space<vmem>>, %arg7: memref<16x128xf32, #tpu.memory_space<vmem>>) attributes {dimension_semantics = [#tpu.dimension_semantics<parallel>, #tpu.dimension_semantics<parallel>, #tpu.dimension_semantics<arbitrary>], iteration_bounds = array<i64: 1, 1, 1>, scalar_prefetch = 0 : i64, scratch_operands = 1 : i64, tpu.core_type = #tpu.core_type<tc>, window_params = [{transform_indices = @transform_0, window_bounds = array<i64: 16, 128>}, {transform_indices = @transform_1, window_bounds = array<i64: 128, 128>}, {transform_indices = @transform_2, window_bounds = array<i64: 1, 128>}, {transform_indices = @transform_3, window_bounds = array<i64: 16, 128>}]} {
    %c0_i32 = arith.constant 0 : i32
    %0 = arith.cmpi eq, %arg2, %c0_i32 : i32
    %1 = arith.extui %0 : i1 to i32
    %c0_i32_0 = arith.constant 0 : i32
    %2 = arith.cmpi ne, %1, %c0_i32_0 : i32
    scf.if %2 {
      %cst_10 = arith.constant 0.000000e+00 : f32
      %12 = vector.broadcast %cst_10 : f32 to vector<16x128xf32>
      %c0_11 = arith.constant 0 : index
      %c0_12 = arith.constant 0 : index
      %13 = vector.load %arg7[%c0_11, %c0_12] : memref<16x128xf32, #tpu.memory_space<vmem>>, vector<16x128xf32>
      tpu.vector_store %arg7[%c0_11, %c0_12], %12 {strides = array<i32>} : memref<16x128xf32, #tpu.memory_space<vmem>>, vector<16x128xf32>,
    } else {
    }
    %c0 = arith.constant 0 : index
    %c0_1 = arith.constant 0 : index
    %3 = vector.load %arg7[%c0, %c0_1] : memref<16x128xf32, #tpu.memory_space<vmem>>, vector<16x128xf32>
    %c0_2 = arith.constant 0 : index
    %c0_3 = arith.constant 0 : index
    %4 = vector.load %arg3[%c0_2, %c0_3] : memref<16x128xbf16, #tpu.memory_space<vmem>>, vector<16x128xbf16>
    %c0_4 = arith.constant 0 : index
    %c0_5 = arith.constant 0 : index
    %5 = vector.load %arg4[%c0_4, %c0_5] : memref<128x128xbf16, #tpu.memory_space<vmem>>, vector<128x128xbf16>
    %cst = arith.constant dense<0.000000e+00> : vector<16x128xf32>
    %6 = tpu.matmul %4, %5, %cst {dimension_numbers = #tpu.dot_dimension_numbers<[1], [0], [0], [1], [0, 0, 1, 1], [], []>} : vector<16x128xbf16>, vector<128x128xbf16>, vector<16x128xf32> -> vector<16x128xf32>
    %7 = arith.addf %3, %6 : vector<16x128xf32>
    %c0_6 = arith.constant 0 : index
    %c0_7 = arith.constant 0 : index
    %8 = vector.load %arg7[%c0_6, %c0_7] : memref<16x128xf32, #tpu.memory_space<vmem>>, vector<16x128xf32>
    tpu.vector_store %arg7[%c0_6, %c0_7], %7 {strides = array<i32>} : memref<16x128xf32, #tpu.memory_space<vmem>>, vector<16x128xf32>,
    %c0_i32_8 = arith.constant 0 : i32
    %9 = arith.cmpi eq, %arg2, %c0_i32_8 : i32
    %10 = arith.extui %9 : i1 to i32
    %c0_i32_9 = arith.constant 0 : i32
    %11 = arith.cmpi ne, %10, %c0_i32_9 : i32
    scf.if %11 {
      %c0_10 = arith.constant 0 : index
      %c0_11 = arith.constant 0 : index
      %12 = vector.load %arg7[%c0_10, %c0_11] : memref<16x128xf32, #tpu.memory_space<vmem>>, vector<16x128xf32>
      %c0_12 = arith.constant 0 : index
      %c0_13 = arith.constant 0 : index
      %13 = vector.load %arg5[%c0_12, %c0_13] : memref<1x128xf32, #tpu.memory_space<vmem>>, vector<1x128xf32>
      %14 = vector.broadcast %13 : vector<1x128xf32> to vector<16x128xf32>
      %15 = arith.addf %12, %14 : vector<16x128xf32>
      %c0_14 = arith.constant 0 : index
      %c0_15 = arith.constant 0 : index
      %16 = vector.load %arg6[%c0_14, %c0_15] : memref<16x128xf32, #tpu.memory_space<vmem>>, vector<16x128xf32>
      tpu.vector_store %arg6[%c0_14, %c0_15], %15 {strides = array<i32>} : memref<16x128xf32, #tpu.memory_space<vmem>>, vector<16x128xf32>,
    } else {
    }
    return
  }
  func.func @transform_0(%arg0: i32, %arg1: i32, %arg2: i32) -> (i32, i32) {
    %c0_i32 = arith.constant 0 : i32
    return %arg0, %arg2 : i32, i32
  }
  func.func @transform_1(%arg0: i32, %arg1: i32, %arg2: i32) -> (i32, i32) {
    %c0_i32 = arith.constant 0 : i32
    return %arg2, %arg1 : i32, i32
  }
  func.func @transform_2(%arg0: i32, %arg1: i32, %arg2: i32) -> (i32, i32) {
    %c0_i32 = arith.constant 0 : i32
    %c0_i32_0 = arith.constant 0 : i32
    return %c0_i32, %arg1 : i32, i32
  }
  func.func @transform_3(%arg0: i32, %arg1: i32, %arg2: i32) -> (i32, i32) {
    %c0_i32 = arith.constant 0 : i32
    return %arg0, %arg1 : i32, i32
  }
}

module attributes {stable_mosaic.version = 11 : i64} {
  func.func @_cross_attn_kernel(%arg0: i32, %arg1: memref<1x8x128xbf16, #tpu.memory_space<vmem>>, %arg2: memref<1x8x128xbf16, #tpu.memory_space<vmem>>, %arg3: memref<1x1x8xf32, #tpu.memory_space<vmem>>, %arg4: memref<4x128x8xbf16, #tpu.memory_space<vmem>>, %arg5: memref<4x1x8xf32, #tpu.memory_space<vmem>>, %arg6: memref<4x128x8xbf16, #tpu.memory_space<vmem>>, %arg7: memref<4x1x8xf32, #tpu.memory_space<vmem>>, %arg8: memref<4x128x8xbf16, #tpu.memory_space<vmem>>, %arg9: memref<4x1x8xf32, #tpu.memory_space<vmem>>, %arg10: memref<4x8x128xbf16, #tpu.memory_space<vmem>>, %arg11: memref<1x128xf32, #tpu.memory_space<vmem>>, %arg12: memref<1x128xf32, #tpu.memory_space<vmem>>, %arg13: memref<1x128xf32, #tpu.memory_space<vmem>>, %arg14: memref<1x8x128xbf16, #tpu.memory_space<vmem>>) attributes {dimension_semantics = [#tpu.dimension_semantics<parallel>], iteration_bounds = array<i64: 2>, scalar_prefetch = 0 : i64, scratch_operands = 0 : i64, tpu.core_type = #tpu.core_type<tc>, window_params = [{transform_indices = @transform_0, window_bounds = array<i64: 1, 8, 128>}, {transform_indices = @transform_1, window_bounds = array<i64: 1, 8, 128>}, {transform_indices = @transform_2, window_bounds = array<i64: 1, 1, 8>}, {pipeline_mode = #tpu.pipeline_mode<synchronous>, transform_indices = @transform_3, window_bounds = array<i64: 4, 128, 8>}, {pipeline_mode = #tpu.pipeline_mode<synchronous>, transform_indices = @transform_4, window_bounds = array<i64: 4, 1, 8>}, {pipeline_mode = #tpu.pipeline_mode<synchronous>, transform_indices = @transform_5, window_bounds = array<i64: 4, 128, 8>}, {pipeline_mode = #tpu.pipeline_mode<synchronous>, transform_indices = @transform_6, window_bounds = array<i64: 4, 1, 8>}, {pipeline_mode = #tpu.pipeline_mode<synchronous>, transform_indices = @transform_7, window_bounds = array<i64: 4, 128, 8>}, {pipeline_mode = #tpu.pipeline_mode<synchronous>, transform_indices = @transform_8, window_bounds = array<i64: 4, 1, 8>}, {pipeline_mode = #tpu.pipeline_mode<synchronous>, transform_indices = @transform_9, window_bounds = array<i64: 4, 8, 128>}, {pipeline_mode = #tpu.pipeline_mode<synchronous>, transform_indices = @transform_10, window_bounds = array<i64: 1, 128>}, {pipeline_mode = #tpu.pipeline_mode<synchronous>, transform_indices = @transform_11, window_bounds = array<i64: 1, 128>}, {pipeline_mode = #tpu.pipeline_mode<synchronous>, transform_indices = @transform_12, window_bounds = array<i64: 1, 128>}, {transform_indices = @transform_13, window_bounds = array<i64: 1, 8, 128>}]} {
    %c0 = arith.constant 0 : index
    %c0_0 = arith.constant 0 : index
    %c0_1 = arith.constant 0 : index
    %0 = vector.load %arg1[%c0, %c0_0, %c0_1] : memref<1x8x128xbf16, #tpu.memory_space<vmem>>, vector<1x8x128xbf16>
    %1 = vector.shape_cast %0 : vector<1x8x128xbf16> to vector<8x128xbf16>
    %c0_2 = arith.constant 0 : index
    %c0_3 = arith.constant 0 : index
    %c0_4 = arith.constant 0 : index
    %2 = vector.load %arg2[%c0_2, %c0_3, %c0_4] : memref<1x8x128xbf16, #tpu.memory_space<vmem>>, vector<1x8x128xbf16>
    %3 = vector.shape_cast %2 : vector<1x8x128xbf16> to vector<8x128xbf16>
    %c0_5 = arith.constant 0 : index
    %c0_6 = arith.constant 0 : index
    %c0_7 = arith.constant 0 : index
    %4 = vector.load %arg3[%c0_5, %c0_6, %c0_7] : memref<1x1x8xf32, #tpu.memory_space<vmem>>, vector<1x1x8xf32>
    %5 = vector.shape_cast %4 : vector<1x1x8xf32> to vector<1x8xf32>
    %cst = arith.constant 0.000000e+00 : f32
    %6 = vector.broadcast %cst : f32 to vector<8x128xf32>
    %c0_8 = arith.constant 0 : index
    %c0_9 = arith.constant 0 : index
    %c0_10 = arith.constant 0 : index
    %7 = vector.load %arg4[%c0_8, %c0_9, %c0_10] : memref<4x128x8xbf16, #tpu.memory_space<vmem>>, vector<1x128x8xbf16>
    %8 = vector.shape_cast %7 : vector<1x128x8xbf16> to vector<128x8xbf16>
    %cst_11 = arith.constant dense<0.000000e+00> : vector<8x8xf32>
    %9 = tpu.matmul %1, %8, %cst_11 {dimension_numbers = #tpu.dot_dimension_numbers<[1], [0], [0], [1], [0, 0, 1, 1], [], []>} : vector<8x128xbf16>, vector<128x8xbf16>, vector<8x8xf32> -> vector<8x8xf32>
    %c0_12 = arith.constant 0 : index
    %c0_13 = arith.constant 0 : index
    %c0_14 = arith.constant 0 : index
    %10 = vector.load %arg5[%c0_12, %c0_13, %c0_14] : memref<4x1x8xf32, #tpu.memory_space<vmem>>, vector<1x1x8xf32>
    %11 = vector.shape_cast %10 : vector<1x1x8xf32> to vector<1x8xf32>
    %12 = vector.broadcast %11 : vector<1x8xf32> to vector<8x8xf32>
    %13 = arith.addf %9, %12 : vector<8x8xf32>
    %c0_15 = arith.constant 0 : index
    %c0_16 = arith.constant 0 : index
    %c0_17 = arith.constant 0 : index
    %14 = vector.load %arg6[%c0_15, %c0_16, %c0_17] : memref<4x128x8xbf16, #tpu.memory_space<vmem>>, vector<1x128x8xbf16>
    %15 = vector.shape_cast %14 : vector<1x128x8xbf16> to vector<128x8xbf16>
    %cst_18 = arith.constant dense<0.000000e+00> : vector<8x8xf32>
    %16 = tpu.matmul %3, %15, %cst_18 {dimension_numbers = #tpu.dot_dimension_numbers<[1], [0], [0], [1], [0, 0, 1, 1], [], []>} : vector<8x128xbf16>, vector<128x8xbf16>, vector<8x8xf32> -> vector<8x8xf32>
    %c0_19 = arith.constant 0 : index
    %c0_20 = arith.constant 0 : index
    %c0_21 = arith.constant 0 : index
    %17 = vector.load %arg7[%c0_19, %c0_20, %c0_21] : memref<4x1x8xf32, #tpu.memory_space<vmem>>, vector<1x1x8xf32>
    %18 = vector.shape_cast %17 : vector<1x1x8xf32> to vector<1x8xf32>
    %19 = vector.broadcast %18 : vector<1x8xf32> to vector<8x8xf32>
    %20 = arith.addf %16, %19 : vector<8x8xf32>
    %c0_22 = arith.constant 0 : index
    %c0_23 = arith.constant 0 : index
    %c0_24 = arith.constant 0 : index
    %21 = vector.load %arg8[%c0_22, %c0_23, %c0_24] : memref<4x128x8xbf16, #tpu.memory_space<vmem>>, vector<1x128x8xbf16>
    %22 = vector.shape_cast %21 : vector<1x128x8xbf16> to vector<128x8xbf16>
    %cst_25 = arith.constant dense<0.000000e+00> : vector<8x8xf32>
    %23 = tpu.matmul %3, %22, %cst_25 {dimension_numbers = #tpu.dot_dimension_numbers<[1], [0], [0], [1], [0, 0, 1, 1], [], []>} : vector<8x128xbf16>, vector<128x8xbf16>, vector<8x8xf32> -> vector<8x8xf32>
    %c0_26 = arith.constant 0 : index
    %c0_27 = arith.constant 0 : index
    %c0_28 = arith.constant 0 : index
    %24 = vector.load %arg9[%c0_26, %c0_27, %c0_28] : memref<4x1x8xf32, #tpu.memory_space<vmem>>, vector<1x1x8xf32>
    %25 = vector.shape_cast %24 : vector<1x1x8xf32> to vector<1x8xf32>
    %26 = vector.broadcast %25 : vector<1x8xf32> to vector<8x8xf32>
    %27 = arith.addf %23, %26 : vector<8x8xf32>
    %28 = arith.truncf %13 : vector<8x8xf32> to vector<8x8xbf16>
    %29 = arith.truncf %20 : vector<8x8xf32> to vector<8x8xbf16>
    %cst_29 = arith.constant dense<0.000000e+00> : vector<8x8xf32>
    %30 = tpu.matmul %28, %29, %cst_29 {dimension_numbers = #tpu.dot_dimension_numbers<[1], [1], [0], [0], [0, 0, 1, 0], [], []>} : vector<8x8xbf16>, vector<8x8xbf16>, vector<8x8xf32> -> vector<8x8xf32>
    %31 = vector.broadcast %5 : vector<1x8xf32> to vector<8x8xf32>
    %32 = arith.addf %30, %31 : vector<8x8xf32>
    %cst_30 = arith.constant dense<0xFF800000> : vector<8xf32>
    %33 = vector.multi_reduction <maximumf>, %32, %cst_30 [1] : vector<8x8xf32> to vector<8xf32>
    %34 = vector.shape_cast %33 : vector<8xf32> to vector<8x1xf32>
    %35 = vector.broadcast %34 : vector<8x1xf32> to vector<8x8xf32>
    %36 = arith.subf %32, %35 : vector<8x8xf32>
    %37 = math.exp %36 : vector<8x8xf32>
    %cst_31 = arith.constant dense<0.000000e+00> : vector<8xf32>
    %38 = vector.multi_reduction <add>, %37, %cst_31 [1] : vector<8x8xf32> to vector<8xf32>
    %39 = vector.shape_cast %38 : vector<8xf32> to vector<8x1xf32>
    %40 = tpu.reciprocal %39 {approx = true} : vector<8x1xf32> -> vector<8x1xf32>
    %41 = vector.broadcast %40 : vector<8x1xf32> to vector<8x8xf32>
    %42 = arith.mulf %37, %41 : vector<8x8xf32>
    %43 = arith.truncf %42 : vector<8x8xf32> to vector<8x8xbf16>
    %44 = arith.truncf %27 : vector<8x8xf32> to vector<8x8xbf16>
    %cst_32 = arith.constant dense<0.000000e+00> : vector<8x8xf32>
    %45 = tpu.matmul %43, %44, %cst_32 {dimension_numbers = #tpu.dot_dimension_numbers<[1], [0], [0], [1], [0, 0, 1, 1], [], []>} : vector<8x8xbf16>, vector<8x8xbf16>, vector<8x8xf32> -> vector<8x8xf32>
    %46 = arith.truncf %45 : vector<8x8xf32> to vector<8x8xbf16>
    %c0_33 = arith.constant 0 : index
    %c0_34 = arith.constant 0 : index
    %c0_35 = arith.constant 0 : index
    %47 = vector.load %arg10[%c0_33, %c0_34, %c0_35] : memref<4x8x128xbf16, #tpu.memory_space<vmem>>, vector<1x8x128xbf16>
    %48 = vector.shape_cast %47 : vector<1x8x128xbf16> to vector<8x128xbf16>
    %cst_36 = arith.constant dense<0.000000e+00> : vector<8x128xf32>
    %49 = tpu.matmul %46, %48, %cst_36 {dimension_numbers = #tpu.dot_dimension_numbers<[1], [0], [0], [1], [0, 0, 1, 1], [], []>} : vector<8x8xbf16>, vector<8x128xbf16>, vector<8x128xf32> -> vector<8x128xf32>
    %50 = arith.addf %6, %49 : vector<8x128xf32>
    %c1 = arith.constant 1 : index
    %c0_37 = arith.constant 0 : index
    %c0_38 = arith.constant 0 : index
    %51 = vector.load %arg4[%c1, %c0_37, %c0_38] : memref<4x128x8xbf16, #tpu.memory_space<vmem>>, vector<1x128x8xbf16>
    %52 = vector.shape_cast %51 : vector<1x128x8xbf16> to vector<128x8xbf16>
    %cst_39 = arith.constant dense<0.000000e+00> : vector<8x8xf32>
    %53 = tpu.matmul %1, %52, %cst_39 {dimension_numbers = #tpu.dot_dimension_numbers<[1], [0], [0], [1], [0, 0, 1, 1], [], []>} : vector<8x128xbf16>, vector<128x8xbf16>, vector<8x8xf32> -> vector<8x8xf32>
    %c1_40 = arith.constant 1 : index
    %c0_41 = arith.constant 0 : index
    %c0_42 = arith.constant 0 : index
    %54 = vector.load %arg5[%c1_40, %c0_41, %c0_42] : memref<4x1x8xf32, #tpu.memory_space<vmem>>, vector<1x1x8xf32>
    %55 = vector.shape_cast %54 : vector<1x1x8xf32> to vector<1x8xf32>
    %56 = vector.broadcast %55 : vector<1x8xf32> to vector<8x8xf32>
    %57 = arith.addf %53, %56 : vector<8x8xf32>
    %c1_43 = arith.constant 1 : index
    %c0_44 = arith.constant 0 : index
    %c0_45 = arith.constant 0 : index
    %58 = vector.load %arg6[%c1_43, %c0_44, %c0_45] : memref<4x128x8xbf16, #tpu.memory_space<vmem>>, vector<1x128x8xbf16>
    %59 = vector.shape_cast %58 : vector<1x128x8xbf16> to vector<128x8xbf16>
    %cst_46 = arith.constant dense<0.000000e+00> : vector<8x8xf32>
    %60 = tpu.matmul %3, %59, %cst_46 {dimension_numbers = #tpu.dot_dimension_numbers<[1], [0], [0], [1], [0, 0, 1, 1], [], []>} : vector<8x128xbf16>, vector<128x8xbf16>, vector<8x8xf32> -> vector<8x8xf32>
    %c1_47 = arith.constant 1 : index
    %c0_48 = arith.constant 0 : index
    %c0_49 = arith.constant 0 : index
    %61 = vector.load %arg7[%c1_47, %c0_48, %c0_49] : memref<4x1x8xf32, #tpu.memory_space<vmem>>, vector<1x1x8xf32>
    %62 = vector.shape_cast %61 : vector<1x1x8xf32> to vector<1x8xf32>
    %63 = vector.broadcast %62 : vector<1x8xf32> to vector<8x8xf32>
    %64 = arith.addf %60, %63 : vector<8x8xf32>
    %c1_50 = arith.constant 1 : index
    %c0_51 = arith.constant 0 : index
    %c0_52 = arith.constant 0 : index
    %65 = vector.load %arg8[%c1_50, %c0_51, %c0_52] : memref<4x128x8xbf16, #tpu.memory_space<vmem>>, vector<1x128x8xbf16>
    %66 = vector.shape_cast %65 : vector<1x128x8xbf16> to vector<128x8xbf16>
    %cst_53 = arith.constant dense<0.000000e+00> : vector<8x8xf32>
    %67 = tpu.matmul %3, %66, %cst_53 {dimension_numbers = #tpu.dot_dimension_numbers<[1], [0], [0], [1], [0, 0, 1, 1], [], []>} : vector<8x128xbf16>, vector<128x8xbf16>, vector<8x8xf32> -> vector<8x8xf32>
    %c1_54 = arith.constant 1 : index
    %c0_55 = arith.constant 0 : index
    %c0_56 = arith.constant 0 : index
    %68 = vector.load %arg9[%c1_54, %c0_55, %c0_56] : memref<4x1x8xf32, #tpu.memory_space<vmem>>, vector<1x1x8xf32>
    %69 = vector.shape_cast %68 : vector<1x1x8xf32> to vector<1x8xf32>
    %70 = vector.broadcast %69 : vector<1x8xf32> to vector<8x8xf32>
    %71 = arith.addf %67, %70 : vector<8x8xf32>
    %72 = arith.truncf %57 : vector<8x8xf32> to vector<8x8xbf16>
    %73 = arith.truncf %64 : vector<8x8xf32> to vector<8x8xbf16>
    %cst_57 = arith.constant dense<0.000000e+00> : vector<8x8xf32>
    %74 = tpu.matmul %72, %73, %cst_57 {dimension_numbers = #tpu.dot_dimension_numbers<[1], [1], [0], [0], [0, 0, 1, 0], [], []>} : vector<8x8xbf16>, vector<8x8xbf16>, vector<8x8xf32> -> vector<8x8xf32>
    %75 = vector.broadcast %5 : vector<1x8xf32> to vector<8x8xf32>
    %76 = arith.addf %74, %75 : vector<8x8xf32>
    %cst_58 = arith.constant dense<0xFF800000> : vector<8xf32>
    %77 = vector.multi_reduction <maximumf>, %76, %cst_58 [1] : vector<8x8xf32> to vector<8xf32>
    %78 = vector.shape_cast %77 : vector<8xf32> to vector<8x1xf32>
    %79 = vector.broadcast %78 : vector<8x1xf32> to vector<8x8xf32>
    %80 = arith.subf %76, %79 : vector<8x8xf32>
    %81 = math.exp %80 : vector<8x8xf32>
    %cst_59 = arith.constant dense<0.000000e+00> : vector<8xf32>
    %82 = vector.multi_reduction <add>, %81, %cst_59 [1] : vector<8x8xf32> to vector<8xf32>
    %83 = vector.shape_cast %82 : vector<8xf32> to vector<8x1xf32>
    %84 = tpu.reciprocal %83 {approx = true} : vector<8x1xf32> -> vector<8x1xf32>
    %85 = vector.broadcast %84 : vector<8x1xf32> to vector<8x8xf32>
    %86 = arith.mulf %81, %85 : vector<8x8xf32>
    %87 = arith.truncf %86 : vector<8x8xf32> to vector<8x8xbf16>
    %88 = arith.truncf %71 : vector<8x8xf32> to vector<8x8xbf16>
    %cst_60 = arith.constant dense<0.000000e+00> : vector<8x8xf32>
    %89 = tpu.matmul %87, %88, %cst_60 {dimension_numbers = #tpu.dot_dimension_numbers<[1], [0], [0], [1], [0, 0, 1, 1], [], []>} : vector<8x8xbf16>, vector<8x8xbf16>, vector<8x8xf32> -> vector<8x8xf32>
    %90 = arith.truncf %89 : vector<8x8xf32> to vector<8x8xbf16>
    %c1_61 = arith.constant 1 : index
    %c0_62 = arith.constant 0 : index
    %c0_63 = arith.constant 0 : index
    %91 = vector.load %arg10[%c1_61, %c0_62, %c0_63] : memref<4x8x128xbf16, #tpu.memory_space<vmem>>, vector<1x8x128xbf16>
    %92 = vector.shape_cast %91 : vector<1x8x128xbf16> to vector<8x128xbf16>
    %cst_64 = arith.constant dense<0.000000e+00> : vector<8x128xf32>
    %93 = tpu.matmul %90, %92, %cst_64 {dimension_numbers = #tpu.dot_dimension_numbers<[1], [0], [0], [1], [0, 0, 1, 1], [], []>} : vector<8x8xbf16>, vector<8x128xbf16>, vector<8x128xf32> -> vector<8x128xf32>
    %94 = arith.addf %50, %93 : vector<8x128xf32>
    %c2 = arith.constant 2 : index
    %c0_65 = arith.constant 0 : index
    %c0_66 = arith.constant 0 : index
    %95 = vector.load %arg4[%c2, %c0_65, %c0_66] : memref<4x128x8xbf16, #tpu.memory_space<vmem>>, vector<1x128x8xbf16>
    %96 = vector.shape_cast %95 : vector<1x128x8xbf16> to vector<128x8xbf16>
    %cst_67 = arith.constant dense<0.000000e+00> : vector<8x8xf32>
    %97 = tpu.matmul %1, %96, %cst_67 {dimension_numbers = #tpu.dot_dimension_numbers<[1], [0], [0], [1], [0, 0, 1, 1], [], []>} : vector<8x128xbf16>, vector<128x8xbf16>, vector<8x8xf32> -> vector<8x8xf32>
    %c2_68 = arith.constant 2 : index
    %c0_69 = arith.constant 0 : index
    %c0_70 = arith.constant 0 : index
    %98 = vector.load %arg5[%c2_68, %c0_69, %c0_70] : memref<4x1x8xf32, #tpu.memory_space<vmem>>, vector<1x1x8xf32>
    %99 = vector.shape_cast %98 : vector<1x1x8xf32> to vector<1x8xf32>
    %100 = vector.broadcast %99 : vector<1x8xf32> to vector<8x8xf32>
    %101 = arith.addf %97, %100 : vector<8x8xf32>
    %c2_71 = arith.constant 2 : index
    %c0_72 = arith.constant 0 : index
    %c0_73 = arith.constant 0 : index
    %102 = vector.load %arg6[%c2_71, %c0_72, %c0_73] : memref<4x128x8xbf16, #tpu.memory_space<vmem>>, vector<1x128x8xbf16>
    %103 = vector.shape_cast %102 : vector<1x128x8xbf16> to vector<128x8xbf16>
    %cst_74 = arith.constant dense<0.000000e+00> : vector<8x8xf32>
    %104 = tpu.matmul %3, %103, %cst_74 {dimension_numbers = #tpu.dot_dimension_numbers<[1], [0], [0], [1], [0, 0, 1, 1], [], []>} : vector<8x128xbf16>, vector<128x8xbf16>, vector<8x8xf32> -> vector<8x8xf32>
    %c2_75 = arith.constant 2 : index
    %c0_76 = arith.constant 0 : index
    %c0_77 = arith.constant 0 : index
    %105 = vector.load %arg7[%c2_75, %c0_76, %c0_77] : memref<4x1x8xf32, #tpu.memory_space<vmem>>, vector<1x1x8xf32>
    %106 = vector.shape_cast %105 : vector<1x1x8xf32> to vector<1x8xf32>
    %107 = vector.broadcast %106 : vector<1x8xf32> to vector<8x8xf32>
    %108 = arith.addf %104, %107 : vector<8x8xf32>
    %c2_78 = arith.constant 2 : index
    %c0_79 = arith.constant 0 : index
    %c0_80 = arith.constant 0 : index
    %109 = vector.load %arg8[%c2_78, %c0_79, %c0_80] : memref<4x128x8xbf16, #tpu.memory_space<vmem>>, vector<1x128x8xbf16>
    %110 = vector.shape_cast %109 : vector<1x128x8xbf16> to vector<128x8xbf16>
    %cst_81 = arith.constant dense<0.000000e+00> : vector<8x8xf32>
    %111 = tpu.matmul %3, %110, %cst_81 {dimension_numbers = #tpu.dot_dimension_numbers<[1], [0], [0], [1], [0, 0, 1, 1], [], []>} : vector<8x128xbf16>, vector<128x8xbf16>, vector<8x8xf32> -> vector<8x8xf32>
    %c2_82 = arith.constant 2 : index
    %c0_83 = arith.constant 0 : index
    %c0_84 = arith.constant 0 : index
    %112 = vector.load %arg9[%c2_82, %c0_83, %c0_84] : memref<4x1x8xf32, #tpu.memory_space<vmem>>, vector<1x1x8xf32>
    %113 = vector.shape_cast %112 : vector<1x1x8xf32> to vector<1x8xf32>
    %114 = vector.broadcast %113 : vector<1x8xf32> to vector<8x8xf32>
    %115 = arith.addf %111, %114 : vector<8x8xf32>
    %116 = arith.truncf %101 : vector<8x8xf32> to vector<8x8xbf16>
    %117 = arith.truncf %108 : vector<8x8xf32> to vector<8x8xbf16>
    %cst_85 = arith.constant dense<0.000000e+00> : vector<8x8xf32>
    %118 = tpu.matmul %116, %117, %cst_85 {dimension_numbers = #tpu.dot_dimension_numbers<[1], [1], [0], [0], [0, 0, 1, 0], [], []>} : vector<8x8xbf16>, vector<8x8xbf16>, vector<8x8xf32> -> vector<8x8xf32>
    %119 = vector.broadcast %5 : vector<1x8xf32> to vector<8x8xf32>
    %120 = arith.addf %118, %119 : vector<8x8xf32>
    %cst_86 = arith.constant dense<0xFF800000> : vector<8xf32>
    %121 = vector.multi_reduction <maximumf>, %120, %cst_86 [1] : vector<8x8xf32> to vector<8xf32>
    %122 = vector.shape_cast %121 : vector<8xf32> to vector<8x1xf32>
    %123 = vector.broadcast %122 : vector<8x1xf32> to vector<8x8xf32>
    %124 = arith.subf %120, %123 : vector<8x8xf32>
    %125 = math.exp %124 : vector<8x8xf32>
    %cst_87 = arith.constant dense<0.000000e+00> : vector<8xf32>
    %126 = vector.multi_reduction <add>, %125, %cst_87 [1] : vector<8x8xf32> to vector<8xf32>
    %127 = vector.shape_cast %126 : vector<8xf32> to vector<8x1xf32>
    %128 = tpu.reciprocal %127 {approx = true} : vector<8x1xf32> -> vector<8x1xf32>
    %129 = vector.broadcast %128 : vector<8x1xf32> to vector<8x8xf32>
    %130 = arith.mulf %125, %129 : vector<8x8xf32>
    %131 = arith.truncf %130 : vector<8x8xf32> to vector<8x8xbf16>
    %132 = arith.truncf %115 : vector<8x8xf32> to vector<8x8xbf16>
    %cst_88 = arith.constant dense<0.000000e+00> : vector<8x8xf32>
    %133 = tpu.matmul %131, %132, %cst_88 {dimension_numbers = #tpu.dot_dimension_numbers<[1], [0], [0], [1], [0, 0, 1, 1], [], []>} : vector<8x8xbf16>, vector<8x8xbf16>, vector<8x8xf32> -> vector<8x8xf32>
    %134 = arith.truncf %133 : vector<8x8xf32> to vector<8x8xbf16>
    %c2_89 = arith.constant 2 : index
    %c0_90 = arith.constant 0 : index
    %c0_91 = arith.constant 0 : index
    %135 = vector.load %arg10[%c2_89, %c0_90, %c0_91] : memref<4x8x128xbf16, #tpu.memory_space<vmem>>, vector<1x8x128xbf16>
    %136 = vector.shape_cast %135 : vector<1x8x128xbf16> to vector<8x128xbf16>
    %cst_92 = arith.constant dense<0.000000e+00> : vector<8x128xf32>
    %137 = tpu.matmul %134, %136, %cst_92 {dimension_numbers = #tpu.dot_dimension_numbers<[1], [0], [0], [1], [0, 0, 1, 1], [], []>} : vector<8x8xbf16>, vector<8x128xbf16>, vector<8x128xf32> -> vector<8x128xf32>
    %138 = arith.addf %94, %137 : vector<8x128xf32>
    %c3 = arith.constant 3 : index
    %c0_93 = arith.constant 0 : index
    %c0_94 = arith.constant 0 : index
    %139 = vector.load %arg4[%c3, %c0_93, %c0_94] : memref<4x128x8xbf16, #tpu.memory_space<vmem>>, vector<1x128x8xbf16>
    %140 = vector.shape_cast %139 : vector<1x128x8xbf16> to vector<128x8xbf16>
    %cst_95 = arith.constant dense<0.000000e+00> : vector<8x8xf32>
    %141 = tpu.matmul %1, %140, %cst_95 {dimension_numbers = #tpu.dot_dimension_numbers<[1], [0], [0], [1], [0, 0, 1, 1], [], []>} : vector<8x128xbf16>, vector<128x8xbf16>, vector<8x8xf32> -> vector<8x8xf32>
    %c3_96 = arith.constant 3 : index
    %c0_97 = arith.constant 0 : index
    %c0_98 = arith.constant 0 : index
    %142 = vector.load %arg5[%c3_96, %c0_97, %c0_98] : memref<4x1x8xf32, #tpu.memory_space<vmem>>, vector<1x1x8xf32>
    %143 = vector.shape_cast %142 : vector<1x1x8xf32> to vector<1x8xf32>
    %144 = vector.broadcast %143 : vector<1x8xf32> to vector<8x8xf32>
    %145 = arith.addf %141, %144 : vector<8x8xf32>
    %c3_99 = arith.constant 3 : index
    %c0_100 = arith.constant 0 : index
    %c0_101 = arith.constant 0 : index
    %146 = vector.load %arg6[%c3_99, %c0_100, %c0_101] : memref<4x128x8xbf16, #tpu.memory_space<vmem>>, vector<1x128x8xbf16>
    %147 = vector.shape_cast %146 : vector<1x128x8xbf16> to vector<128x8xbf16>
    %cst_102 = arith.constant dense<0.000000e+00> : vector<8x8xf32>
    %148 = tpu.matmul %3, %147, %cst_102 {dimension_numbers = #tpu.dot_dimension_numbers<[1], [0], [0], [1], [0, 0, 1, 1], [], []>} : vector<8x128xbf16>, vector<128x8xbf16>, vector<8x8xf32> -> vector<8x8xf32>
    %c3_103 = arith.constant 3 : index
    %c0_104 = arith.constant 0 : index
    %c0_105 = arith.constant 0 : index
    %149 = vector.load %arg7[%c3_103, %c0_104, %c0_105] : memref<4x1x8xf32, #tpu.memory_space<vmem>>, vector<1x1x8xf32>
    %150 = vector.shape_cast %149 : vector<1x1x8xf32> to vector<1x8xf32>
    %151 = vector.broadcast %150 : vector<1x8xf32> to vector<8x8xf32>
    %152 = arith.addf %148, %151 : vector<8x8xf32>
    %c3_106 = arith.constant 3 : index
    %c0_107 = arith.constant 0 : index
    %c0_108 = arith.constant 0 : index
    %153 = vector.load %arg8[%c3_106, %c0_107, %c0_108] : memref<4x128x8xbf16, #tpu.memory_space<vmem>>, vector<1x128x8xbf16>
    %154 = vector.shape_cast %153 : vector<1x128x8xbf16> to vector<128x8xbf16>
    %cst_109 = arith.constant dense<0.000000e+00> : vector<8x8xf32>
    %155 = tpu.matmul %3, %154, %cst_109 {dimension_numbers = #tpu.dot_dimension_numbers<[1], [0], [0], [1], [0, 0, 1, 1], [], []>} : vector<8x128xbf16>, vector<128x8xbf16>, vector<8x8xf32> -> vector<8x8xf32>
    %c3_110 = arith.constant 3 : index
    %c0_111 = arith.constant 0 : index
    %c0_112 = arith.constant 0 : index
    %156 = vector.load %arg9[%c3_110, %c0_111, %c0_112] : memref<4x1x8xf32, #tpu.memory_space<vmem>>, vector<1x1x8xf32>
    %157 = vector.shape_cast %156 : vector<1x1x8xf32> to vector<1x8xf32>
    %158 = vector.broadcast %157 : vector<1x8xf32> to vector<8x8xf32>
    %159 = arith.addf %155, %158 : vector<8x8xf32>
    %160 = arith.truncf %145 : vector<8x8xf32> to vector<8x8xbf16>
    %161 = arith.truncf %152 : vector<8x8xf32> to vector<8x8xbf16>
    %cst_113 = arith.constant dense<0.000000e+00> : vector<8x8xf32>
    %162 = tpu.matmul %160, %161, %cst_113 {dimension_numbers = #tpu.dot_dimension_numbers<[1], [1], [0], [0], [0, 0, 1, 0], [], []>} : vector<8x8xbf16>, vector<8x8xbf16>, vector<8x8xf32> -> vector<8x8xf32>
    %163 = vector.broadcast %5 : vector<1x8xf32> to vector<8x8xf32>
    %164 = arith.addf %162, %163 : vector<8x8xf32>
    %cst_114 = arith.constant dense<0xFF800000> : vector<8xf32>
    %165 = vector.multi_reduction <maximumf>, %164, %cst_114 [1] : vector<8x8xf32> to vector<8xf32>
    %166 = vector.shape_cast %165 : vector<8xf32> to vector<8x1xf32>
    %167 = vector.broadcast %166 : vector<8x1xf32> to vector<8x8xf32>
    %168 = arith.subf %164, %167 : vector<8x8xf32>
    %169 = math.exp %168 : vector<8x8xf32>
    %cst_115 = arith.constant dense<0.000000e+00> : vector<8xf32>
    %170 = vector.multi_reduction <add>, %169, %cst_115 [1] : vector<8x8xf32> to vector<8xf32>
    %171 = vector.shape_cast %170 : vector<8xf32> to vector<8x1xf32>
    %172 = tpu.reciprocal %171 {approx = true} : vector<8x1xf32> -> vector<8x1xf32>
    %173 = vector.broadcast %172 : vector<8x1xf32> to vector<8x8xf32>
    %174 = arith.mulf %169, %173 : vector<8x8xf32>
    %175 = arith.truncf %174 : vector<8x8xf32> to vector<8x8xbf16>
    %176 = arith.truncf %159 : vector<8x8xf32> to vector<8x8xbf16>
    %cst_116 = arith.constant dense<0.000000e+00> : vector<8x8xf32>
    %177 = tpu.matmul %175, %176, %cst_116 {dimension_numbers = #tpu.dot_dimension_numbers<[1], [0], [0], [1], [0, 0, 1, 1], [], []>} : vector<8x8xbf16>, vector<8x8xbf16>, vector<8x8xf32> -> vector<8x8xf32>
    %178 = arith.truncf %177 : vector<8x8xf32> to vector<8x8xbf16>
    %c3_117 = arith.constant 3 : index
    %c0_118 = arith.constant 0 : index
    %c0_119 = arith.constant 0 : index
    %179 = vector.load %arg10[%c3_117, %c0_118, %c0_119] : memref<4x8x128xbf16, #tpu.memory_space<vmem>>, vector<1x8x128xbf16>
    %180 = vector.shape_cast %179 : vector<1x8x128xbf16> to vector<8x128xbf16>
    %cst_120 = arith.constant dense<0.000000e+00> : vector<8x128xf32>
    %181 = tpu.matmul %178, %180, %cst_120 {dimension_numbers = #tpu.dot_dimension_numbers<[1], [0], [0], [1], [0, 0, 1, 1], [], []>} : vector<8x8xbf16>, vector<8x128xbf16>, vector<8x128xf32> -> vector<8x128xf32>
    %182 = arith.addf %138, %181 : vector<8x128xf32>
    %c0_121 = arith.constant 0 : index
    %c0_122 = arith.constant 0 : index
    %183 = vector.load %arg11[%c0_121, %c0_122] : memref<1x128xf32, #tpu.memory_space<vmem>>, vector<1x128xf32>
    %184 = vector.broadcast %183 : vector<1x128xf32> to vector<8x128xf32>
    %185 = arith.addf %182, %184 : vector<8x128xf32>
    %186 = arith.extf %1 : vector<8x128xbf16> to vector<8x128xf32>
    %187 = arith.addf %186, %185 : vector<8x128xf32>
    %c0_123 = arith.constant 0 : index
    %c0_124 = arith.constant 0 : index
    %188 = vector.load %arg12[%c0_123, %c0_124] : memref<1x128xf32, #tpu.memory_space<vmem>>, vector<1x128xf32>
    %c0_125 = arith.constant 0 : index
    %c0_126 = arith.constant 0 : index
    %189 = vector.load %arg13[%c0_125, %c0_126] : memref<1x128xf32, #tpu.memory_space<vmem>>, vector<1x128xf32>
    %cst_127 = arith.constant dense<0.000000e+00> : vector<8xf32>
    %190 = vector.multi_reduction <add>, %187, %cst_127 [1] : vector<8x128xf32> to vector<8xf32>
    %191 = vector.shape_cast %190 : vector<8xf32> to vector<8x1xf32>
    %192 = arith.mulf %187, %187 : vector<8x128xf32>
    %cst_128 = arith.constant dense<0.000000e+00> : vector<8xf32>
    %193 = vector.multi_reduction <add>, %192, %cst_128 [1] : vector<8x128xf32> to vector<8xf32>
    %194 = vector.shape_cast %193 : vector<8xf32> to vector<8x1xf32>
    %cst_129 = arith.constant 3.125000e-02 : f32
    %195 = vector.broadcast %cst_129 : f32 to vector<8x1xf32>
    %196 = arith.mulf %191, %195 : vector<8x1xf32>
    %cst_130 = arith.constant 3.200000e+01 : f32
    %197 = vector.broadcast %cst_130 : f32 to vector<8x1xf32>
    %198 = arith.mulf %197, %196 : vector<8x1xf32>
    %199 = arith.mulf %198, %196 : vector<8x1xf32>
    %200 = arith.subf %194, %199 : vector<8x1xf32>
    %cst_131 = arith.constant 0.0322580636 : f32
    %201 = vector.broadcast %cst_131 : f32 to vector<8x1xf32>
    %202 = arith.mulf %200, %201 : vector<8x1xf32>
    %cst_132 = arith.constant 0.000000e+00 : f32
    %203 = vector.broadcast %cst_132 : f32 to vector<8x1xf32>
    %204 = arith.maximumf %202, %203 : vector<8x1xf32>
    %205 = math.sqrt %204 : vector<8x1xf32>
    %cst_133 = arith.constant 9.99999997E-7 : f32
    %206 = vector.broadcast %cst_133 : f32 to vector<8x1xf32>
    %207 = arith.addf %205, %206 : vector<8x1xf32>
    %208 = tpu.reciprocal %207 {approx = true} : vector<8x1xf32> -> vector<8x1xf32>
    %209 = vector.broadcast %196 : vector<8x1xf32> to vector<8x128xf32>
    %210 = arith.subf %187, %209 : vector<8x128xf32>
    %211 = vector.broadcast %188 : vector<1x128xf32> to vector<8x128xf32>
    %212 = arith.mulf %211, %210 : vector<8x128xf32>
    %213 = vector.broadcast %208 : vector<8x1xf32> to vector<8x128xf32>
    %214 = arith.mulf %212, %213 : vector<8x128xf32>
    %215 = vector.broadcast %189 : vector<1x128xf32> to vector<8x128xf32>
    %216 = arith.addf %214, %215 : vector<8x128xf32>
    %217 = arith.truncf %216 : vector<8x128xf32> to vector<8x128xbf16>
    %c0_134 = arith.constant 0 : index
    %c0_135 = arith.constant 0 : index
    %c0_136 = arith.constant 0 : index
    %218 = vector.load %arg14[%c0_134, %c0_135, %c0_136] : memref<1x8x128xbf16, #tpu.memory_space<vmem>>, vector<1x8x128xbf16>
    %219 = vector.shape_cast %218 : vector<1x8x128xbf16> to vector<8x128xbf16>
    %220 = vector.shape_cast %217 : vector<8x128xbf16> to vector<1x8x128xbf16>
    tpu.vector_store %arg14[%c0_134, %c0_135, %c0_136], %220 {strides = array<i32>} : memref<1x8x128xbf16, #tpu.memory_space<vmem>>, vector<1x8x128xbf16>,
    return
  }
  func.func @transform_0(%arg0: i32) -> (i32, i32, i32) {
    %c0_i32 = arith.constant 0 : i32
    %c0_i32_0 = arith.constant 0 : i32
    %c0_i32_1 = arith.constant 0 : i32
    return %arg0, %c0_i32, %c0_i32_0 : i32, i32, i32
  }
  func.func @transform_1(%arg0: i32) -> (i32, i32, i32) {
    %c0_i32 = arith.constant 0 : i32
    %c0_i32_0 = arith.constant 0 : i32
    %c0_i32_1 = arith.constant 0 : i32
    return %arg0, %c0_i32, %c0_i32_0 : i32, i32, i32
  }
  func.func @transform_2(%arg0: i32) -> (i32, i32, i32) {
    %c0_i32 = arith.constant 0 : i32
    %c0_i32_0 = arith.constant 0 : i32
    %c0_i32_1 = arith.constant 0 : i32
    return %arg0, %c0_i32, %c0_i32_0 : i32, i32, i32
  }
  func.func @transform_3(%arg0: i32) -> (i32, i32, i32) {
    %c0_i32 = arith.constant 0 : i32
    %c0_i32_0 = arith.constant 0 : i32
    %c0_i32_1 = arith.constant 0 : i32
    %c0_i32_2 = arith.constant 0 : i32
    return %c0_i32, %c0_i32_0, %c0_i32_1 : i32, i32, i32
  }
  func.func @transform_4(%arg0: i32) -> (i32, i32, i32) {
    %c0_i32 = arith.constant 0 : i32
    %c0_i32_0 = arith.constant 0 : i32
    %c0_i32_1 = arith.constant 0 : i32
    %c0_i32_2 = arith.constant 0 : i32
    return %c0_i32, %c0_i32_0, %c0_i32_1 : i32, i32, i32
  }
  func.func @transform_5(%arg0: i32) -> (i32, i32, i32) {
    %c0_i32 = arith.constant 0 : i32
    %c0_i32_0 = arith.constant 0 : i32
    %c0_i32_1 = arith.constant 0 : i32
    %c0_i32_2 = arith.constant 0 : i32
    return %c0_i32, %c0_i32_0, %c0_i32_1 : i32, i32, i32
  }
  func.func @transform_6(%arg0: i32) -> (i32, i32, i32) {
    %c0_i32 = arith.constant 0 : i32
    %c0_i32_0 = arith.constant 0 : i32
    %c0_i32_1 = arith.constant 0 : i32
    %c0_i32_2 = arith.constant 0 : i32
    return %c0_i32, %c0_i32_0, %c0_i32_1 : i32, i32, i32
  }
  func.func @transform_7(%arg0: i32) -> (i32, i32, i32) {
    %c0_i32 = arith.constant 0 : i32
    %c0_i32_0 = arith.constant 0 : i32
    %c0_i32_1 = arith.constant 0 : i32
    %c0_i32_2 = arith.constant 0 : i32
    return %c0_i32, %c0_i32_0, %c0_i32_1 : i32, i32, i32
  }
  func.func @transform_8(%arg0: i32) -> (i32, i32, i32) {
    %c0_i32 = arith.constant 0 : i32
    %c0_i32_0 = arith.constant 0 : i32
    %c0_i32_1 = arith.constant 0 : i32
    %c0_i32_2 = arith.constant 0 : i32
    return %c0_i32, %c0_i32_0, %c0_i32_1 : i32, i32, i32
  }
  func.func @transform_9(%arg0: i32) -> (i32, i32, i32) {
    %c0_i32 = arith.constant 0 : i32
    %c0_i32_0 = arith.constant 0 : i32
    %c0_i32_1 = arith.constant 0 : i32
    %c0_i32_2 = arith.constant 0 : i32
    return %c0_i32, %c0_i32_0, %c0_i32_1 : i32, i32, i32
  }
  func.func @transform_10(%arg0: i32) -> (i32, i32) {
    %c0_i32 = arith.constant 0 : i32
    %c0_i32_0 = arith.constant 0 : i32
    %c0_i32_1 = arith.constant 0 : i32
    return %c0_i32, %c0_i32_0 : i32, i32
  }
  func.func @transform_11(%arg0: i32) -> (i32, i32) {
    %c0_i32 = arith.constant 0 : i32
    %c0_i32_0 = arith.constant 0 : i32
    %c0_i32_1 = arith.constant 0 : i32
    return %c0_i32, %c0_i32_0 : i32, i32
  }
  func.func @transform_12(%arg0: i32) -> (i32, i32) {
    %c0_i32 = arith.constant 0 : i32
    %c0_i32_0 = arith.constant 0 : i32
    %c0_i32_1 = arith.constant 0 : i32
    return %c0_i32, %c0_i32_0 : i32, i32
  }
  func.func @transform_13(%arg0: i32) -> (i32, i32, i32) {
    %c0_i32 = arith.constant 0 : i32
    %c0_i32_0 = arith.constant 0 : i32
    %c0_i32_1 = arith.constant 0 : i32
    return %arg0, %c0_i32, %c0_i32_0 : i32, i32, i32
  }
}

</mosaic_0001>

<llo_original>
// kernel: transformer_fwd.14
$region0: #{transformer_fwd.14}
  #allocation0 [shape = 'u32[]', space=smem, size = 0x4, offset = 0x4, fixed_abs, tag = 'smem constant byte address 0x4 - core index']
  #allocation1 [shape = 'u32[144,128]{1,0:T(1,128)}', space=vmem, size = 0x12000, scoped, tag = 'internal scratch']
  %s0 = inlined_call_operand.vmem [shape: bf16[2,8,128], index: 0, kind: input, shape index: {}]
  %s1 = inlined_call_operand.vmem [shape: bf16[128,128], index: 1, kind: input, shape index: {}]
  %s2 = inlined_call_operand.vmem [shape: f32[1,128], index: 2, kind: input, shape index: {}]
  %s3 = inlined_call_operand.vmem [shape: bf16[128,128], index: 3, kind: input, shape index: {}]
  %s4 = inlined_call_operand.vmem [shape: f32[1,128], index: 4, kind: input, shape index: {}]
  %s5 = inlined_call_operand.vmem [shape: f32[1,128], index: 5, kind: input, shape index: {}]
  %s6 = inlined_call_operand.vmem [shape: f32[1,128], index: 6, kind: input, shape index: {}]
  %s7 = inlined_call_operand.vmem [shape: bf16[2,8,128], index: 7, kind: output, shape index: {}]
  %s8 = sld [smem:[#allocation0]]
  $region61: #{transformer_fwd.14} parent=0
    _
  %s10 = ssub.s32 1, %s8
  %s11 = scalar_select 0, %s10, %s8
  loop: start=0, step=1, limit=4
  $region2: #{transformer_fwd.14} parent=0 // loop_pre_header
    _
  $region3: #{transformer_fwd.14} parent=0 // loop_header
    %s13 = sphi 0, %s17
    %p14 = scmp.ge.s32.totalorder %s13, 4
    %s23 = sphi 0, %s25
    %s26 = sphi 0, %s23
    %s27 = sphi 0, %s26
    %s43 = sphi 0, %s27
    %s47 = sphi 0, %s47
    %s49 = sphi 0, %s47
    %s50 = sphi 0, %s49
    %s64 = sphi 0, %s50
    %s68 = sphi 0, %s68
    %s70 = sphi 0, %s68
    %s71 = sphi 0, %s70
    %s85 = sphi 0, %s71
    %s89 = sphi 0, %s89
    %s91 = sphi 0, %s89
    %s92 = sphi 0, %s91
    %s106 = sphi 0, %s92
    %s110 = sphi 0, %s110
    %s112 = sphi 0, %s110
    %s113 = sphi 0, %s112
    %s127 = sphi 0, %s113
    %s131 = sphi 0, %s131
    %s133 = sphi 0, %s131
    %s134 = sphi 0, %s133
    %s148 = sphi 0, %s134
    %s152 = sphi 0, %s152
    %s154 = sphi 0, %s152
    %s155 = sphi 0, %s154
    %s169 = sphi 0, %s155
    %s175 = sphi 0, %s177
    %s178 = sphi 0, %s175
    %s179 = sphi 0, %s178
    %s195 = sphi 0, %s179
  $region4: #{transformer_fwd.14} parent=0 // loop_header_branch
    %16 = sbr.rel (%p14) target = $region8
  $region5: #{transformer_fwd.14} parent=0 // loop_body
    %s18 = ssub.s32 %s13, 1
    %s19 = ssub.s32 %s13, 2
    %s20 = sadd.s32 %s13, 1
    %s21 = ssub.s32 %s13, %s20
    %p22 = scmp.eq.s32.totalorder %s21, 0
    %s24 = sadd.s32 %s23, 1
    %s25 = scalar_select %p22, %s23, %s24
    %p28 = pneg %p22
    %p29 = scmp.eq.s32.totalorder %s13, 1
    %p30 = por %p28, %p29
    %p31 = scmp.ne.s32.totalorder %s23, %s26
    %p32 = scmp.eq.s32.totalorder %s13, 0
    %p33 = por %p31, %p32
    %p34 = scmp.ne.s32.totalorder %s23, %s26
    %p35 = scmp.eq.s32.totalorder %s18, 1
    %p36 = por %p34, %p35
    %p37 = scmp.ne.s32.totalorder %s26, %s27
    %p38 = scmp.eq.s32.totalorder %s18, 0
    %p39 = por %p37, %p38
    %p40 = scmp.ne.s32.totalorder %s26, %s27
    %p41 = scmp.eq.s32.totalorder %s19, 1
    %p42 = por %p40, %p41
    %p44 = scmp.ne.s32.totalorder %s27, %s43
    %p45 = scmp.eq.s32.totalorder %s19, 0
    %p46 = por %p44, %p45
    %s48 = sadd.s32 %s47, 1
    %p51 = scmp.eq.s32.totalorder %s13, 1
    %p52 = scmp.ne.s32.totalorder %s47, %s49
    %p53 = scmp.eq.s32.totalorder %s13, 0
    %p54 = por %p52, %p53
    %p55 = scmp.ne.s32.totalorder %s47, %s49
    %p56 = scmp.eq.s32.totalorder %s18, 1
    %p57 = por %p55, %p56
    %p58 = scmp.ne.s32.totalorder %s49, %s50
    %p59 = scmp.eq.s32.totalorder %s18, 0
    %p60 = por %p58, %p59
    %p61 = scmp.ne.s32.totalorder %s49, %s50
    %p62 = scmp.eq.s32.totalorder %s19, 1
    %p63 = por %p61, %p62
    %p65 = scmp.ne.s32.totalorder %s50, %s64
    %p66 = scmp.eq.s32.totalorder %s19, 0
    %p67 = por %p65, %p66
    %s69 = sadd.s32 %s68, 1
    %p72 = scmp.eq.s32.totalorder %s13, 1
    %p73 = scmp.ne.s32.totalorder %s68, %s70
    %p74 = scmp.eq.s32.totalorder %s13, 0
    %p75 = por %p73, %p74
    %p76 = scmp.ne.s32.totalorder %s68, %s70
    %p77 = scmp.eq.s32.totalorder %s18, 1
    %p78 = por %p76, %p77
    %p79 = scmp.ne.s32.totalorder %s70, %s71
    %p80 = scmp.eq.s32.totalorder %s18, 0
    %p81 = por %p79, %p80
    %p82 = scmp.ne.s32.totalorder %s70, %s71
    %p83 = scmp.eq.s32.totalorder %s19, 1
    %p84 = por %p82, %p83
    %p86 = scmp.ne.s32.totalorder %s71, %s85
    %p87 = scmp.eq.s32.totalorder %s19, 0
    %p88 = por %p86, %p87
    %s90 = sadd.s32 %s89, 1
    %p93 = scmp.eq.s32.totalorder %s13, 1
    %p94 = scmp.ne.s32.totalorder %s89, %s91
    %p95 = scmp.eq.s32.totalorder %s13, 0
    %p96 = por %p94, %p95
    %p97 = scmp.ne.s32.totalorder %s89, %s91
    %p98 = scmp.eq.s32.totalorder %s18, 1
    %p99 = por %p97, %p98
    %p100 = scmp.ne.s32.totalorder %s91, %s92
    %p101 = scmp.eq.s32.totalorder %s18, 0
    %p102 = por %p100, %p101
    %p103 = scmp.ne.s32.totalorder %s91, %s92
    %p104 = scmp.eq.s32.totalorder %s19, 1
    %p105 = por %p103, %p104
    %p107 = scmp.ne.s32.totalorder %s92, %s106
    %p108 = scmp.eq.s32.totalorder %s19, 0
    %p109 = por %p107, %p108
    %s111 = sadd.s32 %s110, 1
    %p114 = scmp.eq.s32.totalorder %s13, 1
    %p115 = scmp.ne.s32.totalorder %s110, %s112
    %p116 = scmp.eq.s32.totalorder %s13, 0
    %p117 = por %p115, %p116
    %p118 = scmp.ne.s32.totalorder %s110, %s112
    %p119 = scmp.eq.s32.totalorder %s18, 1
    %p120 = por %p118, %p119
    %p121 = scmp.ne.s32.totalorder %s112, %s113
    %p122 = scmp.eq.s32.totalorder %s18, 0
    %p123 = por %p121, %p122
    %p124 = scmp.ne.s32.totalorder %s112, %s113
    %p125 = scmp.eq.s32.totalorder %s19, 1
    %p126 = por %p124, %p125
    %p128 = scmp.ne.s32.totalorder %s113, %s127
    %p129 = scmp.eq.s32.totalorder %s19, 0
    %p130 = por %p128, %p129
    %s132 = sadd.s32 %s131, 1
    %p135 = scmp.eq.s32.totalorder %s13, 1
    %p136 = scmp.ne.s32.totalorder %s131, %s133
    %p137 = scmp.eq.s32.totalorder %s13, 0
    %p138 = por %p136, %p137
    %p139 = scmp.ne.s32.totalorder %s131, %s133
    %p140 = scmp.eq.s32.totalorder %s18, 1
    %p141 = por %p139, %p140
    %p142 = scmp.ne.s32.totalorder %s133, %s134
    %p143 = scmp.eq.s32.totalorder %s18, 0
    %p144 = por %p142, %p143
    %p145 = scmp.ne.s32.totalorder %s133, %s134
    %p146 = scmp.eq.s32.totalorder %s19, 1
    %p147 = por %p145, %p146
    %p149 = scmp.ne.s32.totalorder %s134, %s148
    %p150 = scmp.eq.s32.totalorder %s19, 0
    %p151 = por %p149, %p150
    %s153 = sadd.s32 %s152, 1
    %p156 = scmp.eq.s32.totalorder %s13, 1
    %p157 = scmp.ne.s32.totalorder %s152, %s154
    %p158 = scmp.eq.s32.totalorder %s13, 0
    %p159 = por %p157, %p158
    %p160 = scmp.ne.s32.totalorder %s152, %s154
    %p161 = scmp.eq.s32.totalorder %s18, 1
    %p162 = por %p160, %p161
    %p163 = scmp.ne.s32.totalorder %s154, %s155
    %p164 = scmp.eq.s32.totalorder %s18, 0
    %p165 = por %p163, %p164
    %p166 = scmp.ne.s32.totalorder %s154, %s155
    %p167 = scmp.eq.s32.totalorder %s19, 1
    %p168 = por %p166, %p167
    %p170 = scmp.ne.s32.totalorder %s155, %s169
    %p171 = scmp.eq.s32.totalorder %s19, 0
    %p172 = por %p170, %p171
    %s173 = ssub.s32 %s13, %s20
    %p174 = scmp.eq.s32.totalorder %s173, 0
    %s176 = sadd.s32 %s175, 1
    %s177 = scalar_select %p174, %s175, %s176
    %p180 = pneg %p174
    %p181 = scmp.eq.s32.totalorder %s13, 1
    %p182 = por %p180, %p181
    %p183 = scmp.ne.s32.totalorder %s175, %s178
    %p184 = scmp.eq.s32.totalorder %s13, 0
    %p185 = por %p183, %p184
    %p186 = scmp.ne.s32.totalorder %s175, %s178
    %p187 = scmp.eq.s32.totalorder %s18, 1
    %p188 = por %p186, %p187
    %p189 = scmp.ne.s32.totalorder %s178, %s179
    %p190 = scmp.eq.s32.totalorder %s18, 0
    %p191 = por %p189, %p190
    %p192 = scmp.ne.s32.totalorder %s178, %s179
    %p193 = scmp.eq.s32.totalorder %s19, 1
    %p194 = por %p192, %p193
    %p196 = scmp.ne.s32.totalorder %s179, %s195
    %p197 = scmp.eq.s32.totalorder %s19, 0
    %p198 = por %p196, %p197
    %p199 = scmp.le.s32.totalorder 1, %s13
    %p200 = scmp.lt.s32.totalorder %s13, 3
    %p201 = pnand %p199, %p200
    %p202 = pneg %p201
    // Predicated region
    $region9: #{transformer_fwd.14} parent=5 // pred_check
      _
    $region10: #{transformer_fwd.14} parent=5 // pred_check_branch
      %204 = sbr.rel (%p201) target = $region12
    $region11: #{transformer_fwd.14} parent=5 // pred_region
      %s205 = ssub.s32 %s13, 1
      // Predicated region
      $region13: #{transformer_fwd.14} parent=11 // pred_check
        %p206 = pneg %p60
      $region14: #{transformer_fwd.14} parent=11 // pred_check_branch
        %208 = sbr.rel (%p206) target = $region16
      $region15: #{transformer_fwd.14} parent=11 // pred_region
        _
      $region16: #{transformer_fwd.14} parent=11 // pred_fallthru
        _
      // Predicated region
      $region17: #{transformer_fwd.14} parent=11 // pred_check
        %p209 = pneg %p81
      $region18: #{transformer_fwd.14} parent=11 // pred_check_branch
        %211 = sbr.rel (%p209) target = $region20
      $region19: #{transformer_fwd.14} parent=11 // pred_region
        _
      $region20: #{transformer_fwd.14} parent=11 // pred_fallthru
        _
      // Predicated region
      $region21: #{transformer_fwd.14} parent=11 // pred_check
        %p212 = pneg %p102
      $region22: #{transformer_fwd.14} parent=11 // pred_check_branch
        %214 = sbr.rel (%p212) target = $region24
      $region23: #{transformer_fwd.14} parent=11 // pred_region
        _
      $region24: #{transformer_fwd.14} parent=11 // pred_fallthru
        _
      // Predicated region
      $region25: #{transformer_fwd.14} parent=11 // pred_check
        %p215 = pneg %p123
      $region26: #{transformer_fwd.14} parent=11 // pred_check_branch
        %217 = sbr.rel (%p215) target = $region28
      $region27: #{transformer_fwd.14} parent=11 // pred_region
        _
      $region28: #{transformer_fwd.14} parent=11 // pred_fallthru
        _
      // Predicated region
      $region29: #{transformer_fwd.14} parent=11 // pred_check
        %p218 = pneg %p144
      $region30: #{transformer_fwd.14} parent=11 // pred_check_branch
        %220 = sbr.rel (%p218) target = $region32
      $region31: #{transformer_fwd.14} parent=11 // pred_region
        _
      $region32: #{transformer_fwd.14} parent=11 // pred_fallthru
        _
      // Predicated region
      $region33: #{transformer_fwd.14} parent=11 // pred_check
        %p221 = pneg %p165
      $region34: #{transformer_fwd.14} parent=11 // pred_check_branch
        %223 = sbr.rel (%p221) target = $region36
      $region35: #{transformer_fwd.14} parent=11 // pred_region
        _
      $region36: #{transformer_fwd.14} parent=11 // pred_fallthru
        _
    $region12: #{transformer_fwd.14} parent=5 // pred_fallthru
      _
    %p224 = scmp.lt.s32.totalorder %s13, 2
    // Predicated region
    $region37: #{transformer_fwd.14} parent=5 // pred_check
      %p225 = pneg %p224
    $region38: #{transformer_fwd.14} parent=5 // pred_check_branch
      %227 = sbr.rel (%p225) target = $region40
    $region39: #{transformer_fwd.14} parent=5 // pred_region
      // Predicated region
      $region41: #{transformer_fwd.14} parent=39 // pred_check
        %p228 = pneg %p33
      $region42: #{transformer_fwd.14} parent=39 // pred_check_branch
        %230 = sbr.rel (%p228) target = $region44
      $region43: #{transformer_fwd.14} parent=39 // pred_region
        %p231 = scmp.lt.s32.totalorder %s13, 1
        %s232 = scalar_select %p231, %s13, 1
        %s233 = smul.addr %s232, 4
        %s234 = scalar_lea.vmem %s0, %s233
      $region44: #{transformer_fwd.14} parent=39 // pred_fallthru
        _
    $region40: #{transformer_fwd.14} parent=5 // pred_fallthru
      _
    %p235 = scmp.le.s32.totalorder 1, %s13
    %p236 = scmp.lt.s32.totalorder %s13, 3
    %p237 = pnand %p235, %p236
    %p238 = pneg %p237
    // Predicated region
    $region45: #{transformer_fwd.14} parent=5 // pred_check
      _
    $region46: #{transformer_fwd.14} parent=5 // pred_check_branch
      %240 = sbr.rel (%p237) target = $region48
    $region47: #{transformer_fwd.14} parent=5 // pred_region
      %s241 = ssub.s32 %s13, 1
      %p242 = scmp.lt.s32.totalorder %s18, 1
      %s243 = scalar_select %p242, %s18, 1
      %s244 = smul.addr %s243, 4
      %s245 = scalar_lea.vmem %s0, %s244
      %p246 = pneg %p39
      %p247 = pneg %p36
      %p248 = pneg %p60
      %p249 = pneg %p57
      %p250 = pneg %p81
      %p251 = pneg %p78
      %p252 = pneg %p102
      %p253 = pneg %p99
      %p254 = pneg %p123
      %p255 = pneg %p120
      %p256 = pneg %p144
      %p257 = pneg %p141
      %p258 = pneg %p165
      %p259 = pneg %p162
      %p260 = pneg %p191
      %p261 = pneg %p188
      %p262 = scmp.lt.s32.totalorder %s18, 1
      %s263 = scalar_select %p262, %s18, 1
      %s264 = smul.addr %s263, 4
      %s265 = scalar_lea.vmem %s7, %s264
      %p266 = scmp.lt.s32.totalorder %s18, 1
      %s267 = scalar_select %p266, %s18, 1
      %s268 = smul.addr %s267, 4
      %s269 = scalar_lea.vmem %s0, %s268
      %p270 = scmp.lt.s32.totalorder %s18, 1
      %s271 = scalar_select %p270, %s18, 1
      %s272 = smul.addr %s271, 4
      %s273 = scalar_lea.vmem %s7, %s272
      %v275 = vld [vmem:[%s269] sm:$0xf]
      %v276 = vld [vmem:[%s1] sm:$0xf]
      %v277 = vld [vmem:[%s1 + $0x4] sm:$0xf]
      %v278 = vld [vmem:[%s1 + $0x8] sm:$0xf]
      %v279 = vld [vmem:[%s1 + $0xc] sm:$0xf]
      %v280 = vld [vmem:[%s1 + $0x10] sm:$0xf]
      %v281 = vld [vmem:[%s1 + $0x14] sm:$0xf]
      %v282 = vld [vmem:[%s1 + $0x18] sm:$0xf]
      %v283 = vld [vmem:[%s1 + $0x1c] sm:$0xf]
      %v284 = vld [vmem:[%s1 + $0x20] sm:$0xf]
      %v285 = vld [vmem:[%s1 + $0x24] sm:$0xf]
      %v286 = vld [vmem:[%s1 + $0x28] sm:$0xf]
      %v287 = vld [vmem:[%s1 + $0x2c] sm:$0xf]
      %v288 = vld [vmem:[%s1 + $0x30] sm:$0xf]
      %v289 = vld [vmem:[%s1 + $0x34] sm:$0xf]
      %v290 = vld [vmem:[%s1 + $0x38] sm:$0xf]
      %v291 = vld [vmem:[%s1 + $0x3c] sm:$0xf]
      %v292 = vld [vmem:[%s2] sm:$0x1]
      %v294 = vlaneseq
      %v295 = vshrl.u32 %v294, 7
      %v296 = vsub.s32 0, %v295
      %v297 = vrot.slane %v292, %v296
      %v315 = vunpack.c.l.b16 %v276
      %v316 = vunpack.c.l.b16 %v277
      %v317 = vunpack.c.l.b16 %v278
      %v318 = vunpack.c.l.b16 %v279
      %v319 = vunpack.c.l.b16 %v280
      %v320 = vunpack.c.l.b16 %v281
      %v321 = vunpack.c.l.b16 %v282
      %v322 = vunpack.c.l.b16 %v283
      %v323 = vunpack.c.l.b16 %v284
      %v324 = vunpack.c.l.b16 %v285
      %v325 = vunpack.c.l.b16 %v286
      %v326 = vunpack.c.l.b16 %v287
      %v327 = vunpack.c.l.b16 %v288
      %v328 = vunpack.c.l.b16 %v289
      %v329 = vunpack.c.l.b16 %v290
      %v330 = vunpack.c.l.b16 %v291
      %v331 = vpack.c.b16 %v316, %v315
      %v332 = vpack.c.b16 %v318, %v317
      %v333 = vpack.c.b16 %v320, %v319
      %v334 = vpack.c.b16 %v322, %v321
      %v335 = vpack.c.b16 %v324, %v323
      %v336 = vpack.c.b16 %v326, %v325
      %v337 = vpack.c.b16 %v328, %v327
      %v338 = vpack.c.b16 %v330, %v329
      %347 = vmatprep.subr.bf16.mxu0 0
      %348 = vmatpush1.bf16.msra.mxu0 %v331
      %349 = vmatprep.subr.bf16.mxu0 0
      %350 = vmatpush1.bf16.msra.mxu0 %v332
      %351 = vmatprep.subr.bf16.mxu0 0
      %352 = vmatpush1.bf16.msra.mxu0 %v333
      %353 = vmatprep.subr.bf16.mxu0 0
      %354 = vmatpush1.bf16.msra.mxu0 %v334
      %355 = vmatprep.subr.bf16.mxu0 0
      %356 = vmatpush1.bf16.msra.mxu0 %v335
      %357 = vmatprep.subr.bf16.mxu0 0
      %358 = vmatpush1.bf16.msra.mxu0 %v336
      %359 = vmatprep.subr.bf16.mxu0 0
      %360 = vmatpush1.bf16.msra.mxu0 %v337
      %361 = vmatprep.subr.bf16.mxu0 0
      %362 = vmatpush1.bf16.msra.mxu0 %v338
      %363 = vmatprep.subr.bf16.mxu0 0
      %364 = vmatpush1.bf16.msra.mxu0 0
      %365 = vmatprep.subr.bf16.mxu0 0
      %366 = vmatpush1.bf16.msra.mxu0 0
      %367 = vmatprep.subr.bf16.mxu0 0
      %368 = vmatpush1.bf16.msra.mxu0 0
      %369 = vmatprep.subr.bf16.mxu0 0
      %370 = vmatpush1.bf16.msra.mxu0 0
      %371 = vmatprep.subr.bf16.mxu0 0
      %372 = vmatpush1.bf16.msra.mxu0 0
      %373 = vmatprep.subr.bf16.mxu0 0
      %374 = vmatpush1.bf16.msra.mxu0 0
      %375 = vmatprep.subr.bf16.mxu0 0
      %376 = vmatpush1.bf16.msra.mxu0 0
      %377 = vmatprep.subr.bf16.mxu0 0
      %378 = vmatpush1.bf16.msra.mxu0 0
      %379 = vmatprep.mubr.bf16.mxu0 0
      %380 = vmatmul.mubr.bf16.gmra.mrb[0].mxu0 %v275
      %v381 = vpop.f32.mrb[0].mxu0
      %v382 = vadd.f32 %v297, %v381
      %v383 = vpop.f32.mrb[0].mxu0
      %v384 = vpop.f32.mrb[0].mxu0
      %v385 = vpop.f32.mrb[0].mxu0
      %386 = vdwg.mxu0
      %v387 = vmax.f32 %v382, 0.0
      %v388 = vpack.c.bf16 %v387, %v387
      %v389 = vld [vmem:[%s3] sm:$0xf]
      %v390 = vld [vmem:[%s3 + $0x4] sm:$0xf]
      %v391 = vld [vmem:[%s3 + $0x8] sm:$0xf]
      %v392 = vld [vmem:[%s3 + $0xc] sm:$0xf]
      %v393 = vld [vmem:[%s3 + $0x10] sm:$0xf]
      %v394 = vld [vmem:[%s3 + $0x14] sm:$0xf]
      %v395 = vld [vmem:[%s3 + $0x18] sm:$0xf]
      %v396 = vld [vmem:[%s3 + $0x1c] sm:$0xf]
      %v397 = vld [vmem:[%s3 + $0x20] sm:$0xf]
      %v398 = vld [vmem:[%s3 + $0x24] sm:$0xf]
      %v399 = vld [vmem:[%s3 + $0x28] sm:$0xf]
      %v400 = vld [vmem:[%s3 + $0x2c] sm:$0xf]
      %v401 = vld [vmem:[%s3 + $0x30] sm:$0xf]
      %v402 = vld [vmem:[%s3 + $0x34] sm:$0xf]
      %v403 = vld [vmem:[%s3 + $0x38] sm:$0xf]
      %v404 = vld [vmem:[%s3 + $0x3c] sm:$0xf]
      %v405 = vld [vmem:[%s4] sm:$0x1]
      %v407 = vlaneseq
      %v408 = vshrl.u32 %v407, 7
      %v409 = vsub.s32 0, %v408
      %v410 = vrot.slane %v405, %v409
      %v428 = vunpack.c.l.b16 %v389
      %v429 = vunpack.c.l.b16 %v390
      %v430 = vunpack.c.l.b16 %v391
      %v431 = vunpack.c.l.b16 %v392
      %v432 = vunpack.c.l.b16 %v393
      %v433 = vunpack.c.l.b16 %v394
      %v434 = vunpack.c.l.b16 %v395
      %v435 = vunpack.c.l.b16 %v396
      %v436 = vunpack.c.l.b16 %v397
      %v437 = vunpack.c.l.b16 %v398
      %v438 = vunpack.c.l.b16 %v399
      %v439 = vunpack.c.l.b16 %v400
      %v440 = vunpack.c.l.b16 %v401
      %v441 = vunpack.c.l.b16 %v402
      %v442 = vunpack.c.l.b16 %v403
      %v443 = vunpack.c.l.b16 %v404
      %v444 = vpack.c.b16 %v429, %v428
      %v445 = vpack.c.b16 %v431, %v430
      %v446 = vpack.c.b16 %v433, %v432
      %v447 = vpack.c.b16 %v435, %v434
      %v448 = vpack.c.b16 %v437, %v436
      %v449 = vpack.c.b16 %v439, %v438
      %v450 = vpack.c.b16 %v441, %v440
      %v451 = vpack.c.b16 %v443, %v442
      %460 = vmatprep.subr.bf16.mxu0 0
      %461 = vmatpush1.bf16.msra.mxu0 %v444
      %462 = vmatprep.subr.bf16.mxu0 0
      %463 = vmatpush1.bf16.msra.mxu0 %v445
      %464 = vmatprep.subr.bf16.mxu0 0
      %465 = vmatpush1.bf16.msra.mxu0 %v446
      %466 = vmatprep.subr.bf16.mxu0 0
      %467 = vmatpush1.bf16.msra.mxu0 %v447
      %468 = vmatprep.subr.bf16.mxu0 0
      %469 = vmatpush1.bf16.msra.mxu0 %v448
      %470 = vmatprep.subr.bf16.mxu0 0
      %471 = vmatpush1.bf16.msra.mxu0 %v449
      %472 = vmatprep.subr.bf16.mxu0 0
      %473 = vmatpush1.bf16.msra.mxu0 %v450
      %474 = vmatprep.subr.bf16.mxu0 0
      %475 = vmatpush1.bf16.msra.mxu0 %v451
      %476 = vmatprep.subr.bf16.mxu0 0
      %477 = vmatpush1.bf16.msra.mxu0 0
      %478 = vmatprep.subr.bf16.mxu0 0
      %479 = vmatpush1.bf16.msra.mxu0 0
      %480 = vmatprep.subr.bf16.mxu0 0
      %481 = vmatpush1.bf16.msra.mxu0 0
      %482 = vmatprep.subr.bf16.mxu0 0
      %483 = vmatpush1.bf16.msra.mxu0 0
      %484 = vmatprep.subr.bf16.mxu0 0
      %485 = vmatpush1.bf16.msra.mxu0 0
      %486 = vmatprep.subr.bf16.mxu0 0
      %487 = vmatpush1.bf16.msra.mxu0 0
      %488 = vmatprep.subr.bf16.mxu0 0
      %489 = vmatpush1.bf16.msra.mxu0 0
      %490 = vmatprep.subr.bf16.mxu0 0
      %491 = vmatpush1.bf16.msra.mxu0 0
      %492 = vmatprep.mubr.bf16.mxu0 0
      %493 = vmatmul.mubr.bf16.gmra.mrb[0].mxu0 %v388
      %v494 = vpop.f32.mrb[0].mxu0
      %v495 = vadd.f32 %v410, %v494
      %v496 = vpop.f32.mrb[0].mxu0
      %v497 = vpop.f32.mrb[0].mxu0
      %v498 = vpop.f32.mrb[0].mxu0
      %499 = vdwg.mxu0
      %v500 = vunpack.c.l.bf16 %v275
      %v501 = vadd.f32 %v500, %v495
      %v502 = vld [vmem:[%s5] sm:$0x1]
      %v503 = vld [vmem:[%s6] sm:$0x1]
      %504 = vadd.xlane.f32.xlu0 %v501
      %v505 = vpop.xlane.xlu0 %504
      %v506 = vmul.f32 %v501, %v501
      %507 = vadd.xlane.f32.xlu0 %v506
      %v508 = vpop.xlane.xlu0 %507
      %v509 = vmul.f32 %v505, 0.03125
      %v510 = vmul.f32 %v509, 32.0
      %v511 = vmul.f32 %v510, %v509
      %v512 = vsub.f32 %v508, %v511
      %v513 = vmul.f32 %v512, 0.032258064
      %v514 = vmax.f32 %v513, 0.0
      %v515 = vrsqrt.pop %v514
      %v516 = vmul.f32 %v514, %v515
      %vm517 = vcmp.eq.f32.partialorder %v514, inf
      %v518 = vsel %vm517, %v514, %v516
      %vm519 = vcmp.eq.f32.partialorder %v514, 0.0
      %v520 = vand.u32 %v514, 2147483648
      %v521 = vsel %vm519, %v520, %v518
      %v522 = vadd.f32 %v521, 1e-06
      %v523 = vrcp.pop %v522
      %v524 = vsub.f32 %v501, %v509
      %v526 = vlaneseq
      %v527 = vshrl.u32 %v526, 7
      %v528 = vsub.s32 0, %v527
      %v529 = vrot.slane %v502, %v528
      %v531 = vmul.f32 %v529, %v524
      %v532 = vmul.f32 %v531, %v523
      %v534 = vlaneseq
      %v535 = vshrl.u32 %v534, 7
      %v536 = vsub.s32 0, %v535
      %v537 = vrot.slane %v503, %v536
      %v539 = vadd.f32 %v532, %v537
      %v540 = vpack.c.bf16 %v539, %v539
      %541 = vst [vmem:[%s273] sm:$0xf] %v540
      %p542 = scmp.lt.s32.totalorder %s18, 1
      %s543 = scalar_select %p542, %s18, 1
      %s544 = smul.addr %s543, 4
      %s545 = scalar_lea.vmem %s7, %s544
      // Predicated region
      $region49: #{transformer_fwd.14} parent=47 // pred_check
        %p546 = pneg %p188
      $region50: #{transformer_fwd.14} parent=47 // pred_check_branch
        %548 = sbr.rel (%p546) target = $region52
      $region51: #{transformer_fwd.14} parent=47 // pred_region
        _
      $region52: #{transformer_fwd.14} parent=47 // pred_fallthru
        _
    $region48: #{transformer_fwd.14} parent=5 // pred_fallthru
      _
    %p549 = scmp.le.s32.totalorder 2, %s13
    // Predicated region
    $region53: #{transformer_fwd.14} parent=5 // pred_check
      %p550 = pneg %p549
    $region54: #{transformer_fwd.14} parent=5 // pred_check_branch
      %552 = sbr.rel (%p550) target = $region56
    $region55: #{transformer_fwd.14} parent=5 // pred_region
      %s553 = ssub.s32 %s13, 2
      // Predicated region
      $region57: #{transformer_fwd.14} parent=55 // pred_check
        %p554 = pneg %p194
      $region58: #{transformer_fwd.14} parent=55 // pred_check_branch
        %556 = sbr.rel (%p554) target = $region60
      $region59: #{transformer_fwd.14} parent=55 // pred_region
        %p557 = scmp.lt.s32.totalorder %s19, 1
        %s558 = scalar_select %p557, %s19, 1
        %s559 = smul.addr %s558, 4
        %s560 = scalar_lea.vmem %s7, %s559
      $region60: #{transformer_fwd.14} parent=55 // pred_fallthru
        _
    $region56: #{transformer_fwd.14} parent=5 // pred_fallthru
      _
  $region6: #{transformer_fwd.14} parent=0 // loop_footer
    %s17 = sadd.s32 1, %s13
  $region7: #{transformer_fwd.14} parent=0 // loop_footer_branch
    %12 = sbr.rel target = $region3
  $region8: #{transformer_fwd.14} parent=0 // loop_exit
    _

// kernel: transformer_fwd.17
$region0: #{transformer_fwd.17}
  #allocation0 [shape = 'u32[]', space=smem, size = 0x4, offset = 0x4, fixed_abs, tag = 'smem constant byte address 0x4 - core index']
  #allocation1 [shape = 'u32[144,128]{1,0:T(1,128)}', space=vmem, size = 0x12000, scoped, tag = 'internal scratch']
  %s0 = inlined_call_operand.vmem [shape: bf16[2,8,128], index: 0, kind: input, shape index: {}]
  %s1 = inlined_call_operand.vmem [shape: f32[1,128], index: 1, kind: input, shape index: {}]
  %s2 = inlined_call_operand.vmem [shape: f32[1,128], index: 2, kind: input, shape index: {}]
  %s3 = inlined_call_operand.vmem [shape: bf16[2,8,128], index: 3, kind: output, shape index: {}]
  %s4 = sld [smem:[#allocation0]]
  $region45: #{transformer_fwd.17} parent=0
    _
  %s6 = ssub.s32 1, %s4
  %s7 = scalar_select 0, %s6, %s4
  loop: start=0, step=1, limit=4
  $region2: #{transformer_fwd.17} parent=0 // loop_pre_header
    _
  $region3: #{transformer_fwd.17} parent=0 // loop_header
    %s9 = sphi 0, %s13
    %p10 = scmp.ge.s32.totalorder %s9, 4
    %s19 = sphi 0, %s21
    %s22 = sphi 0, %s19
    %s23 = sphi 0, %s22
    %s39 = sphi 0, %s23
    %s43 = sphi 0, %s43
    %s45 = sphi 0, %s43
    %s46 = sphi 0, %s45
    %s60 = sphi 0, %s46
    %s64 = sphi 0, %s64
    %s66 = sphi 0, %s64
    %s67 = sphi 0, %s66
    %s81 = sphi 0, %s67
    %s87 = sphi 0, %s89
    %s90 = sphi 0, %s87
    %s91 = sphi 0, %s90
    %s107 = sphi 0, %s91
  $region4: #{transformer_fwd.17} parent=0 // loop_header_branch
    %12 = sbr.rel (%p10) target = $region8
  $region5: #{transformer_fwd.17} parent=0 // loop_body
    %s14 = ssub.s32 %s9, 1
    %s15 = ssub.s32 %s9, 2
    %s16 = sadd.s32 %s9, 1
    %s17 = ssub.s32 %s9, %s16
    %p18 = scmp.eq.s32.totalorder %s17, 0
    %s20 = sadd.s32 %s19, 1
    %s21 = scalar_select %p18, %s19, %s20
    %p24 = pneg %p18
    %p25 = scmp.eq.s32.totalorder %s9, 1
    %p26 = por %p24, %p25
    %p27 = scmp.ne.s32.totalorder %s19, %s22
    %p28 = scmp.eq.s32.totalorder %s9, 0
    %p29 = por %p27, %p28
    %p30 = scmp.ne.s32.totalorder %s19, %s22
    %p31 = scmp.eq.s32.totalorder %s14, 1
    %p32 = por %p30, %p31
    %p33 = scmp.ne.s32.totalorder %s22, %s23
    %p34 = scmp.eq.s32.totalorder %s14, 0
    %p35 = por %p33, %p34
    %p36 = scmp.ne.s32.totalorder %s22, %s23
    %p37 = scmp.eq.s32.totalorder %s15, 1
    %p38 = por %p36, %p37
    %p40 = scmp.ne.s32.totalorder %s23, %s39
    %p41 = scmp.eq.s32.totalorder %s15, 0
    %p42 = por %p40, %p41
    %s44 = sadd.s32 %s43, 1
    %p47 = scmp.eq.s32.totalorder %s9, 1
    %p48 = scmp.ne.s32.totalorder %s43, %s45
    %p49 = scmp.eq.s32.totalorder %s9, 0
    %p50 = por %p48, %p49
    %p51 = scmp.ne.s32.totalorder %s43, %s45
    %p52 = scmp.eq.s32.totalorder %s14, 1
    %p53 = por %p51, %p52
    %p54 = scmp.ne.s32.totalorder %s45, %s46
    %p55 = scmp.eq.s32.totalorder %s14, 0
    %p56 = por %p54, %p55
    %p57 = scmp.ne.s32.totalorder %s45, %s46
    %p58 = scmp.eq.s32.totalorder %s15, 1
    %p59 = por %p57, %p58
    %p61 = scmp.ne.s32.totalorder %s46, %s60
    %p62 = scmp.eq.s32.totalorder %s15, 0
    %p63 = por %p61, %p62
    %s65 = sadd.s32 %s64, 1
    %p68 = scmp.eq.s32.totalorder %s9, 1
    %p69 = scmp.ne.s32.totalorder %s64, %s66
    %p70 = scmp.eq.s32.totalorder %s9, 0
    %p71 = por %p69, %p70
    %p72 = scmp.ne.s32.totalorder %s64, %s66
    %p73 = scmp.eq.s32.totalorder %s14, 1
    %p74 = por %p72, %p73
    %p75 = scmp.ne.s32.totalorder %s66, %s67
    %p76 = scmp.eq.s32.totalorder %s14, 0
    %p77 = por %p75, %p76
    %p78 = scmp.ne.s32.totalorder %s66, %s67
    %p79 = scmp.eq.s32.totalorder %s15, 1
    %p80 = por %p78, %p79
    %p82 = scmp.ne.s32.totalorder %s67, %s81
    %p83 = scmp.eq.s32.totalorder %s15, 0
    %p84 = por %p82, %p83
    %s85 = ssub.s32 %s9, %s16
    %p86 = scmp.eq.s32.totalorder %s85, 0
    %s88 = sadd.s32 %s87, 1
    %s89 = scalar_select %p86, %s87, %s88
    %p92 = pneg %p86
    %p93 = scmp.eq.s32.totalorder %s9, 1
    %p94 = por %p92, %p93
    %p95 = scmp.ne.s32.totalorder %s87, %s90
    %p96 = scmp.eq.s32.totalorder %s9, 0
    %p97 = por %p95, %p96
    %p98 = scmp.ne.s32.totalorder %s87, %s90
    %p99 = scmp.eq.s32.totalorder %s14, 1
    %p100 = por %p98, %p99
    %p101 = scmp.ne.s32.totalorder %s90, %s91
    %p102 = scmp.eq.s32.totalorder %s14, 0
    %p103 = por %p101, %p102
    %p104 = scmp.ne.s32.totalorder %s90, %s91
    %p105 = scmp.eq.s32.totalorder %s15, 1
    %p106 = por %p104, %p105
    %p108 = scmp.ne.s32.totalorder %s91, %s107
    %p109 = scmp.eq.s32.totalorder %s15, 0
    %p110 = por %p108, %p109
    %p111 = scmp.le.s32.totalorder 1, %s9
    %p112 = scmp.lt.s32.totalorder %s9, 3
    %p113 = pnand %p111, %p112
    %p114 = pneg %p113
    // Predicated region
    $region9: #{transformer_fwd.17} parent=5 // pred_check
      _
    $region10: #{transformer_fwd.17} parent=5 // pred_check_branch
      %116 = sbr.rel (%p113) target = $region12
    $region11: #{transformer_fwd.17} parent=5 // pred_region
      %s117 = ssub.s32 %s9, 1
      // Predicated region
      $region13: #{transformer_fwd.17} parent=11 // pred_check
        %p118 = pneg %p56
      $region14: #{transformer_fwd.17} parent=11 // pred_check_branch
        %120 = sbr.rel (%p118) target = $region16
      $region15: #{transformer_fwd.17} parent=11 // pred_region
        _
      $region16: #{transformer_fwd.17} parent=11 // pred_fallthru
        _
      // Predicated region
      $region17: #{transformer_fwd.17} parent=11 // pred_check
        %p121 = pneg %p77
      $region18: #{transformer_fwd.17} parent=11 // pred_check_branch
        %123 = sbr.rel (%p121) target = $region20
      $region19: #{transformer_fwd.17} parent=11 // pred_region
        _
      $region20: #{transformer_fwd.17} parent=11 // pred_fallthru
        _
    $region12: #{transformer_fwd.17} parent=5 // pred_fallthru
      _
    %p124 = scmp.lt.s32.totalorder %s9, 2
    // Predicated region
    $region21: #{transformer_fwd.17} parent=5 // pred_check
      %p125 = pneg %p124
    $region22: #{transformer_fwd.17} parent=5 // pred_check_branch
      %127 = sbr.rel (%p125) target = $region24
    $region23: #{transformer_fwd.17} parent=5 // pred_region
      // Predicated region
      $region25: #{transformer_fwd.17} parent=23 // pred_check
        %p128 = pneg %p29
      $region26: #{transformer_fwd.17} parent=23 // pred_check_branch
        %130 = sbr.rel (%p128) target = $region28
      $region27: #{transformer_fwd.17} parent=23 // pred_region
        %p131 = scmp.lt.s32.totalorder %s9, 1
        %s132 = scalar_select %p131, %s9, 1
        %s133 = smul.addr %s132, 4
        %s134 = scalar_lea.vmem %s0, %s133
      $region28: #{transformer_fwd.17} parent=23 // pred_fallthru
        _
    $region24: #{transformer_fwd.17} parent=5 // pred_fallthru
      _
    %p135 = scmp.le.s32.totalorder 1, %s9
    %p136 = scmp.lt.s32.totalorder %s9, 3
    %p137 = pnand %p135, %p136
    %p138 = pneg %p137
    // Predicated region
    $region29: #{transformer_fwd.17} parent=5 // pred_check
      _
    $region30: #{transformer_fwd.17} parent=5 // pred_check_branch
      %140 = sbr.rel (%p137) target = $region32
    $region31: #{transformer_fwd.17} parent=5 // pred_region
      %s141 = ssub.s32 %s9, 1
      %p142 = scmp.lt.s32.totalorder %s14, 1
      %s143 = scalar_select %p142, %s14, 1
      %s144 = smul.addr %s143, 4
      %s145 = scalar_lea.vmem %s0, %s144
      %p146 = pneg %p35
      %p147 = pneg %p32
      %p148 = pneg %p56
      %p149 = pneg %p53
      %p150 = pneg %p77
      %p151 = pneg %p74
      %p152 = pneg %p103
      %p153 = pneg %p100
      %p154 = scmp.lt.s32.totalorder %s14, 1
      %s155 = scalar_select %p154, %s14, 1
      %s156 = smul.addr %s155, 4
      %s157 = scalar_lea.vmem %s3, %s156
      %p158 = scmp.lt.s32.totalorder %s14, 1
      %s159 = scalar_select %p158, %s14, 1
      %s160 = smul.addr %s159, 4
      %s161 = scalar_lea.vmem %s0, %s160
      %p162 = scmp.lt.s32.totalorder %s14, 1
      %s163 = scalar_select %p162, %s14, 1
      %s164 = smul.addr %s163, 4
      %s165 = scalar_lea.vmem %s3, %s164
      %v166 = vld [vmem:[%s161] sm:$0xf]
      %v167 = vunpack.c.l.bf16 %v166
      %v168 = vld [vmem:[%s1] sm:$0x1]
      %v169 = vld [vmem:[%s2] sm:$0x1]
      %170 = vadd.xlane.f32.xlu0 %v167
      %v171 = vpop.xlane.xlu0 %170
      %v172 = vmul.f32 %v167, %v167
      %173 = vadd.xlane.f32.xlu0 %v172
      %v174 = vpop.xlane.xlu0 %173
      %v175 = vmul.f32 %v171, 0.03125
      %v176 = vmul.f32 %v175, 32.0
      %v177 = vmul.f32 %v176, %v175
      %v178 = vsub.f32 %v174, %v177
      %v179 = vmul.f32 %v178, 0.032258064
      %v180 = vmax.f32 %v179, 0.0
      %v181 = vrsqrt.pop %v180
      %v182 = vmul.f32 %v180, %v181
      %vm183 = vcmp.eq.f32.partialorder %v180, inf
      %v184 = vsel %vm183, %v180, %v182
      %vm185 = vcmp.eq.f32.partialorder %v180, 0.0
      %v186 = vand.u32 %v180, 2147483648
      %v187 = vsel %vm185, %v186, %v184
      %v188 = vadd.f32 %v187, 1e-06
      %v189 = vrcp.pop %v188
      %v190 = vsub.f32 %v167, %v175
      %v192 = vlaneseq
      %v193 = vshrl.u32 %v192, 7
      %v194 = vsub.s32 0, %v193
      %v195 = vrot.slane %v168, %v194
      %v197 = vmul.f32 %v195, %v190
      %v198 = vmul.f32 %v197, %v189
      %v200 = vlaneseq
      %v201 = vshrl.u32 %v200, 7
      %v202 = vsub.s32 0, %v201
      %v203 = vrot.slane %v169, %v202
      %v205 = vadd.f32 %v198, %v203
      %v206 = vpack.c.bf16 %v205, %v205
      %207 = vst [vmem:[%s165] sm:$0xf] %v206
      %p208 = scmp.lt.s32.totalorder %s14, 1
      %s209 = scalar_select %p208, %s14, 1
      %s210 = smul.addr %s209, 4
      %s211 = scalar_lea.vmem %s3, %s210
      // Predicated region
      $region33: #{transformer_fwd.17} parent=31 // pred_check
        %p212 = pneg %p100
      $region34: #{transformer_fwd.17} parent=31 // pred_check_branch
        %214 = sbr.rel (%p212) target = $region36
      $region35: #{transformer_fwd.17} parent=31 // pred_region
        _
      $region36: #{transformer_fwd.17} parent=31 // pred_fallthru
        _
    $region32: #{transformer_fwd.17} parent=5 // pred_fallthru
      _
    %p215 = scmp.le.s32.totalorder 2, %s9
    // Predicated region
    $region37: #{transformer_fwd.17} parent=5 // pred_check
      %p216 = pneg %p215
    $region38: #{transformer_fwd.17} parent=5 // pred_check_branch
      %218 = sbr.rel (%p216) target = $region40
    $region39: #{transformer_fwd.17} parent=5 // pred_region
      %s219 = ssub.s32 %s9, 2
      // Predicated region
      $region41: #{transformer_fwd.17} parent=39 // pred_check
        %p220 = pneg %p106
      $region42: #{transformer_fwd.17} parent=39 // pred_check_branch
        %222 = sbr.rel (%p220) target = $region44
      $region43: #{transformer_fwd.17} parent=39 // pred_region
        %p223 = scmp.lt.s32.totalorder %s15, 1
        %s224 = scalar_select %p223, %s15, 1
        %s225 = smul.addr %s224, 4
        %s226 = scalar_lea.vmem %s3, %s225
      $region44: #{transformer_fwd.17} parent=39 // pred_fallthru
        _
    $region40: #{transformer_fwd.17} parent=5 // pred_fallthru
      _
  $region6: #{transformer_fwd.17} parent=0 // loop_footer
    %s13 = sadd.s32 1, %s9
  $region7: #{transformer_fwd.17} parent=0 // loop_footer_branch
    %8 = sbr.rel target = $region3
  $region8: #{transformer_fwd.17} parent=0 // loop_exit
    _

// kernel: transformer_fwd.25
$region0: #{transformer_fwd.25}
  #allocation0 [shape = 'u32[]', space=smem, size = 0x4, offset = 0x4, fixed_abs, tag = 'smem constant byte address 0x4 - core index']
  #allocation1 [shape = 'u32[144,128]{1,0:T(1,128)}', space=vmem, size = 0x12000, scoped, tag = 'internal scratch']
  #allocation2 [shape = 'f32[16,128]{1,0:T(8,128)}', space=vmem, size = 0x2000, scoped, tag = 'scratch operand']
  %s0 = inlined_call_operand.vmem [shape: bf16[16,128], index: 0, kind: input, shape index: {}]
  %s1 = inlined_call_operand.vmem [shape: bf16[128,128], index: 1, kind: input, shape index: {}]
  %s2 = inlined_call_operand.vmem [shape: f32[1,128], index: 2, kind: input, shape index: {}]
  %s3 = inlined_call_operand.vmem [shape: f32[16,128], index: 3, kind: output, shape index: {}]
  %s4 = sld [smem:[#allocation0]]
  $region30: #{transformer_fwd.25} parent=0
    _
  %s6 = ssub.s32 1, %s4
  %s7 = scalar_select 0, %s6, %s4
  // Predicated region
  $region2: #{transformer_fwd.25} parent=0 // pred_check
    _
  $region3: #{transformer_fwd.25} parent=0 // pred_check_branch
    %9 = sbr.rel (0) target = $region5
  $region4: #{transformer_fwd.25} parent=0 // pred_region
    _
  $region5: #{transformer_fwd.25} parent=0 // pred_fallthru
    _
  // Predicated region
  $region6: #{transformer_fwd.25} parent=0 // pred_check
    _
  $region7: #{transformer_fwd.25} parent=0 // pred_check_branch
    %11 = sbr.rel (0) target = $region9
  $region8: #{transformer_fwd.25} parent=0 // pred_region
    _
  $region9: #{transformer_fwd.25} parent=0 // pred_fallthru
    _
  // Predicated region
  $region10: #{transformer_fwd.25} parent=0 // pred_check
    _
  $region11: #{transformer_fwd.25} parent=0 // pred_check_branch
    %13 = sbr.rel (0) target = $region13
  $region12: #{transformer_fwd.25} parent=0 // pred_region
    _
  $region13: #{transformer_fwd.25} parent=0 // pred_fallthru
    _
  %p15 = scmp.eq.s32.totalorder 0, 0
  // Predicated region
  $region14: #{transformer_fwd.25} parent=0 // pred_check
    %p16 = pneg %p15
  $region15: #{transformer_fwd.25} parent=0 // pred_check_branch
    %18 = sbr.rel (%p16) target = $region17
  $region16: #{transformer_fwd.25} parent=0 // pred_region
    %19 = vst [vmem:[#allocation2] sm:$0xff] 0.0
    %20 = vst [vmem:[#allocation2 + $0x8] sm:$0xff] 0.0
  $region17: #{transformer_fwd.25} parent=0 // pred_fallthru
    _
  %v21 = vld [vmem:[#allocation2] sm:$0xff]
  %v22 = vld [vmem:[#allocation2 + $0x8] sm:$0xff]
  %v23 = vld [vmem:[%s0] sm:$0xf]
  %v24 = vld [vmem:[%s0 + $0x4] sm:$0xf]
  %v25 = vld [vmem:[%s1] sm:$0xf]
  %v26 = vld [vmem:[%s1 + $0x4] sm:$0xf]
  %v27 = vld [vmem:[%s1 + $0x8] sm:$0xf]
  %v28 = vld [vmem:[%s1 + $0xc] sm:$0xf]
  %v29 = vld [vmem:[%s1 + $0x10] sm:$0xf]
  %v30 = vld [vmem:[%s1 + $0x14] sm:$0xf]
  %v31 = vld [vmem:[%s1 + $0x18] sm:$0xf]
  %v32 = vld [vmem:[%s1 + $0x1c] sm:$0xf]
  %v33 = vld [vmem:[%s1 + $0x20] sm:$0xf]
  %v34 = vld [vmem:[%s1 + $0x24] sm:$0xf]
  %v35 = vld [vmem:[%s1 + $0x28] sm:$0xf]
  %v36 = vld [vmem:[%s1 + $0x2c] sm:$0xf]
  %v37 = vld [vmem:[%s1 + $0x30] sm:$0xf]
  %v38 = vld [vmem:[%s1 + $0x34] sm:$0xf]
  %v39 = vld [vmem:[%s1 + $0x38] sm:$0xf]
  %v40 = vld [vmem:[%s1 + $0x3c] sm:$0xf]
  %v43 = vunpack.c.l.b16 %v23
  %v44 = vunpack.c.l.b16 %v24
  %v45 = vpack.c.b16 %v44, %v43
  %v63 = vunpack.c.l.b16 %v25
  %v64 = vunpack.c.l.b16 %v26
  %v65 = vunpack.c.l.b16 %v27
  %v66 = vunpack.c.l.b16 %v28
  %v67 = vunpack.c.l.b16 %v29
  %v68 = vunpack.c.l.b16 %v30
  %v69 = vunpack.c.l.b16 %v31
  %v70 = vunpack.c.l.b16 %v32
  %v71 = vunpack.c.l.b16 %v33
  %v72 = vunpack.c.l.b16 %v34
  %v73 = vunpack.c.l.b16 %v35
  %v74 = vunpack.c.l.b16 %v36
  %v75 = vunpack.c.l.b16 %v37
  %v76 = vunpack.c.l.b16 %v38
  %v77 = vunpack.c.l.b16 %v39
  %v78 = vunpack.c.l.b16 %v40
  %v79 = vpack.c.b16 %v64, %v63
  %v80 = vpack.c.b16 %v66, %v65
  %v81 = vpack.c.b16 %v68, %v67
  %v82 = vpack.c.b16 %v70, %v69
  %v83 = vpack.c.b16 %v72, %v71
  %v84 = vpack.c.b16 %v74, %v73
  %v85 = vpack.c.b16 %v76, %v75
  %v86 = vpack.c.b16 %v78, %v77
  %95 = vmatprep.subr.bf16.mxu0 0
  %96 = vmatpush1.bf16.msra.mxu0 %v79
  %97 = vmatprep.subr.bf16.mxu0 0
  %98 = vmatpush1.bf16.msra.mxu0 %v80
  %99 = vmatprep.subr.bf16.mxu0 0
  %100 = vmatpush1.bf16.msra.mxu0 %v81
  %101 = vmatprep.subr.bf16.mxu0 0
  %102 = vmatpush1.bf16.msra.mxu0 %v82
  %103 = vmatprep.subr.bf16.mxu0 0
  %104 = vmatpush1.bf16.msra.mxu0 %v83
  %105 = vmatprep.subr.bf16.mxu0 0
  %106 = vmatpush1.bf16.msra.mxu0 %v84
  %107 = vmatprep.subr.bf16.mxu0 0
  %108 = vmatpush1.bf16.msra.mxu0 %v85
  %109 = vmatprep.subr.bf16.mxu0 0
  %110 = vmatpush1.bf16.msra.mxu0 %v86
  %111 = vmatprep.subr.bf16.mxu0 0
  %112 = vmatpush1.bf16.msra.mxu0 0
  %113 = vmatprep.subr.bf16.mxu0 0
  %114 = vmatpush1.bf16.msra.mxu0 0
  %115 = vmatprep.subr.bf16.mxu0 0
  %116 = vmatpush1.bf16.msra.mxu0 0
  %117 = vmatprep.subr.bf16.mxu0 0
  %118 = vmatpush1.bf16.msra.mxu0 0
  %119 = vmatprep.subr.bf16.mxu0 0
  %120 = vmatpush1.bf16.msra.mxu0 0
  %121 = vmatprep.subr.bf16.mxu0 0
  %122 = vmatpush1.bf16.msra.mxu0 0
  %123 = vmatprep.subr.bf16.mxu0 0
  %124 = vmatpush1.bf16.msra.mxu0 0
  %125 = vmatprep.subr.bf16.mxu0 0
  %126 = vmatpush1.bf16.msra.mxu0 0
  %127 = vmatprep.mubr.bf16.mxu0 0
  %128 = vmatmul.mubr.bf16.gmra.mrb[0].mxu0 %v45
  %v129 = vpop.f32.mrb[0].mxu0
  %v130 = vadd.f32 0.0, %v129
  %v131 = vpop.f32.mrb[0].mxu0
  %v132 = vpop.f32.mrb[0].mxu0
  %v133 = vadd.f32 0.0, %v132
  %v134 = vpop.f32.mrb[0].mxu0
  %135 = vdwg.mxu0
  %v136 = vadd.f32 %v21, %v130
  %v137 = vadd.f32 %v22, %v133
  %138 = vst [vmem:[#allocation2] sm:$0xff] %v136
  %139 = vst [vmem:[#allocation2 + $0x8] sm:$0xff] %v137
  // Predicated region
  $region18: #{transformer_fwd.25} parent=0 // pred_check
    %p140 = pneg %p15
  $region19: #{transformer_fwd.25} parent=0 // pred_check_branch
    %142 = sbr.rel (%p140) target = $region21
  $region20: #{transformer_fwd.25} parent=0 // pred_region
    %v143 = vld [vmem:[#allocation2] sm:$0xff]
    %v144 = vld [vmem:[#allocation2 + $0x8] sm:$0xff]
    %v145 = vld [vmem:[%s2] sm:$0x1]
    %v147 = vlaneseq
    %v148 = vshrl.u32 %v147, 7
    %v149 = vsub.s32 0, %v148
    %v150 = vrot.slane %v145, %v149
    %v152 = vadd.f32 %v143, %v150
    %v153 = vadd.f32 %v144, %v150
    %154 = vst [vmem:[%s3] sm:$0xff] %v152
    %155 = vst [vmem:[%s3 + $0x8] sm:$0xff] %v153
  $region21: #{transformer_fwd.25} parent=0 // pred_fallthru
    _
  // Predicated region
  $region22: #{transformer_fwd.25} parent=0 // pred_check
    _
  $region23: #{transformer_fwd.25} parent=0 // pred_check_branch
    %157 = sbr.rel (0) target = $region25
  $region24: #{transformer_fwd.25} parent=0 // pred_region
    _
  $region25: #{transformer_fwd.25} parent=0 // pred_fallthru
    _
  // Predicated region
  $region26: #{transformer_fwd.25} parent=0 // pred_check
    _
  $region27: #{transformer_fwd.25} parent=0 // pred_check_branch
    %159 = sbr.rel (0) target = $region29
  $region28: #{transformer_fwd.25} parent=0 // pred_region
    _
  $region29: #{transformer_fwd.25} parent=0 // pred_fallthru
    _

// kernel: transformer_fwd.13
$region0: #{transformer_fwd.13}
  #allocation0 [shape = 'u32[]', space=smem, size = 0x4, offset = 0x4, fixed_abs, tag = 'smem constant byte address 0x4 - core index']
  #allocation1 [shape = 'u32[144,128]{1,0:T(1,128)}', space=vmem, size = 0x12000, scoped, tag = 'internal scratch']
  %s0 = inlined_call_operand.vmem [shape: bf16[2,8,128], index: 0, kind: input, shape index: {}]
  %s1 = inlined_call_operand.vmem [shape: f32[2,1,8], index: 1, kind: input, shape index: {}]
  %s2 = inlined_call_operand.vmem [shape: bf16[4,128,8], index: 2, kind: input, shape index: {}]
  %s3 = inlined_call_operand.vmem [shape: f32[4,1,8], index: 3, kind: input, shape index: {}]
  %s4 = inlined_call_operand.vmem [shape: bf16[4,128,8], index: 4, kind: input, shape index: {}]
  %s5 = inlined_call_operand.vmem [shape: f32[4,1,8], index: 5, kind: input, shape index: {}]
  %s6 = inlined_call_operand.vmem [shape: bf16[4,128,8], index: 6, kind: input, shape index: {}]
  %s7 = inlined_call_operand.vmem [shape: f32[4,1,8], index: 7, kind: input, shape index: {}]
  %s8 = inlined_call_operand.vmem [shape: bf16[4,8,128], index: 8, kind: input, shape index: {}]
  %s9 = inlined_call_operand.vmem [shape: f32[1,128], index: 9, kind: input, shape index: {}]
  %s10 = inlined_call_operand.vmem [shape: f32[1,128], index: 10, kind: input, shape index: {}]
  %s11 = inlined_call_operand.vmem [shape: f32[1,128], index: 11, kind: input, shape index: {}]
  %s12 = inlined_call_operand.vmem [shape: bf16[2,8,128], index: 12, kind: output, shape index: {}]
  %s13 = sld [smem:[#allocation0]]
  $region81: #{transformer_fwd.13} parent=0
    _
  %s15 = ssub.s32 1, %s13
  %s16 = scalar_select 0, %s15, %s13
  loop: start=0, step=1, limit=4
  $region2: #{transformer_fwd.13} parent=0 // loop_pre_header
    _
  $region3: #{transformer_fwd.13} parent=0 // loop_header
    %s18 = sphi 0, %s22
    %p19 = scmp.ge.s32.totalorder %s18, 4
    %s28 = sphi 0, %s30
    %s31 = sphi 0, %s28
    %s32 = sphi 0, %s31
    %s48 = sphi 0, %s32
    %s54 = sphi 0, %s56
    %s57 = sphi 0, %s54
    %s58 = sphi 0, %s57
    %s74 = sphi 0, %s58
    %s78 = sphi 0, %s78
    %s80 = sphi 0, %s78
    %s81 = sphi 0, %s80
    %s95 = sphi 0, %s81
    %s99 = sphi 0, %s99
    %s101 = sphi 0, %s99
    %s102 = sphi 0, %s101
    %s116 = sphi 0, %s102
    %s120 = sphi 0, %s120
    %s122 = sphi 0, %s120
    %s123 = sphi 0, %s122
    %s137 = sphi 0, %s123
    %s141 = sphi 0, %s141
    %s143 = sphi 0, %s141
    %s144 = sphi 0, %s143
    %s158 = sphi 0, %s144
    %s162 = sphi 0, %s162
    %s164 = sphi 0, %s162
    %s165 = sphi 0, %s164
    %s179 = sphi 0, %s165
    %s183 = sphi 0, %s183
    %s185 = sphi 0, %s183
    %s186 = sphi 0, %s185
    %s200 = sphi 0, %s186
    %s204 = sphi 0, %s204
    %s206 = sphi 0, %s204
    %s207 = sphi 0, %s206
    %s221 = sphi 0, %s207
    %s225 = sphi 0, %s225
    %s227 = sphi 0, %s225
    %s228 = sphi 0, %s227
    %s242 = sphi 0, %s228
    %s246 = sphi 0, %s246
    %s248 = sphi 0, %s246
    %s249 = sphi 0, %s248
    %s263 = sphi 0, %s249
    %s267 = sphi 0, %s267
    %s269 = sphi 0, %s267
    %s270 = sphi 0, %s269
    %s284 = sphi 0, %s270
    %s290 = sphi 0, %s292
    %s293 = sphi 0, %s290
    %s294 = sphi 0, %s293
    %s310 = sphi 0, %s294
  $region4: #{transformer_fwd.13} parent=0 // loop_header_branch
    %21 = sbr.rel (%p19) target = $region8
  $region5: #{transformer_fwd.13} parent=0 // loop_body
    %s23 = ssub.s32 %s18, 1
    %s24 = ssub.s32 %s18, 2
    %s25 = sadd.s32 %s18, 1
    %s26 = ssub.s32 %s18, %s25
    %p27 = scmp.eq.s32.totalorder %s26, 0
    %s29 = sadd.s32 %s28, 1
    %s30 = scalar_select %p27, %s28, %s29
    %p33 = pneg %p27
    %p34 = scmp.eq.s32.totalorder %s18, 1
    %p35 = por %p33, %p34
    %p36 = scmp.ne.s32.totalorder %s28, %s31
    %p37 = scmp.eq.s32.totalorder %s18, 0
    %p38 = por %p36, %p37
    %p39 = scmp.ne.s32.totalorder %s28, %s31
    %p40 = scmp.eq.s32.totalorder %s23, 1
    %p41 = por %p39, %p40
    %p42 = scmp.ne.s32.totalorder %s31, %s32
    %p43 = scmp.eq.s32.totalorder %s23, 0
    %p44 = por %p42, %p43
    %p45 = scmp.ne.s32.totalorder %s31, %s32
    %p46 = scmp.eq.s32.totalorder %s24, 1
    %p47 = por %p45, %p46
    %p49 = scmp.ne.s32.totalorder %s32, %s48
    %p50 = scmp.eq.s32.totalorder %s24, 0
    %p51 = por %p49, %p50
    %s52 = ssub.s32 %s18, %s25
    %p53 = scmp.eq.s32.totalorder %s52, 0
    %s55 = sadd.s32 %s54, 1
    %s56 = scalar_select %p53, %s54, %s55
    %p59 = pneg %p53
    %p60 = scmp.eq.s32.totalorder %s18, 1
    %p61 = por %p59, %p60
    %p62 = scmp.ne.s32.totalorder %s54, %s57
    %p63 = scmp.eq.s32.totalorder %s18, 0
    %p64 = por %p62, %p63
    %p65 = scmp.ne.s32.totalorder %s54, %s57
    %p66 = scmp.eq.s32.totalorder %s23, 1
    %p67 = por %p65, %p66
    %p68 = scmp.ne.s32.totalorder %s57, %s58
    %p69 = scmp.eq.s32.totalorder %s23, 0
    %p70 = por %p68, %p69
    %p71 = scmp.ne.s32.totalorder %s57, %s58
    %p72 = scmp.eq.s32.totalorder %s24, 1
    %p73 = por %p71, %p72
    %p75 = scmp.ne.s32.totalorder %s58, %s74
    %p76 = scmp.eq.s32.totalorder %s24, 0
    %p77 = por %p75, %p76
    %s79 = sadd.s32 %s78, 1
    %p82 = scmp.eq.s32.totalorder %s18, 1
    %p83 = scmp.ne.s32.totalorder %s78, %s80
    %p84 = scmp.eq.s32.totalorder %s18, 0
    %p85 = por %p83, %p84
    %p86 = scmp.ne.s32.totalorder %s78, %s80
    %p87 = scmp.eq.s32.totalorder %s23, 1
    %p88 = por %p86, %p87
    %p89 = scmp.ne.s32.totalorder %s80, %s81
    %p90 = scmp.eq.s32.totalorder %s23, 0
    %p91 = por %p89, %p90
    %p92 = scmp.ne.s32.totalorder %s80, %s81
    %p93 = scmp.eq.s32.totalorder %s24, 1
    %p94 = por %p92, %p93
    %p96 = scmp.ne.s32.totalorder %s81, %s95
    %p97 = scmp.eq.s32.totalorder %s24, 0
    %p98 = por %p96, %p97
    %s100 = sadd.s32 %s99, 1
    %p103 = scmp.eq.s32.totalorder %s18, 1
    %p104 = scmp.ne.s32.totalorder %s99, %s101
    %p105 = scmp.eq.s32.totalorder %s18, 0
    %p106 = por %p104, %p105
    %p107 = scmp.ne.s32.totalorder %s99, %s101
    %p108 = scmp.eq.s32.totalorder %s23, 1
    %p109 = por %p107, %p108
    %p110 = scmp.ne.s32.totalorder %s101, %s102
    %p111 = scmp.eq.s32.totalorder %s23, 0
    %p112 = por %p110, %p111
    %p113 = scmp.ne.s32.totalorder %s101, %s102
    %p114 = scmp.eq.s32.totalorder %s24, 1
    %p115 = por %p113, %p114
    %p117 = scmp.ne.s32.totalorder %s102, %s116
    %p118 = scmp.eq.s32.totalorder %s24, 0
    %p119 = por %p117, %p118
    %s121 = sadd.s32 %s120, 1
    %p124 = scmp.eq.s32.totalorder %s18, 1
    %p125 = scmp.ne.s32.totalorder %s120, %s122
    %p126 = scmp.eq.s32.totalorder %s18, 0
    %p127 = por %p125, %p126
    %p128 = scmp.ne.s32.totalorder %s120, %s122
    %p129 = scmp.eq.s32.totalorder %s23, 1
    %p130 = por %p128, %p129
    %p131 = scmp.ne.s32.totalorder %s122, %s123
    %p132 = scmp.eq.s32.totalorder %s23, 0
    %p133 = por %p131, %p132
    %p134 = scmp.ne.s32.totalorder %s122, %s123
    %p135 = scmp.eq.s32.totalorder %s24, 1
    %p136 = por %p134, %p135
    %p138 = scmp.ne.s32.totalorder %s123, %s137
    %p139 = scmp.eq.s32.totalorder %s24, 0
    %p140 = por %p138, %p139
    %s142 = sadd.s32 %s141, 1
    %p145 = scmp.eq.s32.totalorder %s18, 1
    %p146 = scmp.ne.s32.totalorder %s141, %s143
    %p147 = scmp.eq.s32.totalorder %s18, 0
    %p148 = por %p146, %p147
    %p149 = scmp.ne.s32.totalorder %s141, %s143
    %p150 = scmp.eq.s32.totalorder %s23, 1
    %p151 = por %p149, %p150
    %p152 = scmp.ne.s32.totalorder %s143, %s144
    %p153 = scmp.eq.s32.totalorder %s23, 0
    %p154 = por %p152, %p153
    %p155 = scmp.ne.s32.totalorder %s143, %s144
    %p156 = scmp.eq.s32.totalorder %s24, 1
    %p157 = por %p155, %p156
    %p159 = scmp.ne.s32.totalorder %s144, %s158
    %p160 = scmp.eq.s32.totalorder %s24, 0
    %p161 = por %p159, %p160
    %s163 = sadd.s32 %s162, 1
    %p166 = scmp.eq.s32.totalorder %s18, 1
    %p167 = scmp.ne.s32.totalorder %s162, %s164
    %p168 = scmp.eq.s32.totalorder %s18, 0
    %p169 = por %p167, %p168
    %p170 = scmp.ne.s32.totalorder %s162, %s164
    %p171 = scmp.eq.s32.totalorder %s23, 1
    %p172 = por %p170, %p171
    %p173 = scmp.ne.s32.totalorder %s164, %s165
    %p174 = scmp.eq.s32.totalorder %s23, 0
    %p175 = por %p173, %p174
    %p176 = scmp.ne.s32.totalorder %s164, %s165
    %p177 = scmp.eq.s32.totalorder %s24, 1
    %p178 = por %p176, %p177
    %p180 = scmp.ne.s32.totalorder %s165, %s179
    %p181 = scmp.eq.s32.totalorder %s24, 0
    %p182 = por %p180, %p181
    %s184 = sadd.s32 %s183, 1
    %p187 = scmp.eq.s32.totalorder %s18, 1
    %p188 = scmp.ne.s32.totalorder %s183, %s185
    %p189 = scmp.eq.s32.totalorder %s18, 0
    %p190 = por %p188, %p189
    %p191 = scmp.ne.s32.totalorder %s183, %s185
    %p192 = scmp.eq.s32.totalorder %s23, 1
    %p193 = por %p191, %p192
    %p194 = scmp.ne.s32.totalorder %s185, %s186
    %p195 = scmp.eq.s32.totalorder %s23, 0
    %p196 = por %p194, %p195
    %p197 = scmp.ne.s32.totalorder %s185, %s186
    %p198 = scmp.eq.s32.totalorder %s24, 1
    %p199 = por %p197, %p198
    %p201 = scmp.ne.s32.totalorder %s186, %s200
    %p202 = scmp.eq.s32.totalorder %s24, 0
    %p203 = por %p201, %p202
    %s205 = sadd.s32 %s204, 1
    %p208 = scmp.eq.s32.totalorder %s18, 1
    %p209 = scmp.ne.s32.totalorder %s204, %s206
    %p210 = scmp.eq.s32.totalorder %s18, 0
    %p211 = por %p209, %p210
    %p212 = scmp.ne.s32.totalorder %s204, %s206
    %p213 = scmp.eq.s32.totalorder %s23, 1
    %p214 = por %p212, %p213
    %p215 = scmp.ne.s32.totalorder %s206, %s207
    %p216 = scmp.eq.s32.totalorder %s23, 0
    %p217 = por %p215, %p216
    %p218 = scmp.ne.s32.totalorder %s206, %s207
    %p219 = scmp.eq.s32.totalorder %s24, 1
    %p220 = por %p218, %p219
    %p222 = scmp.ne.s32.totalorder %s207, %s221
    %p223 = scmp.eq.s32.totalorder %s24, 0
    %p224 = por %p222, %p223
    %s226 = sadd.s32 %s225, 1
    %p229 = scmp.eq.s32.totalorder %s18, 1
    %p230 = scmp.ne.s32.totalorder %s225, %s227
    %p231 = scmp.eq.s32.totalorder %s18, 0
    %p232 = por %p230, %p231
    %p233 = scmp.ne.s32.totalorder %s225, %s227
    %p234 = scmp.eq.s32.totalorder %s23, 1
    %p235 = por %p233, %p234
    %p236 = scmp.ne.s32.totalorder %s227, %s228
    %p237 = scmp.eq.s32.totalorder %s23, 0
    %p238 = por %p236, %p237
    %p239 = scmp.ne.s32.totalorder %s227, %s228
    %p240 = scmp.eq.s32.totalorder %s24, 1
    %p241 = por %p239, %p240
    %p243 = scmp.ne.s32.totalorder %s228, %s242
    %p244 = scmp.eq.s32.totalorder %s24, 0
    %p245 = por %p243, %p244
    %s247 = sadd.s32 %s246, 1
    %p250 = scmp.eq.s32.totalorder %s18, 1
    %p251 = scmp.ne.s32.totalorder %s246, %s248
    %p252 = scmp.eq.s32.totalorder %s18, 0
    %p253 = por %p251, %p252
    %p254 = scmp.ne.s32.totalorder %s246, %s248
    %p255 = scmp.eq.s32.totalorder %s23, 1
    %p256 = por %p254, %p255
    %p257 = scmp.ne.s32.totalorder %s248, %s249
    %p258 = scmp.eq.s32.totalorder %s23, 0
    %p259 = por %p257, %p258
    %p260 = scmp.ne.s32.totalorder %s248, %s249
    %p261 = scmp.eq.s32.totalorder %s24, 1
    %p262 = por %p260, %p261
    %p264 = scmp.ne.s32.totalorder %s249, %s263
    %p265 = scmp.eq.s32.totalorder %s24, 0
    %p266 = por %p264, %p265
    %s268 = sadd.s32 %s267, 1
    %p271 = scmp.eq.s32.totalorder %s18, 1
    %p272 = scmp.ne.s32.totalorder %s267, %s269
    %p273 = scmp.eq.s32.totalorder %s18, 0
    %p274 = por %p272, %p273
    %p275 = scmp.ne.s32.totalorder %s267, %s269
    %p276 = scmp.eq.s32.totalorder %s23, 1
    %p277 = por %p275, %p276
    %p278 = scmp.ne.s32.totalorder %s269, %s270
    %p279 = scmp.eq.s32.totalorder %s23, 0
    %p280 = por %p278, %p279
    %p281 = scmp.ne.s32.totalorder %s269, %s270
    %p282 = scmp.eq.s32.totalorder %s24, 1
    %p283 = por %p281, %p282
    %p285 = scmp.ne.s32.totalorder %s270, %s284
    %p286 = scmp.eq.s32.totalorder %s24, 0
    %p287 = por %p285, %p286
    %s288 = ssub.s32 %s18, %s25
    %p289 = scmp.eq.s32.totalorder %s288, 0
    %s291 = sadd.s32 %s290, 1
    %s292 = scalar_select %p289, %s290, %s291
    %p295 = pneg %p289
    %p296 = scmp.eq.s32.totalorder %s18, 1
    %p297 = por %p295, %p296
    %p298 = scmp.ne.s32.totalorder %s290, %s293
    %p299 = scmp.eq.s32.totalorder %s18, 0
    %p300 = por %p298, %p299
    %p301 = scmp.ne.s32.totalorder %s290, %s293
    %p302 = scmp.eq.s32.totalorder %s23, 1
    %p303 = por %p301, %p302
    %p304 = scmp.ne.s32.totalorder %s293, %s294
    %p305 = scmp.eq.s32.totalorder %s23, 0
    %p306 = por %p304, %p305
    %p307 = scmp.ne.s32.totalorder %s293, %s294
    %p308 = scmp.eq.s32.totalorder %s24, 1
    %p309 = por %p307, %p308
    %p311 = scmp.ne.s32.totalorder %s294, %s310
    %p312 = scmp.eq.s32.totalorder %s24, 0
    %p313 = por %p311, %p312
    %p314 = scmp.le.s32.totalorder 1, %s18
    %p315 = scmp.lt.s32.totalorder %s18, 3
    %p316 = pnand %p314, %p315
    %p317 = pneg %p316
    // Predicated region
    $region9: #{transformer_fwd.13} parent=5 // pred_check
      _
    $region10: #{transformer_fwd.13} parent=5 // pred_check_branch
      %319 = sbr.rel (%p316) target = $region12
    $region11: #{transformer_fwd.13} parent=5 // pred_region
      %s320 = ssub.s32 %s18, 1
      // Predicated region
      $region13: #{transformer_fwd.13} parent=11 // pred_check
        %p321 = pneg %p91
      $region14: #{transformer_fwd.13} parent=11 // pred_check_branch
        %323 = sbr.rel (%p321) target = $region16
      $region15: #{transformer_fwd.13} parent=11 // pred_region
        _
      $region16: #{transformer_fwd.13} parent=11 // pred_fallthru
        _
      // Predicated region
      $region17: #{transformer_fwd.13} parent=11 // pred_check
        %p324 = pneg %p112
      $region18: #{transformer_fwd.13} parent=11 // pred_check_branch
        %326 = sbr.rel (%p324) target = $region20
      $region19: #{transformer_fwd.13} parent=11 // pred_region
        _
      $region20: #{transformer_fwd.13} parent=11 // pred_fallthru
        _
      // Predicated region
      $region21: #{transformer_fwd.13} parent=11 // pred_check
        %p327 = pneg %p133
      $region22: #{transformer_fwd.13} parent=11 // pred_check_branch
        %329 = sbr.rel (%p327) target = $region24
      $region23: #{transformer_fwd.13} parent=11 // pred_region
        _
      $region24: #{transformer_fwd.13} parent=11 // pred_fallthru
        _
      // Predicated region
      $region25: #{transformer_fwd.13} parent=11 // pred_check
        %p330 = pneg %p154
      $region26: #{transformer_fwd.13} parent=11 // pred_check_branch
        %332 = sbr.rel (%p330) target = $region28
      $region27: #{transformer_fwd.13} parent=11 // pred_region
        _
      $region28: #{transformer_fwd.13} parent=11 // pred_fallthru
        _
      // Predicated region
      $region29: #{transformer_fwd.13} parent=11 // pred_check
        %p333 = pneg %p175
      $region30: #{transformer_fwd.13} parent=11 // pred_check_branch
        %335 = sbr.rel (%p333) target = $region32
      $region31: #{transformer_fwd.13} parent=11 // pred_region
        _
      $region32: #{transformer_fwd.13} parent=11 // pred_fallthru
        _
      // Predicated region
      $region33: #{transformer_fwd.13} parent=11 // pred_check
        %p336 = pneg %p196
      $region34: #{transformer_fwd.13} parent=11 // pred_check_branch
        %338 = sbr.rel (%p336) target = $region36
      $region35: #{transformer_fwd.13} parent=11 // pred_region
        _
      $region36: #{transformer_fwd.13} parent=11 // pred_fallthru
        _
      // Predicated region
      $region37: #{transformer_fwd.13} parent=11 // pred_check
        %p339 = pneg %p217
      $region38: #{transformer_fwd.13} parent=11 // pred_check_branch
        %341 = sbr.rel (%p339) target = $region40
      $region39: #{transformer_fwd.13} parent=11 // pred_region
        _
      $region40: #{transformer_fwd.13} parent=11 // pred_fallthru
        _
      // Predicated region
      $region41: #{transformer_fwd.13} parent=11 // pred_check
        %p342 = pneg %p238
      $region42: #{transformer_fwd.13} parent=11 // pred_check_branch
        %344 = sbr.rel (%p342) target = $region44
      $region43: #{transformer_fwd.13} parent=11 // pred_region
        _
      $region44: #{transformer_fwd.13} parent=11 // pred_fallthru
        _
      // Predicated region
      $region45: #{transformer_fwd.13} parent=11 // pred_check
        %p345 = pneg %p259
      $region46: #{transformer_fwd.13} parent=11 // pred_check_branch
        %347 = sbr.rel (%p345) target = $region48
      $region47: #{transformer_fwd.13} parent=11 // pred_region
        _
      $region48: #{transformer_fwd.13} parent=11 // pred_fallthru
        _
      // Predicated region
      $region49: #{transformer_fwd.13} parent=11 // pred_check
        %p348 = pneg %p280
      $region50: #{transformer_fwd.13} parent=11 // pred_check_branch
        %350 = sbr.rel (%p348) target = $region52
      $region51: #{transformer_fwd.13} parent=11 // pred_region
        _
      $region52: #{transformer_fwd.13} parent=11 // pred_fallthru
        _
    $region12: #{transformer_fwd.13} parent=5 // pred_fallthru
      _
    %p351 = scmp.lt.s32.totalorder %s18, 2
    // Predicated region
    $region53: #{transformer_fwd.13} parent=5 // pred_check
      %p352 = pneg %p351
    $region54: #{transformer_fwd.13} parent=5 // pred_check_branch
      %354 = sbr.rel (%p352) target = $region56
    $region55: #{transformer_fwd.13} parent=5 // pred_region
      // Predicated region
      $region57: #{transformer_fwd.13} parent=55 // pred_check
        %p355 = pneg %p38
      $region58: #{transformer_fwd.13} parent=55 // pred_check_branch
        %357 = sbr.rel (%p355) target = $region60
      $region59: #{transformer_fwd.13} parent=55 // pred_region
        %p358 = scmp.lt.s32.totalorder %s18, 1
        %s359 = scalar_select %p358, %s18, 1
        %s360 = smul.addr %s359, 4
        %s361 = scalar_lea.vmem %s0, %s360
      $region60: #{transformer_fwd.13} parent=55 // pred_fallthru
        _
      // Predicated region
      $region61: #{transformer_fwd.13} parent=55 // pred_check
        %p362 = pneg %p64
      $region62: #{transformer_fwd.13} parent=55 // pred_check_branch
        %364 = sbr.rel (%p362) target = $region64
      $region63: #{transformer_fwd.13} parent=55 // pred_region
        %p365 = scmp.lt.s32.totalorder %s18, 1
        %s366 = scalar_select %p365, %s18, 1
        %s367 = scalar_lea.vmem %s1, %s366
      $region64: #{transformer_fwd.13} parent=55 // pred_fallthru
        _
    $region56: #{transformer_fwd.13} parent=5 // pred_fallthru
      _
    %p368 = scmp.le.s32.totalorder 1, %s18
    %p369 = scmp.lt.s32.totalorder %s18, 3
    %p370 = pnand %p368, %p369
    %p371 = pneg %p370
    // Predicated region
    $region65: #{transformer_fwd.13} parent=5 // pred_check
      _
    $region66: #{transformer_fwd.13} parent=5 // pred_check_branch
      %373 = sbr.rel (%p370) target = $region68
    $region67: #{transformer_fwd.13} parent=5 // pred_region
      %s374 = ssub.s32 %s18, 1
      %p375 = scmp.lt.s32.totalorder %s23, 1
      %s376 = scalar_select %p375, %s23, 1
      %s377 = smul.addr %s376, 4
      %s378 = scalar_lea.vmem %s0, %s377
      %p379 = pneg %p44
      %p380 = pneg %p41
      %p381 = scmp.lt.s32.totalorder %s23, 1
      %s382 = scalar_select %p381, %s23, 1
      %s383 = scalar_lea.vmem %s1, %s382
      %p384 = pneg %p70
      %p385 = pneg %p67
      %p386 = pneg %p91
      %p387 = pneg %p88
      %p388 = pneg %p112
      %p389 = pneg %p109
      %p390 = pneg %p133
      %p391 = pneg %p130
      %p392 = pneg %p154
      %p393 = pneg %p151
      %p394 = pneg %p175
      %p395 = pneg %p172
      %p396 = pneg %p196
      %p397 = pneg %p193
      %p398 = pneg %p217
      %p399 = pneg %p214
      %p400 = pneg %p238
      %p401 = pneg %p235
      %p402 = pneg %p259
      %p403 = pneg %p256
      %p404 = pneg %p280
      %p405 = pneg %p277
      %p406 = pneg %p306
      %p407 = pneg %p303
      %p408 = scmp.lt.s32.totalorder %s23, 1
      %s409 = scalar_select %p408, %s23, 1
      %s410 = smul.addr %s409, 4
      %s411 = scalar_lea.vmem %s12, %s410
      %p412 = scmp.lt.s32.totalorder %s23, 1
      %s413 = scalar_select %p412, %s23, 1
      %s414 = smul.addr %s413, 4
      %s415 = scalar_lea.vmem %s0, %s414
      %p416 = scmp.lt.s32.totalorder %s23, 1
      %s417 = scalar_select %p416, %s23, 1
      %s418 = scalar_lea.vmem %s1, %s417
      %p419 = scmp.lt.s32.totalorder %s23, 1
      %s420 = scalar_select %p419, %s23, 1
      %s421 = smul.addr %s420, 4
      %s422 = scalar_lea.vmem %s12, %s421
      %v424 = vld [vmem:[%s415] sm:$0xf]
      %v425 = vld [vmem:[%s418] sm:$0x1]
      %v426 = vld [vmem:[%s2] sm:$0xf]
      %v427 = vld [vmem:[%s2 + $0x4] sm:$0xf]
      %v428 = vld [vmem:[%s2 + $0x8] sm:$0xf]
      %v429 = vld [vmem:[%s2 + $0xc] sm:$0xf]
      %v430 = vld [vmem:[%s2 + $0x10] sm:$0xf]
      %v431 = vld [vmem:[%s2 + $0x14] sm:$0xf]
      %v432 = vld [vmem:[%s2 + $0x18] sm:$0xf]
      %v433 = vld [vmem:[%s2 + $0x1c] sm:$0xf]
      %v434 = vld [vmem:[%s2 + $0x20] sm:$0xf]
      %v435 = vld [vmem:[%s2 + $0x24] sm:$0xf]
      %v436 = vld [vmem:[%s2 + $0x28] sm:$0xf]
      %v437 = vld [vmem:[%s2 + $0x2c] sm:$0xf]
      %v438 = vld [vmem:[%s2 + $0x30] sm:$0xf]
      %v439 = vld [vmem:[%s2 + $0x34] sm:$0xf]
      %v440 = vld [vmem:[%s2 + $0x38] sm:$0xf]
      %v441 = vld [vmem:[%s2 + $0x3c] sm:$0xf]
      %v442 = vld [vmem:[%s3] sm:$0x1]
      %v444 = vlaneseq
      %v445 = vshrl.u32 %v444, 7
      %v446 = vsub.s32 0, %v445
      %v447 = vrot.slane %v442, %v446
      %v465 = vunpack.c.l.b16 %v426
      %v466 = vunpack.c.l.b16 %v427
      %v467 = vunpack.c.l.b16 %v428
      %v468 = vunpack.c.l.b16 %v429
      %v469 = vunpack.c.l.b16 %v430
      %v470 = vunpack.c.l.b16 %v431
      %v471 = vunpack.c.l.b16 %v432
      %v472 = vunpack.c.l.b16 %v433
      %v473 = vunpack.c.l.b16 %v434
      %v474 = vunpack.c.l.b16 %v435
      %v475 = vunpack.c.l.b16 %v436
      %v476 = vunpack.c.l.b16 %v437
      %v477 = vunpack.c.l.b16 %v438
      %v478 = vunpack.c.l.b16 %v439
      %v479 = vunpack.c.l.b16 %v440
      %v480 = vunpack.c.l.b16 %v441
      %v481 = vpack.c.b16 %v466, %v465
      %v482 = vpack.c.b16 %v468, %v467
      %v483 = vpack.c.b16 %v470, %v469
      %v484 = vpack.c.b16 %v472, %v471
      %v485 = vpack.c.b16 %v474, %v473
      %v486 = vpack.c.b16 %v476, %v475
      %v487 = vpack.c.b16 %v478, %v477
      %v488 = vpack.c.b16 %v480, %v479
      %497 = vmatprep.subr.bf16.mxu0 0
      %498 = vmatpush1.bf16.msra.mxu0 %v481
      %499 = vmatprep.subr.bf16.mxu0 0
      %500 = vmatpush1.bf16.msra.mxu0 %v482
      %501 = vmatprep.subr.bf16.mxu0 0
      %502 = vmatpush1.bf16.msra.mxu0 %v483
      %503 = vmatprep.subr.bf16.mxu0 0
      %504 = vmatpush1.bf16.msra.mxu0 %v484
      %505 = vmatprep.subr.bf16.mxu0 0
      %506 = vmatpush1.bf16.msra.mxu0 %v485
      %507 = vmatprep.subr.bf16.mxu0 0
      %508 = vmatpush1.bf16.msra.mxu0 %v486
      %509 = vmatprep.subr.bf16.mxu0 0
      %510 = vmatpush1.bf16.msra.mxu0 %v487
      %511 = vmatprep.subr.bf16.mxu0 0
      %512 = vmatpush1.bf16.msra.mxu0 %v488
      %513 = vmatprep.subr.bf16.mxu0 0
      %514 = vmatpush1.bf16.msra.mxu0 0
      %515 = vmatprep.subr.bf16.mxu0 0
      %516 = vmatpush1.bf16.msra.mxu0 0
      %517 = vmatprep.subr.bf16.mxu0 0
      %518 = vmatpush1.bf16.msra.mxu0 0
      %519 = vmatprep.subr.bf16.mxu0 0
      %520 = vmatpush1.bf16.msra.mxu0 0
      %521 = vmatprep.subr.bf16.mxu0 0
      %522 = vmatpush1.bf16.msra.mxu0 0
      %523 = vmatprep.subr.bf16.mxu0 0
      %524 = vmatpush1.bf16.msra.mxu0 0
      %525 = vmatprep.subr.bf16.mxu0 0
      %526 = vmatpush1.bf16.msra.mxu0 0
      %527 = vmatprep.subr.bf16.mxu0 0
      %528 = vmatpush1.bf16.msra.mxu0 0
      %529 = vmatprep.mubr.bf16.mxu0 0
      %530 = vmatmul.mubr.bf16.gmra.mrb[0].mxu0 %v424
      %v531 = vpop.f32.mrb[0].mxu0
      %v532 = vadd.f32 %v447, %v531
      %v533 = vpop.f32.mrb[0].mxu0
      %v534 = vpop.f32.mrb[0].mxu0
      %v535 = vpop.f32.mrb[0].mxu0
      %536 = vdwg.mxu0
      %v537 = vld [vmem:[%s4] sm:$0xf]
      %v538 = vld [vmem:[%s4 + $0x4] sm:$0xf]
      %v539 = vld [vmem:[%s4 + $0x8] sm:$0xf]
      %v540 = vld [vmem:[%s4 + $0xc] sm:$0xf]
      %v541 = vld [vmem:[%s4 + $0x10] sm:$0xf]
      %v542 = vld [vmem:[%s4 + $0x14] sm:$0xf]
      %v543 = vld [vmem:[%s4 + $0x18] sm:$0xf]
      %v544 = vld [vmem:[%s4 + $0x1c] sm:$0xf]
      %v545 = vld [vmem:[%s4 + $0x20] sm:$0xf]
      %v546 = vld [vmem:[%s4 + $0x24] sm:$0xf]
      %v547 = vld [vmem:[%s4 + $0x28] sm:$0xf]
      %v548 = vld [vmem:[%s4 + $0x2c] sm:$0xf]
      %v549 = vld [vmem:[%s4 + $0x30] sm:$0xf]
      %v550 = vld [vmem:[%s4 + $0x34] sm:$0xf]
      %v551 = vld [vmem:[%s4 + $0x38] sm:$0xf]
      %v552 = vld [vmem:[%s4 + $0x3c] sm:$0xf]
      %v553 = vld [vmem:[%s5] sm:$0x1]
      %v555 = vlaneseq
      %v556 = vshrl.u32 %v555, 7
      %v557 = vsub.s32 0, %v556
      %v558 = vrot.slane %v553, %v557
      %v576 = vunpack.c.l.b16 %v537
      %v577 = vunpack.c.l.b16 %v538
      %v578 = vunpack.c.l.b16 %v539
      %v579 = vunpack.c.l.b16 %v540
      %v580 = vunpack.c.l.b16 %v541
      %v581 = vunpack.c.l.b16 %v542
      %v582 = vunpack.c.l.b16 %v543
      %v583 = vunpack.c.l.b16 %v544
      %v584 = vunpack.c.l.b16 %v545
      %v585 = vunpack.c.l.b16 %v546
      %v586 = vunpack.c.l.b16 %v547
      %v587 = vunpack.c.l.b16 %v548
      %v588 = vunpack.c.l.b16 %v549
      %v589 = vunpack.c.l.b16 %v550
      %v590 = vunpack.c.l.b16 %v551
      %v591 = vunpack.c.l.b16 %v552
      %v592 = vpack.c.b16 %v577, %v576
      %v593 = vpack.c.b16 %v579, %v578
      %v594 = vpack.c.b16 %v581, %v580
      %v595 = vpack.c.b16 %v583, %v582
      %v596 = vpack.c.b16 %v585, %v584
      %v597 = vpack.c.b16 %v587, %v586
      %v598 = vpack.c.b16 %v589, %v588
      %v599 = vpack.c.b16 %v591, %v590
      %608 = vmatprep.subr.bf16.mxu0 0
      %609 = vmatpush1.bf16.msra.mxu0 %v592
      %610 = vmatprep.subr.bf16.mxu0 0
      %611 = vmatpush1.bf16.msra.mxu0 %v593
      %612 = vmatprep.subr.bf16.mxu0 0
      %613 = vmatpush1.bf16.msra.mxu0 %v594
      %614 = vmatprep.subr.bf16.mxu0 0
      %615 = vmatpush1.bf16.msra.mxu0 %v595
      %616 = vmatprep.subr.bf16.mxu0 0
      %617 = vmatpush1.bf16.msra.mxu0 %v596
      %618 = vmatprep.subr.bf16.mxu0 0
      %619 = vmatpush1.bf16.msra.mxu0 %v597
      %620 = vmatprep.subr.bf16.mxu0 0
      %621 = vmatpush1.bf16.msra.mxu0 %v598
      %622 = vmatprep.subr.bf16.mxu0 0
      %623 = vmatpush1.bf16.msra.mxu0 %v599
      %624 = vmatprep.subr.bf16.mxu0 0
      %625 = vmatpush1.bf16.msra.mxu0 0
      %626 = vmatprep.subr.bf16.mxu0 0
      %627 = vmatpush1.bf16.msra.mxu0 0
      %628 = vmatprep.subr.bf16.mxu0 0
      %629 = vmatpush1.bf16.msra.mxu0 0
      %630 = vmatprep.subr.bf16.mxu0 0
      %631 = vmatpush1.bf16.msra.mxu0 0
      %632 = vmatprep.subr.bf16.mxu0 0
      %633 = vmatpush1.bf16.msra.mxu0 0
      %634 = vmatprep.subr.bf16.mxu0 0
      %635 = vmatpush1.bf16.msra.mxu0 0
      %636 = vmatprep.subr.bf16.mxu0 0
      %637 = vmatpush1.bf16.msra.mxu0 0
      %638 = vmatprep.subr.bf16.mxu0 0
      %639 = vmatpush1.bf16.msra.mxu0 0
      %640 = vmatprep.mubr.bf16.mxu0 0
      %641 = vmatmul.mubr.bf16.gmra.mrb[0].mxu0 %v424
      %v642 = vpop.f32.mrb[0].mxu0
      %v643 = vadd.f32 %v558, %v642
      %v644 = vpop.f32.mrb[0].mxu0
      %v645 = vpop.f32.mrb[0].mxu0
      %v646 = vpop.f32.mrb[0].mxu0
      %647 = vdwg.mxu0
      %v648 = vld [vmem:[%s6] sm:$0xf]
      %v649 = vld [vmem:[%s6 + $0x4] sm:$0xf]
      %v650 = vld [vmem:[%s6 + $0x8] sm:$0xf]
      %v651 = vld [vmem:[%s6 + $0xc] sm:$0xf]
      %v652 = vld [vmem:[%s6 + $0x10] sm:$0xf]
      %v653 = vld [vmem:[%s6 + $0x14] sm:$0xf]
      %v654 = vld [vmem:[%s6 + $0x18] sm:$0xf]
      %v655 = vld [vmem:[%s6 + $0x1c] sm:$0xf]
      %v656 = vld [vmem:[%s6 + $0x20] sm:$0xf]
      %v657 = vld [vmem:[%s6 + $0x24] sm:$0xf]
      %v658 = vld [vmem:[%s6 + $0x28] sm:$0xf]
      %v659 = vld [vmem:[%s6 + $0x2c] sm:$0xf]
      %v660 = vld [vmem:[%s6 + $0x30] sm:$0xf]
      %v661 = vld [vmem:[%s6 + $0x34] sm:$0xf]
      %v662 = vld [vmem:[%s6 + $0x38] sm:$0xf]
      %v663 = vld [vmem:[%s6 + $0x3c] sm:$0xf]
      %v664 = vld [vmem:[%s7] sm:$0x1]
      %v666 = vlaneseq
      %v667 = vshrl.u32 %v666, 7
      %v668 = vsub.s32 0, %v667
      %v669 = vrot.slane %v664, %v668
      %v687 = vunpack.c.l.b16 %v648
      %v688 = vunpack.c.l.b16 %v649
      %v689 = vunpack.c.l.b16 %v650
      %v690 = vunpack.c.l.b16 %v651
      %v691 = vunpack.c.l.b16 %v652
      %v692 = vunpack.c.l.b16 %v653
      %v693 = vunpack.c.l.b16 %v654
      %v694 = vunpack.c.l.b16 %v655
      %v695 = vunpack.c.l.b16 %v656
      %v696 = vunpack.c.l.b16 %v657
      %v697 = vunpack.c.l.b16 %v658
      %v698 = vunpack.c.l.b16 %v659
      %v699 = vunpack.c.l.b16 %v660
      %v700 = vunpack.c.l.b16 %v661
      %v701 = vunpack.c.l.b16 %v662
      %v702 = vunpack.c.l.b16 %v663
      %v703 = vpack.c.b16 %v688, %v687
      %v704 = vpack.c.b16 %v690, %v689
      %v705 = vpack.c.b16 %v692, %v691
      %v706 = vpack.c.b16 %v694, %v693
      %v707 = vpack.c.b16 %v696, %v695
      %v708 = vpack.c.b16 %v698, %v697
      %v709 = vpack.c.b16 %v700, %v699
      %v710 = vpack.c.b16 %v702, %v701
      %719 = vmatprep.subr.bf16.mxu0 0
      %720 = vmatpush1.bf16.msra.mxu0 %v703
      %721 = vmatprep.subr.bf16.mxu0 0
      %722 = vmatpush1.bf16.msra.mxu0 %v704
      %723 = vmatprep.subr.bf16.mxu0 0
      %724 = vmatpush1.bf16.msra.mxu0 %v705
      %725 = vmatprep.subr.bf16.mxu0 0
      %726 = vmatpush1.bf16.msra.mxu0 %v706
      %727 = vmatprep.subr.bf16.mxu0 0
      %728 = vmatpush1.bf16.msra.mxu0 %v707
      %729 = vmatprep.subr.bf16.mxu0 0
      %730 = vmatpush1.bf16.msra.mxu0 %v708
      %731 = vmatprep.subr.bf16.mxu0 0
      %732 = vmatpush1.bf16.msra.mxu0 %v709
      %733 = vmatprep.subr.bf16.mxu0 0
      %734 = vmatpush1.bf16.msra.mxu0 %v710
      %735 = vmatprep.subr.bf16.mxu0 0
      %736 = vmatpush1.bf16.msra.mxu0 0
      %737 = vmatprep.subr.bf16.mxu0 0
      %738 = vmatpush1.bf16.msra.mxu0 0
      %739 = vmatprep.subr.bf16.mxu0 0
      %740 = vmatpush1.bf16.msra.mxu0 0
      %741 = vmatprep.subr.bf16.mxu0 0
      %742 = vmatpush1.bf16.msra.mxu0 0
      %743 = vmatprep.subr.bf16.mxu0 0
      %744 = vmatpush1.bf16.msra.mxu0 0
      %745 = vmatprep.subr.bf16.mxu0 0
      %746 = vmatpush1.bf16.msra.mxu0 0
      %747 = vmatprep.subr.bf16.mxu0 0
      %748 = vmatpush1.bf16.msra.mxu0 0
      %749 = vmatprep.subr.bf16.mxu0 0
      %750 = vmatpush1.bf16.msra.mxu0 0
      %751 = vmatprep.mubr.bf16.mxu0 0
      %752 = vmatmul.mubr.bf16.gmra.mrb[0].mxu0 %v424
      %v753 = vpop.f32.mrb[0].mxu0
      %v754 = vadd.f32 %v669, %v753
      %v755 = vpop.f32.mrb[0].mxu0
      %v756 = vpop.f32.mrb[0].mxu0
      %v757 = vpop.f32.mrb[0].mxu0
      %758 = vdwg.mxu0
      %v759 = vpack.c.bf16 %v532, %v532
      %v760 = vpack.c.bf16 %v643, %v643
      %v762 = vlaneseq
      %v763 = vshrl.u32 %v762, 7
      %v764 = vsub.s32 0, %v763
      %v765 = vrot.slane %v425, %v764
      %vm767 = vcmask 64512
      %v769 = vsel %vm767, %v759, 0
      %v772 = vsel %vm767, %v760, 0
      %774 = vmatprep.subr.bf16.mxu0 0
      %775 = vmatpush1.bf16.xpose.msra.mxu0 %v772
      %776 = vmatprep.subr.bf16.mxu0 0
      %777 = vmatpush1.bf16.xpose.msra.mxu0 0
      %778 = vmatprep.subr.bf16.mxu0 0
      %779 = vmatpush1.bf16.xpose.msra.mxu0 0
      %780 = vmatprep.subr.bf16.mxu0 0
      %781 = vmatpush1.bf16.xpose.msra.mxu0 0
      %782 = vmatprep.subr.bf16.mxu0 0
      %783 = vmatpush1.bf16.xpose.msra.mxu0 0
      %784 = vmatprep.subr.bf16.mxu0 0
      %785 = vmatpush1.bf16.xpose.msra.mxu0 0
      %786 = vmatprep.subr.bf16.mxu0 0
      %787 = vmatpush1.bf16.xpose.msra.mxu0 0
      %788 = vmatprep.subr.bf16.mxu0 0
      %789 = vmatpush1.bf16.xpose.msra.mxu0 0
      %790 = vmatprep.subr.bf16.mxu0 0
      %791 = vmatpush1.bf16.xpose.msra.mxu0 0
      %792 = vmatprep.subr.bf16.mxu0 0
      %793 = vmatpush1.bf16.xpose.msra.mxu0 0
      %794 = vmatprep.subr.bf16.mxu0 0
      %795 = vmatpush1.bf16.xpose.msra.mxu0 0
      %796 = vmatprep.subr.bf16.mxu0 0
      %797 = vmatpush1.bf16.xpose.msra.mxu0 0
      %798 = vmatprep.subr.bf16.mxu0 0
      %799 = vmatpush1.bf16.xpose.msra.mxu0 0
      %800 = vmatprep.subr.bf16.mxu0 0
      %801 = vmatpush1.bf16.xpose.msra.mxu0 0
      %802 = vmatprep.subr.bf16.mxu0 0
      %803 = vmatpush1.bf16.xpose.msra.mxu0 0
      %804 = vmatprep.subr.bf16.mxu0 0
      %805 = vmatpush1.bf16.xpose.msra.mxu0 0
      %806 = vmatprep.mubr.bf16.mxu0 0
      %807 = vmatmul.mubr.bf16.gmra.mrb[0].mxu0 %v769
      %v808 = vpop.f32.mrb[0].mxu0
      %v809 = vadd.f32 %v765, %v808
      %v810 = vpop.f32.mrb[0].mxu0
      %v811 = vpop.f32.mrb[0].mxu0
      %v812 = vpop.f32.mrb[0].mxu0
      %813 = vdwg.mxu0
      %v814 = vsel %vm767, %v809, -inf
      %815 = vmax.xlane.f32.xlu0 %v814
      %v816 = vpop.xlane.xlu0 %815
      %v817 = vsub.f32 %v809, %v816
      %v818 = vmul.f32 %v817, 1.442695
      %v819 = vpow.pop %v818
      %v820 = vsel %vm767, %v819, 0.0
      %821 = vadd.xlane.f32.xlu0 %v820
      %v822 = vpop.xlane.xlu0 %821
      %v823 = vrcp.pop %v822
      %v824 = vmul.f32 %v819, %v823
      %v825 = vpack.c.bf16 %v824, %v824
      %v826 = vpack.c.bf16 %v754, %v754
      %v828 = vsel %vm767, %v825, 0
      %vm830 = vcmask 1043456
      %v832 = vsel %vm830, %v826, 0
      %834 = vmatprep.subr.bf16.mxu0 0
      %835 = vmatpush1.bf16.msra.mxu0 %v832
      %836 = vmatprep.subr.bf16.mxu0 0
      %837 = vmatpush1.bf16.msra.mxu0 0
      %838 = vmatprep.subr.bf16.mxu0 0
      %839 = vmatpush1.bf16.msra.mxu0 0
      %840 = vmatprep.subr.bf16.mxu0 0
      %841 = vmatpush1.bf16.msra.mxu0 0
      %842 = vmatprep.subr.bf16.mxu0 0
      %843 = vmatpush1.bf16.msra.mxu0 0
      %844 = vmatprep.subr.bf16.mxu0 0
      %845 = vmatpush1.bf16.msra.mxu0 0
      %846 = vmatprep.subr.bf16.mxu0 0
      %847 = vmatpush1.bf16.msra.mxu0 0
      %848 = vmatprep.subr.bf16.mxu0 0
      %849 = vmatpush1.bf16.msra.mxu0 0
      %850 = vmatprep.subr.bf16.mxu0 0
      %851 = vmatpush1.bf16.msra.mxu0 0
      %852 = vmatprep.subr.bf16.mxu0 0
      %853 = vmatpush1.bf16.msra.mxu0 0
      %854 = vmatprep.subr.bf16.mxu0 0
      %855 = vmatpush1.bf16.msra.mxu0 0
      %856 = vmatprep.subr.bf16.mxu0 0
      %857 = vmatpush1.bf16.msra.mxu0 0
      %858 = vmatprep.subr.bf16.mxu0 0
      %859 = vmatpush1.bf16.msra.mxu0 0
      %860 = vmatprep.subr.bf16.mxu0 0
      %861 = vmatpush1.bf16.msra.mxu0 0
      %862 = vmatprep.subr.bf16.mxu0 0
      %863 = vmatpush1.bf16.msra.mxu0 0
      %864 = vmatprep.subr.bf16.mxu0 0
      %865 = vmatpush1.bf16.msra.mxu0 0
      %866 = vmatprep.mubr.bf16.mxu0 0
      %867 = vmatmul.mubr.bf16.gmra.mrb[0].mxu0 %v828
      %v868 = vpop.f32.mrb[0].mxu0
      %v869 = vadd.f32 0.0, %v868
      %v870 = vpop.f32.mrb[0].mxu0
      %v871 = vpop.f32.mrb[0].mxu0
      %v872 = vpop.f32.mrb[0].mxu0
      %873 = vdwg.mxu0
      %v874 = vpack.c.bf16 %v869, %v869
      %v875 = vld [vmem:[%s8] sm:$0xf]
      %s876 = scalar_lea.vmem %s2, 64
      %v877 = vld [vmem:[%s876] sm:$0xf]
      %v878 = vld [vmem:[%s876 + $0x4] sm:$0xf]
      %v879 = vld [vmem:[%s876 + $0x8] sm:$0xf]
      %v880 = vld [vmem:[%s876 + $0xc] sm:$0xf]
      %v881 = vld [vmem:[%s876 + $0x10] sm:$0xf]
      %v882 = vld [vmem:[%s876 + $0x14] sm:$0xf]
      %v883 = vld [vmem:[%s876 + $0x18] sm:$0xf]
      %v884 = vld [vmem:[%s876 + $0x1c] sm:$0xf]
      %v885 = vld [vmem:[%s876 + $0x20] sm:$0xf]
      %v886 = vld [vmem:[%s876 + $0x24] sm:$0xf]
      %v887 = vld [vmem:[%s876 + $0x28] sm:$0xf]
      %v888 = vld [vmem:[%s876 + $0x2c] sm:$0xf]
      %v889 = vld [vmem:[%s876 + $0x30] sm:$0xf]
      %v890 = vld [vmem:[%s876 + $0x34] sm:$0xf]
      %v891 = vld [vmem:[%s876 + $0x38] sm:$0xf]
      %v892 = vld [vmem:[%s876 + $0x3c] sm:$0xf]
      %s893 = scalar_lea.vmem %s3, 1
      %v894 = vld [vmem:[%s893] sm:$0x1]
      %v896 = vlaneseq
      %v897 = vshrl.u32 %v896, 7
      %v898 = vsub.s32 0, %v897
      %v899 = vrot.slane %v894, %v898
      %v917 = vunpack.c.l.b16 %v877
      %v918 = vunpack.c.l.b16 %v878
      %v919 = vunpack.c.l.b16 %v879
      %v920 = vunpack.c.l.b16 %v880
      %v921 = vunpack.c.l.b16 %v881
      %v922 = vunpack.c.l.b16 %v882
      %v923 = vunpack.c.l.b16 %v883
      %v924 = vunpack.c.l.b16 %v884
      %v925 = vunpack.c.l.b16 %v885
      %v926 = vunpack.c.l.b16 %v886
      %v927 = vunpack.c.l.b16 %v887
      %v928 = vunpack.c.l.b16 %v888
      %v929 = vunpack.c.l.b16 %v889
      %v930 = vunpack.c.l.b16 %v890
      %v931 = vunpack.c.l.b16 %v891
      %v932 = vunpack.c.l.b16 %v892
      %v933 = vpack.c.b16 %v918, %v917
      %v934 = vpack.c.b16 %v920, %v919
      %v935 = vpack.c.b16 %v922, %v921
      %v936 = vpack.c.b16 %v924, %v923
      %v937 = vpack.c.b16 %v926, %v925
      %v938 = vpack.c.b16 %v928, %v927
      %v939 = vpack.c.b16 %v930, %v929
      %v940 = vpack.c.b16 %v932, %v931
      %949 = vmatprep.subr.bf16.mxu0 0
      %950 = vmatpush1.bf16.msra.mxu0 %v933
      %951 = vmatprep.subr.bf16.mxu0 0
      %952 = vmatpush1.bf16.msra.mxu0 %v934
      %953 = vmatprep.subr.bf16.mxu0 0
      %954 = vmatpush1.bf16.msra.mxu0 %v935
      %955 = vmatprep.subr.bf16.mxu0 0
      %956 = vmatpush1.bf16.msra.mxu0 %v936
      %957 = vmatprep.subr.bf16.mxu0 0
      %958 = vmatpush1.bf16.msra.mxu0 %v937
      %959 = vmatprep.subr.bf16.mxu0 0
      %960 = vmatpush1.bf16.msra.mxu0 %v938
      %961 = vmatprep.subr.bf16.mxu0 0
      %962 = vmatpush1.bf16.msra.mxu0 %v939
      %963 = vmatprep.subr.bf16.mxu0 0
      %964 = vmatpush1.bf16.msra.mxu0 %v940
      %965 = vmatprep.subr.bf16.mxu0 0
      %966 = vmatpush1.bf16.msra.mxu0 0
      %967 = vmatprep.subr.bf16.mxu0 0
      %968 = vmatpush1.bf16.msra.mxu0 0
      %969 = vmatprep.subr.bf16.mxu0 0
      %970 = vmatpush1.bf16.msra.mxu0 0
      %971 = vmatprep.subr.bf16.mxu0 0
      %972 = vmatpush1.bf16.msra.mxu0 0
      %973 = vmatprep.subr.bf16.mxu0 0
      %974 = vmatpush1.bf16.msra.mxu0 0
      %975 = vmatprep.subr.bf16.mxu0 0
      %976 = vmatpush1.bf16.msra.mxu0 0
      %977 = vmatprep.subr.bf16.mxu0 0
      %978 = vmatpush1.bf16.msra.mxu0 0
      %979 = vmatprep.subr.bf16.mxu0 0
      %980 = vmatpush1.bf16.msra.mxu0 0
      %981 = vmatprep.mubr.bf16.mxu0 0
      %982 = vmatmul.mubr.bf16.gmra.mrb[0].mxu0 %v424
      %v983 = vpop.f32.mrb[0].mxu0
      %v984 = vadd.f32 %v899, %v983
      %v985 = vpop.f32.mrb[0].mxu0
      %v986 = vpop.f32.mrb[0].mxu0
      %v987 = vpop.f32.mrb[0].mxu0
      %988 = vdwg.mxu0
      %s989 = scalar_lea.vmem %s4, 64
      %v990 = vld [vmem:[%s989] sm:$0xf]
      %v991 = vld [vmem:[%s989 + $0x4] sm:$0xf]
      %v992 = vld [vmem:[%s989 + $0x8] sm:$0xf]
      %v993 = vld [vmem:[%s989 + $0xc] sm:$0xf]
      %v994 = vld [vmem:[%s989 + $0x10] sm:$0xf]
      %v995 = vld [vmem:[%s989 + $0x14] sm:$0xf]
      %v996 = vld [vmem:[%s989 + $0x18] sm:$0xf]
      %v997 = vld [vmem:[%s989 + $0x1c] sm:$0xf]
      %v998 = vld [vmem:[%s989 + $0x20] sm:$0xf]
      %v999 = vld [vmem:[%s989 + $0x24] sm:$0xf]
      %v1000 = vld [vmem:[%s989 + $0x28] sm:$0xf]
      %v1001 = vld [vmem:[%s989 + $0x2c] sm:$0xf]
      %v1002 = vld [vmem:[%s989 + $0x30] sm:$0xf]
      %v1003 = vld [vmem:[%s989 + $0x34] sm:$0xf]
      %v1004 = vld [vmem:[%s989 + $0x38] sm:$0xf]
      %v1005 = vld [vmem:[%s989 + $0x3c] sm:$0xf]
      %s1006 = scalar_lea.vmem %s5, 1
      %v1007 = vld [vmem:[%s1006] sm:$0x1]
      %v1009 = vlaneseq
      %v1010 = vshrl.u32 %v1009, 7
      %v1011 = vsub.s32 0, %v1010
      %v1012 = vrot.slane %v1007, %v1011
      %v1030 = vunpack.c.l.b16 %v990
      %v1031 = vunpack.c.l.b16 %v991
      %v1032 = vunpack.c.l.b16 %v992
      %v1033 = vunpack.c.l.b16 %v993
      %v1034 = vunpack.c.l.b16 %v994
      %v1035 = vunpack.c.l.b16 %v995
      %v1036 = vunpack.c.l.b16 %v996
      %v1037 = vunpack.c.l.b16 %v997
      %v1038 = vunpack.c.l.b16 %v998
      %v1039 = vunpack.c.l.b16 %v999
      %v1040 = vunpack.c.l.b16 %v1000
      %v1041 = vunpack.c.l.b16 %v1001
      %v1042 = vunpack.c.l.b16 %v1002
      %v1043 = vunpack.c.l.b16 %v1003
      %v1044 = vunpack.c.l.b16 %v1004
      %v1045 = vunpack.c.l.b16 %v1005
      %v1046 = vpack.c.b16 %v1031, %v1030
      %v1047 = vpack.c.b16 %v1033, %v1032
      %v1048 = vpack.c.b16 %v1035, %v1034
      %v1049 = vpack.c.b16 %v1037, %v1036
      %v1050 = vpack.c.b16 %v1039, %v1038
      %v1051 = vpack.c.b16 %v1041, %v1040
      %v1052 = vpack.c.b16 %v1043, %v1042
      %v1053 = vpack.c.b16 %v1045, %v1044
      %1062 = vmatprep.subr.bf16.mxu0 0
      %1063 = vmatpush1.bf16.msra.mxu0 %v1046
      %1064 = vmatprep.subr.bf16.mxu0 0
      %1065 = vmatpush1.bf16.msra.mxu0 %v1047
      %1066 = vmatprep.subr.bf16.mxu0 0
      %1067 = vmatpush1.bf16.msra.mxu0 %v1048
      %1068 = vmatprep.subr.bf16.mxu0 0
      %1069 = vmatpush1.bf16.msra.mxu0 %v1049
      %1070 = vmatprep.subr.bf16.mxu0 0
      %1071 = vmatpush1.bf16.msra.mxu0 %v1050
      %1072 = vmatprep.subr.bf16.mxu0 0
      %1073 = vmatpush1.bf16.msra.mxu0 %v1051
      %1074 = vmatprep.subr.bf16.mxu0 0
      %1075 = vmatpush1.bf16.msra.mxu0 %v1052
      %1076 = vmatprep.subr.bf16.mxu0 0
      %1077 = vmatpush1.bf16.msra.mxu0 %v1053
      %1078 = vmatprep.subr.bf16.mxu0 0
      %1079 = vmatpush1.bf16.msra.mxu0 0
      %1080 = vmatprep.subr.bf16.mxu0 0
      %1081 = vmatpush1.bf16.msra.mxu0 0
      %1082 = vmatprep.subr.bf16.mxu0 0
      %1083 = vmatpush1.bf16.msra.mxu0 0
      %1084 = vmatprep.subr.bf16.mxu0 0
      %1085 = vmatpush1.bf16.msra.mxu0 0
      %1086 = vmatprep.subr.bf16.mxu0 0
      %1087 = vmatpush1.bf16.msra.mxu0 0
      %1088 = vmatprep.subr.bf16.mxu0 0
      %1089 = vmatpush1.bf16.msra.mxu0 0
      %1090 = vmatprep.subr.bf16.mxu0 0
      %1091 = vmatpush1.bf16.msra.mxu0 0
      %1092 = vmatprep.subr.bf16.mxu0 0
      %1093 = vmatpush1.bf16.msra.mxu0 0
      %1094 = vmatprep.mubr.bf16.mxu0 0
      %1095 = vmatmul.mubr.bf16.gmra.mrb[0].mxu0 %v424
      %v1096 = vpop.f32.mrb[0].mxu0
      %v1097 = vadd.f32 %v1012, %v1096
      %v1098 = vpop.f32.mrb[0].mxu0
      %v1099 = vpop.f32.mrb[0].mxu0
      %v1100 = vpop.f32.mrb[0].mxu0
      %1101 = vdwg.mxu0
      %s1102 = scalar_lea.vmem %s6, 64
      %v1103 = vld [vmem:[%s1102] sm:$0xf]
      %v1104 = vld [vmem:[%s1102 + $0x4] sm:$0xf]
      %v1105 = vld [vmem:[%s1102 + $0x8] sm:$0xf]
      %v1106 = vld [vmem:[%s1102 + $0xc] sm:$0xf]
      %v1107 = vld [vmem:[%s1102 + $0x10] sm:$0xf]
      %v1108 = vld [vmem:[%s1102 + $0x14] sm:$0xf]
      %v1109 = vld [vmem:[%s1102 + $0x18] sm:$0xf]
      %v1110 = vld [vmem:[%s1102 + $0x1c] sm:$0xf]
      %v1111 = vld [vmem:[%s1102 + $0x20] sm:$0xf]
      %v1112 = vld [vmem:[%s1102 + $0x24] sm:$0xf]
      %v1113 = vld [vmem:[%s1102 + $0x28] sm:$0xf]
      %v1114 = vld [vmem:[%s1102 + $0x2c] sm:$0xf]
      %v1115 = vld [vmem:[%s1102 + $0x30] sm:$0xf]
      %v1116 = vld [vmem:[%s1102 + $0x34] sm:$0xf]
      %v1117 = vld [vmem:[%s1102 + $0x38] sm:$0xf]
      %v1118 = vld [vmem:[%s1102 + $0x3c] sm:$0xf]
      %s1119 = scalar_lea.vmem %s7, 1
      %v1120 = vld [vmem:[%s1119] sm:$0x1]
      %v1122 = vlaneseq
      %v1123 = vshrl.u32 %v1122, 7
      %v1124 = vsub.s32 0, %v1123
      %v1125 = vrot.slane %v1120, %v1124
      %v1143 = vunpack.c.l.b16 %v1103
      %v1144 = vunpack.c.l.b16 %v1104
      %v1145 = vunpack.c.l.b16 %v1105
      %v1146 = vunpack.c.l.b16 %v1106
      %v1147 = vunpack.c.l.b16 %v1107
      %v1148 = vunpack.c.l.b16 %v1108
      %v1149 = vunpack.c.l.b16 %v1109
      %v1150 = vunpack.c.l.b16 %v1110
      %v1151 = vunpack.c.l.b16 %v1111
      %v1152 = vunpack.c.l.b16 %v1112
      %v1153 = vunpack.c.l.b16 %v1113
      %v1154 = vunpack.c.l.b16 %v1114
      %v1155 = vunpack.c.l.b16 %v1115
      %v1156 = vunpack.c.l.b16 %v1116
      %v1157 = vunpack.c.l.b16 %v1117
      %v1158 = vunpack.c.l.b16 %v1118
      %v1159 = vpack.c.b16 %v1144, %v1143
      %v1160 = vpack.c.b16 %v1146, %v1145
      %v1161 = vpack.c.b16 %v1148, %v1147
      %v1162 = vpack.c.b16 %v1150, %v1149
      %v1163 = vpack.c.b16 %v1152, %v1151
      %v1164 = vpack.c.b16 %v1154, %v1153
      %v1165 = vpack.c.b16 %v1156, %v1155
      %v1166 = vpack.c.b16 %v1158, %v1157
      %1175 = vmatprep.subr.bf16.mxu0 0
      %1176 = vmatpush1.bf16.msra.mxu0 %v1159
      %1177 = vmatprep.subr.bf16.mxu0 0
      %1178 = vmatpush1.bf16.msra.mxu0 %v1160
      %1179 = vmatprep.subr.bf16.mxu0 0
      %1180 = vmatpush1.bf16.msra.mxu0 %v1161
      %1181 = vmatprep.subr.bf16.mxu0 0
      %1182 = vmatpush1.bf16.msra.mxu0 %v1162
      %1183 = vmatprep.subr.bf16.mxu0 0
      %1184 = vmatpush1.bf16.msra.mxu0 %v1163
      %1185 = vmatprep.subr.bf16.mxu0 0
      %1186 = vmatpush1.bf16.msra.mxu0 %v1164
      %1187 = vmatprep.subr.bf16.mxu0 0
      %1188 = vmatpush1.bf16.msra.mxu0 %v1165
      %1189 = vmatprep.subr.bf16.mxu0 0
      %1190 = vmatpush1.bf16.msra.mxu0 %v1166
      %1191 = vmatprep.subr.bf16.mxu0 0
      %1192 = vmatpush1.bf16.msra.mxu0 0
      %1193 = vmatprep.subr.bf16.mxu0 0
      %1194 = vmatpush1.bf16.msra.mxu0 0
      %1195 = vmatprep.subr.bf16.mxu0 0
      %1196 = vmatpush1.bf16.msra.mxu0 0
      %1197 = vmatprep.subr.bf16.mxu0 0
      %1198 = vmatpush1.bf16.msra.mxu0 0
      %1199 = vmatprep.subr.bf16.mxu0 0
      %1200 = vmatpush1.bf16.msra.mxu0 0
      %1201 = vmatprep.subr.bf16.mxu0 0
      %1202 = vmatpush1.bf16.msra.mxu0 0
      %1203 = vmatprep.subr.bf16.mxu0 0
      %1204 = vmatpush1.bf16.msra.mxu0 0
      %1205 = vmatprep.subr.bf16.mxu0 0
      %1206 = vmatpush1.bf16.msra.mxu0 0
      %1207 = vmatprep.mubr.bf16.mxu0 0
      %1208 = vmatmul.mubr.bf16.gmra.mrb[0].mxu0 %v424
      %v1209 = vpop.f32.mrb[0].mxu0
      %v1210 = vadd.f32 %v1125, %v1209
      %v1211 = vpop.f32.mrb[0].mxu0
      %v1212 = vpop.f32.mrb[0].mxu0
      %v1213 = vpop.f32.mrb[0].mxu0
      %1214 = vdwg.mxu0
      %v1215 = vpack.c.bf16 %v984, %v984
      %v1216 = vpack.c.bf16 %v1097, %v1097
      %v1218 = vsel %vm767, %v1215, 0
      %v1221 = vsel %vm767, %v1216, 0
      %1223 = vmatprep.subr.bf16.mxu0 0
      %1224 = vmatpush1.bf16.xpose.msra.mxu0 %v1221
      %1225 = vmatprep.subr.bf16.mxu0 0
      %1226 = vmatpush1.bf16.xpose.msra.mxu0 0
      %1227 = vmatprep.subr.bf16.mxu0 0
      %1228 = vmatpush1.bf16.xpose.msra.mxu0 0
      %1229 = vmatprep.subr.bf16.mxu0 0
      %1230 = vmatpush1.bf16.xpose.msra.mxu0 0
      %1231 = vmatprep.subr.bf16.mxu0 0
      %1232 = vmatpush1.bf16.xpose.msra.mxu0 0
      %1233 = vmatprep.subr.bf16.mxu0 0
      %1234 = vmatpush1.bf16.xpose.msra.mxu0 0
      %1235 = vmatprep.subr.bf16.mxu0 0
      %1236 = vmatpush1.bf16.xpose.msra.mxu0 0
      %1237 = vmatprep.subr.bf16.mxu0 0
      %1238 = vmatpush1.bf16.xpose.msra.mxu0 0
      %1239 = vmatprep.subr.bf16.mxu0 0
      %1240 = vmatpush1.bf16.xpose.msra.mxu0 0
      %1241 = vmatprep.subr.bf16.mxu0 0
      %1242 = vmatpush1.bf16.xpose.msra.mxu0 0
      %1243 = vmatprep.subr.bf16.mxu0 0
      %1244 = vmatpush1.bf16.xpose.msra.mxu0 0
      %1245 = vmatprep.subr.bf16.mxu0 0
      %1246 = vmatpush1.bf16.xpose.msra.mxu0 0
      %1247 = vmatprep.subr.bf16.mxu0 0
      %1248 = vmatpush1.bf16.xpose.msra.mxu0 0
      %1249 = vmatprep.subr.bf16.mxu0 0
      %1250 = vmatpush1.bf16.xpose.msra.mxu0 0
      %1251 = vmatprep.subr.bf16.mxu0 0
      %1252 = vmatpush1.bf16.xpose.msra.mxu0 0
      %1253 = vmatprep.subr.bf16.mxu0 0
      %1254 = vmatpush1.bf16.xpose.msra.mxu0 0
      %1255 = vmatprep.mubr.bf16.mxu0 0
      %1256 = vmatmul.mubr.bf16.gmra.mrb[0].mxu0 %v1218
      %v1257 = vpop.f32.mrb[0].mxu0
      %v1258 = vadd.f32 %v765, %v1257
      %v1259 = vpop.f32.mrb[0].mxu0
      %v1260 = vpop.f32.mrb[0].mxu0
      %v1261 = vpop.f32.mrb[0].mxu0
      %1262 = vdwg.mxu0
      %v1263 = vsel %vm767, %v1258, -inf
      %1264 = vmax.xlane.f32.xlu0 %v1263
      %v1265 = vpop.xlane.xlu0 %1264
      %v1266 = vsub.f32 %v1258, %v1265
      %v1267 = vmul.f32 %v1266, 1.442695
      %v1268 = vpow.pop %v1267
      %v1269 = vsel %vm767, %v1268, 0.0
      %1270 = vadd.xlane.f32.xlu0 %v1269
      %v1271 = vpop.xlane.xlu0 %1270
      %v1272 = vrcp.pop %v1271
      %v1273 = vmul.f32 %v1268, %v1272
      %v1274 = vpack.c.bf16 %v1273, %v1273
      %v1275 = vpack.c.bf16 %v1210, %v1210
      %v1277 = vsel %vm767, %v1274, 0
      %v1280 = vsel %vm830, %v1275, 0
      %1282 = vmatprep.subr.bf16.mxu0 0
      %1283 = vmatpush1.bf16.msra.mxu0 %v1280
      %1284 = vmatprep.subr.bf16.mxu0 0
      %1285 = vmatpush1.bf16.msra.mxu0 0
      %1286 = vmatprep.subr.bf16.mxu0 0
      %1287 = vmatpush1.bf16.msra.mxu0 0
      %1288 = vmatprep.subr.bf16.mxu0 0
      %1289 = vmatpush1.bf16.msra.mxu0 0
      %1290 = vmatprep.subr.bf16.mxu0 0
      %1291 = vmatpush1.bf16.msra.mxu0 0
      %1292 = vmatprep.subr.bf16.mxu0 0
      %1293 = vmatpush1.bf16.msra.mxu0 0
      %1294 = vmatprep.subr.bf16.mxu0 0
      %1295 = vmatpush1.bf16.msra.mxu0 0
      %1296 = vmatprep.subr.bf16.mxu0 0
      %1297 = vmatpush1.bf16.msra.mxu0 0
      %1298 = vmatprep.subr.bf16.mxu0 0
      %1299 = vmatpush1.bf16.msra.mxu0 0
      %1300 = vmatprep.subr.bf16.mxu0 0
      %1301 = vmatpush1.bf16.msra.mxu0 0
      %1302 = vmatprep.subr.bf16.mxu0 0
      %1303 = vmatpush1.bf16.msra.mxu0 0
      %1304 = vmatprep.subr.bf16.mxu0 0
      %1305 = vmatpush1.bf16.msra.mxu0 0
      %1306 = vmatprep.subr.bf16.mxu0 0
      %1307 = vmatpush1.bf16.msra.mxu0 0
      %1308 = vmatprep.subr.bf16.mxu0 0
      %1309 = vmatpush1.bf16.msra.mxu0 0
      %1310 = vmatprep.subr.bf16.mxu0 0
      %1311 = vmatpush1.bf16.msra.mxu0 0
      %1312 = vmatprep.subr.bf16.mxu0 0
      %1313 = vmatpush1.bf16.msra.mxu0 0
      %1314 = vmatprep.mubr.bf16.mxu0 0
      %1315 = vmatmul.mubr.bf16.gmra.mrb[0].mxu0 %v1277
      %v1316 = vpop.f32.mrb[0].mxu0
      %v1317 = vadd.f32 0.0, %v1316
      %v1318 = vpop.f32.mrb[0].mxu0
      %v1319 = vpop.f32.mrb[0].mxu0
      %v1320 = vpop.f32.mrb[0].mxu0
      %1321 = vdwg.mxu0
      %v1322 = vpack.c.bf16 %v1317, %v1317
      %s1323 = scalar_lea.vmem %s8, 4
      %v1324 = vld [vmem:[%s1323] sm:$0xf]
      %v1326 = vsel %vm767, %v1322, 0
      %v1329 = vsel %vm830, %v1324, 0
      %1331 = vmatprep.subr.bf16.mxu0 0
      %1332 = vmatpush1.bf16.msra.mxu0 %v1329
      %1333 = vmatprep.subr.bf16.mxu0 0
      %1334 = vmatpush1.bf16.msra.mxu0 0
      %1335 = vmatprep.subr.bf16.mxu0 0
      %1336 = vmatpush1.bf16.msra.mxu0 0
      %1337 = vmatprep.subr.bf16.mxu0 0
      %1338 = vmatpush1.bf16.msra.mxu0 0
      %1339 = vmatprep.subr.bf16.mxu0 0
      %1340 = vmatpush1.bf16.msra.mxu0 0
      %1341 = vmatprep.subr.bf16.mxu0 0
      %1342 = vmatpush1.bf16.msra.mxu0 0
      %1343 = vmatprep.subr.bf16.mxu0 0
      %1344 = vmatpush1.bf16.msra.mxu0 0
      %1345 = vmatprep.subr.bf16.mxu0 0
      %1346 = vmatpush1.bf16.msra.mxu0 0
      %1347 = vmatprep.subr.bf16.mxu0 0
      %1348 = vmatpush1.bf16.msra.mxu0 0
      %1349 = vmatprep.subr.bf16.mxu0 0
      %1350 = vmatpush1.bf16.msra.mxu0 0
      %1351 = vmatprep.subr.bf16.mxu0 0
      %1352 = vmatpush1.bf16.msra.mxu0 0
      %1353 = vmatprep.subr.bf16.mxu0 0
      %1354 = vmatpush1.bf16.msra.mxu0 0
      %1355 = vmatprep.subr.bf16.mxu0 0
      %1356 = vmatpush1.bf16.msra.mxu0 0
      %1357 = vmatprep.subr.bf16.mxu0 0
      %1358 = vmatpush1.bf16.msra.mxu0 0
      %1359 = vmatprep.subr.bf16.mxu0 0
      %1360 = vmatpush1.bf16.msra.mxu0 0
      %1361 = vmatprep.subr.bf16.mxu0 0
      %1362 = vmatpush1.bf16.msra.mxu0 0
      %1363 = vmatprep.mubr.bf16.mxu0 0
      %1364 = vmatmul.mubr.bf16.gmra.mrb[0].mxu0 %v1326
      %v1365 = vpop.f32.mrb[0].mxu0
      %v1366 = vadd.f32 0.0, %v1365
      %v1367 = vpop.f32.mrb[0].mxu0
      %v1368 = vpop.f32.mrb[0].mxu0
      %v1369 = vpop.f32.mrb[0].mxu0
      %1370 = vdwg.mxu0
      %v1372 = vsel %vm767, %v874, 0
      %v1375 = vsel %vm830, %v875, 0
      %1377 = vmatprep.subr.bf16.mxu0 0
      %1378 = vmatpush1.bf16.msra.mxu0 %v1375
      %1379 = vmatprep.subr.bf16.mxu0 0
      %1380 = vmatpush1.bf16.msra.mxu0 0
      %1381 = vmatprep.subr.bf16.mxu0 0
      %1382 = vmatpush1.bf16.msra.mxu0 0
      %1383 = vmatprep.subr.bf16.mxu0 0
      %1384 = vmatpush1.bf16.msra.mxu0 0
      %1385 = vmatprep.subr.bf16.mxu0 0
      %1386 = vmatpush1.bf16.msra.mxu0 0
      %1387 = vmatprep.subr.bf16.mxu0 0
      %1388 = vmatpush1.bf16.msra.mxu0 0
      %1389 = vmatprep.subr.bf16.mxu0 0
      %1390 = vmatpush1.bf16.msra.mxu0 0
      %1391 = vmatprep.subr.bf16.mxu0 0
      %1392 = vmatpush1.bf16.msra.mxu0 0
      %1393 = vmatprep.subr.bf16.mxu0 0
      %1394 = vmatpush1.bf16.msra.mxu0 0
      %1395 = vmatprep.subr.bf16.mxu0 0
      %1396 = vmatpush1.bf16.msra.mxu0 0
      %1397 = vmatprep.subr.bf16.mxu0 0
      %1398 = vmatpush1.bf16.msra.mxu0 0
      %1399 = vmatprep.subr.bf16.mxu0 0
      %1400 = vmatpush1.bf16.msra.mxu0 0
      %1401 = vmatprep.subr.bf16.mxu0 0
      %1402 = vmatpush1.bf16.msra.mxu0 0
      %1403 = vmatprep.subr.bf16.mxu0 0
      %1404 = vmatpush1.bf16.msra.mxu0 0
      %1405 = vmatprep.subr.bf16.mxu0 0
      %1406 = vmatpush1.bf16.msra.mxu0 0
      %1407 = vmatprep.subr.bf16.mxu0 0
      %1408 = vmatpush1.bf16.msra.mxu0 0
      %1409 = vmatprep.mubr.bf16.mxu0 0
      %1410 = vmatmul.mubr.bf16.gmra.mrb[0].mxu0 %v1372
      %v1411 = vpop.f32.mrb[0].mxu0
      %v1412 = vadd.f32 %v1366, %v1411
      %v1413 = vpop.f32.mrb[0].mxu0
      %v1414 = vpop.f32.mrb[0].mxu0
      %v1415 = vpop.f32.mrb[0].mxu0
      %1416 = vdwg.mxu0
      %s1417 = scalar_lea.vmem %s2, 128
      %v1418 = vld [vmem:[%s1417] sm:$0xf]
      %v1419 = vld [vmem:[%s1417 + $0x4] sm:$0xf]
      %v1420 = vld [vmem:[%s1417 + $0x8] sm:$0xf]
      %v1421 = vld [vmem:[%s1417 + $0xc] sm:$0xf]
      %v1422 = vld [vmem:[%s1417 + $0x10] sm:$0xf]
      %v1423 = vld [vmem:[%s1417 + $0x14] sm:$0xf]
      %v1424 = vld [vmem:[%s1417 + $0x18] sm:$0xf]
      %v1425 = vld [vmem:[%s1417 + $0x1c] sm:$0xf]
      %v1426 = vld [vmem:[%s1417 + $0x20] sm:$0xf]
      %v1427 = vld [vmem:[%s1417 + $0x24] sm:$0xf]
      %v1428 = vld [vmem:[%s1417 + $0x28] sm:$0xf]
      %v1429 = vld [vmem:[%s1417 + $0x2c] sm:$0xf]
      %v1430 = vld [vmem:[%s1417 + $0x30] sm:$0xf]
      %v1431 = vld [vmem:[%s1417 + $0x34] sm:$0xf]
      %v1432 = vld [vmem:[%s1417 + $0x38] sm:$0xf]
      %v1433 = vld [vmem:[%s1417 + $0x3c] sm:$0xf]
      %s1434 = scalar_lea.vmem %s3, 2
      %v1435 = vld [vmem:[%s1434] sm:$0x1]
      %v1437 = vlaneseq
      %v1438 = vshrl.u32 %v1437, 7
      %v1439 = vsub.s32 0, %v1438
      %v1440 = vrot.slane %v1435, %v1439
      %v1458 = vunpack.c.l.b16 %v1418
      %v1459 = vunpack.c.l.b16 %v1419
      %v1460 = vunpack.c.l.b16 %v1420
      %v1461 = vunpack.c.l.b16 %v1421
      %v1462 = vunpack.c.l.b16 %v1422
      %v1463 = vunpack.c.l.b16 %v1423
      %v1464 = vunpack.c.l.b16 %v1424
      %v1465 = vunpack.c.l.b16 %v1425
      %v1466 = vunpack.c.l.b16 %v1426
      %v1467 = vunpack.c.l.b16 %v1427
      %v1468 = vunpack.c.l.b16 %v1428
      %v1469 = vunpack.c.l.b16 %v1429
      %v1470 = vunpack.c.l.b16 %v1430
      %v1471 = vunpack.c.l.b16 %v1431
      %v1472 = vunpack.c.l.b16 %v1432
      %v1473 = vunpack.c.l.b16 %v1433
      %v1474 = vpack.c.b16 %v1459, %v1458
      %v1475 = vpack.c.b16 %v1461, %v1460
      %v1476 = vpack.c.b16 %v1463, %v1462
      %v1477 = vpack.c.b16 %v1465, %v1464
      %v1478 = vpack.c.b16 %v1467, %v1466
      %v1479 = vpack.c.b16 %v1469, %v1468
      %v1480 = vpack.c.b16 %v1471, %v1470
      %v1481 = vpack.c.b16 %v1473, %v1472
      %1490 = vmatprep.subr.bf16.mxu0 0
      %1491 = vmatpush1.bf16.msra.mxu0 %v1474
      %1492 = vmatprep.subr.bf16.mxu0 0
      %1493 = vmatpush1.bf16.msra.mxu0 %v1475
      %1494 = vmatprep.subr.bf16.mxu0 0
      %1495 = vmatpush1.bf16.msra.mxu0 %v1476
      %1496 = vmatprep.subr.bf16.mxu0 0
      %1497 = vmatpush1.bf16.msra.mxu0 %v1477
      %1498 = vmatprep.subr.bf16.mxu0 0
      %1499 = vmatpush1.bf16.msra.mxu0 %v1478
      %1500 = vmatprep.subr.bf16.mxu0 0
      %1501 = vmatpush1.bf16.msra.mxu0 %v1479
      %1502 = vmatprep.subr.bf16.mxu0 0
      %1503 = vmatpush1.bf16.msra.mxu0 %v1480
      %1504 = vmatprep.subr.bf16.mxu0 0
      %1505 = vmatpush1.bf16.msra.mxu0 %v1481
      %1506 = vmatprep.subr.bf16.mxu0 0
      %1507 = vmatpush1.bf16.msra.mxu0 0
      %1508 = vmatprep.subr.bf16.mxu0 0
      %1509 = vmatpush1.bf16.msra.mxu0 0
      %1510 = vmatprep.subr.bf16.mxu0 0
      %1511 = vmatpush1.bf16.msra.mxu0 0
      %1512 = vmatprep.subr.bf16.mxu0 0
      %1513 = vmatpush1.bf16.msra.mxu0 0
      %1514 = vmatprep.subr.bf16.mxu0 0
      %1515 = vmatpush1.bf16.msra.mxu0 0
      %1516 = vmatprep.subr.bf16.mxu0 0
      %1517 = vmatpush1.bf16.msra.mxu0 0
      %1518 = vmatprep.subr.bf16.mxu0 0
      %1519 = vmatpush1.bf16.msra.mxu0 0
      %1520 = vmatprep.subr.bf16.mxu0 0
      %1521 = vmatpush1.bf16.msra.mxu0 0
      %1522 = vmatprep.mubr.bf16.mxu0 0
      %1523 = vmatmul.mubr.bf16.gmra.mrb[0].mxu0 %v424
      %v1524 = vpop.f32.mrb[0].mxu0
      %v1525 = vadd.f32 %v1440, %v1524
      %v1526 = vpop.f32.mrb[0].mxu0
      %v1527 = vpop.f32.mrb[0].mxu0
      %v1528 = vpop.f32.mrb[0].mxu0
      %1529 = vdwg.mxu0
      %s1530 = scalar_lea.vmem %s4, 128
      %v1531 = vld [vmem:[%s1530] sm:$0xf]
      %v1532 = vld [vmem:[%s1530 + $0x4] sm:$0xf]
      %v1533 = vld [vmem:[%s1530 + $0x8] sm:$0xf]
      %v1534 = vld [vmem:[%s1530 + $0xc] sm:$0xf]
      %v1535 = vld [vmem:[%s1530 + $0x10] sm:$0xf]
      %v1536 = vld [vmem:[%s1530 + $0x14] sm:$0xf]
      %v1537 = vld [vmem:[%s1530 + $0x18] sm:$0xf]
      %v1538 = vld [vmem:[%s1530 + $0x1c] sm:$0xf]
      %v1539 = vld [vmem:[%s1530 + $0x20] sm:$0xf]
      %v1540 = vld [vmem:[%s1530 + $0x24] sm:$0xf]
      %v1541 = vld [vmem:[%s1530 + $0x28] sm:$0xf]
      %v1542 = vld [vmem:[%s1530 + $0x2c] sm:$0xf]
      %v1543 = vld [vmem:[%s1530 + $0x30] sm:$0xf]
      %v1544 = vld [vmem:[%s1530 + $0x34] sm:$0xf]
      %v1545 = vld [vmem:[%s1530 + $0x38] sm:$0xf]
      %v1546 = vld [vmem:[%s1530 + $0x3c] sm:$0xf]
      %s1547 = scalar_lea.vmem %s5, 2
      %v1548 = vld [vmem:[%s1547] sm:$0x1]
      %v1550 = vlaneseq
      %v1551 = vshrl.u32 %v1550, 7
      %v1552 = vsub.s32 0, %v1551
      %v1553 = vrot.slane %v1548, %v1552
      %v1571 = vunpack.c.l.b16 %v1531
      %v1572 = vunpack.c.l.b16 %v1532
      %v1573 = vunpack.c.l.b16 %v1533
      %v1574 = vunpack.c.l.b16 %v1534
      %v1575 = vunpack.c.l.b16 %v1535
      %v1576 = vunpack.c.l.b16 %v1536
      %v1577 = vunpack.c.l.b16 %v1537
      %v1578 = vunpack.c.l.b16 %v1538
      %v1579 = vunpack.c.l.b16 %v1539
      %v1580 = vunpack.c.l.b16 %v1540
      %v1581 = vunpack.c.l.b16 %v1541
      %v1582 = vunpack.c.l.b16 %v1542
      %v1583 = vunpack.c.l.b16 %v1543
      %v1584 = vunpack.c.l.b16 %v1544
      %v1585 = vunpack.c.l.b16 %v1545
      %v1586 = vunpack.c.l.b16 %v1546
      %v1587 = vpack.c.b16 %v1572, %v1571
      %v1588 = vpack.c.b16 %v1574, %v1573
      %v1589 = vpack.c.b16 %v1576, %v1575
      %v1590 = vpack.c.b16 %v1578, %v1577
      %v1591 = vpack.c.b16 %v1580, %v1579
      %v1592 = vpack.c.b16 %v1582, %v1581
      %v1593 = vpack.c.b16 %v1584, %v1583
      %v1594 = vpack.c.b16 %v1586, %v1585
      %1603 = vmatprep.subr.bf16.mxu0 0
      %1604 = vmatpush1.bf16.msra.mxu0 %v1587
      %1605 = vmatprep.subr.bf16.mxu0 0
      %1606 = vmatpush1.bf16.msra.mxu0 %v1588
      %1607 = vmatprep.subr.bf16.mxu0 0
      %1608 = vmatpush1.bf16.msra.mxu0 %v1589
      %1609 = vmatprep.subr.bf16.mxu0 0
      %1610 = vmatpush1.bf16.msra.mxu0 %v1590
      %1611 = vmatprep.subr.bf16.mxu0 0
      %1612 = vmatpush1.bf16.msra.mxu0 %v1591
      %1613 = vmatprep.subr.bf16.mxu0 0
      %1614 = vmatpush1.bf16.msra.mxu0 %v1592
      %1615 = vmatprep.subr.bf16.mxu0 0
      %1616 = vmatpush1.bf16.msra.mxu0 %v1593
      %1617 = vmatprep.subr.bf16.mxu0 0
      %1618 = vmatpush1.bf16.msra.mxu0 %v1594
      %1619 = vmatprep.subr.bf16.mxu0 0
      %1620 = vmatpush1.bf16.msra.mxu0 0
      %1621 = vmatprep.subr.bf16.mxu0 0
      %1622 = vmatpush1.bf16.msra.mxu0 0
      %1623 = vmatprep.subr.bf16.mxu0 0
      %1624 = vmatpush1.bf16.msra.mxu0 0
      %1625 = vmatprep.subr.bf16.mxu0 0
      %1626 = vmatpush1.bf16.msra.mxu0 0
      %1627 = vmatprep.subr.bf16.mxu0 0
      %1628 = vmatpush1.bf16.msra.mxu0 0
      %1629 = vmatprep.subr.bf16.mxu0 0
      %1630 = vmatpush1.bf16.msra.mxu0 0
      %1631 = vmatprep.subr.bf16.mxu0 0
      %1632 = vmatpush1.bf16.msra.mxu0 0
      %1633 = vmatprep.subr.bf16.mxu0 0
      %1634 = vmatpush1.bf16.msra.mxu0 0
      %1635 = vmatprep.mubr.bf16.mxu0 0
      %1636 = vmatmul.mubr.bf16.gmra.mrb[0].mxu0 %v424
      %v1637 = vpop.f32.mrb[0].mxu0
      %v1638 = vadd.f32 %v1553, %v1637
      %v1639 = vpop.f32.mrb[0].mxu0
      %v1640 = vpop.f32.mrb[0].mxu0
      %v1641 = vpop.f32.mrb[0].mxu0
      %1642 = vdwg.mxu0
      %s1643 = scalar_lea.vmem %s6, 128
      %v1644 = vld [vmem:[%s1643] sm:$0xf]
      %v1645 = vld [vmem:[%s1643 + $0x4] sm:$0xf]
      %v1646 = vld [vmem:[%s1643 + $0x8] sm:$0xf]
      %v1647 = vld [vmem:[%s1643 + $0xc] sm:$0xf]
      %v1648 = vld [vmem:[%s1643 + $0x10] sm:$0xf]
      %v1649 = vld [vmem:[%s1643 + $0x14] sm:$0xf]
      %v1650 = vld [vmem:[%s1643 + $0x18] sm:$0xf]
      %v1651 = vld [vmem:[%s1643 + $0x1c] sm:$0xf]
      %v1652 = vld [vmem:[%s1643 + $0x20] sm:$0xf]
      %v1653 = vld [vmem:[%s1643 + $0x24] sm:$0xf]
      %v1654 = vld [vmem:[%s1643 + $0x28] sm:$0xf]
      %v1655 = vld [vmem:[%s1643 + $0x2c] sm:$0xf]
      %v1656 = vld [vmem:[%s1643 + $0x30] sm:$0xf]
      %v1657 = vld [vmem:[%s1643 + $0x34] sm:$0xf]
      %v1658 = vld [vmem:[%s1643 + $0x38] sm:$0xf]
      %v1659 = vld [vmem:[%s1643 + $0x3c] sm:$0xf]
      %s1660 = scalar_lea.vmem %s7, 2
      %v1661 = vld [vmem:[%s1660] sm:$0x1]
      %v1663 = vlaneseq
      %v1664 = vshrl.u32 %v1663, 7
      %v1665 = vsub.s32 0, %v1664
      %v1666 = vrot.slane %v1661, %v1665
      %v1684 = vunpack.c.l.b16 %v1644
      %v1685 = vunpack.c.l.b16 %v1645
      %v1686 = vunpack.c.l.b16 %v1646
      %v1687 = vunpack.c.l.b16 %v1647
      %v1688 = vunpack.c.l.b16 %v1648
      %v1689 = vunpack.c.l.b16 %v1649
      %v1690 = vunpack.c.l.b16 %v1650
      %v1691 = vunpack.c.l.b16 %v1651
      %v1692 = vunpack.c.l.b16 %v1652
      %v1693 = vunpack.c.l.b16 %v1653
      %v1694 = vunpack.c.l.b16 %v1654
      %v1695 = vunpack.c.l.b16 %v1655
      %v1696 = vunpack.c.l.b16 %v1656
      %v1697 = vunpack.c.l.b16 %v1657
      %v1698 = vunpack.c.l.b16 %v1658
      %v1699 = vunpack.c.l.b16 %v1659
      %v1700 = vpack.c.b16 %v1685, %v1684
      %v1701 = vpack.c.b16 %v1687, %v1686
      %v1702 = vpack.c.b16 %v1689, %v1688
      %v1703 = vpack.c.b16 %v1691, %v1690
      %v1704 = vpack.c.b16 %v1693, %v1692
      %v1705 = vpack.c.b16 %v1695, %v1694
      %v1706 = vpack.c.b16 %v1697, %v1696
      %v1707 = vpack.c.b16 %v1699, %v1698
      %1716 = vmatprep.subr.bf16.mxu0 0
      %1717 = vmatpush1.bf16.msra.mxu0 %v1700
      %1718 = vmatprep.subr.bf16.mxu0 0
      %1719 = vmatpush1.bf16.msra.mxu0 %v1701
      %1720 = vmatprep.subr.bf16.mxu0 0
      %1721 = vmatpush1.bf16.msra.mxu0 %v1702
      %1722 = vmatprep.subr.bf16.mxu0 0
      %1723 = vmatpush1.bf16.msra.mxu0 %v1703
      %1724 = vmatprep.subr.bf16.mxu0 0
      %1725 = vmatpush1.bf16.msra.mxu0 %v1704
      %1726 = vmatprep.subr.bf16.mxu0 0
      %1727 = vmatpush1.bf16.msra.mxu0 %v1705
      %1728 = vmatprep.subr.bf16.mxu0 0
      %1729 = vmatpush1.bf16.msra.mxu0 %v1706
      %1730 = vmatprep.subr.bf16.mxu0 0
      %1731 = vmatpush1.bf16.msra.mxu0 %v1707
      %1732 = vmatprep.subr.bf16.mxu0 0
      %1733 = vmatpush1.bf16.msra.mxu0 0
      %1734 = vmatprep.subr.bf16.mxu0 0
      %1735 = vmatpush1.bf16.msra.mxu0 0
      %1736 = vmatprep.subr.bf16.mxu0 0
      %1737 = vmatpush1.bf16.msra.mxu0 0
      %1738 = vmatprep.subr.bf16.mxu0 0
      %1739 = vmatpush1.bf16.msra.mxu0 0
      %1740 = vmatprep.subr.bf16.mxu0 0
      %1741 = vmatpush1.bf16.msra.mxu0 0
      %1742 = vmatprep.subr.bf16.mxu0 0
      %1743 = vmatpush1.bf16.msra.mxu0 0
      %1744 = vmatprep.subr.bf16.mxu0 0
      %1745 = vmatpush1.bf16.msra.mxu0 0
      %1746 = vmatprep.subr.bf16.mxu0 0
      %1747 = vmatpush1.bf16.msra.mxu0 0
      %1748 = vmatprep.mubr.bf16.mxu0 0
      %1749 = vmatmul.mubr.bf16.gmra.mrb[0].mxu0 %v424
      %v1750 = vpop.f32.mrb[0].mxu0
      %v1751 = vadd.f32 %v1666, %v1750
      %v1752 = vpop.f32.mrb[0].mxu0
      %v1753 = vpop.f32.mrb[0].mxu0
      %v1754 = vpop.f32.mrb[0].mxu0
      %1755 = vdwg.mxu0
      %v1756 = vpack.c.bf16 %v1525, %v1525
      %v1757 = vpack.c.bf16 %v1638, %v1638
      %v1759 = vsel %vm767, %v1756, 0
      %v1762 = vsel %vm767, %v1757, 0
      %1764 = vmatprep.subr.bf16.mxu0 0
      %1765 = vmatpush1.bf16.xpose.msra.mxu0 %v1762
      %1766 = vmatprep.subr.bf16.mxu0 0
      %1767 = vmatpush1.bf16.xpose.msra.mxu0 0
      %1768 = vmatprep.subr.bf16.mxu0 0
      %1769 = vmatpush1.bf16.xpose.msra.mxu0 0
      %1770 = vmatprep.subr.bf16.mxu0 0
      %1771 = vmatpush1.bf16.xpose.msra.mxu0 0
      %1772 = vmatprep.subr.bf16.mxu0 0
      %1773 = vmatpush1.bf16.xpose.msra.mxu0 0
      %1774 = vmatprep.subr.bf16.mxu0 0
      %1775 = vmatpush1.bf16.xpose.msra.mxu0 0
      %1776 = vmatprep.subr.bf16.mxu0 0
      %1777 = vmatpush1.bf16.xpose.msra.mxu0 0
      %1778 = vmatprep.subr.bf16.mxu0 0
      %1779 = vmatpush1.bf16.xpose.msra.mxu0 0
      %1780 = vmatprep.subr.bf16.mxu0 0
      %1781 = vmatpush1.bf16.xpose.msra.mxu0 0
      %1782 = vmatprep.subr.bf16.mxu0 0
      %1783 = vmatpush1.bf16.xpose.msra.mxu0 0
      %1784 = vmatprep.subr.bf16.mxu0 0
      %1785 = vmatpush1.bf16.xpose.msra.mxu0 0
      %1786 = vmatprep.subr.bf16.mxu0 0
      %1787 = vmatpush1.bf16.xpose.msra.mxu0 0
      %1788 = vmatprep.subr.bf16.mxu0 0
      %1789 = vmatpush1.bf16.xpose.msra.mxu0 0
      %1790 = vmatprep.subr.bf16.mxu0 0
      %1791 = vmatpush1.bf16.xpose.msra.mxu0 0
      %1792 = vmatprep.subr.bf16.mxu0 0
      %1793 = vmatpush1.bf16.xpose.msra.mxu0 0
      %1794 = vmatprep.subr.bf16.mxu0 0
      %1795 = vmatpush1.bf16.xpose.msra.mxu0 0
      %1796 = vmatprep.mubr.bf16.mxu0 0
      %1797 = vmatmul.mubr.bf16.gmra.mrb[0].mxu0 %v1759
      %v1798 = vpop.f32.mrb[0].mxu0
      %v1799 = vadd.f32 %v765, %v1798
      %v1800 = vpop.f32.mrb[0].mxu0
      %v1801 = vpop.f32.mrb[0].mxu0
      %v1802 = vpop.f32.mrb[0].mxu0
      %1803 = vdwg.mxu0
      %v1804 = vsel %vm767, %v1799, -inf
      %1805 = vmax.xlane.f32.xlu0 %v1804
      %v1806 = vpop.xlane.xlu0 %1805
      %v1807 = vsub.f32 %v1799, %v1806
      %v1808 = vmul.f32 %v1807, 1.442695
      %v1809 = vpow.pop %v1808
      %v1810 = vsel %vm767, %v1809, 0.0
      %1811 = vadd.xlane.f32.xlu0 %v1810
      %v1812 = vpop.xlane.xlu0 %1811
      %v1813 = vrcp.pop %v1812
      %v1814 = vmul.f32 %v1809, %v1813
      %v1815 = vpack.c.bf16 %v1814, %v1814
      %v1816 = vpack.c.bf16 %v1751, %v1751
      %v1818 = vsel %vm767, %v1815, 0
      %v1821 = vsel %vm830, %v1816, 0
      %1823 = vmatprep.subr.bf16.mxu0 0
      %1824 = vmatpush1.bf16.msra.mxu0 %v1821
      %1825 = vmatprep.subr.bf16.mxu0 0
      %1826 = vmatpush1.bf16.msra.mxu0 0
      %1827 = vmatprep.subr.bf16.mxu0 0
      %1828 = vmatpush1.bf16.msra.mxu0 0
      %1829 = vmatprep.subr.bf16.mxu0 0
      %1830 = vmatpush1.bf16.msra.mxu0 0
      %1831 = vmatprep.subr.bf16.mxu0 0
      %1832 = vmatpush1.bf16.msra.mxu0 0
      %1833 = vmatprep.subr.bf16.mxu0 0
      %1834 = vmatpush1.bf16.msra.mxu0 0
      %1835 = vmatprep.subr.bf16.mxu0 0
      %1836 = vmatpush1.bf16.msra.mxu0 0
      %1837 = vmatprep.subr.bf16.mxu0 0
      %1838 = vmatpush1.bf16.msra.mxu0 0
      %1839 = vmatprep.subr.bf16.mxu0 0
      %1840 = vmatpush1.bf16.msra.mxu0 0
      %1841 = vmatprep.subr.bf16.mxu0 0
      %1842 = vmatpush1.bf16.msra.mxu0 0
      %1843 = vmatprep.subr.bf16.mxu0 0
      %1844 = vmatpush1.bf16.msra.mxu0 0
      %1845 = vmatprep.subr.bf16.mxu0 0
      %1846 = vmatpush1.bf16.msra.mxu0 0
      %1847 = vmatprep.subr.bf16.mxu0 0
      %1848 = vmatpush1.bf16.msra.mxu0 0
      %1849 = vmatprep.subr.bf16.mxu0 0
      %1850 = vmatpush1.bf16.msra.mxu0 0
      %1851 = vmatprep.subr.bf16.mxu0 0
      %1852 = vmatpush1.bf16.msra.mxu0 0
      %1853 = vmatprep.subr.bf16.mxu0 0
      %1854 = vmatpush1.bf16.msra.mxu0 0
      %1855 = vmatprep.mubr.bf16.mxu0 0
      %1856 = vmatmul.mubr.bf16.gmra.mrb[0].mxu0 %v1818
      %v1857 = vpop.f32.mrb[0].mxu0
      %v1858 = vadd.f32 0.0, %v1857
      %v1859 = vpop.f32.mrb[0].mxu0
      %v1860 = vpop.f32.mrb[0].mxu0
      %v1861 = vpop.f32.mrb[0].mxu0
      %1862 = vdwg.mxu0
      %v1863 = vpack.c.bf16 %v1858, %v1858
      %s1864 = scalar_lea.vmem %s8, 8
      %v1865 = vld [vmem:[%s1864] sm:$0xf]
      %v1867 = vsel %vm767, %v1863, 0
      %v1870 = vsel %vm830, %v1865, 0
      %1872 = vmatprep.subr.bf16.mxu0 0
      %1873 = vmatpush1.bf16.msra.mxu0 %v1870
      %1874 = vmatprep.subr.bf16.mxu0 0
      %1875 = vmatpush1.bf16.msra.mxu0 0
      %1876 = vmatprep.subr.bf16.mxu0 0
      %1877 = vmatpush1.bf16.msra.mxu0 0
      %1878 = vmatprep.subr.bf16.mxu0 0
      %1879 = vmatpush1.bf16.msra.mxu0 0
      %1880 = vmatprep.subr.bf16.mxu0 0
      %1881 = vmatpush1.bf16.msra.mxu0 0
      %1882 = vmatprep.subr.bf16.mxu0 0
      %1883 = vmatpush1.bf16.msra.mxu0 0
      %1884 = vmatprep.subr.bf16.mxu0 0
      %1885 = vmatpush1.bf16.msra.mxu0 0
      %1886 = vmatprep.subr.bf16.mxu0 0
      %1887 = vmatpush1.bf16.msra.mxu0 0
      %1888 = vmatprep.subr.bf16.mxu0 0
      %1889 = vmatpush1.bf16.msra.mxu0 0
      %1890 = vmatprep.subr.bf16.mxu0 0
      %1891 = vmatpush1.bf16.msra.mxu0 0
      %1892 = vmatprep.subr.bf16.mxu0 0
      %1893 = vmatpush1.bf16.msra.mxu0 0
      %1894 = vmatprep.subr.bf16.mxu0 0
      %1895 = vmatpush1.bf16.msra.mxu0 0
      %1896 = vmatprep.subr.bf16.mxu0 0
      %1897 = vmatpush1.bf16.msra.mxu0 0
      %1898 = vmatprep.subr.bf16.mxu0 0
      %1899 = vmatpush1.bf16.msra.mxu0 0
      %1900 = vmatprep.subr.bf16.mxu0 0
      %1901 = vmatpush1.bf16.msra.mxu0 0
      %1902 = vmatprep.subr.bf16.mxu0 0
      %1903 = vmatpush1.bf16.msra.mxu0 0
      %1904 = vmatprep.mubr.bf16.mxu0 0
      %1905 = vmatmul.mubr.bf16.gmra.mrb[0].mxu0 %v1867
      %v1906 = vpop.f32.mrb[0].mxu0
      %v1907 = vadd.f32 0.0, %v1906
      %v1908 = vpop.f32.mrb[0].mxu0
      %v1909 = vpop.f32.mrb[0].mxu0
      %v1910 = vpop.f32.mrb[0].mxu0
      %1911 = vdwg.mxu0
      %v1912 = vadd.f32 %v1412, %v1907
      %s1913 = scalar_lea.vmem %s2, 192
      %v1914 = vld [vmem:[%s1913] sm:$0xf]
      %v1915 = vld [vmem:[%s1913 + $0x4] sm:$0xf]
      %v1916 = vld [vmem:[%s1913 + $0x8] sm:$0xf]
      %v1917 = vld [vmem:[%s1913 + $0xc] sm:$0xf]
      %v1918 = vld [vmem:[%s1913 + $0x10] sm:$0xf]
      %v1919 = vld [vmem:[%s1913 + $0x14] sm:$0xf]
      %v1920 = vld [vmem:[%s1913 + $0x18] sm:$0xf]
      %v1921 = vld [vmem:[%s1913 + $0x1c] sm:$0xf]
      %v1922 = vld [vmem:[%s1913 + $0x20] sm:$0xf]
      %v1923 = vld [vmem:[%s1913 + $0x24] sm:$0xf]
      %v1924 = vld [vmem:[%s1913 + $0x28] sm:$0xf]
      %v1925 = vld [vmem:[%s1913 + $0x2c] sm:$0xf]
      %v1926 = vld [vmem:[%s1913 + $0x30] sm:$0xf]
      %v1927 = vld [vmem:[%s1913 + $0x34] sm:$0xf]
      %v1928 = vld [vmem:[%s1913 + $0x38] sm:$0xf]
      %v1929 = vld [vmem:[%s1913 + $0x3c] sm:$0xf]
      %s1930 = scalar_lea.vmem %s3, 3
      %v1931 = vld [vmem:[%s1930] sm:$0x1]
      %v1933 = vlaneseq
      %v1934 = vshrl.u32 %v1933, 7
      %v1935 = vsub.s32 0, %v1934
      %v1936 = vrot.slane %v1931, %v1935
      %v1954 = vunpack.c.l.b16 %v1914
      %v1955 = vunpack.c.l.b16 %v1915
      %v1956 = vunpack.c.l.b16 %v1916
      %v1957 = vunpack.c.l.b16 %v1917
      %v1958 = vunpack.c.l.b16 %v1918
      %v1959 = vunpack.c.l.b16 %v1919
      %v1960 = vunpack.c.l.b16 %v1920
      %v1961 = vunpack.c.l.b16 %v1921
      %v1962 = vunpack.c.l.b16 %v1922
      %v1963 = vunpack.c.l.b16 %v1923
      %v1964 = vunpack.c.l.b16 %v1924
      %v1965 = vunpack.c.l.b16 %v1925
      %v1966 = vunpack.c.l.b16 %v1926
      %v1967 = vunpack.c.l.b16 %v1927
      %v1968 = vunpack.c.l.b16 %v1928
      %v1969 = vunpack.c.l.b16 %v1929
      %v1970 = vpack.c.b16 %v1955, %v1954
      %v1971 = vpack.c.b16 %v1957, %v1956
      %v1972 = vpack.c.b16 %v1959, %v1958
      %v1973 = vpack.c.b16 %v1961, %v1960
      %v1974 = vpack.c.b16 %v1963, %v1962
      %v1975 = vpack.c.b16 %v1965, %v1964
      %v1976 = vpack.c.b16 %v1967, %v1966
      %v1977 = vpack.c.b16 %v1969, %v1968
      %1986 = vmatprep.subr.bf16.mxu0 0
      %1987 = vmatpush1.bf16.msra.mxu0 %v1970
      %1988 = vmatprep.subr.bf16.mxu0 0
      %1989 = vmatpush1.bf16.msra.mxu0 %v1971
      %1990 = vmatprep.subr.bf16.mxu0 0
      %1991 = vmatpush1.bf16.msra.mxu0 %v1972
      %1992 = vmatprep.subr.bf16.mxu0 0
      %1993 = vmatpush1.bf16.msra.mxu0 %v1973
      %1994 = vmatprep.subr.bf16.mxu0 0
      %1995 = vmatpush1.bf16.msra.mxu0 %v1974
      %1996 = vmatprep.subr.bf16.mxu0 0
      %1997 = vmatpush1.bf16.msra.mxu0 %v1975
      %1998 = vmatprep.subr.bf16.mxu0 0
      %1999 = vmatpush1.bf16.msra.mxu0 %v1976
      %2000 = vmatprep.subr.bf16.mxu0 0
      %2001 = vmatpush1.bf16.msra.mxu0 %v1977
      %2002 = vmatprep.subr.bf16.mxu0 0
      %2003 = vmatpush1.bf16.msra.mxu0 0
      %2004 = vmatprep.subr.bf16.mxu0 0
      %2005 = vmatpush1.bf16.msra.mxu0 0
      %2006 = vmatprep.subr.bf16.mxu0 0
      %2007 = vmatpush1.bf16.msra.mxu0 0
      %2008 = vmatprep.subr.bf16.mxu0 0
      %2009 = vmatpush1.bf16.msra.mxu0 0
      %2010 = vmatprep.subr.bf16.mxu0 0
      %2011 = vmatpush1.bf16.msra.mxu0 0
      %2012 = vmatprep.subr.bf16.mxu0 0
      %2013 = vmatpush1.bf16.msra.mxu0 0
      %2014 = vmatprep.subr.bf16.mxu0 0
      %2015 = vmatpush1.bf16.msra.mxu0 0
      %2016 = vmatprep.subr.bf16.mxu0 0
      %2017 = vmatpush1.bf16.msra.mxu0 0
      %2018 = vmatprep.mubr.bf16.mxu0 0
      %2019 = vmatmul.mubr.bf16.gmra.mrb[0].mxu0 %v424
      %v2020 = vpop.f32.mrb[0].mxu0
      %v2021 = vadd.f32 %v1936, %v2020
      %v2022 = vpop.f32.mrb[0].mxu0
      %v2023 = vpop.f32.mrb[0].mxu0
      %v2024 = vpop.f32.mrb[0].mxu0
      %2025 = vdwg.mxu0
      %s2026 = scalar_lea.vmem %s4, 192
      %v2027 = vld [vmem:[%s2026] sm:$0xf]
      %v2028 = vld [vmem:[%s2026 + $0x4] sm:$0xf]
      %v2029 = vld [vmem:[%s2026 + $0x8] sm:$0xf]
      %v2030 = vld [vmem:[%s2026 + $0xc] sm:$0xf]
      %v2031 = vld [vmem:[%s2026 + $0x10] sm:$0xf]
      %v2032 = vld [vmem:[%s2026 + $0x14] sm:$0xf]
      %v2033 = vld [vmem:[%s2026 + $0x18] sm:$0xf]
      %v2034 = vld [vmem:[%s2026 + $0x1c] sm:$0xf]
      %v2035 = vld [vmem:[%s2026 + $0x20] sm:$0xf]
      %v2036 = vld [vmem:[%s2026 + $0x24] sm:$0xf]
      %v2037 = vld [vmem:[%s2026 + $0x28] sm:$0xf]
      %v2038 = vld [vmem:[%s2026 + $0x2c] sm:$0xf]
      %v2039 = vld [vmem:[%s2026 + $0x30] sm:$0xf]
      %v2040 = vld [vmem:[%s2026 + $0x34] sm:$0xf]
      %v2041 = vld [vmem:[%s2026 + $0x38] sm:$0xf]
      %v2042 = vld [vmem:[%s2026 + $0x3c] sm:$0xf]
      %s2043 = scalar_lea.vmem %s5, 3
      %v2044 = vld [vmem:[%s2043] sm:$0x1]
      %v2046 = vlaneseq
      %v2047 = vshrl.u32 %v2046, 7
      %v2048 = vsub.s32 0, %v2047
      %v2049 = vrot.slane %v2044, %v2048
      %v2067 = vunpack.c.l.b16 %v2027
      %v2068 = vunpack.c.l.b16 %v2028
      %v2069 = vunpack.c.l.b16 %v2029
      %v2070 = vunpack.c.l.b16 %v2030
      %v2071 = vunpack.c.l.b16 %v2031
      %v2072 = vunpack.c.l.b16 %v2032
      %v2073 = vunpack.c.l.b16 %v2033
      %v2074 = vunpack.c.l.b16 %v2034
      %v2075 = vunpack.c.l.b16 %v2035
      %v2076 = vunpack.c.l.b16 %v2036
      %v2077 = vunpack.c.l.b16 %v2037
      %v2078 = vunpack.c.l.b16 %v2038
      %v2079 = vunpack.c.l.b16 %v2039
      %v2080 = vunpack.c.l.b16 %v2040
      %v2081 = vunpack.c.l.b16 %v2041
      %v2082 = vunpack.c.l.b16 %v2042
      %v2083 = vpack.c.b16 %v2068, %v2067
      %v2084 = vpack.c.b16 %v2070, %v2069
      %v2085 = vpack.c.b16 %v2072, %v2071
      %v2086 = vpack.c.b16 %v2074, %v2073
      %v2087 = vpack.c.b16 %v2076, %v2075
      %v2088 = vpack.c.b16 %v2078, %v2077
      %v2089 = vpack.c.b16 %v2080, %v2079
      %v2090 = vpack.c.b16 %v2082, %v2081
      %2099 = vmatprep.subr.bf16.mxu0 0
      %2100 = vmatpush1.bf16.msra.mxu0 %v2083
      %2101 = vmatprep.subr.bf16.mxu0 0
      %2102 = vmatpush1.bf16.msra.mxu0 %v2084
      %2103 = vmatprep.subr.bf16.mxu0 0
      %2104 = vmatpush1.bf16.msra.mxu0 %v2085
      %2105 = vmatprep.subr.bf16.mxu0 0
      %2106 = vmatpush1.bf16.msra.mxu0 %v2086
      %2107 = vmatprep.subr.bf16.mxu0 0
      %2108 = vmatpush1.bf16.msra.mxu0 %v2087
      %2109 = vmatprep.subr.bf16.mxu0 0
      %2110 = vmatpush1.bf16.msra.mxu0 %v2088
      %2111 = vmatprep.subr.bf16.mxu0 0
      %2112 = vmatpush1.bf16.msra.mxu0 %v2089
      %2113 = vmatprep.subr.bf16.mxu0 0
      %2114 = vmatpush1.bf16.msra.mxu0 %v2090
      %2115 = vmatprep.subr.bf16.mxu0 0
      %2116 = vmatpush1.bf16.msra.mxu0 0
      %2117 = vmatprep.subr.bf16.mxu0 0
      %2118 = vmatpush1.bf16.msra.mxu0 0
      %2119 = vmatprep.subr.bf16.mxu0 0
      %2120 = vmatpush1.bf16.msra.mxu0 0
      %2121 = vmatprep.subr.bf16.mxu0 0
      %2122 = vmatpush1.bf16.msra.mxu0 0
      %2123 = vmatprep.subr.bf16.mxu0 0
      %2124 = vmatpush1.bf16.msra.mxu0 0
      %2125 = vmatprep.subr.bf16.mxu0 0
      %2126 = vmatpush1.bf16.msra.mxu0 0
      %2127 = vmatprep.subr.bf16.mxu0 0
      %2128 = vmatpush1.bf16.msra.mxu0 0
      %2129 = vmatprep.subr.bf16.mxu0 0
      %2130 = vmatpush1.bf16.msra.mxu0 0
      %2131 = vmatprep.mubr.bf16.mxu0 0
      %2132 = vmatmul.mubr.bf16.gmra.mrb[0].mxu0 %v424
      %v2133 = vpop.f32.mrb[0].mxu0
      %v2134 = vadd.f32 %v2049, %v2133
      %v2135 = vpop.f32.mrb[0].mxu0
      %v2136 = vpop.f32.mrb[0].mxu0
      %v2137 = vpop.f32.mrb[0].mxu0
      %2138 = vdwg.mxu0
      %s2139 = scalar_lea.vmem %s6, 192
      %v2140 = vld [vmem:[%s2139] sm:$0xf]
      %v2141 = vld [vmem:[%s2139 + $0x4] sm:$0xf]
      %v2142 = vld [vmem:[%s2139 + $0x8] sm:$0xf]
      %v2143 = vld [vmem:[%s2139 + $0xc] sm:$0xf]
      %v2144 = vld [vmem:[%s2139 + $0x10] sm:$0xf]
      %v2145 = vld [vmem:[%s2139 + $0x14] sm:$0xf]
      %v2146 = vld [vmem:[%s2139 + $0x18] sm:$0xf]
      %v2147 = vld [vmem:[%s2139 + $0x1c] sm:$0xf]
      %v2148 = vld [vmem:[%s2139 + $0x20] sm:$0xf]
      %v2149 = vld [vmem:[%s2139 + $0x24] sm:$0xf]
      %v2150 = vld [vmem:[%s2139 + $0x28] sm:$0xf]
      %v2151 = vld [vmem:[%s2139 + $0x2c] sm:$0xf]
      %v2152 = vld [vmem:[%s2139 + $0x30] sm:$0xf]
      %v2153 = vld [vmem:[%s2139 + $0x34] sm:$0xf]
      %v2154 = vld [vmem:[%s2139 + $0x38] sm:$0xf]
      %v2155 = vld [vmem:[%s2139 + $0x3c] sm:$0xf]
      %s2156 = scalar_lea.vmem %s7, 3
      %v2157 = vld [vmem:[%s2156] sm:$0x1]
      %v2159 = vlaneseq
      %v2160 = vshrl.u32 %v2159, 7
      %v2161 = vsub.s32 0, %v2160
      %v2162 = vrot.slane %v2157, %v2161
      %v2180 = vunpack.c.l.b16 %v2140
      %v2181 = vunpack.c.l.b16 %v2141
      %v2182 = vunpack.c.l.b16 %v2142
      %v2183 = vunpack.c.l.b16 %v2143
      %v2184 = vunpack.c.l.b16 %v2144
      %v2185 = vunpack.c.l.b16 %v2145
      %v2186 = vunpack.c.l.b16 %v2146
      %v2187 = vunpack.c.l.b16 %v2147
      %v2188 = vunpack.c.l.b16 %v2148
      %v2189 = vunpack.c.l.b16 %v2149
      %v2190 = vunpack.c.l.b16 %v2150
      %v2191 = vunpack.c.l.b16 %v2151
      %v2192 = vunpack.c.l.b16 %v2152
      %v2193 = vunpack.c.l.b16 %v2153
      %v2194 = vunpack.c.l.b16 %v2154
      %v2195 = vunpack.c.l.b16 %v2155
      %v2196 = vpack.c.b16 %v2181, %v2180
      %v2197 = vpack.c.b16 %v2183, %v2182
      %v2198 = vpack.c.b16 %v2185, %v2184
      %v2199 = vpack.c.b16 %v2187, %v2186
      %v2200 = vpack.c.b16 %v2189, %v2188
      %v2201 = vpack.c.b16 %v2191, %v2190
      %v2202 = vpack.c.b16 %v2193, %v2192
      %v2203 = vpack.c.b16 %v2195, %v2194
      %2212 = vmatprep.subr.bf16.mxu0 0
      %2213 = vmatpush1.bf16.msra.mxu0 %v2196
      %2214 = vmatprep.subr.bf16.mxu0 0
      %2215 = vmatpush1.bf16.msra.mxu0 %v2197
      %2216 = vmatprep.subr.bf16.mxu0 0
      %2217 = vmatpush1.bf16.msra.mxu0 %v2198
      %2218 = vmatprep.subr.bf16.mxu0 0
      %2219 = vmatpush1.bf16.msra.mxu0 %v2199
      %2220 = vmatprep.subr.bf16.mxu0 0
      %2221 = vmatpush1.bf16.msra.mxu0 %v2200
      %2222 = vmatprep.subr.bf16.mxu0 0
      %2223 = vmatpush1.bf16.msra.mxu0 %v2201
      %2224 = vmatprep.subr.bf16.mxu0 0
      %2225 = vmatpush1.bf16.msra.mxu0 %v2202
      %2226 = vmatprep.subr.bf16.mxu0 0
      %2227 = vmatpush1.bf16.msra.mxu0 %v2203
      %2228 = vmatprep.subr.bf16.mxu0 0
      %2229 = vmatpush1.bf16.msra.mxu0 0
      %2230 = vmatprep.subr.bf16.mxu0 0
      %2231 = vmatpush1.bf16.msra.mxu0 0
      %2232 = vmatprep.subr.bf16.mxu0 0
      %2233 = vmatpush1.bf16.msra.mxu0 0
      %2234 = vmatprep.subr.bf16.mxu0 0
      %2235 = vmatpush1.bf16.msra.mxu0 0
      %2236 = vmatprep.subr.bf16.mxu0 0
      %2237 = vmatpush1.bf16.msra.mxu0 0
      %2238 = vmatprep.subr.bf16.mxu0 0
      %2239 = vmatpush1.bf16.msra.mxu0 0
      %2240 = vmatprep.subr.bf16.mxu0 0
      %2241 = vmatpush1.bf16.msra.mxu0 0
      %2242 = vmatprep.subr.bf16.mxu0 0
      %2243 = vmatpush1.bf16.msra.mxu0 0
      %2244 = vmatprep.mubr.bf16.mxu0 0
      %2245 = vmatmul.mubr.bf16.gmra.mrb[0].mxu0 %v424
      %v2246 = vpop.f32.mrb[0].mxu0
      %v2247 = vadd.f32 %v2162, %v2246
      %v2248 = vpop.f32.mrb[0].mxu0
      %v2249 = vpop.f32.mrb[0].mxu0
      %v2250 = vpop.f32.mrb[0].mxu0
      %2251 = vdwg.mxu0
      %v2252 = vpack.c.bf16 %v2021, %v2021
      %v2253 = vpack.c.bf16 %v2134, %v2134
      %v2255 = vsel %vm767, %v2252, 0
      %v2258 = vsel %vm767, %v2253, 0
      %2260 = vmatprep.subr.bf16.mxu0 0
      %2261 = vmatpush1.bf16.xpose.msra.mxu0 %v2258
      %2262 = vmatprep.subr.bf16.mxu0 0
      %2263 = vmatpush1.bf16.xpose.msra.mxu0 0
      %2264 = vmatprep.subr.bf16.mxu0 0
      %2265 = vmatpush1.bf16.xpose.msra.mxu0 0
      %2266 = vmatprep.subr.bf16.mxu0 0
      %2267 = vmatpush1.bf16.xpose.msra.mxu0 0
      %2268 = vmatprep.subr.bf16.mxu0 0
      %2269 = vmatpush1.bf16.xpose.msra.mxu0 0
      %2270 = vmatprep.subr.bf16.mxu0 0
      %2271 = vmatpush1.bf16.xpose.msra.mxu0 0
      %2272 = vmatprep.subr.bf16.mxu0 0
      %2273 = vmatpush1.bf16.xpose.msra.mxu0 0
      %2274 = vmatprep.subr.bf16.mxu0 0
      %2275 = vmatpush1.bf16.xpose.msra.mxu0 0
      %2276 = vmatprep.subr.bf16.mxu0 0
      %2277 = vmatpush1.bf16.xpose.msra.mxu0 0
      %2278 = vmatprep.subr.bf16.mxu0 0
      %2279 = vmatpush1.bf16.xpose.msra.mxu0 0
      %2280 = vmatprep.subr.bf16.mxu0 0
      %2281 = vmatpush1.bf16.xpose.msra.mxu0 0
      %2282 = vmatprep.subr.bf16.mxu0 0
      %2283 = vmatpush1.bf16.xpose.msra.mxu0 0
      %2284 = vmatprep.subr.bf16.mxu0 0
      %2285 = vmatpush1.bf16.xpose.msra.mxu0 0
      %2286 = vmatprep.subr.bf16.mxu0 0
      %2287 = vmatpush1.bf16.xpose.msra.mxu0 0
      %2288 = vmatprep.subr.bf16.mxu0 0
      %2289 = vmatpush1.bf16.xpose.msra.mxu0 0
      %2290 = vmatprep.subr.bf16.mxu0 0
      %2291 = vmatpush1.bf16.xpose.msra.mxu0 0
      %2292 = vmatprep.mubr.bf16.mxu0 0
      %2293 = vmatmul.mubr.bf16.gmra.mrb[0].mxu0 %v2255
      %v2294 = vpop.f32.mrb[0].mxu0
      %v2295 = vadd.f32 %v765, %v2294
      %v2296 = vpop.f32.mrb[0].mxu0
      %v2297 = vpop.f32.mrb[0].mxu0
      %v2298 = vpop.f32.mrb[0].mxu0
      %2299 = vdwg.mxu0
      %v2300 = vsel %vm767, %v2295, -inf
      %2301 = vmax.xlane.f32.xlu0 %v2300
      %v2302 = vpop.xlane.xlu0 %2301
      %v2303 = vsub.f32 %v2295, %v2302
      %v2304 = vmul.f32 %v2303, 1.442695
      %v2305 = vpow.pop %v2304
      %v2306 = vsel %vm767, %v2305, 0.0
      %2307 = vadd.xlane.f32.xlu0 %v2306
      %v2308 = vpop.xlane.xlu0 %2307
      %v2309 = vrcp.pop %v2308
      %v2310 = vmul.f32 %v2305, %v2309
      %v2311 = vpack.c.bf16 %v2310, %v2310
      %v2312 = vpack.c.bf16 %v2247, %v2247
      %v2314 = vsel %vm767, %v2311, 0
      %v2317 = vsel %vm830, %v2312, 0
      %2319 = vmatprep.subr.bf16.mxu0 0
      %2320 = vmatpush1.bf16.msra.mxu0 %v2317
      %2321 = vmatprep.subr.bf16.mxu0 0
      %2322 = vmatpush1.bf16.msra.mxu0 0
      %2323 = vmatprep.subr.bf16.mxu0 0
      %2324 = vmatpush1.bf16.msra.mxu0 0
      %2325 = vmatprep.subr.bf16.mxu0 0
      %2326 = vmatpush1.bf16.msra.mxu0 0
      %2327 = vmatprep.subr.bf16.mxu0 0
      %2328 = vmatpush1.bf16.msra.mxu0 0
      %2329 = vmatprep.subr.bf16.mxu0 0
      %2330 = vmatpush1.bf16.msra.mxu0 0
      %2331 = vmatprep.subr.bf16.mxu0 0
      %2332 = vmatpush1.bf16.msra.mxu0 0
      %2333 = vmatprep.subr.bf16.mxu0 0
      %2334 = vmatpush1.bf16.msra.mxu0 0
      %2335 = vmatprep.subr.bf16.mxu0 0
      %2336 = vmatpush1.bf16.msra.mxu0 0
      %2337 = vmatprep.subr.bf16.mxu0 0
      %2338 = vmatpush1.bf16.msra.mxu0 0
      %2339 = vmatprep.subr.bf16.mxu0 0
      %2340 = vmatpush1.bf16.msra.mxu0 0
      %2341 = vmatprep.subr.bf16.mxu0 0
      %2342 = vmatpush1.bf16.msra.mxu0 0
      %2343 = vmatprep.subr.bf16.mxu0 0
      %2344 = vmatpush1.bf16.msra.mxu0 0
      %2345 = vmatprep.subr.bf16.mxu0 0
      %2346 = vmatpush1.bf16.msra.mxu0 0
      %2347 = vmatprep.subr.bf16.mxu0 0
      %2348 = vmatpush1.bf16.msra.mxu0 0
      %2349 = vmatprep.subr.bf16.mxu0 0
      %2350 = vmatpush1.bf16.msra.mxu0 0
      %2351 = vmatprep.mubr.bf16.mxu0 0
      %2352 = vmatmul.mubr.bf16.gmra.mrb[0].mxu0 %v2314
      %v2353 = vpop.f32.mrb[0].mxu0
      %v2354 = vadd.f32 0.0, %v2353
      %v2355 = vpop.f32.mrb[0].mxu0
      %v2356 = vpop.f32.mrb[0].mxu0
      %v2357 = vpop.f32.mrb[0].mxu0
      %2358 = vdwg.mxu0
      %v2359 = vpack.c.bf16 %v2354, %v2354
      %s2360 = scalar_lea.vmem %s8, 12
      %v2361 = vld [vmem:[%s2360] sm:$0xf]
      %v2363 = vsel %vm767, %v2359, 0
      %v2366 = vsel %vm830, %v2361, 0
      %2368 = vmatprep.subr.bf16.mxu0 0
      %2369 = vmatpush1.bf16.msra.mxu0 %v2366
      %2370 = vmatprep.subr.bf16.mxu0 0
      %2371 = vmatpush1.bf16.msra.mxu0 0
      %2372 = vmatprep.subr.bf16.mxu0 0
      %2373 = vmatpush1.bf16.msra.mxu0 0
      %2374 = vmatprep.subr.bf16.mxu0 0
      %2375 = vmatpush1.bf16.msra.mxu0 0
      %2376 = vmatprep.subr.bf16.mxu0 0
      %2377 = vmatpush1.bf16.msra.mxu0 0
      %2378 = vmatprep.subr.bf16.mxu0 0
      %2379 = vmatpush1.bf16.msra.mxu0 0
      %2380 = vmatprep.subr.bf16.mxu0 0
      %2381 = vmatpush1.bf16.msra.mxu0 0
      %2382 = vmatprep.subr.bf16.mxu0 0
      %2383 = vmatpush1.bf16.msra.mxu0 0
      %2384 = vmatprep.subr.bf16.mxu0 0
      %2385 = vmatpush1.bf16.msra.mxu0 0
      %2386 = vmatprep.subr.bf16.mxu0 0
      %2387 = vmatpush1.bf16.msra.mxu0 0
      %2388 = vmatprep.subr.bf16.mxu0 0
      %2389 = vmatpush1.bf16.msra.mxu0 0
      %2390 = vmatprep.subr.bf16.mxu0 0
      %2391 = vmatpush1.bf16.msra.mxu0 0
      %2392 = vmatprep.subr.bf16.mxu0 0
      %2393 = vmatpush1.bf16.msra.mxu0 0
      %2394 = vmatprep.subr.bf16.mxu0 0
      %2395 = vmatpush1.bf16.msra.mxu0 0
      %2396 = vmatprep.subr.bf16.mxu0 0
      %2397 = vmatpush1.bf16.msra.mxu0 0
      %2398 = vmatprep.subr.bf16.mxu0 0
      %2399 = vmatpush1.bf16.msra.mxu0 0
      %2400 = vmatprep.mubr.bf16.mxu0 0
      %2401 = vmatmul.mubr.bf16.gmra.mrb[0].mxu0 %v2363
      %v2402 = vpop.f32.mrb[0].mxu0
      %v2403 = vadd.f32 0.0, %v2402
      %v2404 = vpop.f32.mrb[0].mxu0
      %v2405 = vpop.f32.mrb[0].mxu0
      %v2406 = vpop.f32.mrb[0].mxu0
      %2407 = vdwg.mxu0
      %v2408 = vadd.f32 %v1912, %v2403
      %v2409 = vld [vmem:[%s9] sm:$0x1]
      %v2411 = vlaneseq
      %v2412 = vshrl.u32 %v2411, 7
      %v2413 = vsub.s32 0, %v2412
      %v2414 = vrot.slane %v2409, %v2413
      %v2416 = vadd.f32 %v2408, %v2414
      %v2417 = vunpack.c.l.bf16 %v424
      %v2418 = vadd.f32 %v2417, %v2416
      %v2419 = vld [vmem:[%s10] sm:$0x1]
      %v2420 = vld [vmem:[%s11] sm:$0x1]
      %2421 = vadd.xlane.f32.xlu0 %v2418
      %v2422 = vpop.xlane.xlu0 %2421
      %v2423 = vmul.f32 %v2418, %v2418
      %2424 = vadd.xlane.f32.xlu0 %v2423
      %v2425 = vpop.xlane.xlu0 %2424
      %v2426 = vmul.f32 %v2422, 0.03125
      %v2427 = vmul.f32 %v2426, 32.0
      %v2428 = vmul.f32 %v2427, %v2426
      %v2429 = vsub.f32 %v2425, %v2428
      %v2430 = vmul.f32 %v2429, 0.032258064
      %v2431 = vmax.f32 %v2430, 0.0
      %v2432 = vrsqrt.pop %v2431
      %v2433 = vmul.f32 %v2431, %v2432
      %vm2434 = vcmp.eq.f32.partialorder %v2431, inf
      %v2435 = vsel %vm2434, %v2431, %v2433
      %vm2436 = vcmp.eq.f32.partialorder %v2431, 0.0
      %v2437 = vand.u32 %v2431, 2147483648
      %v2438 = vsel %vm2436, %v2437, %v2435
      %v2439 = vadd.f32 %v2438, 1e-06
      %v2440 = vrcp.pop %v2439
      %v2441 = vsub.f32 %v2418, %v2426
      %v2443 = vlaneseq
      %v2444 = vshrl.u32 %v2443, 7
      %v2445 = vsub.s32 0, %v2444
      %v2446 = vrot.slane %v2419, %v2445
      %v2448 = vmul.f32 %v2446, %v2441
      %v2449 = vmul.f32 %v2448, %v2440
      %v2451 = vlaneseq
      %v2452 = vshrl.u32 %v2451, 7
      %v2453 = vsub.s32 0, %v2452
      %v2454 = vrot.slane %v2420, %v2453
      %v2456 = vadd.f32 %v2449, %v2454
      %v2457 = vpack.c.bf16 %v2456, %v2456
      %2458 = vst [vmem:[%s422] sm:$0xf] %v2457
      %p2459 = scmp.lt.s32.totalorder %s23, 1
      %s2460 = scalar_select %p2459, %s23, 1
      %s2461 = smul.addr %s2460, 4
      %s2462 = scalar_lea.vmem %s12, %s2461
      // Predicated region
      $region69: #{transformer_fwd.13} parent=67 // pred_check
        %p2463 = pneg %p303
      $region70: #{transformer_fwd.13} parent=67 // pred_check_branch
        %2465 = sbr.rel (%p2463) target = $region72
      $region71: #{transformer_fwd.13} parent=67 // pred_region
        _
      $region72: #{transformer_fwd.13} parent=67 // pred_fallthru
        _
    $region68: #{transformer_fwd.13} parent=5 // pred_fallthru
      _
    %p2466 = scmp.le.s32.totalorder 2, %s18
    // Predicated region
    $region73: #{transformer_fwd.13} parent=5 // pred_check
      %p2467 = pneg %p2466
    $region74: #{transformer_fwd.13} parent=5 // pred_check_branch
      %2469 = sbr.rel (%p2467) target = $region76
    $region75: #{transformer_fwd.13} parent=5 // pred_region
      %s2470 = ssub.s32 %s18, 2
      // Predicated region
      $region77: #{transformer_fwd.13} parent=75 // pred_check
        %p2471 = pneg %p309
      $region78: #{transformer_fwd.13} parent=75 // pred_check_branch
        %2473 = sbr.rel (%p2471) target = $region80
      $region79: #{transformer_fwd.13} parent=75 // pred_region
        %p2474 = scmp.lt.s32.totalorder %s24, 1
        %s2475 = scalar_select %p2474, %s24, 1
        %s2476 = smul.addr %s2475, 4
        %s2477 = scalar_lea.vmem %s12, %s2476
      $region80: #{transformer_fwd.13} parent=75 // pred_fallthru
        _
    $region76: #{transformer_fwd.13} parent=5 // pred_fallthru
      _
  $region6: #{transformer_fwd.13} parent=0 // loop_footer
    %s22 = sadd.s32 1, %s18
  $region7: #{transformer_fwd.13} parent=0 // loop_footer_branch
    %17 = sbr.rel target = $region3
  $region8: #{transformer_fwd.13} parent=0 // loop_exit
    _

// kernel: transformer_fwd.18
$region0: #{transformer_fwd.18}
  #allocation0 [shape = 'u32[]', space=smem, size = 0x4, offset = 0x4, fixed_abs, tag = 'smem constant byte address 0x4 - core index']
  #allocation1 [shape = 'u32[144,128]{1,0:T(1,128)}', space=vmem, size = 0x12000, scoped, tag = 'internal scratch']
  %s0 = inlined_call_operand.vmem [shape: bf16[2,8,128], index: 0, kind: input, shape index: {}]
  %s1 = inlined_call_operand.vmem [shape: f32[2,8,8], index: 1, kind: input, shape index: {}]
  %s2 = inlined_call_operand.vmem [shape: bf16[4,128,8], index: 2, kind: input, shape index: {}]
  %s3 = inlined_call_operand.vmem [shape: f32[4,1,8], index: 3, kind: input, shape index: {}]
  %s4 = inlined_call_operand.vmem [shape: bf16[4,128,8], index: 4, kind: input, shape index: {}]
  %s5 = inlined_call_operand.vmem [shape: f32[4,1,8], index: 5, kind: input, shape index: {}]
  %s6 = inlined_call_operand.vmem [shape: bf16[4,128,8], index: 6, kind: input, shape index: {}]
  %s7 = inlined_call_operand.vmem [shape: f32[4,1,8], index: 7, kind: input, shape index: {}]
  %s8 = inlined_call_operand.vmem [shape: bf16[4,8,128], index: 8, kind: input, shape index: {}]
  %s9 = inlined_call_operand.vmem [shape: f32[1,128], index: 9, kind: input, shape index: {}]
  %s10 = inlined_call_operand.vmem [shape: f32[1,128], index: 10, kind: input, shape index: {}]
  %s11 = inlined_call_operand.vmem [shape: f32[1,128], index: 11, kind: input, shape index: {}]
  %s12 = inlined_call_operand.vmem [shape: bf16[2,8,128], index: 12, kind: output, shape index: {}]
  %s13 = sld [smem:[#allocation0]]
  $region81: #{transformer_fwd.18} parent=0
    _
  %s15 = ssub.s32 1, %s13
  %s16 = scalar_select 0, %s15, %s13
  loop: start=0, step=1, limit=4
  $region2: #{transformer_fwd.18} parent=0 // loop_pre_header
    _
  $region3: #{transformer_fwd.18} parent=0 // loop_header
    %s18 = sphi 0, %s22
    %p19 = scmp.ge.s32.totalorder %s18, 4
    %s28 = sphi 0, %s30
    %s31 = sphi 0, %s28
    %s32 = sphi 0, %s31
    %s48 = sphi 0, %s32
    %s54 = sphi 0, %s56
    %s57 = sphi 0, %s54
    %s58 = sphi 0, %s57
    %s74 = sphi 0, %s58
    %s78 = sphi 0, %s78
    %s80 = sphi 0, %s78
    %s81 = sphi 0, %s80
    %s95 = sphi 0, %s81
    %s99 = sphi 0, %s99
    %s101 = sphi 0, %s99
    %s102 = sphi 0, %s101
    %s116 = sphi 0, %s102
    %s120 = sphi 0, %s120
    %s122 = sphi 0, %s120
    %s123 = sphi 0, %s122
    %s137 = sphi 0, %s123
    %s141 = sphi 0, %s141
    %s143 = sphi 0, %s141
    %s144 = sphi 0, %s143
    %s158 = sphi 0, %s144
    %s162 = sphi 0, %s162
    %s164 = sphi 0, %s162
    %s165 = sphi 0, %s164
    %s179 = sphi 0, %s165
    %s183 = sphi 0, %s183
    %s185 = sphi 0, %s183
    %s186 = sphi 0, %s185
    %s200 = sphi 0, %s186
    %s204 = sphi 0, %s204
    %s206 = sphi 0, %s204
    %s207 = sphi 0, %s206
    %s221 = sphi 0, %s207
    %s225 = sphi 0, %s225
    %s227 = sphi 0, %s225
    %s228 = sphi 0, %s227
    %s242 = sphi 0, %s228
    %s246 = sphi 0, %s246
    %s248 = sphi 0, %s246
    %s249 = sphi 0, %s248
    %s263 = sphi 0, %s249
    %s267 = sphi 0, %s267
    %s269 = sphi 0, %s267
    %s270 = sphi 0, %s269
    %s284 = sphi 0, %s270
    %s290 = sphi 0, %s292
    %s293 = sphi 0, %s290
    %s294 = sphi 0, %s293
    %s310 = sphi 0, %s294
  $region4: #{transformer_fwd.18} parent=0 // loop_header_branch
    %21 = sbr.rel (%p19) target = $region8
  $region5: #{transformer_fwd.18} parent=0 // loop_body
    %s23 = ssub.s32 %s18, 1
    %s24 = ssub.s32 %s18, 2
    %s25 = sadd.s32 %s18, 1
    %s26 = ssub.s32 %s18, %s25
    %p27 = scmp.eq.s32.totalorder %s26, 0
    %s29 = sadd.s32 %s28, 1
    %s30 = scalar_select %p27, %s28, %s29
    %p33 = pneg %p27
    %p34 = scmp.eq.s32.totalorder %s18, 1
    %p35 = por %p33, %p34
    %p36 = scmp.ne.s32.totalorder %s28, %s31
    %p37 = scmp.eq.s32.totalorder %s18, 0
    %p38 = por %p36, %p37
    %p39 = scmp.ne.s32.totalorder %s28, %s31
    %p40 = scmp.eq.s32.totalorder %s23, 1
    %p41 = por %p39, %p40
    %p42 = scmp.ne.s32.totalorder %s31, %s32
    %p43 = scmp.eq.s32.totalorder %s23, 0
    %p44 = por %p42, %p43
    %p45 = scmp.ne.s32.totalorder %s31, %s32
    %p46 = scmp.eq.s32.totalorder %s24, 1
    %p47 = por %p45, %p46
    %p49 = scmp.ne.s32.totalorder %s32, %s48
    %p50 = scmp.eq.s32.totalorder %s24, 0
    %p51 = por %p49, %p50
    %s52 = ssub.s32 %s18, %s25
    %p53 = scmp.eq.s32.totalorder %s52, 0
    %s55 = sadd.s32 %s54, 1
    %s56 = scalar_select %p53, %s54, %s55
    %p59 = pneg %p53
    %p60 = scmp.eq.s32.totalorder %s18, 1
    %p61 = por %p59, %p60
    %p62 = scmp.ne.s32.totalorder %s54, %s57
    %p63 = scmp.eq.s32.totalorder %s18, 0
    %p64 = por %p62, %p63
    %p65 = scmp.ne.s32.totalorder %s54, %s57
    %p66 = scmp.eq.s32.totalorder %s23, 1
    %p67 = por %p65, %p66
    %p68 = scmp.ne.s32.totalorder %s57, %s58
    %p69 = scmp.eq.s32.totalorder %s23, 0
    %p70 = por %p68, %p69
    %p71 = scmp.ne.s32.totalorder %s57, %s58
    %p72 = scmp.eq.s32.totalorder %s24, 1
    %p73 = por %p71, %p72
    %p75 = scmp.ne.s32.totalorder %s58, %s74
    %p76 = scmp.eq.s32.totalorder %s24, 0
    %p77 = por %p75, %p76
    %s79 = sadd.s32 %s78, 1
    %p82 = scmp.eq.s32.totalorder %s18, 1
    %p83 = scmp.ne.s32.totalorder %s78, %s80
    %p84 = scmp.eq.s32.totalorder %s18, 0
    %p85 = por %p83, %p84
    %p86 = scmp.ne.s32.totalorder %s78, %s80
    %p87 = scmp.eq.s32.totalorder %s23, 1
    %p88 = por %p86, %p87
    %p89 = scmp.ne.s32.totalorder %s80, %s81
    %p90 = scmp.eq.s32.totalorder %s23, 0
    %p91 = por %p89, %p90
    %p92 = scmp.ne.s32.totalorder %s80, %s81
    %p93 = scmp.eq.s32.totalorder %s24, 1
    %p94 = por %p92, %p93
    %p96 = scmp.ne.s32.totalorder %s81, %s95
    %p97 = scmp.eq.s32.totalorder %s24, 0
    %p98 = por %p96, %p97
    %s100 = sadd.s32 %s99, 1
    %p103 = scmp.eq.s32.totalorder %s18, 1
    %p104 = scmp.ne.s32.totalorder %s99, %s101
    %p105 = scmp.eq.s32.totalorder %s18, 0
    %p106 = por %p104, %p105
    %p107 = scmp.ne.s32.totalorder %s99, %s101
    %p108 = scmp.eq.s32.totalorder %s23, 1
    %p109 = por %p107, %p108
    %p110 = scmp.ne.s32.totalorder %s101, %s102
    %p111 = scmp.eq.s32.totalorder %s23, 0
    %p112 = por %p110, %p111
    %p113 = scmp.ne.s32.totalorder %s101, %s102
    %p114 = scmp.eq.s32.totalorder %s24, 1
    %p115 = por %p113, %p114
    %p117 = scmp.ne.s32.totalorder %s102, %s116
    %p118 = scmp.eq.s32.totalorder %s24, 0
    %p119 = por %p117, %p118
    %s121 = sadd.s32 %s120, 1
    %p124 = scmp.eq.s32.totalorder %s18, 1
    %p125 = scmp.ne.s32.totalorder %s120, %s122
    %p126 = scmp.eq.s32.totalorder %s18, 0
    %p127 = por %p125, %p126
    %p128 = scmp.ne.s32.totalorder %s120, %s122
    %p129 = scmp.eq.s32.totalorder %s23, 1
    %p130 = por %p128, %p129
    %p131 = scmp.ne.s32.totalorder %s122, %s123
    %p132 = scmp.eq.s32.totalorder %s23, 0
    %p133 = por %p131, %p132
    %p134 = scmp.ne.s32.totalorder %s122, %s123
    %p135 = scmp.eq.s32.totalorder %s24, 1
    %p136 = por %p134, %p135
    %p138 = scmp.ne.s32.totalorder %s123, %s137
    %p139 = scmp.eq.s32.totalorder %s24, 0
    %p140 = por %p138, %p139
    %s142 = sadd.s32 %s141, 1
    %p145 = scmp.eq.s32.totalorder %s18, 1
    %p146 = scmp.ne.s32.totalorder %s141, %s143
    %p147 = scmp.eq.s32.totalorder %s18, 0
    %p148 = por %p146, %p147
    %p149 = scmp.ne.s32.totalorder %s141, %s143
    %p150 = scmp.eq.s32.totalorder %s23, 1
    %p151 = por %p149, %p150
    %p152 = scmp.ne.s32.totalorder %s143, %s144
    %p153 = scmp.eq.s32.totalorder %s23, 0
    %p154 = por %p152, %p153
    %p155 = scmp.ne.s32.totalorder %s143, %s144
    %p156 = scmp.eq.s32.totalorder %s24, 1
    %p157 = por %p155, %p156
    %p159 = scmp.ne.s32.totalorder %s144, %s158
    %p160 = scmp.eq.s32.totalorder %s24, 0
    %p161 = por %p159, %p160
    %s163 = sadd.s32 %s162, 1
    %p166 = scmp.eq.s32.totalorder %s18, 1
    %p167 = scmp.ne.s32.totalorder %s162, %s164
    %p168 = scmp.eq.s32.totalorder %s18, 0
    %p169 = por %p167, %p168
    %p170 = scmp.ne.s32.totalorder %s162, %s164
    %p171 = scmp.eq.s32.totalorder %s23, 1
    %p172 = por %p170, %p171
    %p173 = scmp.ne.s32.totalorder %s164, %s165
    %p174 = scmp.eq.s32.totalorder %s23, 0
    %p175 = por %p173, %p174
    %p176 = scmp.ne.s32.totalorder %s164, %s165
    %p177 = scmp.eq.s32.totalorder %s24, 1
    %p178 = por %p176, %p177
    %p180 = scmp.ne.s32.totalorder %s165, %s179
    %p181 = scmp.eq.s32.totalorder %s24, 0
    %p182 = por %p180, %p181
    %s184 = sadd.s32 %s183, 1
    %p187 = scmp.eq.s32.totalorder %s18, 1
    %p188 = scmp.ne.s32.totalorder %s183, %s185
    %p189 = scmp.eq.s32.totalorder %s18, 0
    %p190 = por %p188, %p189
    %p191 = scmp.ne.s32.totalorder %s183, %s185
    %p192 = scmp.eq.s32.totalorder %s23, 1
    %p193 = por %p191, %p192
    %p194 = scmp.ne.s32.totalorder %s185, %s186
    %p195 = scmp.eq.s32.totalorder %s23, 0
    %p196 = por %p194, %p195
    %p197 = scmp.ne.s32.totalorder %s185, %s186
    %p198 = scmp.eq.s32.totalorder %s24, 1
    %p199 = por %p197, %p198
    %p201 = scmp.ne.s32.totalorder %s186, %s200
    %p202 = scmp.eq.s32.totalorder %s24, 0
    %p203 = por %p201, %p202
    %s205 = sadd.s32 %s204, 1
    %p208 = scmp.eq.s32.totalorder %s18, 1
    %p209 = scmp.ne.s32.totalorder %s204, %s206
    %p210 = scmp.eq.s32.totalorder %s18, 0
    %p211 = por %p209, %p210
    %p212 = scmp.ne.s32.totalorder %s204, %s206
    %p213 = scmp.eq.s32.totalorder %s23, 1
    %p214 = por %p212, %p213
    %p215 = scmp.ne.s32.totalorder %s206, %s207
    %p216 = scmp.eq.s32.totalorder %s23, 0
    %p217 = por %p215, %p216
    %p218 = scmp.ne.s32.totalorder %s206, %s207
    %p219 = scmp.eq.s32.totalorder %s24, 1
    %p220 = por %p218, %p219
    %p222 = scmp.ne.s32.totalorder %s207, %s221
    %p223 = scmp.eq.s32.totalorder %s24, 0
    %p224 = por %p222, %p223
    %s226 = sadd.s32 %s225, 1
    %p229 = scmp.eq.s32.totalorder %s18, 1
    %p230 = scmp.ne.s32.totalorder %s225, %s227
    %p231 = scmp.eq.s32.totalorder %s18, 0
    %p232 = por %p230, %p231
    %p233 = scmp.ne.s32.totalorder %s225, %s227
    %p234 = scmp.eq.s32.totalorder %s23, 1
    %p235 = por %p233, %p234
    %p236 = scmp.ne.s32.totalorder %s227, %s228
    %p237 = scmp.eq.s32.totalorder %s23, 0
    %p238 = por %p236, %p237
    %p239 = scmp.ne.s32.totalorder %s227, %s228
    %p240 = scmp.eq.s32.totalorder %s24, 1
    %p241 = por %p239, %p240
    %p243 = scmp.ne.s32.totalorder %s228, %s242
    %p244 = scmp.eq.s32.totalorder %s24, 0
    %p245 = por %p243, %p244
    %s247 = sadd.s32 %s246, 1
    %p250 = scmp.eq.s32.totalorder %s18, 1
    %p251 = scmp.ne.s32.totalorder %s246, %s248
    %p252 = scmp.eq.s32.totalorder %s18, 0
    %p253 = por %p251, %p252
    %p254 = scmp.ne.s32.totalorder %s246, %s248
    %p255 = scmp.eq.s32.totalorder %s23, 1
    %p256 = por %p254, %p255
    %p257 = scmp.ne.s32.totalorder %s248, %s249
    %p258 = scmp.eq.s32.totalorder %s23, 0
    %p259 = por %p257, %p258
    %p260 = scmp.ne.s32.totalorder %s248, %s249
    %p261 = scmp.eq.s32.totalorder %s24, 1
    %p262 = por %p260, %p261
    %p264 = scmp.ne.s32.totalorder %s249, %s263
    %p265 = scmp.eq.s32.totalorder %s24, 0
    %p266 = por %p264, %p265
    %s268 = sadd.s32 %s267, 1
    %p271 = scmp.eq.s32.totalorder %s18, 1
    %p272 = scmp.ne.s32.totalorder %s267, %s269
    %p273 = scmp.eq.s32.totalorder %s18, 0
    %p274 = por %p272, %p273
    %p275 = scmp.ne.s32.totalorder %s267, %s269
    %p276 = scmp.eq.s32.totalorder %s23, 1
    %p277 = por %p275, %p276
    %p278 = scmp.ne.s32.totalorder %s269, %s270
    %p279 = scmp.eq.s32.totalorder %s23, 0
    %p280 = por %p278, %p279
    %p281 = scmp.ne.s32.totalorder %s269, %s270
    %p282 = scmp.eq.s32.totalorder %s24, 1
    %p283 = por %p281, %p282
    %p285 = scmp.ne.s32.totalorder %s270, %s284
    %p286 = scmp.eq.s32.totalorder %s24, 0
    %p287 = por %p285, %p286
    %s288 = ssub.s32 %s18, %s25
    %p289 = scmp.eq.s32.totalorder %s288, 0
    %s291 = sadd.s32 %s290, 1
    %s292 = scalar_select %p289, %s290, %s291
    %p295 = pneg %p289
    %p296 = scmp.eq.s32.totalorder %s18, 1
    %p297 = por %p295, %p296
    %p298 = scmp.ne.s32.totalorder %s290, %s293
    %p299 = scmp.eq.s32.totalorder %s18, 0
    %p300 = por %p298, %p299
    %p301 = scmp.ne.s32.totalorder %s290, %s293
    %p302 = scmp.eq.s32.totalorder %s23, 1
    %p303 = por %p301, %p302
    %p304 = scmp.ne.s32.totalorder %s293, %s294
    %p305 = scmp.eq.s32.totalorder %s23, 0
    %p306 = por %p304, %p305
    %p307 = scmp.ne.s32.totalorder %s293, %s294
    %p308 = scmp.eq.s32.totalorder %s24, 1
    %p309 = por %p307, %p308
    %p311 = scmp.ne.s32.totalorder %s294, %s310
    %p312 = scmp.eq.s32.totalorder %s24, 0
    %p313 = por %p311, %p312
    %p314 = scmp.le.s32.totalorder 1, %s18
    %p315 = scmp.lt.s32.totalorder %s18, 3
    %p316 = pnand %p314, %p315
    %p317 = pneg %p316
    // Predicated region
    $region9: #{transformer_fwd.18} parent=5 // pred_check
      _
    $region10: #{transformer_fwd.18} parent=5 // pred_check_branch
      %319 = sbr.rel (%p316) target = $region12
    $region11: #{transformer_fwd.18} parent=5 // pred_region
      %s320 = ssub.s32 %s18, 1
      // Predicated region
      $region13: #{transformer_fwd.18} parent=11 // pred_check
        %p321 = pneg %p91
      $region14: #{transformer_fwd.18} parent=11 // pred_check_branch
        %323 = sbr.rel (%p321) target = $region16
      $region15: #{transformer_fwd.18} parent=11 // pred_region
        _
      $region16: #{transformer_fwd.18} parent=11 // pred_fallthru
        _
      // Predicated region
      $region17: #{transformer_fwd.18} parent=11 // pred_check
        %p324 = pneg %p112
      $region18: #{transformer_fwd.18} parent=11 // pred_check_branch
        %326 = sbr.rel (%p324) target = $region20
      $region19: #{transformer_fwd.18} parent=11 // pred_region
        _
      $region20: #{transformer_fwd.18} parent=11 // pred_fallthru
        _
      // Predicated region
      $region21: #{transformer_fwd.18} parent=11 // pred_check
        %p327 = pneg %p133
      $region22: #{transformer_fwd.18} parent=11 // pred_check_branch
        %329 = sbr.rel (%p327) target = $region24
      $region23: #{transformer_fwd.18} parent=11 // pred_region
        _
      $region24: #{transformer_fwd.18} parent=11 // pred_fallthru
        _
      // Predicated region
      $region25: #{transformer_fwd.18} parent=11 // pred_check
        %p330 = pneg %p154
      $region26: #{transformer_fwd.18} parent=11 // pred_check_branch
        %332 = sbr.rel (%p330) target = $region28
      $region27: #{transformer_fwd.18} parent=11 // pred_region
        _
      $region28: #{transformer_fwd.18} parent=11 // pred_fallthru
        _
      // Predicated region
      $region29: #{transformer_fwd.18} parent=11 // pred_check
        %p333 = pneg %p175
      $region30: #{transformer_fwd.18} parent=11 // pred_check_branch
        %335 = sbr.rel (%p333) target = $region32
      $region31: #{transformer_fwd.18} parent=11 // pred_region
        _
      $region32: #{transformer_fwd.18} parent=11 // pred_fallthru
        _
      // Predicated region
      $region33: #{transformer_fwd.18} parent=11 // pred_check
        %p336 = pneg %p196
      $region34: #{transformer_fwd.18} parent=11 // pred_check_branch
        %338 = sbr.rel (%p336) target = $region36
      $region35: #{transformer_fwd.18} parent=11 // pred_region
        _
      $region36: #{transformer_fwd.18} parent=11 // pred_fallthru
        _
      // Predicated region
      $region37: #{transformer_fwd.18} parent=11 // pred_check
        %p339 = pneg %p217
      $region38: #{transformer_fwd.18} parent=11 // pred_check_branch
        %341 = sbr.rel (%p339) target = $region40
      $region39: #{transformer_fwd.18} parent=11 // pred_region
        _
      $region40: #{transformer_fwd.18} parent=11 // pred_fallthru
        _
      // Predicated region
      $region41: #{transformer_fwd.18} parent=11 // pred_check
        %p342 = pneg %p238
      $region42: #{transformer_fwd.18} parent=11 // pred_check_branch
        %344 = sbr.rel (%p342) target = $region44
      $region43: #{transformer_fwd.18} parent=11 // pred_region
        _
      $region44: #{transformer_fwd.18} parent=11 // pred_fallthru
        _
      // Predicated region
      $region45: #{transformer_fwd.18} parent=11 // pred_check
        %p345 = pneg %p259
      $region46: #{transformer_fwd.18} parent=11 // pred_check_branch
        %347 = sbr.rel (%p345) target = $region48
      $region47: #{transformer_fwd.18} parent=11 // pred_region
        _
      $region48: #{transformer_fwd.18} parent=11 // pred_fallthru
        _
      // Predicated region
      $region49: #{transformer_fwd.18} parent=11 // pred_check
        %p348 = pneg %p280
      $region50: #{transformer_fwd.18} parent=11 // pred_check_branch
        %350 = sbr.rel (%p348) target = $region52
      $region51: #{transformer_fwd.18} parent=11 // pred_region
        _
      $region52: #{transformer_fwd.18} parent=11 // pred_fallthru
        _
    $region12: #{transformer_fwd.18} parent=5 // pred_fallthru
      _
    %p351 = scmp.lt.s32.totalorder %s18, 2
    // Predicated region
    $region53: #{transformer_fwd.18} parent=5 // pred_check
      %p352 = pneg %p351
    $region54: #{transformer_fwd.18} parent=5 // pred_check_branch
      %354 = sbr.rel (%p352) target = $region56
    $region55: #{transformer_fwd.18} parent=5 // pred_region
      // Predicated region
      $region57: #{transformer_fwd.18} parent=55 // pred_check
        %p355 = pneg %p38
      $region58: #{transformer_fwd.18} parent=55 // pred_check_branch
        %357 = sbr.rel (%p355) target = $region60
      $region59: #{transformer_fwd.18} parent=55 // pred_region
        %p358 = scmp.lt.s32.totalorder %s18, 1
        %s359 = scalar_select %p358, %s18, 1
        %s360 = smul.addr %s359, 4
        %s361 = scalar_lea.vmem %s0, %s360
      $region60: #{transformer_fwd.18} parent=55 // pred_fallthru
        _
      // Predicated region
      $region61: #{transformer_fwd.18} parent=55 // pred_check
        %p362 = pneg %p64
      $region62: #{transformer_fwd.18} parent=55 // pred_check_branch
        %364 = sbr.rel (%p362) target = $region64
      $region63: #{transformer_fwd.18} parent=55 // pred_region
        %p365 = scmp.lt.s32.totalorder %s18, 1
        %s366 = scalar_select %p365, %s18, 1
        %s367 = smul.addr %s366, 8
        %s368 = scalar_lea.vmem %s1, %s367
      $region64: #{transformer_fwd.18} parent=55 // pred_fallthru
        _
    $region56: #{transformer_fwd.18} parent=5 // pred_fallthru
      _
    %p369 = scmp.le.s32.totalorder 1, %s18
    %p370 = scmp.lt.s32.totalorder %s18, 3
    %p371 = pnand %p369, %p370
    %p372 = pneg %p371
    // Predicated region
    $region65: #{transformer_fwd.18} parent=5 // pred_check
      _
    $region66: #{transformer_fwd.18} parent=5 // pred_check_branch
      %374 = sbr.rel (%p371) target = $region68
    $region67: #{transformer_fwd.18} parent=5 // pred_region
      %s375 = ssub.s32 %s18, 1
      %p376 = scmp.lt.s32.totalorder %s23, 1
      %s377 = scalar_select %p376, %s23, 1
      %s378 = smul.addr %s377, 4
      %s379 = scalar_lea.vmem %s0, %s378
      %p380 = pneg %p44
      %p381 = pneg %p41
      %p382 = scmp.lt.s32.totalorder %s23, 1
      %s383 = scalar_select %p382, %s23, 1
      %s384 = smul.addr %s383, 8
      %s385 = scalar_lea.vmem %s1, %s384
      %p386 = pneg %p70
      %p387 = pneg %p67
      %p388 = pneg %p91
      %p389 = pneg %p88
      %p390 = pneg %p112
      %p391 = pneg %p109
      %p392 = pneg %p133
      %p393 = pneg %p130
      %p394 = pneg %p154
      %p395 = pneg %p151
      %p396 = pneg %p175
      %p397 = pneg %p172
      %p398 = pneg %p196
      %p399 = pneg %p193
      %p400 = pneg %p217
      %p401 = pneg %p214
      %p402 = pneg %p238
      %p403 = pneg %p235
      %p404 = pneg %p259
      %p405 = pneg %p256
      %p406 = pneg %p280
      %p407 = pneg %p277
      %p408 = pneg %p306
      %p409 = pneg %p303
      %p410 = scmp.lt.s32.totalorder %s23, 1
      %s411 = scalar_select %p410, %s23, 1
      %s412 = smul.addr %s411, 4
      %s413 = scalar_lea.vmem %s12, %s412
      %p414 = scmp.lt.s32.totalorder %s23, 1
      %s415 = scalar_select %p414, %s23, 1
      %s416 = smul.addr %s415, 4
      %s417 = scalar_lea.vmem %s0, %s416
      %p418 = scmp.lt.s32.totalorder %s23, 1
      %s419 = scalar_select %p418, %s23, 1
      %s420 = smul.addr %s419, 8
      %s421 = scalar_lea.vmem %s1, %s420
      %p422 = scmp.lt.s32.totalorder %s23, 1
      %s423 = scalar_select %p422, %s23, 1
      %s424 = smul.addr %s423, 4
      %s425 = scalar_lea.vmem %s12, %s424
      %v427 = vld [vmem:[%s417] sm:$0xf]
      %v428 = vld [vmem:[%s421] sm:$0xff]
      %v429 = vld [vmem:[%s2] sm:$0xf]
      %v430 = vld [vmem:[%s2 + $0x4] sm:$0xf]
      %v431 = vld [vmem:[%s2 + $0x8] sm:$0xf]
      %v432 = vld [vmem:[%s2 + $0xc] sm:$0xf]
      %v433 = vld [vmem:[%s2 + $0x10] sm:$0xf]
      %v434 = vld [vmem:[%s2 + $0x14] sm:$0xf]
      %v435 = vld [vmem:[%s2 + $0x18] sm:$0xf]
      %v436 = vld [vmem:[%s2 + $0x1c] sm:$0xf]
      %v437 = vld [vmem:[%s2 + $0x20] sm:$0xf]
      %v438 = vld [vmem:[%s2 + $0x24] sm:$0xf]
      %v439 = vld [vmem:[%s2 + $0x28] sm:$0xf]
      %v440 = vld [vmem:[%s2 + $0x2c] sm:$0xf]
      %v441 = vld [vmem:[%s2 + $0x30] sm:$0xf]
      %v442 = vld [vmem:[%s2 + $0x34] sm:$0xf]
      %v443 = vld [vmem:[%s2 + $0x38] sm:$0xf]
      %v444 = vld [vmem:[%s2 + $0x3c] sm:$0xf]
      %v445 = vld [vmem:[%s3] sm:$0x1]
      %v447 = vlaneseq
      %v448 = vshrl.u32 %v447, 7
      %v449 = vsub.s32 0, %v448
      %v450 = vrot.slane %v445, %v449
      %v468 = vunpack.c.l.b16 %v429
      %v469 = vunpack.c.l.b16 %v430
      %v470 = vunpack.c.l.b16 %v431
      %v471 = vunpack.c.l.b16 %v432
      %v472 = vunpack.c.l.b16 %v433
      %v473 = vunpack.c.l.b16 %v434
      %v474 = vunpack.c.l.b16 %v435
      %v475 = vunpack.c.l.b16 %v436
      %v476 = vunpack.c.l.b16 %v437
      %v477 = vunpack.c.l.b16 %v438
      %v478 = vunpack.c.l.b16 %v439
      %v479 = vunpack.c.l.b16 %v440
      %v480 = vunpack.c.l.b16 %v441
      %v481 = vunpack.c.l.b16 %v442
      %v482 = vunpack.c.l.b16 %v443
      %v483 = vunpack.c.l.b16 %v444
      %v484 = vpack.c.b16 %v469, %v468
      %v485 = vpack.c.b16 %v471, %v470
      %v486 = vpack.c.b16 %v473, %v472
      %v487 = vpack.c.b16 %v475, %v474
      %v488 = vpack.c.b16 %v477, %v476
      %v489 = vpack.c.b16 %v479, %v478
      %v490 = vpack.c.b16 %v481, %v480
      %v491 = vpack.c.b16 %v483, %v482
      %500 = vmatprep.subr.bf16.mxu0 0
      %501 = vmatpush1.bf16.msra.mxu0 %v484
      %502 = vmatprep.subr.bf16.mxu0 0
      %503 = vmatpush1.bf16.msra.mxu0 %v485
      %504 = vmatprep.subr.bf16.mxu0 0
      %505 = vmatpush1.bf16.msra.mxu0 %v486
      %506 = vmatprep.subr.bf16.mxu0 0
      %507 = vmatpush1.bf16.msra.mxu0 %v487
      %508 = vmatprep.subr.bf16.mxu0 0
      %509 = vmatpush1.bf16.msra.mxu0 %v488
      %510 = vmatprep.subr.bf16.mxu0 0
      %511 = vmatpush1.bf16.msra.mxu0 %v489
      %512 = vmatprep.subr.bf16.mxu0 0
      %513 = vmatpush1.bf16.msra.mxu0 %v490
      %514 = vmatprep.subr.bf16.mxu0 0
      %515 = vmatpush1.bf16.msra.mxu0 %v491
      %516 = vmatprep.subr.bf16.mxu0 0
      %517 = vmatpush1.bf16.msra.mxu0 0
      %518 = vmatprep.subr.bf16.mxu0 0
      %519 = vmatpush1.bf16.msra.mxu0 0
      %520 = vmatprep.subr.bf16.mxu0 0
      %521 = vmatpush1.bf16.msra.mxu0 0
      %522 = vmatprep.subr.bf16.mxu0 0
      %523 = vmatpush1.bf16.msra.mxu0 0
      %524 = vmatprep.subr.bf16.mxu0 0
      %525 = vmatpush1.bf16.msra.mxu0 0
      %526 = vmatprep.subr.bf16.mxu0 0
      %527 = vmatpush1.bf16.msra.mxu0 0
      %528 = vmatprep.subr.bf16.mxu0 0
      %529 = vmatpush1.bf16.msra.mxu0 0
      %530 = vmatprep.subr.bf16.mxu0 0
      %531 = vmatpush1.bf16.msra.mxu0 0
      %532 = vmatprep.mubr.bf16.mxu0 0
      %533 = vmatmul.mubr.bf16.gmra.mrb[0].mxu0 %v427
      %v534 = vpop.f32.mrb[0].mxu0
      %v535 = vadd.f32 %v450, %v534
      %v536 = vpop.f32.mrb[0].mxu0
      %v537 = vpop.f32.mrb[0].mxu0
      %v538 = vpop.f32.mrb[0].mxu0
      %539 = vdwg.mxu0
      %v540 = vld [vmem:[%s4] sm:$0xf]
      %v541 = vld [vmem:[%s4 + $0x4] sm:$0xf]
      %v542 = vld [vmem:[%s4 + $0x8] sm:$0xf]
      %v543 = vld [vmem:[%s4 + $0xc] sm:$0xf]
      %v544 = vld [vmem:[%s4 + $0x10] sm:$0xf]
      %v545 = vld [vmem:[%s4 + $0x14] sm:$0xf]
      %v546 = vld [vmem:[%s4 + $0x18] sm:$0xf]
      %v547 = vld [vmem:[%s4 + $0x1c] sm:$0xf]
      %v548 = vld [vmem:[%s4 + $0x20] sm:$0xf]
      %v549 = vld [vmem:[%s4 + $0x24] sm:$0xf]
      %v550 = vld [vmem:[%s4 + $0x28] sm:$0xf]
      %v551 = vld [vmem:[%s4 + $0x2c] sm:$0xf]
      %v552 = vld [vmem:[%s4 + $0x30] sm:$0xf]
      %v553 = vld [vmem:[%s4 + $0x34] sm:$0xf]
      %v554 = vld [vmem:[%s4 + $0x38] sm:$0xf]
      %v555 = vld [vmem:[%s4 + $0x3c] sm:$0xf]
      %v556 = vld [vmem:[%s5] sm:$0x1]
      %v558 = vlaneseq
      %v559 = vshrl.u32 %v558, 7
      %v560 = vsub.s32 0, %v559
      %v561 = vrot.slane %v556, %v560
      %v579 = vunpack.c.l.b16 %v540
      %v580 = vunpack.c.l.b16 %v541
      %v581 = vunpack.c.l.b16 %v542
      %v582 = vunpack.c.l.b16 %v543
      %v583 = vunpack.c.l.b16 %v544
      %v584 = vunpack.c.l.b16 %v545
      %v585 = vunpack.c.l.b16 %v546
      %v586 = vunpack.c.l.b16 %v547
      %v587 = vunpack.c.l.b16 %v548
      %v588 = vunpack.c.l.b16 %v549
      %v589 = vunpack.c.l.b16 %v550
      %v590 = vunpack.c.l.b16 %v551
      %v591 = vunpack.c.l.b16 %v552
      %v592 = vunpack.c.l.b16 %v553
      %v593 = vunpack.c.l.b16 %v554
      %v594 = vunpack.c.l.b16 %v555
      %v595 = vpack.c.b16 %v580, %v579
      %v596 = vpack.c.b16 %v582, %v581
      %v597 = vpack.c.b16 %v584, %v583
      %v598 = vpack.c.b16 %v586, %v585
      %v599 = vpack.c.b16 %v588, %v587
      %v600 = vpack.c.b16 %v590, %v589
      %v601 = vpack.c.b16 %v592, %v591
      %v602 = vpack.c.b16 %v594, %v593
      %611 = vmatprep.subr.bf16.mxu0 0
      %612 = vmatpush1.bf16.msra.mxu0 %v595
      %613 = vmatprep.subr.bf16.mxu0 0
      %614 = vmatpush1.bf16.msra.mxu0 %v596
      %615 = vmatprep.subr.bf16.mxu0 0
      %616 = vmatpush1.bf16.msra.mxu0 %v597
      %617 = vmatprep.subr.bf16.mxu0 0
      %618 = vmatpush1.bf16.msra.mxu0 %v598
      %619 = vmatprep.subr.bf16.mxu0 0
      %620 = vmatpush1.bf16.msra.mxu0 %v599
      %621 = vmatprep.subr.bf16.mxu0 0
      %622 = vmatpush1.bf16.msra.mxu0 %v600
      %623 = vmatprep.subr.bf16.mxu0 0
      %624 = vmatpush1.bf16.msra.mxu0 %v601
      %625 = vmatprep.subr.bf16.mxu0 0
      %626 = vmatpush1.bf16.msra.mxu0 %v602
      %627 = vmatprep.subr.bf16.mxu0 0
      %628 = vmatpush1.bf16.msra.mxu0 0
      %629 = vmatprep.subr.bf16.mxu0 0
      %630 = vmatpush1.bf16.msra.mxu0 0
      %631 = vmatprep.subr.bf16.mxu0 0
      %632 = vmatpush1.bf16.msra.mxu0 0
      %633 = vmatprep.subr.bf16.mxu0 0
      %634 = vmatpush1.bf16.msra.mxu0 0
      %635 = vmatprep.subr.bf16.mxu0 0
      %636 = vmatpush1.bf16.msra.mxu0 0
      %637 = vmatprep.subr.bf16.mxu0 0
      %638 = vmatpush1.bf16.msra.mxu0 0
      %639 = vmatprep.subr.bf16.mxu0 0
      %640 = vmatpush1.bf16.msra.mxu0 0
      %641 = vmatprep.subr.bf16.mxu0 0
      %642 = vmatpush1.bf16.msra.mxu0 0
      %643 = vmatprep.mubr.bf16.mxu0 0
      %644 = vmatmul.mubr.bf16.gmra.mrb[0].mxu0 %v427
      %v645 = vpop.f32.mrb[0].mxu0
      %v646 = vadd.f32 %v561, %v645
      %v647 = vpop.f32.mrb[0].mxu0
      %v648 = vpop.f32.mrb[0].mxu0
      %v649 = vpop.f32.mrb[0].mxu0
      %650 = vdwg.mxu0
      %v651 = vld [vmem:[%s6] sm:$0xf]
      %v652 = vld [vmem:[%s6 + $0x4] sm:$0xf]
      %v653 = vld [vmem:[%s6 + $0x8] sm:$0xf]
      %v654 = vld [vmem:[%s6 + $0xc] sm:$0xf]
      %v655 = vld [vmem:[%s6 + $0x10] sm:$0xf]
      %v656 = vld [vmem:[%s6 + $0x14] sm:$0xf]
      %v657 = vld [vmem:[%s6 + $0x18] sm:$0xf]
      %v658 = vld [vmem:[%s6 + $0x1c] sm:$0xf]
      %v659 = vld [vmem:[%s6 + $0x20] sm:$0xf]
      %v660 = vld [vmem:[%s6 + $0x24] sm:$0xf]
      %v661 = vld [vmem:[%s6 + $0x28] sm:$0xf]
      %v662 = vld [vmem:[%s6 + $0x2c] sm:$0xf]
      %v663 = vld [vmem:[%s6 + $0x30] sm:$0xf]
      %v664 = vld [vmem:[%s6 + $0x34] sm:$0xf]
      %v665 = vld [vmem:[%s6 + $0x38] sm:$0xf]
      %v666 = vld [vmem:[%s6 + $0x3c] sm:$0xf]
      %v667 = vld [vmem:[%s7] sm:$0x1]
      %v669 = vlaneseq
      %v670 = vshrl.u32 %v669, 7
      %v671 = vsub.s32 0, %v670
      %v672 = vrot.slane %v667, %v671
      %v690 = vunpack.c.l.b16 %v651
      %v691 = vunpack.c.l.b16 %v652
      %v692 = vunpack.c.l.b16 %v653
      %v693 = vunpack.c.l.b16 %v654
      %v694 = vunpack.c.l.b16 %v655
      %v695 = vunpack.c.l.b16 %v656
      %v696 = vunpack.c.l.b16 %v657
      %v697 = vunpack.c.l.b16 %v658
      %v698 = vunpack.c.l.b16 %v659
      %v699 = vunpack.c.l.b16 %v660
      %v700 = vunpack.c.l.b16 %v661
      %v701 = vunpack.c.l.b16 %v662
      %v702 = vunpack.c.l.b16 %v663
      %v703 = vunpack.c.l.b16 %v664
      %v704 = vunpack.c.l.b16 %v665
      %v705 = vunpack.c.l.b16 %v666
      %v706 = vpack.c.b16 %v691, %v690
      %v707 = vpack.c.b16 %v693, %v692
      %v708 = vpack.c.b16 %v695, %v694
      %v709 = vpack.c.b16 %v697, %v696
      %v710 = vpack.c.b16 %v699, %v698
      %v711 = vpack.c.b16 %v701, %v700
      %v712 = vpack.c.b16 %v703, %v702
      %v713 = vpack.c.b16 %v705, %v704
      %722 = vmatprep.subr.bf16.mxu0 0
      %723 = vmatpush1.bf16.msra.mxu0 %v706
      %724 = vmatprep.subr.bf16.mxu0 0
      %725 = vmatpush1.bf16.msra.mxu0 %v707
      %726 = vmatprep.subr.bf16.mxu0 0
      %727 = vmatpush1.bf16.msra.mxu0 %v708
      %728 = vmatprep.subr.bf16.mxu0 0
      %729 = vmatpush1.bf16.msra.mxu0 %v709
      %730 = vmatprep.subr.bf16.mxu0 0
      %731 = vmatpush1.bf16.msra.mxu0 %v710
      %732 = vmatprep.subr.bf16.mxu0 0
      %733 = vmatpush1.bf16.msra.mxu0 %v711
      %734 = vmatprep.subr.bf16.mxu0 0
      %735 = vmatpush1.bf16.msra.mxu0 %v712
      %736 = vmatprep.subr.bf16.mxu0 0
      %737 = vmatpush1.bf16.msra.mxu0 %v713
      %738 = vmatprep.subr.bf16.mxu0 0
      %739 = vmatpush1.bf16.msra.mxu0 0
      %740 = vmatprep.subr.bf16.mxu0 0
      %741 = vmatpush1.bf16.msra.mxu0 0
      %742 = vmatprep.subr.bf16.mxu0 0
      %743 = vmatpush1.bf16.msra.mxu0 0
      %744 = vmatprep.subr.bf16.mxu0 0
      %745 = vmatpush1.bf16.msra.mxu0 0
      %746 = vmatprep.subr.bf16.mxu0 0
      %747 = vmatpush1.bf16.msra.mxu0 0
      %748 = vmatprep.subr.bf16.mxu0 0
      %749 = vmatpush1.bf16.msra.mxu0 0
      %750 = vmatprep.subr.bf16.mxu0 0
      %751 = vmatpush1.bf16.msra.mxu0 0
      %752 = vmatprep.subr.bf16.mxu0 0
      %753 = vmatpush1.bf16.msra.mxu0 0
      %754 = vmatprep.mubr.bf16.mxu0 0
      %755 = vmatmul.mubr.bf16.gmra.mrb[0].mxu0 %v427
      %v756 = vpop.f32.mrb[0].mxu0
      %v757 = vadd.f32 %v672, %v756
      %v758 = vpop.f32.mrb[0].mxu0
      %v759 = vpop.f32.mrb[0].mxu0
      %v760 = vpop.f32.mrb[0].mxu0
      %761 = vdwg.mxu0
      %v762 = vpack.c.bf16 %v535, %v535
      %v763 = vpack.c.bf16 %v646, %v646
      %vm764 = vcmask 64512
      %v766 = vsel %vm764, %v762, 0
      %v769 = vsel %vm764, %v763, 0
      %771 = vmatprep.subr.bf16.mxu0 0
      %772 = vmatpush1.bf16.xpose.msra.mxu0 %v769
      %773 = vmatprep.subr.bf16.mxu0 0
      %774 = vmatpush1.bf16.xpose.msra.mxu0 0
      %775 = vmatprep.subr.bf16.mxu0 0
      %776 = vmatpush1.bf16.xpose.msra.mxu0 0
      %777 = vmatprep.subr.bf16.mxu0 0
      %778 = vmatpush1.bf16.xpose.msra.mxu0 0
      %779 = vmatprep.subr.bf16.mxu0 0
      %780 = vmatpush1.bf16.xpose.msra.mxu0 0
      %781 = vmatprep.subr.bf16.mxu0 0
      %782 = vmatpush1.bf16.xpose.msra.mxu0 0
      %783 = vmatprep.subr.bf16.mxu0 0
      %784 = vmatpush1.bf16.xpose.msra.mxu0 0
      %785 = vmatprep.subr.bf16.mxu0 0
      %786 = vmatpush1.bf16.xpose.msra.mxu0 0
      %787 = vmatprep.subr.bf16.mxu0 0
      %788 = vmatpush1.bf16.xpose.msra.mxu0 0
      %789 = vmatprep.subr.bf16.mxu0 0
      %790 = vmatpush1.bf16.xpose.msra.mxu0 0
      %791 = vmatprep.subr.bf16.mxu0 0
      %792 = vmatpush1.bf16.xpose.msra.mxu0 0
      %793 = vmatprep.subr.bf16.mxu0 0
      %794 = vmatpush1.bf16.xpose.msra.mxu0 0
      %795 = vmatprep.subr.bf16.mxu0 0
      %796 = vmatpush1.bf16.xpose.msra.mxu0 0
      %797 = vmatprep.subr.bf16.mxu0 0
      %798 = vmatpush1.bf16.xpose.msra.mxu0 0
      %799 = vmatprep.subr.bf16.mxu0 0
      %800 = vmatpush1.bf16.xpose.msra.mxu0 0
      %801 = vmatprep.subr.bf16.mxu0 0
      %802 = vmatpush1.bf16.xpose.msra.mxu0 0
      %803 = vmatprep.mubr.bf16.mxu0 0
      %804 = vmatmul.mubr.bf16.gmra.mrb[0].mxu0 %v766
      %v805 = vpop.f32.mrb[0].mxu0
      %v806 = vadd.f32 %v428, %v805
      %v807 = vpop.f32.mrb[0].mxu0
      %v808 = vpop.f32.mrb[0].mxu0
      %v809 = vpop.f32.mrb[0].mxu0
      %810 = vdwg.mxu0
      %v811 = vsel %vm764, %v806, -inf
      %812 = vmax.xlane.f32.xlu0 %v811
      %v813 = vpop.xlane.xlu0 %812
      %v814 = vsub.f32 %v806, %v813
      %v815 = vmul.f32 %v814, 1.442695
      %v816 = vpow.pop %v815
      %v817 = vsel %vm764, %v816, 0.0
      %818 = vadd.xlane.f32.xlu0 %v817
      %v819 = vpop.xlane.xlu0 %818
      %v820 = vrcp.pop %v819
      %v821 = vmul.f32 %v816, %v820
      %v822 = vpack.c.bf16 %v821, %v821
      %v823 = vpack.c.bf16 %v757, %v757
      %v825 = vsel %vm764, %v822, 0
      %vm827 = vcmask 1043456
      %v829 = vsel %vm827, %v823, 0
      %831 = vmatprep.subr.bf16.mxu0 0
      %832 = vmatpush1.bf16.msra.mxu0 %v829
      %833 = vmatprep.subr.bf16.mxu0 0
      %834 = vmatpush1.bf16.msra.mxu0 0
      %835 = vmatprep.subr.bf16.mxu0 0
      %836 = vmatpush1.bf16.msra.mxu0 0
      %837 = vmatprep.subr.bf16.mxu0 0
      %838 = vmatpush1.bf16.msra.mxu0 0
      %839 = vmatprep.subr.bf16.mxu0 0
      %840 = vmatpush1.bf16.msra.mxu0 0
      %841 = vmatprep.subr.bf16.mxu0 0
      %842 = vmatpush1.bf16.msra.mxu0 0
      %843 = vmatprep.subr.bf16.mxu0 0
      %844 = vmatpush1.bf16.msra.mxu0 0
      %845 = vmatprep.subr.bf16.mxu0 0
      %846 = vmatpush1.bf16.msra.mxu0 0
      %847 = vmatprep.subr.bf16.mxu0 0
      %848 = vmatpush1.bf16.msra.mxu0 0
      %849 = vmatprep.subr.bf16.mxu0 0
      %850 = vmatpush1.bf16.msra.mxu0 0
      %851 = vmatprep.subr.bf16.mxu0 0
      %852 = vmatpush1.bf16.msra.mxu0 0
      %853 = vmatprep.subr.bf16.mxu0 0
      %854 = vmatpush1.bf16.msra.mxu0 0
      %855 = vmatprep.subr.bf16.mxu0 0
      %856 = vmatpush1.bf16.msra.mxu0 0
      %857 = vmatprep.subr.bf16.mxu0 0
      %858 = vmatpush1.bf16.msra.mxu0 0
      %859 = vmatprep.subr.bf16.mxu0 0
      %860 = vmatpush1.bf16.msra.mxu0 0
      %861 = vmatprep.subr.bf16.mxu0 0
      %862 = vmatpush1.bf16.msra.mxu0 0
      %863 = vmatprep.mubr.bf16.mxu0 0
      %864 = vmatmul.mubr.bf16.gmra.mrb[0].mxu0 %v825
      %v865 = vpop.f32.mrb[0].mxu0
      %v866 = vadd.f32 0.0, %v865
      %v867 = vpop.f32.mrb[0].mxu0
      %v868 = vpop.f32.mrb[0].mxu0
      %v869 = vpop.f32.mrb[0].mxu0
      %870 = vdwg.mxu0
      %v871 = vpack.c.bf16 %v866, %v866
      %v872 = vld [vmem:[%s8] sm:$0xf]
      %s873 = scalar_lea.vmem %s2, 64
      %v874 = vld [vmem:[%s873] sm:$0xf]
      %v875 = vld [vmem:[%s873 + $0x4] sm:$0xf]
      %v876 = vld [vmem:[%s873 + $0x8] sm:$0xf]
      %v877 = vld [vmem:[%s873 + $0xc] sm:$0xf]
      %v878 = vld [vmem:[%s873 + $0x10] sm:$0xf]
      %v879 = vld [vmem:[%s873 + $0x14] sm:$0xf]
      %v880 = vld [vmem:[%s873 + $0x18] sm:$0xf]
      %v881 = vld [vmem:[%s873 + $0x1c] sm:$0xf]
      %v882 = vld [vmem:[%s873 + $0x20] sm:$0xf]
      %v883 = vld [vmem:[%s873 + $0x24] sm:$0xf]
      %v884 = vld [vmem:[%s873 + $0x28] sm:$0xf]
      %v885 = vld [vmem:[%s873 + $0x2c] sm:$0xf]
      %v886 = vld [vmem:[%s873 + $0x30] sm:$0xf]
      %v887 = vld [vmem:[%s873 + $0x34] sm:$0xf]
      %v888 = vld [vmem:[%s873 + $0x38] sm:$0xf]
      %v889 = vld [vmem:[%s873 + $0x3c] sm:$0xf]
      %s890 = scalar_lea.vmem %s3, 1
      %v891 = vld [vmem:[%s890] sm:$0x1]
      %v893 = vlaneseq
      %v894 = vshrl.u32 %v893, 7
      %v895 = vsub.s32 0, %v894
      %v896 = vrot.slane %v891, %v895
      %v914 = vunpack.c.l.b16 %v874
      %v915 = vunpack.c.l.b16 %v875
      %v916 = vunpack.c.l.b16 %v876
      %v917 = vunpack.c.l.b16 %v877
      %v918 = vunpack.c.l.b16 %v878
      %v919 = vunpack.c.l.b16 %v879
      %v920 = vunpack.c.l.b16 %v880
      %v921 = vunpack.c.l.b16 %v881
      %v922 = vunpack.c.l.b16 %v882
      %v923 = vunpack.c.l.b16 %v883
      %v924 = vunpack.c.l.b16 %v884
      %v925 = vunpack.c.l.b16 %v885
      %v926 = vunpack.c.l.b16 %v886
      %v927 = vunpack.c.l.b16 %v887
      %v928 = vunpack.c.l.b16 %v888
      %v929 = vunpack.c.l.b16 %v889
      %v930 = vpack.c.b16 %v915, %v914
      %v931 = vpack.c.b16 %v917, %v916
      %v932 = vpack.c.b16 %v919, %v918
      %v933 = vpack.c.b16 %v921, %v920
      %v934 = vpack.c.b16 %v923, %v922
      %v935 = vpack.c.b16 %v925, %v924
      %v936 = vpack.c.b16 %v927, %v926
      %v937 = vpack.c.b16 %v929, %v928
      %946 = vmatprep.subr.bf16.mxu0 0
      %947 = vmatpush1.bf16.msra.mxu0 %v930
      %948 = vmatprep.subr.bf16.mxu0 0
      %949 = vmatpush1.bf16.msra.mxu0 %v931
      %950 = vmatprep.subr.bf16.mxu0 0
      %951 = vmatpush1.bf16.msra.mxu0 %v932
      %952 = vmatprep.subr.bf16.mxu0 0
      %953 = vmatpush1.bf16.msra.mxu0 %v933
      %954 = vmatprep.subr.bf16.mxu0 0
      %955 = vmatpush1.bf16.msra.mxu0 %v934
      %956 = vmatprep.subr.bf16.mxu0 0
      %957 = vmatpush1.bf16.msra.mxu0 %v935
      %958 = vmatprep.subr.bf16.mxu0 0
      %959 = vmatpush1.bf16.msra.mxu0 %v936
      %960 = vmatprep.subr.bf16.mxu0 0
      %961 = vmatpush1.bf16.msra.mxu0 %v937
      %962 = vmatprep.subr.bf16.mxu0 0
      %963 = vmatpush1.bf16.msra.mxu0 0
      %964 = vmatprep.subr.bf16.mxu0 0
      %965 = vmatpush1.bf16.msra.mxu0 0
      %966 = vmatprep.subr.bf16.mxu0 0
      %967 = vmatpush1.bf16.msra.mxu0 0
      %968 = vmatprep.subr.bf16.mxu0 0
      %969 = vmatpush1.bf16.msra.mxu0 0
      %970 = vmatprep.subr.bf16.mxu0 0
      %971 = vmatpush1.bf16.msra.mxu0 0
      %972 = vmatprep.subr.bf16.mxu0 0
      %973 = vmatpush1.bf16.msra.mxu0 0
      %974 = vmatprep.subr.bf16.mxu0 0
      %975 = vmatpush1.bf16.msra.mxu0 0
      %976 = vmatprep.subr.bf16.mxu0 0
      %977 = vmatpush1.bf16.msra.mxu0 0
      %978 = vmatprep.mubr.bf16.mxu0 0
      %979 = vmatmul.mubr.bf16.gmra.mrb[0].mxu0 %v427
      %v980 = vpop.f32.mrb[0].mxu0
      %v981 = vadd.f32 %v896, %v980
      %v982 = vpop.f32.mrb[0].mxu0
      %v983 = vpop.f32.mrb[0].mxu0
      %v984 = vpop.f32.mrb[0].mxu0
      %985 = vdwg.mxu0
      %s986 = scalar_lea.vmem %s4, 64
      %v987 = vld [vmem:[%s986] sm:$0xf]
      %v988 = vld [vmem:[%s986 + $0x4] sm:$0xf]
      %v989 = vld [vmem:[%s986 + $0x8] sm:$0xf]
      %v990 = vld [vmem:[%s986 + $0xc] sm:$0xf]
      %v991 = vld [vmem:[%s986 + $0x10] sm:$0xf]
      %v992 = vld [vmem:[%s986 + $0x14] sm:$0xf]
      %v993 = vld [vmem:[%s986 + $0x18] sm:$0xf]
      %v994 = vld [vmem:[%s986 + $0x1c] sm:$0xf]
      %v995 = vld [vmem:[%s986 + $0x20] sm:$0xf]
      %v996 = vld [vmem:[%s986 + $0x24] sm:$0xf]
      %v997 = vld [vmem:[%s986 + $0x28] sm:$0xf]
      %v998 = vld [vmem:[%s986 + $0x2c] sm:$0xf]
      %v999 = vld [vmem:[%s986 + $0x30] sm:$0xf]
      %v1000 = vld [vmem:[%s986 + $0x34] sm:$0xf]
      %v1001 = vld [vmem:[%s986 + $0x38] sm:$0xf]
      %v1002 = vld [vmem:[%s986 + $0x3c] sm:$0xf]
      %s1003 = scalar_lea.vmem %s5, 1
      %v1004 = vld [vmem:[%s1003] sm:$0x1]
      %v1006 = vlaneseq
      %v1007 = vshrl.u32 %v1006, 7
      %v1008 = vsub.s32 0, %v1007
      %v1009 = vrot.slane %v1004, %v1008
      %v1027 = vunpack.c.l.b16 %v987
      %v1028 = vunpack.c.l.b16 %v988
      %v1029 = vunpack.c.l.b16 %v989
      %v1030 = vunpack.c.l.b16 %v990
      %v1031 = vunpack.c.l.b16 %v991
      %v1032 = vunpack.c.l.b16 %v992
      %v1033 = vunpack.c.l.b16 %v993
      %v1034 = vunpack.c.l.b16 %v994
      %v1035 = vunpack.c.l.b16 %v995
      %v1036 = vunpack.c.l.b16 %v996
      %v1037 = vunpack.c.l.b16 %v997
      %v1038 = vunpack.c.l.b16 %v998
      %v1039 = vunpack.c.l.b16 %v999
      %v1040 = vunpack.c.l.b16 %v1000
      %v1041 = vunpack.c.l.b16 %v1001
      %v1042 = vunpack.c.l.b16 %v1002
      %v1043 = vpack.c.b16 %v1028, %v1027
      %v1044 = vpack.c.b16 %v1030, %v1029
      %v1045 = vpack.c.b16 %v1032, %v1031
      %v1046 = vpack.c.b16 %v1034, %v1033
      %v1047 = vpack.c.b16 %v1036, %v1035
      %v1048 = vpack.c.b16 %v1038, %v1037
      %v1049 = vpack.c.b16 %v1040, %v1039
      %v1050 = vpack.c.b16 %v1042, %v1041
      %1059 = vmatprep.subr.bf16.mxu0 0
      %1060 = vmatpush1.bf16.msra.mxu0 %v1043
      %1061 = vmatprep.subr.bf16.mxu0 0
      %1062 = vmatpush1.bf16.msra.mxu0 %v1044
      %1063 = vmatprep.subr.bf16.mxu0 0
      %1064 = vmatpush1.bf16.msra.mxu0 %v1045
      %1065 = vmatprep.subr.bf16.mxu0 0
      %1066 = vmatpush1.bf16.msra.mxu0 %v1046
      %1067 = vmatprep.subr.bf16.mxu0 0
      %1068 = vmatpush1.bf16.msra.mxu0 %v1047
      %1069 = vmatprep.subr.bf16.mxu0 0
      %1070 = vmatpush1.bf16.msra.mxu0 %v1048
      %1071 = vmatprep.subr.bf16.mxu0 0
      %1072 = vmatpush1.bf16.msra.mxu0 %v1049
      %1073 = vmatprep.subr.bf16.mxu0 0
      %1074 = vmatpush1.bf16.msra.mxu0 %v1050
      %1075 = vmatprep.subr.bf16.mxu0 0
      %1076 = vmatpush1.bf16.msra.mxu0 0
      %1077 = vmatprep.subr.bf16.mxu0 0
      %1078 = vmatpush1.bf16.msra.mxu0 0
      %1079 = vmatprep.subr.bf16.mxu0 0
      %1080 = vmatpush1.bf16.msra.mxu0 0
      %1081 = vmatprep.subr.bf16.mxu0 0
      %1082 = vmatpush1.bf16.msra.mxu0 0
      %1083 = vmatprep.subr.bf16.mxu0 0
      %1084 = vmatpush1.bf16.msra.mxu0 0
      %1085 = vmatprep.subr.bf16.mxu0 0
      %1086 = vmatpush1.bf16.msra.mxu0 0
      %1087 = vmatprep.subr.bf16.mxu0 0
      %1088 = vmatpush1.bf16.msra.mxu0 0
      %1089 = vmatprep.subr.bf16.mxu0 0
      %1090 = vmatpush1.bf16.msra.mxu0 0
      %1091 = vmatprep.mubr.bf16.mxu0 0
      %1092 = vmatmul.mubr.bf16.gmra.mrb[0].mxu0 %v427
      %v1093 = vpop.f32.mrb[0].mxu0
      %v1094 = vadd.f32 %v1009, %v1093
      %v1095 = vpop.f32.mrb[0].mxu0
      %v1096 = vpop.f32.mrb[0].mxu0
      %v1097 = vpop.f32.mrb[0].mxu0
      %1098 = vdwg.mxu0
      %s1099 = scalar_lea.vmem %s6, 64
      %v1100 = vld [vmem:[%s1099] sm:$0xf]
      %v1101 = vld [vmem:[%s1099 + $0x4] sm:$0xf]
      %v1102 = vld [vmem:[%s1099 + $0x8] sm:$0xf]
      %v1103 = vld [vmem:[%s1099 + $0xc] sm:$0xf]
      %v1104 = vld [vmem:[%s1099 + $0x10] sm:$0xf]
      %v1105 = vld [vmem:[%s1099 + $0x14] sm:$0xf]
      %v1106 = vld [vmem:[%s1099 + $0x18] sm:$0xf]
      %v1107 = vld [vmem:[%s1099 + $0x1c] sm:$0xf]
      %v1108 = vld [vmem:[%s1099 + $0x20] sm:$0xf]
      %v1109 = vld [vmem:[%s1099 + $0x24] sm:$0xf]
      %v1110 = vld [vmem:[%s1099 + $0x28] sm:$0xf]
      %v1111 = vld [vmem:[%s1099 + $0x2c] sm:$0xf]
      %v1112 = vld [vmem:[%s1099 + $0x30] sm:$0xf]
      %v1113 = vld [vmem:[%s1099 + $0x34] sm:$0xf]
      %v1114 = vld [vmem:[%s1099 + $0x38] sm:$0xf]
      %v1115 = vld [vmem:[%s1099 + $0x3c] sm:$0xf]
      %s1116 = scalar_lea.vmem %s7, 1
      %v1117 = vld [vmem:[%s1116] sm:$0x1]
      %v1119 = vlaneseq
      %v1120 = vshrl.u32 %v1119, 7
      %v1121 = vsub.s32 0, %v1120
      %v1122 = vrot.slane %v1117, %v1121
      %v1140 = vunpack.c.l.b16 %v1100
      %v1141 = vunpack.c.l.b16 %v1101
      %v1142 = vunpack.c.l.b16 %v1102
      %v1143 = vunpack.c.l.b16 %v1103
      %v1144 = vunpack.c.l.b16 %v1104
      %v1145 = vunpack.c.l.b16 %v1105
      %v1146 = vunpack.c.l.b16 %v1106
      %v1147 = vunpack.c.l.b16 %v1107
      %v1148 = vunpack.c.l.b16 %v1108
      %v1149 = vunpack.c.l.b16 %v1109
      %v1150 = vunpack.c.l.b16 %v1110
      %v1151 = vunpack.c.l.b16 %v1111
      %v1152 = vunpack.c.l.b16 %v1112
      %v1153 = vunpack.c.l.b16 %v1113
      %v1154 = vunpack.c.l.b16 %v1114
      %v1155 = vunpack.c.l.b16 %v1115
      %v1156 = vpack.c.b16 %v1141, %v1140
      %v1157 = vpack.c.b16 %v1143, %v1142
      %v1158 = vpack.c.b16 %v1145, %v1144
      %v1159 = vpack.c.b16 %v1147, %v1146
      %v1160 = vpack.c.b16 %v1149, %v1148
      %v1161 = vpack.c.b16 %v1151, %v1150
      %v1162 = vpack.c.b16 %v1153, %v1152
      %v1163 = vpack.c.b16 %v1155, %v1154
      %1172 = vmatprep.subr.bf16.mxu0 0
      %1173 = vmatpush1.bf16.msra.mxu0 %v1156
      %1174 = vmatprep.subr.bf16.mxu0 0
      %1175 = vmatpush1.bf16.msra.mxu0 %v1157
      %1176 = vmatprep.subr.bf16.mxu0 0
      %1177 = vmatpush1.bf16.msra.mxu0 %v1158
      %1178 = vmatprep.subr.bf16.mxu0 0
      %1179 = vmatpush1.bf16.msra.mxu0 %v1159
      %1180 = vmatprep.subr.bf16.mxu0 0
      %1181 = vmatpush1.bf16.msra.mxu0 %v1160
      %1182 = vmatprep.subr.bf16.mxu0 0
      %1183 = vmatpush1.bf16.msra.mxu0 %v1161
      %1184 = vmatprep.subr.bf16.mxu0 0
      %1185 = vmatpush1.bf16.msra.mxu0 %v1162
      %1186 = vmatprep.subr.bf16.mxu0 0
      %1187 = vmatpush1.bf16.msra.mxu0 %v1163
      %1188 = vmatprep.subr.bf16.mxu0 0
      %1189 = vmatpush1.bf16.msra.mxu0 0
      %1190 = vmatprep.subr.bf16.mxu0 0
      %1191 = vmatpush1.bf16.msra.mxu0 0
      %1192 = vmatprep.subr.bf16.mxu0 0
      %1193 = vmatpush1.bf16.msra.mxu0 0
      %1194 = vmatprep.subr.bf16.mxu0 0
      %1195 = vmatpush1.bf16.msra.mxu0 0
      %1196 = vmatprep.subr.bf16.mxu0 0
      %1197 = vmatpush1.bf16.msra.mxu0 0
      %1198 = vmatprep.subr.bf16.mxu0 0
      %1199 = vmatpush1.bf16.msra.mxu0 0
      %1200 = vmatprep.subr.bf16.mxu0 0
      %1201 = vmatpush1.bf16.msra.mxu0 0
      %1202 = vmatprep.subr.bf16.mxu0 0
      %1203 = vmatpush1.bf16.msra.mxu0 0
      %1204 = vmatprep.mubr.bf16.mxu0 0
      %1205 = vmatmul.mubr.bf16.gmra.mrb[0].mxu0 %v427
      %v1206 = vpop.f32.mrb[0].mxu0
      %v1207 = vadd.f32 %v1122, %v1206
      %v1208 = vpop.f32.mrb[0].mxu0
      %v1209 = vpop.f32.mrb[0].mxu0
      %v1210 = vpop.f32.mrb[0].mxu0
      %1211 = vdwg.mxu0
      %v1212 = vpack.c.bf16 %v981, %v981
      %v1213 = vpack.c.bf16 %v1094, %v1094
      %v1215 = vsel %vm764, %v1212, 0
      %v1218 = vsel %vm764, %v1213, 0
      %1220 = vmatprep.subr.bf16.mxu0 0
      %1221 = vmatpush1.bf16.xpose.msra.mxu0 %v1218
      %1222 = vmatprep.subr.bf16.mxu0 0
      %1223 = vmatpush1.bf16.xpose.msra.mxu0 0
      %1224 = vmatprep.subr.bf16.mxu0 0
      %1225 = vmatpush1.bf16.xpose.msra.mxu0 0
      %1226 = vmatprep.subr.bf16.mxu0 0
      %1227 = vmatpush1.bf16.xpose.msra.mxu0 0
      %1228 = vmatprep.subr.bf16.mxu0 0
      %1229 = vmatpush1.bf16.xpose.msra.mxu0 0
      %1230 = vmatprep.subr.bf16.mxu0 0
      %1231 = vmatpush1.bf16.xpose.msra.mxu0 0
      %1232 = vmatprep.subr.bf16.mxu0 0
      %1233 = vmatpush1.bf16.xpose.msra.mxu0 0
      %1234 = vmatprep.subr.bf16.mxu0 0
      %1235 = vmatpush1.bf16.xpose.msra.mxu0 0
      %1236 = vmatprep.subr.bf16.mxu0 0
      %1237 = vmatpush1.bf16.xpose.msra.mxu0 0
      %1238 = vmatprep.subr.bf16.mxu0 0
      %1239 = vmatpush1.bf16.xpose.msra.mxu0 0
      %1240 = vmatprep.subr.bf16.mxu0 0
      %1241 = vmatpush1.bf16.xpose.msra.mxu0 0
      %1242 = vmatprep.subr.bf16.mxu0 0
      %1243 = vmatpush1.bf16.xpose.msra.mxu0 0
      %1244 = vmatprep.subr.bf16.mxu0 0
      %1245 = vmatpush1.bf16.xpose.msra.mxu0 0
      %1246 = vmatprep.subr.bf16.mxu0 0
      %1247 = vmatpush1.bf16.xpose.msra.mxu0 0
      %1248 = vmatprep.subr.bf16.mxu0 0
      %1249 = vmatpush1.bf16.xpose.msra.mxu0 0
      %1250 = vmatprep.subr.bf16.mxu0 0
      %1251 = vmatpush1.bf16.xpose.msra.mxu0 0
      %1252 = vmatprep.mubr.bf16.mxu0 0
      %1253 = vmatmul.mubr.bf16.gmra.mrb[0].mxu0 %v1215
      %v1254 = vpop.f32.mrb[0].mxu0
      %v1255 = vadd.f32 %v428, %v1254
      %v1256 = vpop.f32.mrb[0].mxu0
      %v1257 = vpop.f32.mrb[0].mxu0
      %v1258 = vpop.f32.mrb[0].mxu0
      %1259 = vdwg.mxu0
      %v1260 = vsel %vm764, %v1255, -inf
      %1261 = vmax.xlane.f32.xlu0 %v1260
      %v1262 = vpop.xlane.xlu0 %1261
      %v1263 = vsub.f32 %v1255, %v1262
      %v1264 = vmul.f32 %v1263, 1.442695
      %v1265 = vpow.pop %v1264
      %v1266 = vsel %vm764, %v1265, 0.0
      %1267 = vadd.xlane.f32.xlu0 %v1266
      %v1268 = vpop.xlane.xlu0 %1267
      %v1269 = vrcp.pop %v1268
      %v1270 = vmul.f32 %v1265, %v1269
      %v1271 = vpack.c.bf16 %v1270, %v1270
      %v1272 = vpack.c.bf16 %v1207, %v1207
      %v1274 = vsel %vm764, %v1271, 0
      %v1277 = vsel %vm827, %v1272, 0
      %1279 = vmatprep.subr.bf16.mxu0 0
      %1280 = vmatpush1.bf16.msra.mxu0 %v1277
      %1281 = vmatprep.subr.bf16.mxu0 0
      %1282 = vmatpush1.bf16.msra.mxu0 0
      %1283 = vmatprep.subr.bf16.mxu0 0
      %1284 = vmatpush1.bf16.msra.mxu0 0
      %1285 = vmatprep.subr.bf16.mxu0 0
      %1286 = vmatpush1.bf16.msra.mxu0 0
      %1287 = vmatprep.subr.bf16.mxu0 0
      %1288 = vmatpush1.bf16.msra.mxu0 0
      %1289 = vmatprep.subr.bf16.mxu0 0
      %1290 = vmatpush1.bf16.msra.mxu0 0
      %1291 = vmatprep.subr.bf16.mxu0 0
      %1292 = vmatpush1.bf16.msra.mxu0 0
      %1293 = vmatprep.subr.bf16.mxu0 0
      %1294 = vmatpush1.bf16.msra.mxu0 0
      %1295 = vmatprep.subr.bf16.mxu0 0
      %1296 = vmatpush1.bf16.msra.mxu0 0
      %1297 = vmatprep.subr.bf16.mxu0 0
      %1298 = vmatpush1.bf16.msra.mxu0 0
      %1299 = vmatprep.subr.bf16.mxu0 0
      %1300 = vmatpush1.bf16.msra.mxu0 0
      %1301 = vmatprep.subr.bf16.mxu0 0
      %1302 = vmatpush1.bf16.msra.mxu0 0
      %1303 = vmatprep.subr.bf16.mxu0 0
      %1304 = vmatpush1.bf16.msra.mxu0 0
      %1305 = vmatprep.subr.bf16.mxu0 0
      %1306 = vmatpush1.bf16.msra.mxu0 0
      %1307 = vmatprep.subr.bf16.mxu0 0
      %1308 = vmatpush1.bf16.msra.mxu0 0
      %1309 = vmatprep.subr.bf16.mxu0 0
      %1310 = vmatpush1.bf16.msra.mxu0 0
      %1311 = vmatprep.mubr.bf16.mxu0 0
      %1312 = vmatmul.mubr.bf16.gmra.mrb[0].mxu0 %v1274
      %v1313 = vpop.f32.mrb[0].mxu0
      %v1314 = vadd.f32 0.0, %v1313
      %v1315 = vpop.f32.mrb[0].mxu0
      %v1316 = vpop.f32.mrb[0].mxu0
      %v1317 = vpop.f32.mrb[0].mxu0
      %1318 = vdwg.mxu0
      %v1319 = vpack.c.bf16 %v1314, %v1314
      %s1320 = scalar_lea.vmem %s8, 4
      %v1321 = vld [vmem:[%s1320] sm:$0xf]
      %v1323 = vsel %vm764, %v1319, 0
      %v1326 = vsel %vm827, %v1321, 0
      %1328 = vmatprep.subr.bf16.mxu0 0
      %1329 = vmatpush1.bf16.msra.mxu0 %v1326
      %1330 = vmatprep.subr.bf16.mxu0 0
      %1331 = vmatpush1.bf16.msra.mxu0 0
      %1332 = vmatprep.subr.bf16.mxu0 0
      %1333 = vmatpush1.bf16.msra.mxu0 0
      %1334 = vmatprep.subr.bf16.mxu0 0
      %1335 = vmatpush1.bf16.msra.mxu0 0
      %1336 = vmatprep.subr.bf16.mxu0 0
      %1337 = vmatpush1.bf16.msra.mxu0 0
      %1338 = vmatprep.subr.bf16.mxu0 0
      %1339 = vmatpush1.bf16.msra.mxu0 0
      %1340 = vmatprep.subr.bf16.mxu0 0
      %1341 = vmatpush1.bf16.msra.mxu0 0
      %1342 = vmatprep.subr.bf16.mxu0 0
      %1343 = vmatpush1.bf16.msra.mxu0 0
      %1344 = vmatprep.subr.bf16.mxu0 0
      %1345 = vmatpush1.bf16.msra.mxu0 0
      %1346 = vmatprep.subr.bf16.mxu0 0
      %1347 = vmatpush1.bf16.msra.mxu0 0
      %1348 = vmatprep.subr.bf16.mxu0 0
      %1349 = vmatpush1.bf16.msra.mxu0 0
      %1350 = vmatprep.subr.bf16.mxu0 0
      %1351 = vmatpush1.bf16.msra.mxu0 0
      %1352 = vmatprep.subr.bf16.mxu0 0
      %1353 = vmatpush1.bf16.msra.mxu0 0
      %1354 = vmatprep.subr.bf16.mxu0 0
      %1355 = vmatpush1.bf16.msra.mxu0 0
      %1356 = vmatprep.subr.bf16.mxu0 0
      %1357 = vmatpush1.bf16.msra.mxu0 0
      %1358 = vmatprep.subr.bf16.mxu0 0
      %1359 = vmatpush1.bf16.msra.mxu0 0
      %1360 = vmatprep.mubr.bf16.mxu0 0
      %1361 = vmatmul.mubr.bf16.gmra.mrb[0].mxu0 %v1323
      %v1362 = vpop.f32.mrb[0].mxu0
      %v1363 = vadd.f32 0.0, %v1362
      %v1364 = vpop.f32.mrb[0].mxu0
      %v1365 = vpop.f32.mrb[0].mxu0
      %v1366 = vpop.f32.mrb[0].mxu0
      %1367 = vdwg.mxu0
      %v1369 = vsel %vm764, %v871, 0
      %v1372 = vsel %vm827, %v872, 0
      %1374 = vmatprep.subr.bf16.mxu0 0
      %1375 = vmatpush1.bf16.msra.mxu0 %v1372
      %1376 = vmatprep.subr.bf16.mxu0 0
      %1377 = vmatpush1.bf16.msra.mxu0 0
      %1378 = vmatprep.subr.bf16.mxu0 0
      %1379 = vmatpush1.bf16.msra.mxu0 0
      %1380 = vmatprep.subr.bf16.mxu0 0
      %1381 = vmatpush1.bf16.msra.mxu0 0
      %1382 = vmatprep.subr.bf16.mxu0 0
      %1383 = vmatpush1.bf16.msra.mxu0 0
      %1384 = vmatprep.subr.bf16.mxu0 0
      %1385 = vmatpush1.bf16.msra.mxu0 0
      %1386 = vmatprep.subr.bf16.mxu0 0
      %1387 = vmatpush1.bf16.msra.mxu0 0
      %1388 = vmatprep.subr.bf16.mxu0 0
      %1389 = vmatpush1.bf16.msra.mxu0 0
      %1390 = vmatprep.subr.bf16.mxu0 0
      %1391 = vmatpush1.bf16.msra.mxu0 0
      %1392 = vmatprep.subr.bf16.mxu0 0
      %1393 = vmatpush1.bf16.msra.mxu0 0
      %1394 = vmatprep.subr.bf16.mxu0 0
      %1395 = vmatpush1.bf16.msra.mxu0 0
      %1396 = vmatprep.subr.bf16.mxu0 0
      %1397 = vmatpush1.bf16.msra.mxu0 0
      %1398 = vmatprep.subr.bf16.mxu0 0
      %1399 = vmatpush1.bf16.msra.mxu0 0
      %1400 = vmatprep.subr.bf16.mxu0 0
      %1401 = vmatpush1.bf16.msra.mxu0 0
      %1402 = vmatprep.subr.bf16.mxu0 0
      %1403 = vmatpush1.bf16.msra.mxu0 0
      %1404 = vmatprep.subr.bf16.mxu0 0
      %1405 = vmatpush1.bf16.msra.mxu0 0
      %1406 = vmatprep.mubr.bf16.mxu0 0
      %1407 = vmatmul.mubr.bf16.gmra.mrb[0].mxu0 %v1369
      %v1408 = vpop.f32.mrb[0].mxu0
      %v1409 = vadd.f32 %v1363, %v1408
      %v1410 = vpop.f32.mrb[0].mxu0
      %v1411 = vpop.f32.mrb[0].mxu0
      %v1412 = vpop.f32.mrb[0].mxu0
      %1413 = vdwg.mxu0
      %s1414 = scalar_lea.vmem %s2, 128
      %v1415 = vld [vmem:[%s1414] sm:$0xf]
      %v1416 = vld [vmem:[%s1414 + $0x4] sm:$0xf]
      %v1417 = vld [vmem:[%s1414 + $0x8] sm:$0xf]
      %v1418 = vld [vmem:[%s1414 + $0xc] sm:$0xf]
      %v1419 = vld [vmem:[%s1414 + $0x10] sm:$0xf]
      %v1420 = vld [vmem:[%s1414 + $0x14] sm:$0xf]
      %v1421 = vld [vmem:[%s1414 + $0x18] sm:$0xf]
      %v1422 = vld [vmem:[%s1414 + $0x1c] sm:$0xf]
      %v1423 = vld [vmem:[%s1414 + $0x20] sm:$0xf]
      %v1424 = vld [vmem:[%s1414 + $0x24] sm:$0xf]
      %v1425 = vld [vmem:[%s1414 + $0x28] sm:$0xf]
      %v1426 = vld [vmem:[%s1414 + $0x2c] sm:$0xf]
      %v1427 = vld [vmem:[%s1414 + $0x30] sm:$0xf]
      %v1428 = vld [vmem:[%s1414 + $0x34] sm:$0xf]
      %v1429 = vld [vmem:[%s1414 + $0x38] sm:$0xf]
      %v1430 = vld [vmem:[%s1414 + $0x3c] sm:$0xf]
      %s1431 = scalar_lea.vmem %s3, 2
      %v1432 = vld [vmem:[%s1431] sm:$0x1]
      %v1434 = vlaneseq
      %v1435 = vshrl.u32 %v1434, 7
      %v1436 = vsub.s32 0, %v1435
      %v1437 = vrot.slane %v1432, %v1436
      %v1455 = vunpack.c.l.b16 %v1415
      %v1456 = vunpack.c.l.b16 %v1416
      %v1457 = vunpack.c.l.b16 %v1417
      %v1458 = vunpack.c.l.b16 %v1418
      %v1459 = vunpack.c.l.b16 %v1419
      %v1460 = vunpack.c.l.b16 %v1420
      %v1461 = vunpack.c.l.b16 %v1421
      %v1462 = vunpack.c.l.b16 %v1422
      %v1463 = vunpack.c.l.b16 %v1423
      %v1464 = vunpack.c.l.b16 %v1424
      %v1465 = vunpack.c.l.b16 %v1425
      %v1466 = vunpack.c.l.b16 %v1426
      %v1467 = vunpack.c.l.b16 %v1427
      %v1468 = vunpack.c.l.b16 %v1428
      %v1469 = vunpack.c.l.b16 %v1429
      %v1470 = vunpack.c.l.b16 %v1430
      %v1471 = vpack.c.b16 %v1456, %v1455
      %v1472 = vpack.c.b16 %v1458, %v1457
      %v1473 = vpack.c.b16 %v1460, %v1459
      %v1474 = vpack.c.b16 %v1462, %v1461
      %v1475 = vpack.c.b16 %v1464, %v1463
      %v1476 = vpack.c.b16 %v1466, %v1465
      %v1477 = vpack.c.b16 %v1468, %v1467
      %v1478 = vpack.c.b16 %v1470, %v1469
      %1487 = vmatprep.subr.bf16.mxu0 0
      %1488 = vmatpush1.bf16.msra.mxu0 %v1471
      %1489 = vmatprep.subr.bf16.mxu0 0
      %1490 = vmatpush1.bf16.msra.mxu0 %v1472
      %1491 = vmatprep.subr.bf16.mxu0 0
      %1492 = vmatpush1.bf16.msra.mxu0 %v1473
      %1493 = vmatprep.subr.bf16.mxu0 0
      %1494 = vmatpush1.bf16.msra.mxu0 %v1474
      %1495 = vmatprep.subr.bf16.mxu0 0
      %1496 = vmatpush1.bf16.msra.mxu0 %v1475
      %1497 = vmatprep.subr.bf16.mxu0 0
      %1498 = vmatpush1.bf16.msra.mxu0 %v1476
      %1499 = vmatprep.subr.bf16.mxu0 0
      %1500 = vmatpush1.bf16.msra.mxu0 %v1477
      %1501 = vmatprep.subr.bf16.mxu0 0
      %1502 = vmatpush1.bf16.msra.mxu0 %v1478
      %1503 = vmatprep.subr.bf16.mxu0 0
      %1504 = vmatpush1.bf16.msra.mxu0 0
      %1505 = vmatprep.subr.bf16.mxu0 0
      %1506 = vmatpush1.bf16.msra.mxu0 0
      %1507 = vmatprep.subr.bf16.mxu0 0
      %1508 = vmatpush1.bf16.msra.mxu0 0
      %1509 = vmatprep.subr.bf16.mxu0 0
      %1510 = vmatpush1.bf16.msra.mxu0 0
      %1511 = vmatprep.subr.bf16.mxu0 0
      %1512 = vmatpush1.bf16.msra.mxu0 0
      %1513 = vmatprep.subr.bf16.mxu0 0
      %1514 = vmatpush1.bf16.msra.mxu0 0
      %1515 = vmatprep.subr.bf16.mxu0 0
      %1516 = vmatpush1.bf16.msra.mxu0 0
      %1517 = vmatprep.subr.bf16.mxu0 0
      %1518 = vmatpush1.bf16.msra.mxu0 0
      %1519 = vmatprep.mubr.bf16.mxu0 0
      %1520 = vmatmul.mubr.bf16.gmra.mrb[0].mxu0 %v427
      %v1521 = vpop.f32.mrb[0].mxu0
      %v1522 = vadd.f32 %v1437, %v1521
      %v1523 = vpop.f32.mrb[0].mxu0
      %v1524 = vpop.f32.mrb[0].mxu0
      %v1525 = vpop.f32.mrb[0].mxu0
      %1526 = vdwg.mxu0
      %s1527 = scalar_lea.vmem %s4, 128
      %v1528 = vld [vmem:[%s1527] sm:$0xf]
      %v1529 = vld [vmem:[%s1527 + $0x4] sm:$0xf]
      %v1530 = vld [vmem:[%s1527 + $0x8] sm:$0xf]
      %v1531 = vld [vmem:[%s1527 + $0xc] sm:$0xf]
      %v1532 = vld [vmem:[%s1527 + $0x10] sm:$0xf]
      %v1533 = vld [vmem:[%s1527 + $0x14] sm:$0xf]
      %v1534 = vld [vmem:[%s1527 + $0x18] sm:$0xf]
      %v1535 = vld [vmem:[%s1527 + $0x1c] sm:$0xf]
      %v1536 = vld [vmem:[%s1527 + $0x20] sm:$0xf]
      %v1537 = vld [vmem:[%s1527 + $0x24] sm:$0xf]
      %v1538 = vld [vmem:[%s1527 + $0x28] sm:$0xf]
      %v1539 = vld [vmem:[%s1527 + $0x2c] sm:$0xf]
      %v1540 = vld [vmem:[%s1527 + $0x30] sm:$0xf]
      %v1541 = vld [vmem:[%s1527 + $0x34] sm:$0xf]
      %v1542 = vld [vmem:[%s1527 + $0x38] sm:$0xf]
      %v1543 = vld [vmem:[%s1527 + $0x3c] sm:$0xf]
      %s1544 = scalar_lea.vmem %s5, 2
      %v1545 = vld [vmem:[%s1544] sm:$0x1]
      %v1547 = vlaneseq
      %v1548 = vshrl.u32 %v1547, 7
      %v1549 = vsub.s32 0, %v1548
      %v1550 = vrot.slane %v1545, %v1549
      %v1568 = vunpack.c.l.b16 %v1528
      %v1569 = vunpack.c.l.b16 %v1529
      %v1570 = vunpack.c.l.b16 %v1530
      %v1571 = vunpack.c.l.b16 %v1531
      %v1572 = vunpack.c.l.b16 %v1532
      %v1573 = vunpack.c.l.b16 %v1533
      %v1574 = vunpack.c.l.b16 %v1534
      %v1575 = vunpack.c.l.b16 %v1535
      %v1576 = vunpack.c.l.b16 %v1536
      %v1577 = vunpack.c.l.b16 %v1537
      %v1578 = vunpack.c.l.b16 %v1538
      %v1579 = vunpack.c.l.b16 %v1539
      %v1580 = vunpack.c.l.b16 %v1540
      %v1581 = vunpack.c.l.b16 %v1541
      %v1582 = vunpack.c.l.b16 %v1542
      %v1583 = vunpack.c.l.b16 %v1543
      %v1584 = vpack.c.b16 %v1569, %v1568
      %v1585 = vpack.c.b16 %v1571, %v1570
      %v1586 = vpack.c.b16 %v1573, %v1572
      %v1587 = vpack.c.b16 %v1575, %v1574
      %v1588 = vpack.c.b16 %v1577, %v1576
      %v1589 = vpack.c.b16 %v1579, %v1578
      %v1590 = vpack.c.b16 %v1581, %v1580
      %v1591 = vpack.c.b16 %v1583, %v1582
      %1600 = vmatprep.subr.bf16.mxu0 0
      %1601 = vmatpush1.bf16.msra.mxu0 %v1584
      %1602 = vmatprep.subr.bf16.mxu0 0
      %1603 = vmatpush1.bf16.msra.mxu0 %v1585
      %1604 = vmatprep.subr.bf16.mxu0 0
      %1605 = vmatpush1.bf16.msra.mxu0 %v1586
      %1606 = vmatprep.subr.bf16.mxu0 0
      %1607 = vmatpush1.bf16.msra.mxu0 %v1587
      %1608 = vmatprep.subr.bf16.mxu0 0
      %1609 = vmatpush1.bf16.msra.mxu0 %v1588
      %1610 = vmatprep.subr.bf16.mxu0 0
      %1611 = vmatpush1.bf16.msra.mxu0 %v1589
      %1612 = vmatprep.subr.bf16.mxu0 0
      %1613 = vmatpush1.bf16.msra.mxu0 %v1590
      %1614 = vmatprep.subr.bf16.mxu0 0
      %1615 = vmatpush1.bf16.msra.mxu0 %v1591
      %1616 = vmatprep.subr.bf16.mxu0 0
      %1617 = vmatpush1.bf16.msra.mxu0 0
      %1618 = vmatprep.subr.bf16.mxu0 0
      %1619 = vmatpush1.bf16.msra.mxu0 0
      %1620 = vmatprep.subr.bf16.mxu0 0
      %1621 = vmatpush1.bf16.msra.mxu0 0
      %1622 = vmatprep.subr.bf16.mxu0 0
      %1623 = vmatpush1.bf16.msra.mxu0 0
      %1624 = vmatprep.subr.bf16.mxu0 0
      %1625 = vmatpush1.bf16.msra.mxu0 0
      %1626 = vmatprep.subr.bf16.mxu0 0
      %1627 = vmatpush1.bf16.msra.mxu0 0
      %1628 = vmatprep.subr.bf16.mxu0 0
      %1629 = vmatpush1.bf16.msra.mxu0 0
      %1630 = vmatprep.subr.bf16.mxu0 0
      %1631 = vmatpush1.bf16.msra.mxu0 0
      %1632 = vmatprep.mubr.bf16.mxu0 0
      %1633 = vmatmul.mubr.bf16.gmra.mrb[0].mxu0 %v427
      %v1634 = vpop.f32.mrb[0].mxu0
      %v1635 = vadd.f32 %v1550, %v1634
      %v1636 = vpop.f32.mrb[0].mxu0
      %v1637 = vpop.f32.mrb[0].mxu0
      %v1638 = vpop.f32.mrb[0].mxu0
      %1639 = vdwg.mxu0
      %s1640 = scalar_lea.vmem %s6, 128
      %v1641 = vld [vmem:[%s1640] sm:$0xf]
      %v1642 = vld [vmem:[%s1640 + $0x4] sm:$0xf]
      %v1643 = vld [vmem:[%s1640 + $0x8] sm:$0xf]
      %v1644 = vld [vmem:[%s1640 + $0xc] sm:$0xf]
      %v1645 = vld [vmem:[%s1640 + $0x10] sm:$0xf]
      %v1646 = vld [vmem:[%s1640 + $0x14] sm:$0xf]
      %v1647 = vld [vmem:[%s1640 + $0x18] sm:$0xf]
      %v1648 = vld [vmem:[%s1640 + $0x1c] sm:$0xf]
      %v1649 = vld [vmem:[%s1640 + $0x20] sm:$0xf]
      %v1650 = vld [vmem:[%s1640 + $0x24] sm:$0xf]
      %v1651 = vld [vmem:[%s1640 + $0x28] sm:$0xf]
      %v1652 = vld [vmem:[%s1640 + $0x2c] sm:$0xf]
      %v1653 = vld [vmem:[%s1640 + $0x30] sm:$0xf]
      %v1654 = vld [vmem:[%s1640 + $0x34] sm:$0xf]
      %v1655 = vld [vmem:[%s1640 + $0x38] sm:$0xf]
      %v1656 = vld [vmem:[%s1640 + $0x3c] sm:$0xf]
      %s1657 = scalar_lea.vmem %s7, 2
      %v1658 = vld [vmem:[%s1657] sm:$0x1]
      %v1660 = vlaneseq
      %v1661 = vshrl.u32 %v1660, 7
      %v1662 = vsub.s32 0, %v1661
      %v1663 = vrot.slane %v1658, %v1662
      %v1681 = vunpack.c.l.b16 %v1641
      %v1682 = vunpack.c.l.b16 %v1642
      %v1683 = vunpack.c.l.b16 %v1643
      %v1684 = vunpack.c.l.b16 %v1644
      %v1685 = vunpack.c.l.b16 %v1645
      %v1686 = vunpack.c.l.b16 %v1646
      %v1687 = vunpack.c.l.b16 %v1647
      %v1688 = vunpack.c.l.b16 %v1648
      %v1689 = vunpack.c.l.b16 %v1649
      %v1690 = vunpack.c.l.b16 %v1650
      %v1691 = vunpack.c.l.b16 %v1651
      %v1692 = vunpack.c.l.b16 %v1652
      %v1693 = vunpack.c.l.b16 %v1653
      %v1694 = vunpack.c.l.b16 %v1654
      %v1695 = vunpack.c.l.b16 %v1655
      %v1696 = vunpack.c.l.b16 %v1656
      %v1697 = vpack.c.b16 %v1682, %v1681
      %v1698 = vpack.c.b16 %v1684, %v1683
      %v1699 = vpack.c.b16 %v1686, %v1685
      %v1700 = vpack.c.b16 %v1688, %v1687
      %v1701 = vpack.c.b16 %v1690, %v1689
      %v1702 = vpack.c.b16 %v1692, %v1691
      %v1703 = vpack.c.b16 %v1694, %v1693
      %v1704 = vpack.c.b16 %v1696, %v1695
      %1713 = vmatprep.subr.bf16.mxu0 0
      %1714 = vmatpush1.bf16.msra.mxu0 %v1697
      %1715 = vmatprep.subr.bf16.mxu0 0
      %1716 = vmatpush1.bf16.msra.mxu0 %v1698
      %1717 = vmatprep.subr.bf16.mxu0 0
      %1718 = vmatpush1.bf16.msra.mxu0 %v1699
      %1719 = vmatprep.subr.bf16.mxu0 0
      %1720 = vmatpush1.bf16.msra.mxu0 %v1700
      %1721 = vmatprep.subr.bf16.mxu0 0
      %1722 = vmatpush1.bf16.msra.mxu0 %v1701
      %1723 = vmatprep.subr.bf16.mxu0 0
      %1724 = vmatpush1.bf16.msra.mxu0 %v1702
      %1725 = vmatprep.subr.bf16.mxu0 0
      %1726 = vmatpush1.bf16.msra.mxu0 %v1703
      %1727 = vmatprep.subr.bf16.mxu0 0
      %1728 = vmatpush1.bf16.msra.mxu0 %v1704
      %1729 = vmatprep.subr.bf16.mxu0 0
      %1730 = vmatpush1.bf16.msra.mxu0 0
      %1731 = vmatprep.subr.bf16.mxu0 0
      %1732 = vmatpush1.bf16.msra.mxu0 0
      %1733 = vmatprep.subr.bf16.mxu0 0
      %1734 = vmatpush1.bf16.msra.mxu0 0
      %1735 = vmatprep.subr.bf16.mxu0 0
      %1736 = vmatpush1.bf16.msra.mxu0 0
      %1737 = vmatprep.subr.bf16.mxu0 0
      %1738 = vmatpush1.bf16.msra.mxu0 0
      %1739 = vmatprep.subr.bf16.mxu0 0
      %1740 = vmatpush1.bf16.msra.mxu0 0
      %1741 = vmatprep.subr.bf16.mxu0 0
      %1742 = vmatpush1.bf16.msra.mxu0 0
      %1743 = vmatprep.subr.bf16.mxu0 0
      %1744 = vmatpush1.bf16.msra.mxu0 0
      %1745 = vmatprep.mubr.bf16.mxu0 0
      %1746 = vmatmul.mubr.bf16.gmra.mrb[0].mxu0 %v427
      %v1747 = vpop.f32.mrb[0].mxu0
      %v1748 = vadd.f32 %v1663, %v1747
      %v1749 = vpop.f32.mrb[0].mxu0
      %v1750 = vpop.f32.mrb[0].mxu0
      %v1751 = vpop.f32.mrb[0].mxu0
      %1752 = vdwg.mxu0
      %v1753 = vpack.c.bf16 %v1522, %v1522
      %v1754 = vpack.c.bf16 %v1635, %v1635
      %v1756 = vsel %vm764, %v1753, 0
      %v1759 = vsel %vm764, %v1754, 0
      %1761 = vmatprep.subr.bf16.mxu0 0
      %1762 = vmatpush1.bf16.xpose.msra.mxu0 %v1759
      %1763 = vmatprep.subr.bf16.mxu0 0
      %1764 = vmatpush1.bf16.xpose.msra.mxu0 0
      %1765 = vmatprep.subr.bf16.mxu0 0
      %1766 = vmatpush1.bf16.xpose.msra.mxu0 0
      %1767 = vmatprep.subr.bf16.mxu0 0
      %1768 = vmatpush1.bf16.xpose.msra.mxu0 0
      %1769 = vmatprep.subr.bf16.mxu0 0
      %1770 = vmatpush1.bf16.xpose.msra.mxu0 0
      %1771 = vmatprep.subr.bf16.mxu0 0
      %1772 = vmatpush1.bf16.xpose.msra.mxu0 0
      %1773 = vmatprep.subr.bf16.mxu0 0
      %1774 = vmatpush1.bf16.xpose.msra.mxu0 0
      %1775 = vmatprep.subr.bf16.mxu0 0
      %1776 = vmatpush1.bf16.xpose.msra.mxu0 0
      %1777 = vmatprep.subr.bf16.mxu0 0
      %1778 = vmatpush1.bf16.xpose.msra.mxu0 0
      %1779 = vmatprep.subr.bf16.mxu0 0
      %1780 = vmatpush1.bf16.xpose.msra.mxu0 0
      %1781 = vmatprep.subr.bf16.mxu0 0
      %1782 = vmatpush1.bf16.xpose.msra.mxu0 0
      %1783 = vmatprep.subr.bf16.mxu0 0
      %1784 = vmatpush1.bf16.xpose.msra.mxu0 0
      %1785 = vmatprep.subr.bf16.mxu0 0
      %1786 = vmatpush1.bf16.xpose.msra.mxu0 0
      %1787 = vmatprep.subr.bf16.mxu0 0
      %1788 = vmatpush1.bf16.xpose.msra.mxu0 0
      %1789 = vmatprep.subr.bf16.mxu0 0
      %1790 = vmatpush1.bf16.xpose.msra.mxu0 0
      %1791 = vmatprep.subr.bf16.mxu0 0
      %1792 = vmatpush1.bf16.xpose.msra.mxu0 0
      %1793 = vmatprep.mubr.bf16.mxu0 0
      %1794 = vmatmul.mubr.bf16.gmra.mrb[0].mxu0 %v1756
      %v1795 = vpop.f32.mrb[0].mxu0
      %v1796 = vadd.f32 %v428, %v1795
      %v1797 = vpop.f32.mrb[0].mxu0
      %v1798 = vpop.f32.mrb[0].mxu0
      %v1799 = vpop.f32.mrb[0].mxu0
      %1800 = vdwg.mxu0
      %v1801 = vsel %vm764, %v1796, -inf
      %1802 = vmax.xlane.f32.xlu0 %v1801
      %v1803 = vpop.xlane.xlu0 %1802
      %v1804 = vsub.f32 %v1796, %v1803
      %v1805 = vmul.f32 %v1804, 1.442695
      %v1806 = vpow.pop %v1805
      %v1807 = vsel %vm764, %v1806, 0.0
      %1808 = vadd.xlane.f32.xlu0 %v1807
      %v1809 = vpop.xlane.xlu0 %1808
      %v1810 = vrcp.pop %v1809
      %v1811 = vmul.f32 %v1806, %v1810
      %v1812 = vpack.c.bf16 %v1811, %v1811
      %v1813 = vpack.c.bf16 %v1748, %v1748
      %v1815 = vsel %vm764, %v1812, 0
      %v1818 = vsel %vm827, %v1813, 0
      %1820 = vmatprep.subr.bf16.mxu0 0
      %1821 = vmatpush1.bf16.msra.mxu0 %v1818
      %1822 = vmatprep.subr.bf16.mxu0 0
      %1823 = vmatpush1.bf16.msra.mxu0 0
      %1824 = vmatprep.subr.bf16.mxu0 0
      %1825 = vmatpush1.bf16.msra.mxu0 0
      %1826 = vmatprep.subr.bf16.mxu0 0
      %1827 = vmatpush1.bf16.msra.mxu0 0
      %1828 = vmatprep.subr.bf16.mxu0 0
      %1829 = vmatpush1.bf16.msra.mxu0 0
      %1830 = vmatprep.subr.bf16.mxu0 0
      %1831 = vmatpush1.bf16.msra.mxu0 0
      %1832 = vmatprep.subr.bf16.mxu0 0
      %1833 = vmatpush1.bf16.msra.mxu0 0
      %1834 = vmatprep.subr.bf16.mxu0 0
      %1835 = vmatpush1.bf16.msra.mxu0 0
      %1836 = vmatprep.subr.bf16.mxu0 0
      %1837 = vmatpush1.bf16.msra.mxu0 0
      %1838 = vmatprep.subr.bf16.mxu0 0
      %1839 = vmatpush1.bf16.msra.mxu0 0
      %1840 = vmatprep.subr.bf16.mxu0 0
      %1841 = vmatpush1.bf16.msra.mxu0 0
      %1842 = vmatprep.subr.bf16.mxu0 0
      %1843 = vmatpush1.bf16.msra.mxu0 0
      %1844 = vmatprep.subr.bf16.mxu0 0
      %1845 = vmatpush1.bf16.msra.mxu0 0
      %1846 = vmatprep.subr.bf16.mxu0 0
      %1847 = vmatpush1.bf16.msra.mxu0 0
      %1848 = vmatprep.subr.bf16.mxu0 0
      %1849 = vmatpush1.bf16.msra.mxu0 0
      %1850 = vmatprep.subr.bf16.mxu0 0
      %1851 = vmatpush1.bf16.msra.mxu0 0
      %1852 = vmatprep.mubr.bf16.mxu0 0
      %1853 = vmatmul.mubr.bf16.gmra.mrb[0].mxu0 %v1815
      %v1854 = vpop.f32.mrb[0].mxu0
      %v1855 = vadd.f32 0.0, %v1854
      %v1856 = vpop.f32.mrb[0].mxu0
      %v1857 = vpop.f32.mrb[0].mxu0
      %v1858 = vpop.f32.mrb[0].mxu0
      %1859 = vdwg.mxu0
      %v1860 = vpack.c.bf16 %v1855, %v1855
      %s1861 = scalar_lea.vmem %s8, 8
      %v1862 = vld [vmem:[%s1861] sm:$0xf]
      %v1864 = vsel %vm764, %v1860, 0
      %v1867 = vsel %vm827, %v1862, 0
      %1869 = vmatprep.subr.bf16.mxu0 0
      %1870 = vmatpush1.bf16.msra.mxu0 %v1867
      %1871 = vmatprep.subr.bf16.mxu0 0
      %1872 = vmatpush1.bf16.msra.mxu0 0
      %1873 = vmatprep.subr.bf16.mxu0 0
      %1874 = vmatpush1.bf16.msra.mxu0 0
      %1875 = vmatprep.subr.bf16.mxu0 0
      %1876 = vmatpush1.bf16.msra.mxu0 0
      %1877 = vmatprep.subr.bf16.mxu0 0
      %1878 = vmatpush1.bf16.msra.mxu0 0
      %1879 = vmatprep.subr.bf16.mxu0 0
      %1880 = vmatpush1.bf16.msra.mxu0 0
      %1881 = vmatprep.subr.bf16.mxu0 0
      %1882 = vmatpush1.bf16.msra.mxu0 0
      %1883 = vmatprep.subr.bf16.mxu0 0
      %1884 = vmatpush1.bf16.msra.mxu0 0
      %1885 = vmatprep.subr.bf16.mxu0 0
      %1886 = vmatpush1.bf16.msra.mxu0 0
      %1887 = vmatprep.subr.bf16.mxu0 0
      %1888 = vmatpush1.bf16.msra.mxu0 0
      %1889 = vmatprep.subr.bf16.mxu0 0
      %1890 = vmatpush1.bf16.msra.mxu0 0
      %1891 = vmatprep.subr.bf16.mxu0 0
      %1892 = vmatpush1.bf16.msra.mxu0 0
      %1893 = vmatprep.subr.bf16.mxu0 0
      %1894 = vmatpush1.bf16.msra.mxu0 0
      %1895 = vmatprep.subr.bf16.mxu0 0
      %1896 = vmatpush1.bf16.msra.mxu0 0
      %1897 = vmatprep.subr.bf16.mxu0 0
      %1898 = vmatpush1.bf16.msra.mxu0 0
      %1899 = vmatprep.subr.bf16.mxu0 0
      %1900 = vmatpush1.bf16.msra.mxu0 0
      %1901 = vmatprep.mubr.bf16.mxu0 0
      %1902 = vmatmul.mubr.bf16.gmra.mrb[0].mxu0 %v1864
      %v1903 = vpop.f32.mrb[0].mxu0
      %v1904 = vadd.f32 0.0, %v1903
      %v1905 = vpop.f32.mrb[0].mxu0
      %v1906 = vpop.f32.mrb[0].mxu0
      %v1907 = vpop.f32.mrb[0].mxu0
      %1908 = vdwg.mxu0
      %v1909 = vadd.f32 %v1409, %v1904
      %s1910 = scalar_lea.vmem %s2, 192
      %v1911 = vld [vmem:[%s1910] sm:$0xf]
      %v1912 = vld [vmem:[%s1910 + $0x4] sm:$0xf]
      %v1913 = vld [vmem:[%s1910 + $0x8] sm:$0xf]
      %v1914 = vld [vmem:[%s1910 + $0xc] sm:$0xf]
      %v1915 = vld [vmem:[%s1910 + $0x10] sm:$0xf]
      %v1916 = vld [vmem:[%s1910 + $0x14] sm:$0xf]
      %v1917 = vld [vmem:[%s1910 + $0x18] sm:$0xf]
      %v1918 = vld [vmem:[%s1910 + $0x1c] sm:$0xf]
      %v1919 = vld [vmem:[%s1910 + $0x20] sm:$0xf]
      %v1920 = vld [vmem:[%s1910 + $0x24] sm:$0xf]
      %v1921 = vld [vmem:[%s1910 + $0x28] sm:$0xf]
      %v1922 = vld [vmem:[%s1910 + $0x2c] sm:$0xf]
      %v1923 = vld [vmem:[%s1910 + $0x30] sm:$0xf]
      %v1924 = vld [vmem:[%s1910 + $0x34] sm:$0xf]
      %v1925 = vld [vmem:[%s1910 + $0x38] sm:$0xf]
      %v1926 = vld [vmem:[%s1910 + $0x3c] sm:$0xf]
      %s1927 = scalar_lea.vmem %s3, 3
      %v1928 = vld [vmem:[%s1927] sm:$0x1]
      %v1930 = vlaneseq
      %v1931 = vshrl.u32 %v1930, 7
      %v1932 = vsub.s32 0, %v1931
      %v1933 = vrot.slane %v1928, %v1932
      %v1951 = vunpack.c.l.b16 %v1911
      %v1952 = vunpack.c.l.b16 %v1912
      %v1953 = vunpack.c.l.b16 %v1913
      %v1954 = vunpack.c.l.b16 %v1914
      %v1955 = vunpack.c.l.b16 %v1915
      %v1956 = vunpack.c.l.b16 %v1916
      %v1957 = vunpack.c.l.b16 %v1917
      %v1958 = vunpack.c.l.b16 %v1918
      %v1959 = vunpack.c.l.b16 %v1919
      %v1960 = vunpack.c.l.b16 %v1920
      %v1961 = vunpack.c.l.b16 %v1921
      %v1962 = vunpack.c.l.b16 %v1922
      %v1963 = vunpack.c.l.b16 %v1923
      %v1964 = vunpack.c.l.b16 %v1924
      %v1965 = vunpack.c.l.b16 %v1925
      %v1966 = vunpack.c.l.b16 %v1926
      %v1967 = vpack.c.b16 %v1952, %v1951
      %v1968 = vpack.c.b16 %v1954, %v1953
      %v1969 = vpack.c.b16 %v1956, %v1955
      %v1970 = vpack.c.b16 %v1958, %v1957
      %v1971 = vpack.c.b16 %v1960, %v1959
      %v1972 = vpack.c.b16 %v1962, %v1961
      %v1973 = vpack.c.b16 %v1964, %v1963
      %v1974 = vpack.c.b16 %v1966, %v1965
      %1983 = vmatprep.subr.bf16.mxu0 0
      %1984 = vmatpush1.bf16.msra.mxu0 %v1967
      %1985 = vmatprep.subr.bf16.mxu0 0
      %1986 = vmatpush1.bf16.msra.mxu0 %v1968
      %1987 = vmatprep.subr.bf16.mxu0 0
      %1988 = vmatpush1.bf16.msra.mxu0 %v1969
      %1989 = vmatprep.subr.bf16.mxu0 0
      %1990 = vmatpush1.bf16.msra.mxu0 %v1970
      %1991 = vmatprep.subr.bf16.mxu0 0
      %1992 = vmatpush1.bf16.msra.mxu0 %v1971
      %1993 = vmatprep.subr.bf16.mxu0 0
      %1994 = vmatpush1.bf16.msra.mxu0 %v1972
      %1995 = vmatprep.subr.bf16.mxu0 0
      %1996 = vmatpush1.bf16.msra.mxu0 %v1973
      %1997 = vmatprep.subr.bf16.mxu0 0
      %1998 = vmatpush1.bf16.msra.mxu0 %v1974
      %1999 = vmatprep.subr.bf16.mxu0 0
      %2000 = vmatpush1.bf16.msra.mxu0 0
      %2001 = vmatprep.subr.bf16.mxu0 0
      %2002 = vmatpush1.bf16.msra.mxu0 0
      %2003 = vmatprep.subr.bf16.mxu0 0
      %2004 = vmatpush1.bf16.msra.mxu0 0
      %2005 = vmatprep.subr.bf16.mxu0 0
      %2006 = vmatpush1.bf16.msra.mxu0 0
      %2007 = vmatprep.subr.bf16.mxu0 0
      %2008 = vmatpush1.bf16.msra.mxu0 0
      %2009 = vmatprep.subr.bf16.mxu0 0
      %2010 = vmatpush1.bf16.msra.mxu0 0
      %2011 = vmatprep.subr.bf16.mxu0 0
      %2012 = vmatpush1.bf16.msra.mxu0 0
      %2013 = vmatprep.subr.bf16.mxu0 0
      %2014 = vmatpush1.bf16.msra.mxu0 0
      %2015 = vmatprep.mubr.bf16.mxu0 0
      %2016 = vmatmul.mubr.bf16.gmra.mrb[0].mxu0 %v427
      %v2017 = vpop.f32.mrb[0].mxu0
      %v2018 = vadd.f32 %v1933, %v2017
      %v2019 = vpop.f32.mrb[0].mxu0
      %v2020 = vpop.f32.mrb[0].mxu0
      %v2021 = vpop.f32.mrb[0].mxu0
      %2022 = vdwg.mxu0
      %s2023 = scalar_lea.vmem %s4, 192
      %v2024 = vld [vmem:[%s2023] sm:$0xf]
      %v2025 = vld [vmem:[%s2023 + $0x4] sm:$0xf]
      %v2026 = vld [vmem:[%s2023 + $0x8] sm:$0xf]
      %v2027 = vld [vmem:[%s2023 + $0xc] sm:$0xf]
      %v2028 = vld [vmem:[%s2023 + $0x10] sm:$0xf]
      %v2029 = vld [vmem:[%s2023 + $0x14] sm:$0xf]
      %v2030 = vld [vmem:[%s2023 + $0x18] sm:$0xf]
      %v2031 = vld [vmem:[%s2023 + $0x1c] sm:$0xf]
      %v2032 = vld [vmem:[%s2023 + $0x20] sm:$0xf]
      %v2033 = vld [vmem:[%s2023 + $0x24] sm:$0xf]
      %v2034 = vld [vmem:[%s2023 + $0x28] sm:$0xf]
      %v2035 = vld [vmem:[%s2023 + $0x2c] sm:$0xf]
      %v2036 = vld [vmem:[%s2023 + $0x30] sm:$0xf]
      %v2037 = vld [vmem:[%s2023 + $0x34] sm:$0xf]
      %v2038 = vld [vmem:[%s2023 + $0x38] sm:$0xf]
      %v2039 = vld [vmem:[%s2023 + $0x3c] sm:$0xf]
      %s2040 = scalar_lea.vmem %s5, 3
      %v2041 = vld [vmem:[%s2040] sm:$0x1]
      %v2043 = vlaneseq
      %v2044 = vshrl.u32 %v2043, 7
      %v2045 = vsub.s32 0, %v2044
      %v2046 = vrot.slane %v2041, %v2045
      %v2064 = vunpack.c.l.b16 %v2024
      %v2065 = vunpack.c.l.b16 %v2025
      %v2066 = vunpack.c.l.b16 %v2026
      %v2067 = vunpack.c.l.b16 %v2027
      %v2068 = vunpack.c.l.b16 %v2028
      %v2069 = vunpack.c.l.b16 %v2029
      %v2070 = vunpack.c.l.b16 %v2030
      %v2071 = vunpack.c.l.b16 %v2031
      %v2072 = vunpack.c.l.b16 %v2032
      %v2073 = vunpack.c.l.b16 %v2033
      %v2074 = vunpack.c.l.b16 %v2034
      %v2075 = vunpack.c.l.b16 %v2035
      %v2076 = vunpack.c.l.b16 %v2036
      %v2077 = vunpack.c.l.b16 %v2037
      %v2078 = vunpack.c.l.b16 %v2038
      %v2079 = vunpack.c.l.b16 %v2039
      %v2080 = vpack.c.b16 %v2065, %v2064
      %v2081 = vpack.c.b16 %v2067, %v2066
      %v2082 = vpack.c.b16 %v2069, %v2068
      %v2083 = vpack.c.b16 %v2071, %v2070
      %v2084 = vpack.c.b16 %v2073, %v2072
      %v2085 = vpack.c.b16 %v2075, %v2074
      %v2086 = vpack.c.b16 %v2077, %v2076
      %v2087 = vpack.c.b16 %v2079, %v2078
      %2096 = vmatprep.subr.bf16.mxu0 0
      %2097 = vmatpush1.bf16.msra.mxu0 %v2080
      %2098 = vmatprep.subr.bf16.mxu0 0
      %2099 = vmatpush1.bf16.msra.mxu0 %v2081
      %2100 = vmatprep.subr.bf16.mxu0 0
      %2101 = vmatpush1.bf16.msra.mxu0 %v2082
      %2102 = vmatprep.subr.bf16.mxu0 0
      %2103 = vmatpush1.bf16.msra.mxu0 %v2083
      %2104 = vmatprep.subr.bf16.mxu0 0
      %2105 = vmatpush1.bf16.msra.mxu0 %v2084
      %2106 = vmatprep.subr.bf16.mxu0 0
      %2107 = vmatpush1.bf16.msra.mxu0 %v2085
      %2108 = vmatprep.subr.bf16.mxu0 0
      %2109 = vmatpush1.bf16.msra.mxu0 %v2086
      %2110 = vmatprep.subr.bf16.mxu0 0
      %2111 = vmatpush1.bf16.msra.mxu0 %v2087
      %2112 = vmatprep.subr.bf16.mxu0 0
      %2113 = vmatpush1.bf16.msra.mxu0 0
      %2114 = vmatprep.subr.bf16.mxu0 0
      %2115 = vmatpush1.bf16.msra.mxu0 0
      %2116 = vmatprep.subr.bf16.mxu0 0
      %2117 = vmatpush1.bf16.msra.mxu0 0
      %2118 = vmatprep.subr.bf16.mxu0 0
      %2119 = vmatpush1.bf16.msra.mxu0 0
      %2120 = vmatprep.subr.bf16.mxu0 0
      %2121 = vmatpush1.bf16.msra.mxu0 0
      %2122 = vmatprep.subr.bf16.mxu0 0
      %2123 = vmatpush1.bf16.msra.mxu0 0
      %2124 = vmatprep.subr.bf16.mxu0 0
      %2125 = vmatpush1.bf16.msra.mxu0 0
      %2126 = vmatprep.subr.bf16.mxu0 0
      %2127 = vmatpush1.bf16.msra.mxu0 0
      %2128 = vmatprep.mubr.bf16.mxu0 0
      %2129 = vmatmul.mubr.bf16.gmra.mrb[0].mxu0 %v427
      %v2130 = vpop.f32.mrb[0].mxu0
      %v2131 = vadd.f32 %v2046, %v2130
      %v2132 = vpop.f32.mrb[0].mxu0
      %v2133 = vpop.f32.mrb[0].mxu0
      %v2134 = vpop.f32.mrb[0].mxu0
      %2135 = vdwg.mxu0
      %s2136 = scalar_lea.vmem %s6, 192
      %v2137 = vld [vmem:[%s2136] sm:$0xf]
      %v2138 = vld [vmem:[%s2136 + $0x4] sm:$0xf]
      %v2139 = vld [vmem:[%s2136 + $0x8] sm:$0xf]
      %v2140 = vld [vmem:[%s2136 + $0xc] sm:$0xf]
      %v2141 = vld [vmem:[%s2136 + $0x10] sm:$0xf]
      %v2142 = vld [vmem:[%s2136 + $0x14] sm:$0xf]
      %v2143 = vld [vmem:[%s2136 + $0x18] sm:$0xf]
      %v2144 = vld [vmem:[%s2136 + $0x1c] sm:$0xf]
      %v2145 = vld [vmem:[%s2136 + $0x20] sm:$0xf]
      %v2146 = vld [vmem:[%s2136 + $0x24] sm:$0xf]
      %v2147 = vld [vmem:[%s2136 + $0x28] sm:$0xf]
      %v2148 = vld [vmem:[%s2136 + $0x2c] sm:$0xf]
      %v2149 = vld [vmem:[%s2136 + $0x30] sm:$0xf]
      %v2150 = vld [vmem:[%s2136 + $0x34] sm:$0xf]
      %v2151 = vld [vmem:[%s2136 + $0x38] sm:$0xf]
      %v2152 = vld [vmem:[%s2136 + $0x3c] sm:$0xf]
      %s2153 = scalar_lea.vmem %s7, 3
      %v2154 = vld [vmem:[%s2153] sm:$0x1]
      %v2156 = vlaneseq
      %v2157 = vshrl.u32 %v2156, 7
      %v2158 = vsub.s32 0, %v2157
      %v2159 = vrot.slane %v2154, %v2158
      %v2177 = vunpack.c.l.b16 %v2137
      %v2178 = vunpack.c.l.b16 %v2138
      %v2179 = vunpack.c.l.b16 %v2139
      %v2180 = vunpack.c.l.b16 %v2140
      %v2181 = vunpack.c.l.b16 %v2141
      %v2182 = vunpack.c.l.b16 %v2142
      %v2183 = vunpack.c.l.b16 %v2143
      %v2184 = vunpack.c.l.b16 %v2144
      %v2185 = vunpack.c.l.b16 %v2145
      %v2186 = vunpack.c.l.b16 %v2146
      %v2187 = vunpack.c.l.b16 %v2147
      %v2188 = vunpack.c.l.b16 %v2148
      %v2189 = vunpack.c.l.b16 %v2149
      %v2190 = vunpack.c.l.b16 %v2150
      %v2191 = vunpack.c.l.b16 %v2151
      %v2192 = vunpack.c.l.b16 %v2152
      %v2193 = vpack.c.b16 %v2178, %v2177
      %v2194 = vpack.c.b16 %v2180, %v2179
      %v2195 = vpack.c.b16 %v2182, %v2181
      %v2196 = vpack.c.b16 %v2184, %v2183
      %v2197 = vpack.c.b16 %v2186, %v2185
      %v2198 = vpack.c.b16 %v2188, %v2187
      %v2199 = vpack.c.b16 %v2190, %v2189
      %v2200 = vpack.c.b16 %v2192, %v2191
      %2209 = vmatprep.subr.bf16.mxu0 0
      %2210 = vmatpush1.bf16.msra.mxu0 %v2193
      %2211 = vmatprep.subr.bf16.mxu0 0
      %2212 = vmatpush1.bf16.msra.mxu0 %v2194
      %2213 = vmatprep.subr.bf16.mxu0 0
      %2214 = vmatpush1.bf16.msra.mxu0 %v2195
      %2215 = vmatprep.subr.bf16.mxu0 0
      %2216 = vmatpush1.bf16.msra.mxu0 %v2196
      %2217 = vmatprep.subr.bf16.mxu0 0
      %2218 = vmatpush1.bf16.msra.mxu0 %v2197
      %2219 = vmatprep.subr.bf16.mxu0 0
      %2220 = vmatpush1.bf16.msra.mxu0 %v2198
      %2221 = vmatprep.subr.bf16.mxu0 0
      %2222 = vmatpush1.bf16.msra.mxu0 %v2199
      %2223 = vmatprep.subr.bf16.mxu0 0
      %2224 = vmatpush1.bf16.msra.mxu0 %v2200
      %2225 = vmatprep.subr.bf16.mxu0 0
      %2226 = vmatpush1.bf16.msra.mxu0 0
      %2227 = vmatprep.subr.bf16.mxu0 0
      %2228 = vmatpush1.bf16.msra.mxu0 0
      %2229 = vmatprep.subr.bf16.mxu0 0
      %2230 = vmatpush1.bf16.msra.mxu0 0
      %2231 = vmatprep.subr.bf16.mxu0 0
      %2232 = vmatpush1.bf16.msra.mxu0 0
      %2233 = vmatprep.subr.bf16.mxu0 0
      %2234 = vmatpush1.bf16.msra.mxu0 0
      %2235 = vmatprep.subr.bf16.mxu0 0
      %2236 = vmatpush1.bf16.msra.mxu0 0
      %2237 = vmatprep.subr.bf16.mxu0 0
      %2238 = vmatpush1.bf16.msra.mxu0 0
      %2239 = vmatprep.subr.bf16.mxu0 0
      %2240 = vmatpush1.bf16.msra.mxu0 0
      %2241 = vmatprep.mubr.bf16.mxu0 0
      %2242 = vmatmul.mubr.bf16.gmra.mrb[0].mxu0 %v427
      %v2243 = vpop.f32.mrb[0].mxu0
      %v2244 = vadd.f32 %v2159, %v2243
      %v2245 = vpop.f32.mrb[0].mxu0
      %v2246 = vpop.f32.mrb[0].mxu0
      %v2247 = vpop.f32.mrb[0].mxu0
      %2248 = vdwg.mxu0
      %v2249 = vpack.c.bf16 %v2018, %v2018
      %v2250 = vpack.c.bf16 %v2131, %v2131
      %v2252 = vsel %vm764, %v2249, 0
      %v2255 = vsel %vm764, %v2250, 0
      %2257 = vmatprep.subr.bf16.mxu0 0
      %2258 = vmatpush1.bf16.xpose.msra.mxu0 %v2255
      %2259 = vmatprep.subr.bf16.mxu0 0
      %2260 = vmatpush1.bf16.xpose.msra.mxu0 0
      %2261 = vmatprep.subr.bf16.mxu0 0
      %2262 = vmatpush1.bf16.xpose.msra.mxu0 0
      %2263 = vmatprep.subr.bf16.mxu0 0
      %2264 = vmatpush1.bf16.xpose.msra.mxu0 0
      %2265 = vmatprep.subr.bf16.mxu0 0
      %2266 = vmatpush1.bf16.xpose.msra.mxu0 0
      %2267 = vmatprep.subr.bf16.mxu0 0
      %2268 = vmatpush1.bf16.xpose.msra.mxu0 0
      %2269 = vmatprep.subr.bf16.mxu0 0
      %2270 = vmatpush1.bf16.xpose.msra.mxu0 0
      %2271 = vmatprep.subr.bf16.mxu0 0
      %2272 = vmatpush1.bf16.xpose.msra.mxu0 0
      %2273 = vmatprep.subr.bf16.mxu0 0
      %2274 = vmatpush1.bf16.xpose.msra.mxu0 0
      %2275 = vmatprep.subr.bf16.mxu0 0
      %2276 = vmatpush1.bf16.xpose.msra.mxu0 0
      %2277 = vmatprep.subr.bf16.mxu0 0
      %2278 = vmatpush1.bf16.xpose.msra.mxu0 0
      %2279 = vmatprep.subr.bf16.mxu0 0
      %2280 = vmatpush1.bf16.xpose.msra.mxu0 0
      %2281 = vmatprep.subr.bf16.mxu0 0
      %2282 = vmatpush1.bf16.xpose.msra.mxu0 0
      %2283 = vmatprep.subr.bf16.mxu0 0
      %2284 = vmatpush1.bf16.xpose.msra.mxu0 0
      %2285 = vmatprep.subr.bf16.mxu0 0
      %2286 = vmatpush1.bf16.xpose.msra.mxu0 0
      %2287 = vmatprep.subr.bf16.mxu0 0
      %2288 = vmatpush1.bf16.xpose.msra.mxu0 0
      %2289 = vmatprep.mubr.bf16.mxu0 0
      %2290 = vmatmul.mubr.bf16.gmra.mrb[0].mxu0 %v2252
      %v2291 = vpop.f32.mrb[0].mxu0
      %v2292 = vadd.f32 %v428, %v2291
      %v2293 = vpop.f32.mrb[0].mxu0
      %v2294 = vpop.f32.mrb[0].mxu0
      %v2295 = vpop.f32.mrb[0].mxu0
      %2296 = vdwg.mxu0
      %v2297 = vsel %vm764, %v2292, -inf
      %2298 = vmax.xlane.f32.xlu0 %v2297
      %v2299 = vpop.xlane.xlu0 %2298
      %v2300 = vsub.f32 %v2292, %v2299
      %v2301 = vmul.f32 %v2300, 1.442695
      %v2302 = vpow.pop %v2301
      %v2303 = vsel %vm764, %v2302, 0.0
      %2304 = vadd.xlane.f32.xlu0 %v2303
      %v2305 = vpop.xlane.xlu0 %2304
      %v2306 = vrcp.pop %v2305
      %v2307 = vmul.f32 %v2302, %v2306
      %v2308 = vpack.c.bf16 %v2307, %v2307
      %v2309 = vpack.c.bf16 %v2244, %v2244
      %v2311 = vsel %vm764, %v2308, 0
      %v2314 = vsel %vm827, %v2309, 0
      %2316 = vmatprep.subr.bf16.mxu0 0
      %2317 = vmatpush1.bf16.msra.mxu0 %v2314
      %2318 = vmatprep.subr.bf16.mxu0 0
      %2319 = vmatpush1.bf16.msra.mxu0 0
      %2320 = vmatprep.subr.bf16.mxu0 0
      %2321 = vmatpush1.bf16.msra.mxu0 0
      %2322 = vmatprep.subr.bf16.mxu0 0
      %2323 = vmatpush1.bf16.msra.mxu0 0
      %2324 = vmatprep.subr.bf16.mxu0 0
      %2325 = vmatpush1.bf16.msra.mxu0 0
      %2326 = vmatprep.subr.bf16.mxu0 0
      %2327 = vmatpush1.bf16.msra.mxu0 0
      %2328 = vmatprep.subr.bf16.mxu0 0
      %2329 = vmatpush1.bf16.msra.mxu0 0
      %2330 = vmatprep.subr.bf16.mxu0 0
      %2331 = vmatpush1.bf16.msra.mxu0 0
      %2332 = vmatprep.subr.bf16.mxu0 0
      %2333 = vmatpush1.bf16.msra.mxu0 0
      %2334 = vmatprep.subr.bf16.mxu0 0
      %2335 = vmatpush1.bf16.msra.mxu0 0
      %2336 = vmatprep.subr.bf16.mxu0 0
      %2337 = vmatpush1.bf16.msra.mxu0 0
      %2338 = vmatprep.subr.bf16.mxu0 0
      %2339 = vmatpush1.bf16.msra.mxu0 0
      %2340 = vmatprep.subr.bf16.mxu0 0
      %2341 = vmatpush1.bf16.msra.mxu0 0
      %2342 = vmatprep.subr.bf16.mxu0 0
      %2343 = vmatpush1.bf16.msra.mxu0 0
      %2344 = vmatprep.subr.bf16.mxu0 0
      %2345 = vmatpush1.bf16.msra.mxu0 0
      %2346 = vmatprep.subr.bf16.mxu0 0
      %2347 = vmatpush1.bf16.msra.mxu0 0
      %2348 = vmatprep.mubr.bf16.mxu0 0
      %2349 = vmatmul.mubr.bf16.gmra.mrb[0].mxu0 %v2311
      %v2350 = vpop.f32.mrb[0].mxu0
      %v2351 = vadd.f32 0.0, %v2350
      %v2352 = vpop.f32.mrb[0].mxu0
      %v2353 = vpop.f32.mrb[0].mxu0
      %v2354 = vpop.f32.mrb[0].mxu0
      %2355 = vdwg.mxu0
      %v2356 = vpack.c.bf16 %v2351, %v2351
      %s2357 = scalar_lea.vmem %s8, 12
      %v2358 = vld [vmem:[%s2357] sm:$0xf]
      %v2360 = vsel %vm764, %v2356, 0
      %v2363 = vsel %vm827, %v2358, 0
      %2365 = vmatprep.subr.bf16.mxu0 0
      %2366 = vmatpush1.bf16.msra.mxu0 %v2363
      %2367 = vmatprep.subr.bf16.mxu0 0
      %2368 = vmatpush1.bf16.msra.mxu0 0
      %2369 = vmatprep.subr.bf16.mxu0 0
      %2370 = vmatpush1.bf16.msra.mxu0 0
      %2371 = vmatprep.subr.bf16.mxu0 0
      %2372 = vmatpush1.bf16.msra.mxu0 0
      %2373 = vmatprep.subr.bf16.mxu0 0
      %2374 = vmatpush1.bf16.msra.mxu0 0
      %2375 = vmatprep.subr.bf16.mxu0 0
      %2376 = vmatpush1.bf16.msra.mxu0 0
      %2377 = vmatprep.subr.bf16.mxu0 0
      %2378 = vmatpush1.bf16.msra.mxu0 0
      %2379 = vmatprep.subr.bf16.mxu0 0
      %2380 = vmatpush1.bf16.msra.mxu0 0
      %2381 = vmatprep.subr.bf16.mxu0 0
      %2382 = vmatpush1.bf16.msra.mxu0 0
      %2383 = vmatprep.subr.bf16.mxu0 0
      %2384 = vmatpush1.bf16.msra.mxu0 0
      %2385 = vmatprep.subr.bf16.mxu0 0
      %2386 = vmatpush1.bf16.msra.mxu0 0
      %2387 = vmatprep.subr.bf16.mxu0 0
      %2388 = vmatpush1.bf16.msra.mxu0 0
      %2389 = vmatprep.subr.bf16.mxu0 0
      %2390 = vmatpush1.bf16.msra.mxu0 0
      %2391 = vmatprep.subr.bf16.mxu0 0
      %2392 = vmatpush1.bf16.msra.mxu0 0
      %2393 = vmatprep.subr.bf16.mxu0 0
      %2394 = vmatpush1.bf16.msra.mxu0 0
      %2395 = vmatprep.subr.bf16.mxu0 0
      %2396 = vmatpush1.bf16.msra.mxu0 0
      %2397 = vmatprep.mubr.bf16.mxu0 0
      %2398 = vmatmul.mubr.bf16.gmra.mrb[0].mxu0 %v2360
      %v2399 = vpop.f32.mrb[0].mxu0
      %v2400 = vadd.f32 0.0, %v2399
      %v2401 = vpop.f32.mrb[0].mxu0
      %v2402 = vpop.f32.mrb[0].mxu0
      %v2403 = vpop.f32.mrb[0].mxu0
      %2404 = vdwg.mxu0
      %v2405 = vadd.f32 %v1909, %v2400
      %v2406 = vld [vmem:[%s9] sm:$0x1]
      %v2408 = vlaneseq
      %v2409 = vshrl.u32 %v2408, 7
      %v2410 = vsub.s32 0, %v2409
      %v2411 = vrot.slane %v2406, %v2410
      %v2413 = vadd.f32 %v2405, %v2411
      %v2414 = vunpack.c.l.bf16 %v427
      %v2415 = vadd.f32 %v2414, %v2413
      %v2416 = vld [vmem:[%s10] sm:$0x1]
      %v2417 = vld [vmem:[%s11] sm:$0x1]
      %2418 = vadd.xlane.f32.xlu0 %v2415
      %v2419 = vpop.xlane.xlu0 %2418
      %v2420 = vmul.f32 %v2415, %v2415
      %2421 = vadd.xlane.f32.xlu0 %v2420
      %v2422 = vpop.xlane.xlu0 %2421
      %v2423 = vmul.f32 %v2419, 0.03125
      %v2424 = vmul.f32 %v2423, 32.0
      %v2425 = vmul.f32 %v2424, %v2423
      %v2426 = vsub.f32 %v2422, %v2425
      %v2427 = vmul.f32 %v2426, 0.032258064
      %v2428 = vmax.f32 %v2427, 0.0
      %v2429 = vrsqrt.pop %v2428
      %v2430 = vmul.f32 %v2428, %v2429
      %vm2431 = vcmp.eq.f32.partialorder %v2428, inf
      %v2432 = vsel %vm2431, %v2428, %v2430
      %vm2433 = vcmp.eq.f32.partialorder %v2428, 0.0
      %v2434 = vand.u32 %v2428, 2147483648
      %v2435 = vsel %vm2433, %v2434, %v2432
      %v2436 = vadd.f32 %v2435, 1e-06
      %v2437 = vrcp.pop %v2436
      %v2438 = vsub.f32 %v2415, %v2423
      %v2440 = vlaneseq
      %v2441 = vshrl.u32 %v2440, 7
      %v2442 = vsub.s32 0, %v2441
      %v2443 = vrot.slane %v2416, %v2442
      %v2445 = vmul.f32 %v2443, %v2438
      %v2446 = vmul.f32 %v2445, %v2437
      %v2448 = vlaneseq
      %v2449 = vshrl.u32 %v2448, 7
      %v2450 = vsub.s32 0, %v2449
      %v2451 = vrot.slane %v2417, %v2450
      %v2453 = vadd.f32 %v2446, %v2451
      %v2454 = vpack.c.bf16 %v2453, %v2453
      %2455 = vst [vmem:[%s425] sm:$0xf] %v2454
      %p2456 = scmp.lt.s32.totalorder %s23, 1
      %s2457 = scalar_select %p2456, %s23, 1
      %s2458 = smul.addr %s2457, 4
      %s2459 = scalar_lea.vmem %s12, %s2458
      // Predicated region
      $region69: #{transformer_fwd.18} parent=67 // pred_check
        %p2460 = pneg %p303
      $region70: #{transformer_fwd.18} parent=67 // pred_check_branch
        %2462 = sbr.rel (%p2460) target = $region72
      $region71: #{transformer_fwd.18} parent=67 // pred_region
        _
      $region72: #{transformer_fwd.18} parent=67 // pred_fallthru
        _
    $region68: #{transformer_fwd.18} parent=5 // pred_fallthru
      _
    %p2463 = scmp.le.s32.totalorder 2, %s18
    // Predicated region
    $region73: #{transformer_fwd.18} parent=5 // pred_check
      %p2464 = pneg %p2463
    $region74: #{transformer_fwd.18} parent=5 // pred_check_branch
      %2466 = sbr.rel (%p2464) target = $region76
    $region75: #{transformer_fwd.18} parent=5 // pred_region
      %s2467 = ssub.s32 %s18, 2
      // Predicated region
      $region77: #{transformer_fwd.18} parent=75 // pred_check
        %p2468 = pneg %p309
      $region78: #{transformer_fwd.18} parent=75 // pred_check_branch
        %2470 = sbr.rel (%p2468) target = $region80
      $region79: #{transformer_fwd.18} parent=75 // pred_region
        %p2471 = scmp.lt.s32.totalorder %s24, 1
        %s2472 = scalar_select %p2471, %s24, 1
        %s2473 = smul.addr %s2472, 4
        %s2474 = scalar_lea.vmem %s12, %s2473
      $region80: #{transformer_fwd.18} parent=75 // pred_fallthru
        _
    $region76: #{transformer_fwd.18} parent=5 // pred_fallthru
      _
  $region6: #{transformer_fwd.18} parent=0 // loop_footer
    %s22 = sadd.s32 1, %s18
  $region7: #{transformer_fwd.18} parent=0 // loop_footer_branch
    %17 = sbr.rel target = $region3
  $region8: #{transformer_fwd.18} parent=0 // loop_exit
    _

// kernel: transformer_fwd.19
$region0: #{transformer_fwd.19}
  #allocation0 [shape = 'u32[]', space=smem, size = 0x4, offset = 0x4, fixed_abs, tag = 'smem constant byte address 0x4 - core index']
  #allocation1 [shape = 'u32[144,128]{1,0:T(1,128)}', space=vmem, size = 0x12000, scoped, tag = 'internal scratch']
  %s0 = inlined_call_operand.vmem [shape: bf16[2,8,128], index: 0, kind: input, shape index: {}]
  %s1 = inlined_call_operand.vmem [shape: bf16[2,8,128], index: 1, kind: input, shape index: {}]
  %s2 = inlined_call_operand.vmem [shape: f32[2,1,8], index: 2, kind: input, shape index: {}]
  %s3 = inlined_call_operand.vmem [shape: bf16[4,128,8], index: 3, kind: input, shape index: {}]
  %s4 = inlined_call_operand.vmem [shape: f32[4,1,8], index: 4, kind: input, shape index: {}]
  %s5 = inlined_call_operand.vmem [shape: bf16[4,128,8], index: 5, kind: input, shape index: {}]
  %s6 = inlined_call_operand.vmem [shape: f32[4,1,8], index: 6, kind: input, shape index: {}]
  %s7 = inlined_call_operand.vmem [shape: bf16[4,128,8], index: 7, kind: input, shape index: {}]
  %s8 = inlined_call_operand.vmem [shape: f32[4,1,8], index: 8, kind: input, shape index: {}]
  %s9 = inlined_call_operand.vmem [shape: bf16[4,8,128], index: 9, kind: input, shape index: {}]
  %s10 = inlined_call_operand.vmem [shape: f32[1,128], index: 10, kind: input, shape index: {}]
  %s11 = inlined_call_operand.vmem [shape: f32[1,128], index: 11, kind: input, shape index: {}]
  %s12 = inlined_call_operand.vmem [shape: f32[1,128], index: 12, kind: input, shape index: {}]
  %s13 = inlined_call_operand.vmem [shape: bf16[2,8,128], index: 13, kind: output, shape index: {}]
  %s14 = sld [smem:[#allocation0]]
  $region85: #{transformer_fwd.19} parent=0
    _
  %s16 = ssub.s32 1, %s14
  %s17 = scalar_select 0, %s16, %s14
  loop: start=0, step=1, limit=4
  $region2: #{transformer_fwd.19} parent=0 // loop_pre_header
    _
  $region3: #{transformer_fwd.19} parent=0 // loop_header
    %s19 = sphi 0, %s23
    %p20 = scmp.ge.s32.totalorder %s19, 4
    %s29 = sphi 0, %s31
    %s32 = sphi 0, %s29
    %s33 = sphi 0, %s32
    %s49 = sphi 0, %s33
    %s55 = sphi 0, %s57
    %s58 = sphi 0, %s55
    %s59 = sphi 0, %s58
    %s75 = sphi 0, %s59
    %s81 = sphi 0, %s83
    %s84 = sphi 0, %s81
    %s85 = sphi 0, %s84
    %s101 = sphi 0, %s85
    %s105 = sphi 0, %s105
    %s107 = sphi 0, %s105
    %s108 = sphi 0, %s107
    %s122 = sphi 0, %s108
    %s126 = sphi 0, %s126
    %s128 = sphi 0, %s126
    %s129 = sphi 0, %s128
    %s143 = sphi 0, %s129
    %s147 = sphi 0, %s147
    %s149 = sphi 0, %s147
    %s150 = sphi 0, %s149
    %s164 = sphi 0, %s150
    %s168 = sphi 0, %s168
    %s170 = sphi 0, %s168
    %s171 = sphi 0, %s170
    %s185 = sphi 0, %s171
    %s189 = sphi 0, %s189
    %s191 = sphi 0, %s189
    %s192 = sphi 0, %s191
    %s206 = sphi 0, %s192
    %s210 = sphi 0, %s210
    %s212 = sphi 0, %s210
    %s213 = sphi 0, %s212
    %s227 = sphi 0, %s213
    %s231 = sphi 0, %s231
    %s233 = sphi 0, %s231
    %s234 = sphi 0, %s233
    %s248 = sphi 0, %s234
    %s252 = sphi 0, %s252
    %s254 = sphi 0, %s252
    %s255 = sphi 0, %s254
    %s269 = sphi 0, %s255
    %s273 = sphi 0, %s273
    %s275 = sphi 0, %s273
    %s276 = sphi 0, %s275
    %s290 = sphi 0, %s276
    %s294 = sphi 0, %s294
    %s296 = sphi 0, %s294
    %s297 = sphi 0, %s296
    %s311 = sphi 0, %s297
    %s317 = sphi 0, %s319
    %s320 = sphi 0, %s317
    %s321 = sphi 0, %s320
    %s337 = sphi 0, %s321
  $region4: #{transformer_fwd.19} parent=0 // loop_header_branch
    %22 = sbr.rel (%p20) target = $region8
  $region5: #{transformer_fwd.19} parent=0 // loop_body
    %s24 = ssub.s32 %s19, 1
    %s25 = ssub.s32 %s19, 2
    %s26 = sadd.s32 %s19, 1
    %s27 = ssub.s32 %s19, %s26
    %p28 = scmp.eq.s32.totalorder %s27, 0
    %s30 = sadd.s32 %s29, 1
    %s31 = scalar_select %p28, %s29, %s30
    %p34 = pneg %p28
    %p35 = scmp.eq.s32.totalorder %s19, 1
    %p36 = por %p34, %p35
    %p37 = scmp.ne.s32.totalorder %s29, %s32
    %p38 = scmp.eq.s32.totalorder %s19, 0
    %p39 = por %p37, %p38
    %p40 = scmp.ne.s32.totalorder %s29, %s32
    %p41 = scmp.eq.s32.totalorder %s24, 1
    %p42 = por %p40, %p41
    %p43 = scmp.ne.s32.totalorder %s32, %s33
    %p44 = scmp.eq.s32.totalorder %s24, 0
    %p45 = por %p43, %p44
    %p46 = scmp.ne.s32.totalorder %s32, %s33
    %p47 = scmp.eq.s32.totalorder %s25, 1
    %p48 = por %p46, %p47
    %p50 = scmp.ne.s32.totalorder %s33, %s49
    %p51 = scmp.eq.s32.totalorder %s25, 0
    %p52 = por %p50, %p51
    %s53 = ssub.s32 %s19, %s26
    %p54 = scmp.eq.s32.totalorder %s53, 0
    %s56 = sadd.s32 %s55, 1
    %s57 = scalar_select %p54, %s55, %s56
    %p60 = pneg %p54
    %p61 = scmp.eq.s32.totalorder %s19, 1
    %p62 = por %p60, %p61
    %p63 = scmp.ne.s32.totalorder %s55, %s58
    %p64 = scmp.eq.s32.totalorder %s19, 0
    %p65 = por %p63, %p64
    %p66 = scmp.ne.s32.totalorder %s55, %s58
    %p67 = scmp.eq.s32.totalorder %s24, 1
    %p68 = por %p66, %p67
    %p69 = scmp.ne.s32.totalorder %s58, %s59
    %p70 = scmp.eq.s32.totalorder %s24, 0
    %p71 = por %p69, %p70
    %p72 = scmp.ne.s32.totalorder %s58, %s59
    %p73 = scmp.eq.s32.totalorder %s25, 1
    %p74 = por %p72, %p73
    %p76 = scmp.ne.s32.totalorder %s59, %s75
    %p77 = scmp.eq.s32.totalorder %s25, 0
    %p78 = por %p76, %p77
    %s79 = ssub.s32 %s19, %s26
    %p80 = scmp.eq.s32.totalorder %s79, 0
    %s82 = sadd.s32 %s81, 1
    %s83 = scalar_select %p80, %s81, %s82
    %p86 = pneg %p80
    %p87 = scmp.eq.s32.totalorder %s19, 1
    %p88 = por %p86, %p87
    %p89 = scmp.ne.s32.totalorder %s81, %s84
    %p90 = scmp.eq.s32.totalorder %s19, 0
    %p91 = por %p89, %p90
    %p92 = scmp.ne.s32.totalorder %s81, %s84
    %p93 = scmp.eq.s32.totalorder %s24, 1
    %p94 = por %p92, %p93
    %p95 = scmp.ne.s32.totalorder %s84, %s85
    %p96 = scmp.eq.s32.totalorder %s24, 0
    %p97 = por %p95, %p96
    %p98 = scmp.ne.s32.totalorder %s84, %s85
    %p99 = scmp.eq.s32.totalorder %s25, 1
    %p100 = por %p98, %p99
    %p102 = scmp.ne.s32.totalorder %s85, %s101
    %p103 = scmp.eq.s32.totalorder %s25, 0
    %p104 = por %p102, %p103
    %s106 = sadd.s32 %s105, 1
    %p109 = scmp.eq.s32.totalorder %s19, 1
    %p110 = scmp.ne.s32.totalorder %s105, %s107
    %p111 = scmp.eq.s32.totalorder %s19, 0
    %p112 = por %p110, %p111
    %p113 = scmp.ne.s32.totalorder %s105, %s107
    %p114 = scmp.eq.s32.totalorder %s24, 1
    %p115 = por %p113, %p114
    %p116 = scmp.ne.s32.totalorder %s107, %s108
    %p117 = scmp.eq.s32.totalorder %s24, 0
    %p118 = por %p116, %p117
    %p119 = scmp.ne.s32.totalorder %s107, %s108
    %p120 = scmp.eq.s32.totalorder %s25, 1
    %p121 = por %p119, %p120
    %p123 = scmp.ne.s32.totalorder %s108, %s122
    %p124 = scmp.eq.s32.totalorder %s25, 0
    %p125 = por %p123, %p124
    %s127 = sadd.s32 %s126, 1
    %p130 = scmp.eq.s32.totalorder %s19, 1
    %p131 = scmp.ne.s32.totalorder %s126, %s128
    %p132 = scmp.eq.s32.totalorder %s19, 0
    %p133 = por %p131, %p132
    %p134 = scmp.ne.s32.totalorder %s126, %s128
    %p135 = scmp.eq.s32.totalorder %s24, 1
    %p136 = por %p134, %p135
    %p137 = scmp.ne.s32.totalorder %s128, %s129
    %p138 = scmp.eq.s32.totalorder %s24, 0
    %p139 = por %p137, %p138
    %p140 = scmp.ne.s32.totalorder %s128, %s129
    %p141 = scmp.eq.s32.totalorder %s25, 1
    %p142 = por %p140, %p141
    %p144 = scmp.ne.s32.totalorder %s129, %s143
    %p145 = scmp.eq.s32.totalorder %s25, 0
    %p146 = por %p144, %p145
    %s148 = sadd.s32 %s147, 1
    %p151 = scmp.eq.s32.totalorder %s19, 1
    %p152 = scmp.ne.s32.totalorder %s147, %s149
    %p153 = scmp.eq.s32.totalorder %s19, 0
    %p154 = por %p152, %p153
    %p155 = scmp.ne.s32.totalorder %s147, %s149
    %p156 = scmp.eq.s32.totalorder %s24, 1
    %p157 = por %p155, %p156
    %p158 = scmp.ne.s32.totalorder %s149, %s150
    %p159 = scmp.eq.s32.totalorder %s24, 0
    %p160 = por %p158, %p159
    %p161 = scmp.ne.s32.totalorder %s149, %s150
    %p162 = scmp.eq.s32.totalorder %s25, 1
    %p163 = por %p161, %p162
    %p165 = scmp.ne.s32.totalorder %s150, %s164
    %p166 = scmp.eq.s32.totalorder %s25, 0
    %p167 = por %p165, %p166
    %s169 = sadd.s32 %s168, 1
    %p172 = scmp.eq.s32.totalorder %s19, 1
    %p173 = scmp.ne.s32.totalorder %s168, %s170
    %p174 = scmp.eq.s32.totalorder %s19, 0
    %p175 = por %p173, %p174
    %p176 = scmp.ne.s32.totalorder %s168, %s170
    %p177 = scmp.eq.s32.totalorder %s24, 1
    %p178 = por %p176, %p177
    %p179 = scmp.ne.s32.totalorder %s170, %s171
    %p180 = scmp.eq.s32.totalorder %s24, 0
    %p181 = por %p179, %p180
    %p182 = scmp.ne.s32.totalorder %s170, %s171
    %p183 = scmp.eq.s32.totalorder %s25, 1
    %p184 = por %p182, %p183
    %p186 = scmp.ne.s32.totalorder %s171, %s185
    %p187 = scmp.eq.s32.totalorder %s25, 0
    %p188 = por %p186, %p187
    %s190 = sadd.s32 %s189, 1
    %p193 = scmp.eq.s32.totalorder %s19, 1
    %p194 = scmp.ne.s32.totalorder %s189, %s191
    %p195 = scmp.eq.s32.totalorder %s19, 0
    %p196 = por %p194, %p195
    %p197 = scmp.ne.s32.totalorder %s189, %s191
    %p198 = scmp.eq.s32.totalorder %s24, 1
    %p199 = por %p197, %p198
    %p200 = scmp.ne.s32.totalorder %s191, %s192
    %p201 = scmp.eq.s32.totalorder %s24, 0
    %p202 = por %p200, %p201
    %p203 = scmp.ne.s32.totalorder %s191, %s192
    %p204 = scmp.eq.s32.totalorder %s25, 1
    %p205 = por %p203, %p204
    %p207 = scmp.ne.s32.totalorder %s192, %s206
    %p208 = scmp.eq.s32.totalorder %s25, 0
    %p209 = por %p207, %p208
    %s211 = sadd.s32 %s210, 1
    %p214 = scmp.eq.s32.totalorder %s19, 1
    %p215 = scmp.ne.s32.totalorder %s210, %s212
    %p216 = scmp.eq.s32.totalorder %s19, 0
    %p217 = por %p215, %p216
    %p218 = scmp.ne.s32.totalorder %s210, %s212
    %p219 = scmp.eq.s32.totalorder %s24, 1
    %p220 = por %p218, %p219
    %p221 = scmp.ne.s32.totalorder %s212, %s213
    %p222 = scmp.eq.s32.totalorder %s24, 0
    %p223 = por %p221, %p222
    %p224 = scmp.ne.s32.totalorder %s212, %s213
    %p225 = scmp.eq.s32.totalorder %s25, 1
    %p226 = por %p224, %p225
    %p228 = scmp.ne.s32.totalorder %s213, %s227
    %p229 = scmp.eq.s32.totalorder %s25, 0
    %p230 = por %p228, %p229
    %s232 = sadd.s32 %s231, 1
    %p235 = scmp.eq.s32.totalorder %s19, 1
    %p236 = scmp.ne.s32.totalorder %s231, %s233
    %p237 = scmp.eq.s32.totalorder %s19, 0
    %p238 = por %p236, %p237
    %p239 = scmp.ne.s32.totalorder %s231, %s233
    %p240 = scmp.eq.s32.totalorder %s24, 1
    %p241 = por %p239, %p240
    %p242 = scmp.ne.s32.totalorder %s233, %s234
    %p243 = scmp.eq.s32.totalorder %s24, 0
    %p244 = por %p242, %p243
    %p245 = scmp.ne.s32.totalorder %s233, %s234
    %p246 = scmp.eq.s32.totalorder %s25, 1
    %p247 = por %p245, %p246
    %p249 = scmp.ne.s32.totalorder %s234, %s248
    %p250 = scmp.eq.s32.totalorder %s25, 0
    %p251 = por %p249, %p250
    %s253 = sadd.s32 %s252, 1
    %p256 = scmp.eq.s32.totalorder %s19, 1
    %p257 = scmp.ne.s32.totalorder %s252, %s254
    %p258 = scmp.eq.s32.totalorder %s19, 0
    %p259 = por %p257, %p258
    %p260 = scmp.ne.s32.totalorder %s252, %s254
    %p261 = scmp.eq.s32.totalorder %s24, 1
    %p262 = por %p260, %p261
    %p263 = scmp.ne.s32.totalorder %s254, %s255
    %p264 = scmp.eq.s32.totalorder %s24, 0
    %p265 = por %p263, %p264
    %p266 = scmp.ne.s32.totalorder %s254, %s255
    %p267 = scmp.eq.s32.totalorder %s25, 1
    %p268 = por %p266, %p267
    %p270 = scmp.ne.s32.totalorder %s255, %s269
    %p271 = scmp.eq.s32.totalorder %s25, 0
    %p272 = por %p270, %p271
    %s274 = sadd.s32 %s273, 1
    %p277 = scmp.eq.s32.totalorder %s19, 1
    %p278 = scmp.ne.s32.totalorder %s273, %s275
    %p279 = scmp.eq.s32.totalorder %s19, 0
    %p280 = por %p278, %p279
    %p281 = scmp.ne.s32.totalorder %s273, %s275
    %p282 = scmp.eq.s32.totalorder %s24, 1
    %p283 = por %p281, %p282
    %p284 = scmp.ne.s32.totalorder %s275, %s276
    %p285 = scmp.eq.s32.totalorder %s24, 0
    %p286 = por %p284, %p285
    %p287 = scmp.ne.s32.totalorder %s275, %s276
    %p288 = scmp.eq.s32.totalorder %s25, 1
    %p289 = por %p287, %p288
    %p291 = scmp.ne.s32.totalorder %s276, %s290
    %p292 = scmp.eq.s32.totalorder %s25, 0
    %p293 = por %p291, %p292
    %s295 = sadd.s32 %s294, 1
    %p298 = scmp.eq.s32.totalorder %s19, 1
    %p299 = scmp.ne.s32.totalorder %s294, %s296
    %p300 = scmp.eq.s32.totalorder %s19, 0
    %p301 = por %p299, %p300
    %p302 = scmp.ne.s32.totalorder %s294, %s296
    %p303 = scmp.eq.s32.totalorder %s24, 1
    %p304 = por %p302, %p303
    %p305 = scmp.ne.s32.totalorder %s296, %s297
    %p306 = scmp.eq.s32.totalorder %s24, 0
    %p307 = por %p305, %p306
    %p308 = scmp.ne.s32.totalorder %s296, %s297
    %p309 = scmp.eq.s32.totalorder %s25, 1
    %p310 = por %p308, %p309
    %p312 = scmp.ne.s32.totalorder %s297, %s311
    %p313 = scmp.eq.s32.totalorder %s25, 0
    %p314 = por %p312, %p313
    %s315 = ssub.s32 %s19, %s26
    %p316 = scmp.eq.s32.totalorder %s315, 0
    %s318 = sadd.s32 %s317, 1
    %s319 = scalar_select %p316, %s317, %s318
    %p322 = pneg %p316
    %p323 = scmp.eq.s32.totalorder %s19, 1
    %p324 = por %p322, %p323
    %p325 = scmp.ne.s32.totalorder %s317, %s320
    %p326 = scmp.eq.s32.totalorder %s19, 0
    %p327 = por %p325, %p326
    %p328 = scmp.ne.s32.totalorder %s317, %s320
    %p329 = scmp.eq.s32.totalorder %s24, 1
    %p330 = por %p328, %p329
    %p331 = scmp.ne.s32.totalorder %s320, %s321
    %p332 = scmp.eq.s32.totalorder %s24, 0
    %p333 = por %p331, %p332
    %p334 = scmp.ne.s32.totalorder %s320, %s321
    %p335 = scmp.eq.s32.totalorder %s25, 1
    %p336 = por %p334, %p335
    %p338 = scmp.ne.s32.totalorder %s321, %s337
    %p339 = scmp.eq.s32.totalorder %s25, 0
    %p340 = por %p338, %p339
    %p341 = scmp.le.s32.totalorder 1, %s19
    %p342 = scmp.lt.s32.totalorder %s19, 3
    %p343 = pnand %p341, %p342
    %p344 = pneg %p343
    // Predicated region
    $region9: #{transformer_fwd.19} parent=5 // pred_check
      _
    $region10: #{transformer_fwd.19} parent=5 // pred_check_branch
      %346 = sbr.rel (%p343) target = $region12
    $region11: #{transformer_fwd.19} parent=5 // pred_region
      %s347 = ssub.s32 %s19, 1
      // Predicated region
      $region13: #{transformer_fwd.19} parent=11 // pred_check
        %p348 = pneg %p118
      $region14: #{transformer_fwd.19} parent=11 // pred_check_branch
        %350 = sbr.rel (%p348) target = $region16
      $region15: #{transformer_fwd.19} parent=11 // pred_region
        _
      $region16: #{transformer_fwd.19} parent=11 // pred_fallthru
        _
      // Predicated region
      $region17: #{transformer_fwd.19} parent=11 // pred_check
        %p351 = pneg %p139
      $region18: #{transformer_fwd.19} parent=11 // pred_check_branch
        %353 = sbr.rel (%p351) target = $region20
      $region19: #{transformer_fwd.19} parent=11 // pred_region
        _
      $region20: #{transformer_fwd.19} parent=11 // pred_fallthru
        _
      // Predicated region
      $region21: #{transformer_fwd.19} parent=11 // pred_check
        %p354 = pneg %p160
      $region22: #{transformer_fwd.19} parent=11 // pred_check_branch
        %356 = sbr.rel (%p354) target = $region24
      $region23: #{transformer_fwd.19} parent=11 // pred_region
        _
      $region24: #{transformer_fwd.19} parent=11 // pred_fallthru
        _
      // Predicated region
      $region25: #{transformer_fwd.19} parent=11 // pred_check
        %p357 = pneg %p181
      $region26: #{transformer_fwd.19} parent=11 // pred_check_branch
        %359 = sbr.rel (%p357) target = $region28
      $region27: #{transformer_fwd.19} parent=11 // pred_region
        _
      $region28: #{transformer_fwd.19} parent=11 // pred_fallthru
        _
      // Predicated region
      $region29: #{transformer_fwd.19} parent=11 // pred_check
        %p360 = pneg %p202
      $region30: #{transformer_fwd.19} parent=11 // pred_check_branch
        %362 = sbr.rel (%p360) target = $region32
      $region31: #{transformer_fwd.19} parent=11 // pred_region
        _
      $region32: #{transformer_fwd.19} parent=11 // pred_fallthru
        _
      // Predicated region
      $region33: #{transformer_fwd.19} parent=11 // pred_check
        %p363 = pneg %p223
      $region34: #{transformer_fwd.19} parent=11 // pred_check_branch
        %365 = sbr.rel (%p363) target = $region36
      $region35: #{transformer_fwd.19} parent=11 // pred_region
        _
      $region36: #{transformer_fwd.19} parent=11 // pred_fallthru
        _
      // Predicated region
      $region37: #{transformer_fwd.19} parent=11 // pred_check
        %p366 = pneg %p244
      $region38: #{transformer_fwd.19} parent=11 // pred_check_branch
        %368 = sbr.rel (%p366) target = $region40
      $region39: #{transformer_fwd.19} parent=11 // pred_region
        _
      $region40: #{transformer_fwd.19} parent=11 // pred_fallthru
        _
      // Predicated region
      $region41: #{transformer_fwd.19} parent=11 // pred_check
        %p369 = pneg %p265
      $region42: #{transformer_fwd.19} parent=11 // pred_check_branch
        %371 = sbr.rel (%p369) target = $region44
      $region43: #{transformer_fwd.19} parent=11 // pred_region
        _
      $region44: #{transformer_fwd.19} parent=11 // pred_fallthru
        _
      // Predicated region
      $region45: #{transformer_fwd.19} parent=11 // pred_check
        %p372 = pneg %p286
      $region46: #{transformer_fwd.19} parent=11 // pred_check_branch
        %374 = sbr.rel (%p372) target = $region48
      $region47: #{transformer_fwd.19} parent=11 // pred_region
        _
      $region48: #{transformer_fwd.19} parent=11 // pred_fallthru
        _
      // Predicated region
      $region49: #{transformer_fwd.19} parent=11 // pred_check
        %p375 = pneg %p307
      $region50: #{transformer_fwd.19} parent=11 // pred_check_branch
        %377 = sbr.rel (%p375) target = $region52
      $region51: #{transformer_fwd.19} parent=11 // pred_region
        _
      $region52: #{transformer_fwd.19} parent=11 // pred_fallthru
        _
    $region12: #{transformer_fwd.19} parent=5 // pred_fallthru
      _
    %p378 = scmp.lt.s32.totalorder %s19, 2
    // Predicated region
    $region53: #{transformer_fwd.19} parent=5 // pred_check
      %p379 = pneg %p378
    $region54: #{transformer_fwd.19} parent=5 // pred_check_branch
      %381 = sbr.rel (%p379) target = $region56
    $region55: #{transformer_fwd.19} parent=5 // pred_region
      // Predicated region
      $region57: #{transformer_fwd.19} parent=55 // pred_check
        %p382 = pneg %p39
      $region58: #{transformer_fwd.19} parent=55 // pred_check_branch
        %384 = sbr.rel (%p382) target = $region60
      $region59: #{transformer_fwd.19} parent=55 // pred_region
        %p385 = scmp.lt.s32.totalorder %s19, 1
        %s386 = scalar_select %p385, %s19, 1
        %s387 = smul.addr %s386, 4
        %s388 = scalar_lea.vmem %s0, %s387
      $region60: #{transformer_fwd.19} parent=55 // pred_fallthru
        _
      // Predicated region
      $region61: #{transformer_fwd.19} parent=55 // pred_check
        %p389 = pneg %p65
      $region62: #{transformer_fwd.19} parent=55 // pred_check_branch
        %391 = sbr.rel (%p389) target = $region64
      $region63: #{transformer_fwd.19} parent=55 // pred_region
        %p392 = scmp.lt.s32.totalorder %s19, 1
        %s393 = scalar_select %p392, %s19, 1
        %s394 = smul.addr %s393, 4
        %s395 = scalar_lea.vmem %s1, %s394
      $region64: #{transformer_fwd.19} parent=55 // pred_fallthru
        _
      // Predicated region
      $region65: #{transformer_fwd.19} parent=55 // pred_check
        %p396 = pneg %p91
      $region66: #{transformer_fwd.19} parent=55 // pred_check_branch
        %398 = sbr.rel (%p396) target = $region68
      $region67: #{transformer_fwd.19} parent=55 // pred_region
        %p399 = scmp.lt.s32.totalorder %s19, 1
        %s400 = scalar_select %p399, %s19, 1
        %s401 = scalar_lea.vmem %s2, %s400
      $region68: #{transformer_fwd.19} parent=55 // pred_fallthru
        _
    $region56: #{transformer_fwd.19} parent=5 // pred_fallthru
      _
    %p402 = scmp.le.s32.totalorder 1, %s19
    %p403 = scmp.lt.s32.totalorder %s19, 3
    %p404 = pnand %p402, %p403
    %p405 = pneg %p404
    // Predicated region
    $region69: #{transformer_fwd.19} parent=5 // pred_check
      _
    $region70: #{transformer_fwd.19} parent=5 // pred_check_branch
      %407 = sbr.rel (%p404) target = $region72
    $region71: #{transformer_fwd.19} parent=5 // pred_region
      %s408 = ssub.s32 %s19, 1
      %p409 = scmp.lt.s32.totalorder %s24, 1
      %s410 = scalar_select %p409, %s24, 1
      %s411 = smul.addr %s410, 4
      %s412 = scalar_lea.vmem %s0, %s411
      %p413 = pneg %p45
      %p414 = pneg %p42
      %p415 = scmp.lt.s32.totalorder %s24, 1
      %s416 = scalar_select %p415, %s24, 1
      %s417 = smul.addr %s416, 4
      %s418 = scalar_lea.vmem %s1, %s417
      %p419 = pneg %p71
      %p420 = pneg %p68
      %p421 = scmp.lt.s32.totalorder %s24, 1
      %s422 = scalar_select %p421, %s24, 1
      %s423 = scalar_lea.vmem %s2, %s422
      %p424 = pneg %p97
      %p425 = pneg %p94
      %p426 = pneg %p118
      %p427 = pneg %p115
      %p428 = pneg %p139
      %p429 = pneg %p136
      %p430 = pneg %p160
      %p431 = pneg %p157
      %p432 = pneg %p181
      %p433 = pneg %p178
      %p434 = pneg %p202
      %p435 = pneg %p199
      %p436 = pneg %p223
      %p437 = pneg %p220
      %p438 = pneg %p244
      %p439 = pneg %p241
      %p440 = pneg %p265
      %p441 = pneg %p262
      %p442 = pneg %p286
      %p443 = pneg %p283
      %p444 = pneg %p307
      %p445 = pneg %p304
      %p446 = pneg %p333
      %p447 = pneg %p330
      %p448 = scmp.lt.s32.totalorder %s24, 1
      %s449 = scalar_select %p448, %s24, 1
      %s450 = smul.addr %s449, 4
      %s451 = scalar_lea.vmem %s13, %s450
      %p452 = scmp.lt.s32.totalorder %s24, 1
      %s453 = scalar_select %p452, %s24, 1
      %s454 = smul.addr %s453, 4
      %s455 = scalar_lea.vmem %s0, %s454
      %p456 = scmp.lt.s32.totalorder %s24, 1
      %s457 = scalar_select %p456, %s24, 1
      %s458 = smul.addr %s457, 4
      %s459 = scalar_lea.vmem %s1, %s458
      %p460 = scmp.lt.s32.totalorder %s24, 1
      %s461 = scalar_select %p460, %s24, 1
      %s462 = scalar_lea.vmem %s2, %s461
      %p463 = scmp.lt.s32.totalorder %s24, 1
      %s464 = scalar_select %p463, %s24, 1
      %s465 = smul.addr %s464, 4
      %s466 = scalar_lea.vmem %s13, %s465
      %v468 = vld [vmem:[%s455] sm:$0xf]
      %v469 = vld [vmem:[%s459] sm:$0xf]
      %v470 = vld [vmem:[%s462] sm:$0x1]
      %v471 = vld [vmem:[%s3] sm:$0xf]
      %v472 = vld [vmem:[%s3 + $0x4] sm:$0xf]
      %v473 = vld [vmem:[%s3 + $0x8] sm:$0xf]
      %v474 = vld [vmem:[%s3 + $0xc] sm:$0xf]
      %v475 = vld [vmem:[%s3 + $0x10] sm:$0xf]
      %v476 = vld [vmem:[%s3 + $0x14] sm:$0xf]
      %v477 = vld [vmem:[%s3 + $0x18] sm:$0xf]
      %v478 = vld [vmem:[%s3 + $0x1c] sm:$0xf]
      %v479 = vld [vmem:[%s3 + $0x20] sm:$0xf]
      %v480 = vld [vmem:[%s3 + $0x24] sm:$0xf]
      %v481 = vld [vmem:[%s3 + $0x28] sm:$0xf]
      %v482 = vld [vmem:[%s3 + $0x2c] sm:$0xf]
      %v483 = vld [vmem:[%s3 + $0x30] sm:$0xf]
      %v484 = vld [vmem:[%s3 + $0x34] sm:$0xf]
      %v485 = vld [vmem:[%s3 + $0x38] sm:$0xf]
      %v486 = vld [vmem:[%s3 + $0x3c] sm:$0xf]
      %v487 = vld [vmem:[%s4] sm:$0x1]
      %v489 = vlaneseq
      %v490 = vshrl.u32 %v489, 7
      %v491 = vsub.s32 0, %v490
      %v492 = vrot.slane %v487, %v491
      %v510 = vunpack.c.l.b16 %v471
      %v511 = vunpack.c.l.b16 %v472
      %v512 = vunpack.c.l.b16 %v473
      %v513 = vunpack.c.l.b16 %v474
      %v514 = vunpack.c.l.b16 %v475
      %v515 = vunpack.c.l.b16 %v476
      %v516 = vunpack.c.l.b16 %v477
      %v517 = vunpack.c.l.b16 %v478
      %v518 = vunpack.c.l.b16 %v479
      %v519 = vunpack.c.l.b16 %v480
      %v520 = vunpack.c.l.b16 %v481
      %v521 = vunpack.c.l.b16 %v482
      %v522 = vunpack.c.l.b16 %v483
      %v523 = vunpack.c.l.b16 %v484
      %v524 = vunpack.c.l.b16 %v485
      %v525 = vunpack.c.l.b16 %v486
      %v526 = vpack.c.b16 %v511, %v510
      %v527 = vpack.c.b16 %v513, %v512
      %v528 = vpack.c.b16 %v515, %v514
      %v529 = vpack.c.b16 %v517, %v516
      %v530 = vpack.c.b16 %v519, %v518
      %v531 = vpack.c.b16 %v521, %v520
      %v532 = vpack.c.b16 %v523, %v522
      %v533 = vpack.c.b16 %v525, %v524
      %542 = vmatprep.subr.bf16.mxu0 0
      %543 = vmatpush1.bf16.msra.mxu0 %v526
      %544 = vmatprep.subr.bf16.mxu0 0
      %545 = vmatpush1.bf16.msra.mxu0 %v527
      %546 = vmatprep.subr.bf16.mxu0 0
      %547 = vmatpush1.bf16.msra.mxu0 %v528
      %548 = vmatprep.subr.bf16.mxu0 0
      %549 = vmatpush1.bf16.msra.mxu0 %v529
      %550 = vmatprep.subr.bf16.mxu0 0
      %551 = vmatpush1.bf16.msra.mxu0 %v530
      %552 = vmatprep.subr.bf16.mxu0 0
      %553 = vmatpush1.bf16.msra.mxu0 %v531
      %554 = vmatprep.subr.bf16.mxu0 0
      %555 = vmatpush1.bf16.msra.mxu0 %v532
      %556 = vmatprep.subr.bf16.mxu0 0
      %557 = vmatpush1.bf16.msra.mxu0 %v533
      %558 = vmatprep.subr.bf16.mxu0 0
      %559 = vmatpush1.bf16.msra.mxu0 0
      %560 = vmatprep.subr.bf16.mxu0 0
      %561 = vmatpush1.bf16.msra.mxu0 0
      %562 = vmatprep.subr.bf16.mxu0 0
      %563 = vmatpush1.bf16.msra.mxu0 0
      %564 = vmatprep.subr.bf16.mxu0 0
      %565 = vmatpush1.bf16.msra.mxu0 0
      %566 = vmatprep.subr.bf16.mxu0 0
      %567 = vmatpush1.bf16.msra.mxu0 0
      %568 = vmatprep.subr.bf16.mxu0 0
      %569 = vmatpush1.bf16.msra.mxu0 0
      %570 = vmatprep.subr.bf16.mxu0 0
      %571 = vmatpush1.bf16.msra.mxu0 0
      %572 = vmatprep.subr.bf16.mxu0 0
      %573 = vmatpush1.bf16.msra.mxu0 0
      %574 = vmatprep.mubr.bf16.mxu0 0
      %575 = vmatmul.mubr.bf16.gmra.mrb[0].mxu0 %v468
      %v576 = vpop.f32.mrb[0].mxu0
      %v577 = vadd.f32 %v492, %v576
      %v578 = vpop.f32.mrb[0].mxu0
      %v579 = vpop.f32.mrb[0].mxu0
      %v580 = vpop.f32.mrb[0].mxu0
      %581 = vdwg.mxu0
      %v582 = vld [vmem:[%s5] sm:$0xf]
      %v583 = vld [vmem:[%s5 + $0x4] sm:$0xf]
      %v584 = vld [vmem:[%s5 + $0x8] sm:$0xf]
      %v585 = vld [vmem:[%s5 + $0xc] sm:$0xf]
      %v586 = vld [vmem:[%s5 + $0x10] sm:$0xf]
      %v587 = vld [vmem:[%s5 + $0x14] sm:$0xf]
      %v588 = vld [vmem:[%s5 + $0x18] sm:$0xf]
      %v589 = vld [vmem:[%s5 + $0x1c] sm:$0xf]
      %v590 = vld [vmem:[%s5 + $0x20] sm:$0xf]
      %v591 = vld [vmem:[%s5 + $0x24] sm:$0xf]
      %v592 = vld [vmem:[%s5 + $0x28] sm:$0xf]
      %v593 = vld [vmem:[%s5 + $0x2c] sm:$0xf]
      %v594 = vld [vmem:[%s5 + $0x30] sm:$0xf]
      %v595 = vld [vmem:[%s5 + $0x34] sm:$0xf]
      %v596 = vld [vmem:[%s5 + $0x38] sm:$0xf]
      %v597 = vld [vmem:[%s5 + $0x3c] sm:$0xf]
      %v598 = vld [vmem:[%s6] sm:$0x1]
      %v600 = vlaneseq
      %v601 = vshrl.u32 %v600, 7
      %v602 = vsub.s32 0, %v601
      %v603 = vrot.slane %v598, %v602
      %v621 = vunpack.c.l.b16 %v582
      %v622 = vunpack.c.l.b16 %v583
      %v623 = vunpack.c.l.b16 %v584
      %v624 = vunpack.c.l.b16 %v585
      %v625 = vunpack.c.l.b16 %v586
      %v626 = vunpack.c.l.b16 %v587
      %v627 = vunpack.c.l.b16 %v588
      %v628 = vunpack.c.l.b16 %v589
      %v629 = vunpack.c.l.b16 %v590
      %v630 = vunpack.c.l.b16 %v591
      %v631 = vunpack.c.l.b16 %v592
      %v632 = vunpack.c.l.b16 %v593
      %v633 = vunpack.c.l.b16 %v594
      %v634 = vunpack.c.l.b16 %v595
      %v635 = vunpack.c.l.b16 %v596
      %v636 = vunpack.c.l.b16 %v597
      %v637 = vpack.c.b16 %v622, %v621
      %v638 = vpack.c.b16 %v624, %v623
      %v639 = vpack.c.b16 %v626, %v625
      %v640 = vpack.c.b16 %v628, %v627
      %v641 = vpack.c.b16 %v630, %v629
      %v642 = vpack.c.b16 %v632, %v631
      %v643 = vpack.c.b16 %v634, %v633
      %v644 = vpack.c.b16 %v636, %v635
      %653 = vmatprep.subr.bf16.mxu0 0
      %654 = vmatpush1.bf16.msra.mxu0 %v637
      %655 = vmatprep.subr.bf16.mxu0 0
      %656 = vmatpush1.bf16.msra.mxu0 %v638
      %657 = vmatprep.subr.bf16.mxu0 0
      %658 = vmatpush1.bf16.msra.mxu0 %v639
      %659 = vmatprep.subr.bf16.mxu0 0
      %660 = vmatpush1.bf16.msra.mxu0 %v640
      %661 = vmatprep.subr.bf16.mxu0 0
      %662 = vmatpush1.bf16.msra.mxu0 %v641
      %663 = vmatprep.subr.bf16.mxu0 0
      %664 = vmatpush1.bf16.msra.mxu0 %v642
      %665 = vmatprep.subr.bf16.mxu0 0
      %666 = vmatpush1.bf16.msra.mxu0 %v643
      %667 = vmatprep.subr.bf16.mxu0 0
      %668 = vmatpush1.bf16.msra.mxu0 %v644
      %669 = vmatprep.subr.bf16.mxu0 0
      %670 = vmatpush1.bf16.msra.mxu0 0
      %671 = vmatprep.subr.bf16.mxu0 0
      %672 = vmatpush1.bf16.msra.mxu0 0
      %673 = vmatprep.subr.bf16.mxu0 0
      %674 = vmatpush1.bf16.msra.mxu0 0
      %675 = vmatprep.subr.bf16.mxu0 0
      %676 = vmatpush1.bf16.msra.mxu0 0
      %677 = vmatprep.subr.bf16.mxu0 0
      %678 = vmatpush1.bf16.msra.mxu0 0
      %679 = vmatprep.subr.bf16.mxu0 0
      %680 = vmatpush1.bf16.msra.mxu0 0
      %681 = vmatprep.subr.bf16.mxu0 0
      %682 = vmatpush1.bf16.msra.mxu0 0
      %683 = vmatprep.subr.bf16.mxu0 0
      %684 = vmatpush1.bf16.msra.mxu0 0
      %685 = vmatprep.mubr.bf16.mxu0 0
      %686 = vmatmul.mubr.bf16.gmra.mrb[0].mxu0 %v469
      %v687 = vpop.f32.mrb[0].mxu0
      %v688 = vadd.f32 %v603, %v687
      %v689 = vpop.f32.mrb[0].mxu0
      %v690 = vpop.f32.mrb[0].mxu0
      %v691 = vpop.f32.mrb[0].mxu0
      %692 = vdwg.mxu0
      %v693 = vld [vmem:[%s7] sm:$0xf]
      %v694 = vld [vmem:[%s7 + $0x4] sm:$0xf]
      %v695 = vld [vmem:[%s7 + $0x8] sm:$0xf]
      %v696 = vld [vmem:[%s7 + $0xc] sm:$0xf]
      %v697 = vld [vmem:[%s7 + $0x10] sm:$0xf]
      %v698 = vld [vmem:[%s7 + $0x14] sm:$0xf]
      %v699 = vld [vmem:[%s7 + $0x18] sm:$0xf]
      %v700 = vld [vmem:[%s7 + $0x1c] sm:$0xf]
      %v701 = vld [vmem:[%s7 + $0x20] sm:$0xf]
      %v702 = vld [vmem:[%s7 + $0x24] sm:$0xf]
      %v703 = vld [vmem:[%s7 + $0x28] sm:$0xf]
      %v704 = vld [vmem:[%s7 + $0x2c] sm:$0xf]
      %v705 = vld [vmem:[%s7 + $0x30] sm:$0xf]
      %v706 = vld [vmem:[%s7 + $0x34] sm:$0xf]
      %v707 = vld [vmem:[%s7 + $0x38] sm:$0xf]
      %v708 = vld [vmem:[%s7 + $0x3c] sm:$0xf]
      %v709 = vld [vmem:[%s8] sm:$0x1]
      %v711 = vlaneseq
      %v712 = vshrl.u32 %v711, 7
      %v713 = vsub.s32 0, %v712
      %v714 = vrot.slane %v709, %v713
      %v732 = vunpack.c.l.b16 %v693
      %v733 = vunpack.c.l.b16 %v694
      %v734 = vunpack.c.l.b16 %v695
      %v735 = vunpack.c.l.b16 %v696
      %v736 = vunpack.c.l.b16 %v697
      %v737 = vunpack.c.l.b16 %v698
      %v738 = vunpack.c.l.b16 %v699
      %v739 = vunpack.c.l.b16 %v700
      %v740 = vunpack.c.l.b16 %v701
      %v741 = vunpack.c.l.b16 %v702
      %v742 = vunpack.c.l.b16 %v703
      %v743 = vunpack.c.l.b16 %v704
      %v744 = vunpack.c.l.b16 %v705
      %v745 = vunpack.c.l.b16 %v706
      %v746 = vunpack.c.l.b16 %v707
      %v747 = vunpack.c.l.b16 %v708
      %v748 = vpack.c.b16 %v733, %v732
      %v749 = vpack.c.b16 %v735, %v734
      %v750 = vpack.c.b16 %v737, %v736
      %v751 = vpack.c.b16 %v739, %v738
      %v752 = vpack.c.b16 %v741, %v740
      %v753 = vpack.c.b16 %v743, %v742
      %v754 = vpack.c.b16 %v745, %v744
      %v755 = vpack.c.b16 %v747, %v746
      %764 = vmatprep.subr.bf16.mxu0 0
      %765 = vmatpush1.bf16.msra.mxu0 %v748
      %766 = vmatprep.subr.bf16.mxu0 0
      %767 = vmatpush1.bf16.msra.mxu0 %v749
      %768 = vmatprep.subr.bf16.mxu0 0
      %769 = vmatpush1.bf16.msra.mxu0 %v750
      %770 = vmatprep.subr.bf16.mxu0 0
      %771 = vmatpush1.bf16.msra.mxu0 %v751
      %772 = vmatprep.subr.bf16.mxu0 0
      %773 = vmatpush1.bf16.msra.mxu0 %v752
      %774 = vmatprep.subr.bf16.mxu0 0
      %775 = vmatpush1.bf16.msra.mxu0 %v753
      %776 = vmatprep.subr.bf16.mxu0 0
      %777 = vmatpush1.bf16.msra.mxu0 %v754
      %778 = vmatprep.subr.bf16.mxu0 0
      %779 = vmatpush1.bf16.msra.mxu0 %v755
      %780 = vmatprep.subr.bf16.mxu0 0
      %781 = vmatpush1.bf16.msra.mxu0 0
      %782 = vmatprep.subr.bf16.mxu0 0
      %783 = vmatpush1.bf16.msra.mxu0 0
      %784 = vmatprep.subr.bf16.mxu0 0
      %785 = vmatpush1.bf16.msra.mxu0 0
      %786 = vmatprep.subr.bf16.mxu0 0
      %787 = vmatpush1.bf16.msra.mxu0 0
      %788 = vmatprep.subr.bf16.mxu0 0
      %789 = vmatpush1.bf16.msra.mxu0 0
      %790 = vmatprep.subr.bf16.mxu0 0
      %791 = vmatpush1.bf16.msra.mxu0 0
      %792 = vmatprep.subr.bf16.mxu0 0
      %793 = vmatpush1.bf16.msra.mxu0 0
      %794 = vmatprep.subr.bf16.mxu0 0
      %795 = vmatpush1.bf16.msra.mxu0 0
      %796 = vmatprep.mubr.bf16.mxu0 0
      %797 = vmatmul.mubr.bf16.gmra.mrb[0].mxu0 %v469
      %v798 = vpop.f32.mrb[0].mxu0
      %v799 = vadd.f32 %v714, %v798
      %v800 = vpop.f32.mrb[0].mxu0
      %v801 = vpop.f32.mrb[0].mxu0
      %v802 = vpop.f32.mrb[0].mxu0
      %803 = vdwg.mxu0
      %v804 = vpack.c.bf16 %v577, %v577
      %v805 = vpack.c.bf16 %v688, %v688
      %v807 = vlaneseq
      %v808 = vshrl.u32 %v807, 7
      %v809 = vsub.s32 0, %v808
      %v810 = vrot.slane %v470, %v809
      %vm812 = vcmask 64512
      %v814 = vsel %vm812, %v804, 0
      %v817 = vsel %vm812, %v805, 0
      %819 = vmatprep.subr.bf16.mxu0 0
      %820 = vmatpush1.bf16.xpose.msra.mxu0 %v817
      %821 = vmatprep.subr.bf16.mxu0 0
      %822 = vmatpush1.bf16.xpose.msra.mxu0 0
      %823 = vmatprep.subr.bf16.mxu0 0
      %824 = vmatpush1.bf16.xpose.msra.mxu0 0
      %825 = vmatprep.subr.bf16.mxu0 0
      %826 = vmatpush1.bf16.xpose.msra.mxu0 0
      %827 = vmatprep.subr.bf16.mxu0 0
      %828 = vmatpush1.bf16.xpose.msra.mxu0 0
      %829 = vmatprep.subr.bf16.mxu0 0
      %830 = vmatpush1.bf16.xpose.msra.mxu0 0
      %831 = vmatprep.subr.bf16.mxu0 0
      %832 = vmatpush1.bf16.xpose.msra.mxu0 0
      %833 = vmatprep.subr.bf16.mxu0 0
      %834 = vmatpush1.bf16.xpose.msra.mxu0 0
      %835 = vmatprep.subr.bf16.mxu0 0
      %836 = vmatpush1.bf16.xpose.msra.mxu0 0
      %837 = vmatprep.subr.bf16.mxu0 0
      %838 = vmatpush1.bf16.xpose.msra.mxu0 0
      %839 = vmatprep.subr.bf16.mxu0 0
      %840 = vmatpush1.bf16.xpose.msra.mxu0 0
      %841 = vmatprep.subr.bf16.mxu0 0
      %842 = vmatpush1.bf16.xpose.msra.mxu0 0
      %843 = vmatprep.subr.bf16.mxu0 0
      %844 = vmatpush1.bf16.xpose.msra.mxu0 0
      %845 = vmatprep.subr.bf16.mxu0 0
      %846 = vmatpush1.bf16.xpose.msra.mxu0 0
      %847 = vmatprep.subr.bf16.mxu0 0
      %848 = vmatpush1.bf16.xpose.msra.mxu0 0
      %849 = vmatprep.subr.bf16.mxu0 0
      %850 = vmatpush1.bf16.xpose.msra.mxu0 0
      %851 = vmatprep.mubr.bf16.mxu0 0
      %852 = vmatmul.mubr.bf16.gmra.mrb[0].mxu0 %v814
      %v853 = vpop.f32.mrb[0].mxu0
      %v854 = vadd.f32 %v810, %v853
      %v855 = vpop.f32.mrb[0].mxu0
      %v856 = vpop.f32.mrb[0].mxu0
      %v857 = vpop.f32.mrb[0].mxu0
      %858 = vdwg.mxu0
      %v859 = vsel %vm812, %v854, -inf
      %860 = vmax.xlane.f32.xlu0 %v859
      %v861 = vpop.xlane.xlu0 %860
      %v862 = vsub.f32 %v854, %v861
      %v863 = vmul.f32 %v862, 1.442695
      %v864 = vpow.pop %v863
      %v865 = vsel %vm812, %v864, 0.0
      %866 = vadd.xlane.f32.xlu0 %v865
      %v867 = vpop.xlane.xlu0 %866
      %v868 = vrcp.pop %v867
      %v869 = vmul.f32 %v864, %v868
      %v870 = vpack.c.bf16 %v869, %v869
      %v871 = vpack.c.bf16 %v799, %v799
      %v873 = vsel %vm812, %v870, 0
      %vm875 = vcmask 1043456
      %v877 = vsel %vm875, %v871, 0
      %879 = vmatprep.subr.bf16.mxu0 0
      %880 = vmatpush1.bf16.msra.mxu0 %v877
      %881 = vmatprep.subr.bf16.mxu0 0
      %882 = vmatpush1.bf16.msra.mxu0 0
      %883 = vmatprep.subr.bf16.mxu0 0
      %884 = vmatpush1.bf16.msra.mxu0 0
      %885 = vmatprep.subr.bf16.mxu0 0
      %886 = vmatpush1.bf16.msra.mxu0 0
      %887 = vmatprep.subr.bf16.mxu0 0
      %888 = vmatpush1.bf16.msra.mxu0 0
      %889 = vmatprep.subr.bf16.mxu0 0
      %890 = vmatpush1.bf16.msra.mxu0 0
      %891 = vmatprep.subr.bf16.mxu0 0
      %892 = vmatpush1.bf16.msra.mxu0 0
      %893 = vmatprep.subr.bf16.mxu0 0
      %894 = vmatpush1.bf16.msra.mxu0 0
      %895 = vmatprep.subr.bf16.mxu0 0
      %896 = vmatpush1.bf16.msra.mxu0 0
      %897 = vmatprep.subr.bf16.mxu0 0
      %898 = vmatpush1.bf16.msra.mxu0 0
      %899 = vmatprep.subr.bf16.mxu0 0
      %900 = vmatpush1.bf16.msra.mxu0 0
      %901 = vmatprep.subr.bf16.mxu0 0
      %902 = vmatpush1.bf16.msra.mxu0 0
      %903 = vmatprep.subr.bf16.mxu0 0
      %904 = vmatpush1.bf16.msra.mxu0 0
      %905 = vmatprep.subr.bf16.mxu0 0
      %906 = vmatpush1.bf16.msra.mxu0 0
      %907 = vmatprep.subr.bf16.mxu0 0
      %908 = vmatpush1.bf16.msra.mxu0 0
      %909 = vmatprep.subr.bf16.mxu0 0
      %910 = vmatpush1.bf16.msra.mxu0 0
      %911 = vmatprep.mubr.bf16.mxu0 0
      %912 = vmatmul.mubr.bf16.gmra.mrb[0].mxu0 %v873
      %v913 = vpop.f32.mrb[0].mxu0
      %v914 = vadd.f32 0.0, %v913
      %v915 = vpop.f32.mrb[0].mxu0
      %v916 = vpop.f32.mrb[0].mxu0
      %v917 = vpop.f32.mrb[0].mxu0
      %918 = vdwg.mxu0
      %v919 = vpack.c.bf16 %v914, %v914
      %v920 = vld [vmem:[%s9] sm:$0xf]
      %s921 = scalar_lea.vmem %s3, 64
      %v922 = vld [vmem:[%s921] sm:$0xf]
      %v923 = vld [vmem:[%s921 + $0x4] sm:$0xf]
      %v924 = vld [vmem:[%s921 + $0x8] sm:$0xf]
      %v925 = vld [vmem:[%s921 + $0xc] sm:$0xf]
      %v926 = vld [vmem:[%s921 + $0x10] sm:$0xf]
      %v927 = vld [vmem:[%s921 + $0x14] sm:$0xf]
      %v928 = vld [vmem:[%s921 + $0x18] sm:$0xf]
      %v929 = vld [vmem:[%s921 + $0x1c] sm:$0xf]
      %v930 = vld [vmem:[%s921 + $0x20] sm:$0xf]
      %v931 = vld [vmem:[%s921 + $0x24] sm:$0xf]
      %v932 = vld [vmem:[%s921 + $0x28] sm:$0xf]
      %v933 = vld [vmem:[%s921 + $0x2c] sm:$0xf]
      %v934 = vld [vmem:[%s921 + $0x30] sm:$0xf]
      %v935 = vld [vmem:[%s921 + $0x34] sm:$0xf]
      %v936 = vld [vmem:[%s921 + $0x38] sm:$0xf]
      %v937 = vld [vmem:[%s921 + $0x3c] sm:$0xf]
      %s938 = scalar_lea.vmem %s4, 1
      %v939 = vld [vmem:[%s938] sm:$0x1]
      %v941 = vlaneseq
      %v942 = vshrl.u32 %v941, 7
      %v943 = vsub.s32 0, %v942
      %v944 = vrot.slane %v939, %v943
      %v962 = vunpack.c.l.b16 %v922
      %v963 = vunpack.c.l.b16 %v923
      %v964 = vunpack.c.l.b16 %v924
      %v965 = vunpack.c.l.b16 %v925
      %v966 = vunpack.c.l.b16 %v926
      %v967 = vunpack.c.l.b16 %v927
      %v968 = vunpack.c.l.b16 %v928
      %v969 = vunpack.c.l.b16 %v929
      %v970 = vunpack.c.l.b16 %v930
      %v971 = vunpack.c.l.b16 %v931
      %v972 = vunpack.c.l.b16 %v932
      %v973 = vunpack.c.l.b16 %v933
      %v974 = vunpack.c.l.b16 %v934
      %v975 = vunpack.c.l.b16 %v935
      %v976 = vunpack.c.l.b16 %v936
      %v977 = vunpack.c.l.b16 %v937
      %v978 = vpack.c.b16 %v963, %v962
      %v979 = vpack.c.b16 %v965, %v964
      %v980 = vpack.c.b16 %v967, %v966
      %v981 = vpack.c.b16 %v969, %v968
      %v982 = vpack.c.b16 %v971, %v970
      %v983 = vpack.c.b16 %v973, %v972
      %v984 = vpack.c.b16 %v975, %v974
      %v985 = vpack.c.b16 %v977, %v976
      %994 = vmatprep.subr.bf16.mxu0 0
      %995 = vmatpush1.bf16.msra.mxu0 %v978
      %996 = vmatprep.subr.bf16.mxu0 0
      %997 = vmatpush1.bf16.msra.mxu0 %v979
      %998 = vmatprep.subr.bf16.mxu0 0
      %999 = vmatpush1.bf16.msra.mxu0 %v980
      %1000 = vmatprep.subr.bf16.mxu0 0
      %1001 = vmatpush1.bf16.msra.mxu0 %v981
      %1002 = vmatprep.subr.bf16.mxu0 0
      %1003 = vmatpush1.bf16.msra.mxu0 %v982
      %1004 = vmatprep.subr.bf16.mxu0 0
      %1005 = vmatpush1.bf16.msra.mxu0 %v983
      %1006 = vmatprep.subr.bf16.mxu0 0
      %1007 = vmatpush1.bf16.msra.mxu0 %v984
      %1008 = vmatprep.subr.bf16.mxu0 0
      %1009 = vmatpush1.bf16.msra.mxu0 %v985
      %1010 = vmatprep.subr.bf16.mxu0 0
      %1011 = vmatpush1.bf16.msra.mxu0 0
      %1012 = vmatprep.subr.bf16.mxu0 0
      %1013 = vmatpush1.bf16.msra.mxu0 0
      %1014 = vmatprep.subr.bf16.mxu0 0
      %1015 = vmatpush1.bf16.msra.mxu0 0
      %1016 = vmatprep.subr.bf16.mxu0 0
      %1017 = vmatpush1.bf16.msra.mxu0 0
      %1018 = vmatprep.subr.bf16.mxu0 0
      %1019 = vmatpush1.bf16.msra.mxu0 0
      %1020 = vmatprep.subr.bf16.mxu0 0
      %1021 = vmatpush1.bf16.msra.mxu0 0
      %1022 = vmatprep.subr.bf16.mxu0 0
      %1023 = vmatpush1.bf16.msra.mxu0 0
      %1024 = vmatprep.subr.bf16.mxu0 0
      %1025 = vmatpush1.bf16.msra.mxu0 0
      %1026 = vmatprep.mubr.bf16.mxu0 0
      %1027 = vmatmul.mubr.bf16.gmra.mrb[0].mxu0 %v468
      %v1028 = vpop.f32.mrb[0].mxu0
      %v1029 = vadd.f32 %v944, %v1028
      %v1030 = vpop.f32.mrb[0].mxu0
      %v1031 = vpop.f32.mrb[0].mxu0
      %v1032 = vpop.f32.mrb[0].mxu0
      %1033 = vdwg.mxu0
      %s1034 = scalar_lea.vmem %s5, 64
      %v1035 = vld [vmem:[%s1034] sm:$0xf]
      %v1036 = vld [vmem:[%s1034 + $0x4] sm:$0xf]
      %v1037 = vld [vmem:[%s1034 + $0x8] sm:$0xf]
      %v1038 = vld [vmem:[%s1034 + $0xc] sm:$0xf]
      %v1039 = vld [vmem:[%s1034 + $0x10] sm:$0xf]
      %v1040 = vld [vmem:[%s1034 + $0x14] sm:$0xf]
      %v1041 = vld [vmem:[%s1034 + $0x18] sm:$0xf]
      %v1042 = vld [vmem:[%s1034 + $0x1c] sm:$0xf]
      %v1043 = vld [vmem:[%s1034 + $0x20] sm:$0xf]
      %v1044 = vld [vmem:[%s1034 + $0x24] sm:$0xf]
      %v1045 = vld [vmem:[%s1034 + $0x28] sm:$0xf]
      %v1046 = vld [vmem:[%s1034 + $0x2c] sm:$0xf]
      %v1047 = vld [vmem:[%s1034 + $0x30] sm:$0xf]
      %v1048 = vld [vmem:[%s1034 + $0x34] sm:$0xf]
      %v1049 = vld [vmem:[%s1034 + $0x38] sm:$0xf]
      %v1050 = vld [vmem:[%s1034 + $0x3c] sm:$0xf]
      %s1051 = scalar_lea.vmem %s6, 1
      %v1052 = vld [vmem:[%s1051] sm:$0x1]
      %v1054 = vlaneseq
      %v1055 = vshrl.u32 %v1054, 7
      %v1056 = vsub.s32 0, %v1055
      %v1057 = vrot.slane %v1052, %v1056
      %v1075 = vunpack.c.l.b16 %v1035
      %v1076 = vunpack.c.l.b16 %v1036
      %v1077 = vunpack.c.l.b16 %v1037
      %v1078 = vunpack.c.l.b16 %v1038
      %v1079 = vunpack.c.l.b16 %v1039
      %v1080 = vunpack.c.l.b16 %v1040
      %v1081 = vunpack.c.l.b16 %v1041
      %v1082 = vunpack.c.l.b16 %v1042
      %v1083 = vunpack.c.l.b16 %v1043
      %v1084 = vunpack.c.l.b16 %v1044
      %v1085 = vunpack.c.l.b16 %v1045
      %v1086 = vunpack.c.l.b16 %v1046
      %v1087 = vunpack.c.l.b16 %v1047
      %v1088 = vunpack.c.l.b16 %v1048
      %v1089 = vunpack.c.l.b16 %v1049
      %v1090 = vunpack.c.l.b16 %v1050
      %v1091 = vpack.c.b16 %v1076, %v1075
      %v1092 = vpack.c.b16 %v1078, %v1077
      %v1093 = vpack.c.b16 %v1080, %v1079
      %v1094 = vpack.c.b16 %v1082, %v1081
      %v1095 = vpack.c.b16 %v1084, %v1083
      %v1096 = vpack.c.b16 %v1086, %v1085
      %v1097 = vpack.c.b16 %v1088, %v1087
      %v1098 = vpack.c.b16 %v1090, %v1089
      %1107 = vmatprep.subr.bf16.mxu0 0
      %1108 = vmatpush1.bf16.msra.mxu0 %v1091
      %1109 = vmatprep.subr.bf16.mxu0 0
      %1110 = vmatpush1.bf16.msra.mxu0 %v1092
      %1111 = vmatprep.subr.bf16.mxu0 0
      %1112 = vmatpush1.bf16.msra.mxu0 %v1093
      %1113 = vmatprep.subr.bf16.mxu0 0
      %1114 = vmatpush1.bf16.msra.mxu0 %v1094
      %1115 = vmatprep.subr.bf16.mxu0 0
      %1116 = vmatpush1.bf16.msra.mxu0 %v1095
      %1117 = vmatprep.subr.bf16.mxu0 0
      %1118 = vmatpush1.bf16.msra.mxu0 %v1096
      %1119 = vmatprep.subr.bf16.mxu0 0
      %1120 = vmatpush1.bf16.msra.mxu0 %v1097
      %1121 = vmatprep.subr.bf16.mxu0 0
      %1122 = vmatpush1.bf16.msra.mxu0 %v1098
      %1123 = vmatprep.subr.bf16.mxu0 0
      %1124 = vmatpush1.bf16.msra.mxu0 0
      %1125 = vmatprep.subr.bf16.mxu0 0
      %1126 = vmatpush1.bf16.msra.mxu0 0
      %1127 = vmatprep.subr.bf16.mxu0 0
      %1128 = vmatpush1.bf16.msra.mxu0 0
      %1129 = vmatprep.subr.bf16.mxu0 0
      %1130 = vmatpush1.bf16.msra.mxu0 0
      %1131 = vmatprep.subr.bf16.mxu0 0
      %1132 = vmatpush1.bf16.msra.mxu0 0
      %1133 = vmatprep.subr.bf16.mxu0 0
      %1134 = vmatpush1.bf16.msra.mxu0 0
      %1135 = vmatprep.subr.bf16.mxu0 0
      %1136 = vmatpush1.bf16.msra.mxu0 0
      %1137 = vmatprep.subr.bf16.mxu0 0
      %1138 = vmatpush1.bf16.msra.mxu0 0
      %1139 = vmatprep.mubr.bf16.mxu0 0
      %1140 = vmatmul.mubr.bf16.gmra.mrb[0].mxu0 %v469
      %v1141 = vpop.f32.mrb[0].mxu0
      %v1142 = vadd.f32 %v1057, %v1141
      %v1143 = vpop.f32.mrb[0].mxu0
      %v1144 = vpop.f32.mrb[0].mxu0
      %v1145 = vpop.f32.mrb[0].mxu0
      %1146 = vdwg.mxu0
      %s1147 = scalar_lea.vmem %s7, 64
      %v1148 = vld [vmem:[%s1147] sm:$0xf]
      %v1149 = vld [vmem:[%s1147 + $0x4] sm:$0xf]
      %v1150 = vld [vmem:[%s1147 + $0x8] sm:$0xf]
      %v1151 = vld [vmem:[%s1147 + $0xc] sm:$0xf]
      %v1152 = vld [vmem:[%s1147 + $0x10] sm:$0xf]
      %v1153 = vld [vmem:[%s1147 + $0x14] sm:$0xf]
      %v1154 = vld [vmem:[%s1147 + $0x18] sm:$0xf]
      %v1155 = vld [vmem:[%s1147 + $0x1c] sm:$0xf]
      %v1156 = vld [vmem:[%s1147 + $0x20] sm:$0xf]
      %v1157 = vld [vmem:[%s1147 + $0x24] sm:$0xf]
      %v1158 = vld [vmem:[%s1147 + $0x28] sm:$0xf]
      %v1159 = vld [vmem:[%s1147 + $0x2c] sm:$0xf]
      %v1160 = vld [vmem:[%s1147 + $0x30] sm:$0xf]
      %v1161 = vld [vmem:[%s1147 + $0x34] sm:$0xf]
      %v1162 = vld [vmem:[%s1147 + $0x38] sm:$0xf]
      %v1163 = vld [vmem:[%s1147 + $0x3c] sm:$0xf]
      %s1164 = scalar_lea.vmem %s8, 1
      %v1165 = vld [vmem:[%s1164] sm:$0x1]
      %v1167 = vlaneseq
      %v1168 = vshrl.u32 %v1167, 7
      %v1169 = vsub.s32 0, %v1168
      %v1170 = vrot.slane %v1165, %v1169
      %v1188 = vunpack.c.l.b16 %v1148
      %v1189 = vunpack.c.l.b16 %v1149
      %v1190 = vunpack.c.l.b16 %v1150
      %v1191 = vunpack.c.l.b16 %v1151
      %v1192 = vunpack.c.l.b16 %v1152
      %v1193 = vunpack.c.l.b16 %v1153
      %v1194 = vunpack.c.l.b16 %v1154
      %v1195 = vunpack.c.l.b16 %v1155
      %v1196 = vunpack.c.l.b16 %v1156
      %v1197 = vunpack.c.l.b16 %v1157
      %v1198 = vunpack.c.l.b16 %v1158
      %v1199 = vunpack.c.l.b16 %v1159
      %v1200 = vunpack.c.l.b16 %v1160
      %v1201 = vunpack.c.l.b16 %v1161
      %v1202 = vunpack.c.l.b16 %v1162
      %v1203 = vunpack.c.l.b16 %v1163
      %v1204 = vpack.c.b16 %v1189, %v1188
      %v1205 = vpack.c.b16 %v1191, %v1190
      %v1206 = vpack.c.b16 %v1193, %v1192
      %v1207 = vpack.c.b16 %v1195, %v1194
      %v1208 = vpack.c.b16 %v1197, %v1196
      %v1209 = vpack.c.b16 %v1199, %v1198
      %v1210 = vpack.c.b16 %v1201, %v1200
      %v1211 = vpack.c.b16 %v1203, %v1202
      %1220 = vmatprep.subr.bf16.mxu0 0
      %1221 = vmatpush1.bf16.msra.mxu0 %v1204
      %1222 = vmatprep.subr.bf16.mxu0 0
      %1223 = vmatpush1.bf16.msra.mxu0 %v1205
      %1224 = vmatprep.subr.bf16.mxu0 0
      %1225 = vmatpush1.bf16.msra.mxu0 %v1206
      %1226 = vmatprep.subr.bf16.mxu0 0
      %1227 = vmatpush1.bf16.msra.mxu0 %v1207
      %1228 = vmatprep.subr.bf16.mxu0 0
      %1229 = vmatpush1.bf16.msra.mxu0 %v1208
      %1230 = vmatprep.subr.bf16.mxu0 0
      %1231 = vmatpush1.bf16.msra.mxu0 %v1209
      %1232 = vmatprep.subr.bf16.mxu0 0
      %1233 = vmatpush1.bf16.msra.mxu0 %v1210
      %1234 = vmatprep.subr.bf16.mxu0 0
      %1235 = vmatpush1.bf16.msra.mxu0 %v1211
      %1236 = vmatprep.subr.bf16.mxu0 0
      %1237 = vmatpush1.bf16.msra.mxu0 0
      %1238 = vmatprep.subr.bf16.mxu0 0
      %1239 = vmatpush1.bf16.msra.mxu0 0
      %1240 = vmatprep.subr.bf16.mxu0 0
      %1241 = vmatpush1.bf16.msra.mxu0 0
      %1242 = vmatprep.subr.bf16.mxu0 0
      %1243 = vmatpush1.bf16.msra.mxu0 0
      %1244 = vmatprep.subr.bf16.mxu0 0
      %1245 = vmatpush1.bf16.msra.mxu0 0
      %1246 = vmatprep.subr.bf16.mxu0 0
      %1247 = vmatpush1.bf16.msra.mxu0 0
      %1248 = vmatprep.subr.bf16.mxu0 0
      %1249 = vmatpush1.bf16.msra.mxu0 0
      %1250 = vmatprep.subr.bf16.mxu0 0
      %1251 = vmatpush1.bf16.msra.mxu0 0
      %1252 = vmatprep.mubr.bf16.mxu0 0
      %1253 = vmatmul.mubr.bf16.gmra.mrb[0].mxu0 %v469
      %v1254 = vpop.f32.mrb[0].mxu0
      %v1255 = vadd.f32 %v1170, %v1254
      %v1256 = vpop.f32.mrb[0].mxu0
      %v1257 = vpop.f32.mrb[0].mxu0
      %v1258 = vpop.f32.mrb[0].mxu0
      %1259 = vdwg.mxu0
      %v1260 = vpack.c.bf16 %v1029, %v1029
      %v1261 = vpack.c.bf16 %v1142, %v1142
      %v1263 = vsel %vm812, %v1260, 0
      %v1266 = vsel %vm812, %v1261, 0
      %1268 = vmatprep.subr.bf16.mxu0 0
      %1269 = vmatpush1.bf16.xpose.msra.mxu0 %v1266
      %1270 = vmatprep.subr.bf16.mxu0 0
      %1271 = vmatpush1.bf16.xpose.msra.mxu0 0
      %1272 = vmatprep.subr.bf16.mxu0 0
      %1273 = vmatpush1.bf16.xpose.msra.mxu0 0
      %1274 = vmatprep.subr.bf16.mxu0 0
      %1275 = vmatpush1.bf16.xpose.msra.mxu0 0
      %1276 = vmatprep.subr.bf16.mxu0 0
      %1277 = vmatpush1.bf16.xpose.msra.mxu0 0
      %1278 = vmatprep.subr.bf16.mxu0 0
      %1279 = vmatpush1.bf16.xpose.msra.mxu0 0
      %1280 = vmatprep.subr.bf16.mxu0 0
      %1281 = vmatpush1.bf16.xpose.msra.mxu0 0
      %1282 = vmatprep.subr.bf16.mxu0 0
      %1283 = vmatpush1.bf16.xpose.msra.mxu0 0
      %1284 = vmatprep.subr.bf16.mxu0 0
      %1285 = vmatpush1.bf16.xpose.msra.mxu0 0
      %1286 = vmatprep.subr.bf16.mxu0 0
      %1287 = vmatpush1.bf16.xpose.msra.mxu0 0
      %1288 = vmatprep.subr.bf16.mxu0 0
      %1289 = vmatpush1.bf16.xpose.msra.mxu0 0
      %1290 = vmatprep.subr.bf16.mxu0 0
      %1291 = vmatpush1.bf16.xpose.msra.mxu0 0
      %1292 = vmatprep.subr.bf16.mxu0 0
      %1293 = vmatpush1.bf16.xpose.msra.mxu0 0
      %1294 = vmatprep.subr.bf16.mxu0 0
      %1295 = vmatpush1.bf16.xpose.msra.mxu0 0
      %1296 = vmatprep.subr.bf16.mxu0 0
      %1297 = vmatpush1.bf16.xpose.msra.mxu0 0
      %1298 = vmatprep.subr.bf16.mxu0 0
      %1299 = vmatpush1.bf16.xpose.msra.mxu0 0
      %1300 = vmatprep.mubr.bf16.mxu0 0
      %1301 = vmatmul.mubr.bf16.gmra.mrb[0].mxu0 %v1263
      %v1302 = vpop.f32.mrb[0].mxu0
      %v1303 = vadd.f32 %v810, %v1302
      %v1304 = vpop.f32.mrb[0].mxu0
      %v1305 = vpop.f32.mrb[0].mxu0
      %v1306 = vpop.f32.mrb[0].mxu0
      %1307 = vdwg.mxu0
      %v1308 = vsel %vm812, %v1303, -inf
      %1309 = vmax.xlane.f32.xlu0 %v1308
      %v1310 = vpop.xlane.xlu0 %1309
      %v1311 = vsub.f32 %v1303, %v1310
      %v1312 = vmul.f32 %v1311, 1.442695
      %v1313 = vpow.pop %v1312
      %v1314 = vsel %vm812, %v1313, 0.0
      %1315 = vadd.xlane.f32.xlu0 %v1314
      %v1316 = vpop.xlane.xlu0 %1315
      %v1317 = vrcp.pop %v1316
      %v1318 = vmul.f32 %v1313, %v1317
      %v1319 = vpack.c.bf16 %v1318, %v1318
      %v1320 = vpack.c.bf16 %v1255, %v1255
      %v1322 = vsel %vm812, %v1319, 0
      %v1325 = vsel %vm875, %v1320, 0
      %1327 = vmatprep.subr.bf16.mxu0 0
      %1328 = vmatpush1.bf16.msra.mxu0 %v1325
      %1329 = vmatprep.subr.bf16.mxu0 0
      %1330 = vmatpush1.bf16.msra.mxu0 0
      %1331 = vmatprep.subr.bf16.mxu0 0
      %1332 = vmatpush1.bf16.msra.mxu0 0
      %1333 = vmatprep.subr.bf16.mxu0 0
      %1334 = vmatpush1.bf16.msra.mxu0 0
      %1335 = vmatprep.subr.bf16.mxu0 0
      %1336 = vmatpush1.bf16.msra.mxu0 0
      %1337 = vmatprep.subr.bf16.mxu0 0
      %1338 = vmatpush1.bf16.msra.mxu0 0
      %1339 = vmatprep.subr.bf16.mxu0 0
      %1340 = vmatpush1.bf16.msra.mxu0 0
      %1341 = vmatprep.subr.bf16.mxu0 0
      %1342 = vmatpush1.bf16.msra.mxu0 0
      %1343 = vmatprep.subr.bf16.mxu0 0
      %1344 = vmatpush1.bf16.msra.mxu0 0
      %1345 = vmatprep.subr.bf16.mxu0 0
      %1346 = vmatpush1.bf16.msra.mxu0 0
      %1347 = vmatprep.subr.bf16.mxu0 0
      %1348 = vmatpush1.bf16.msra.mxu0 0
      %1349 = vmatprep.subr.bf16.mxu0 0
      %1350 = vmatpush1.bf16.msra.mxu0 0
      %1351 = vmatprep.subr.bf16.mxu0 0
      %1352 = vmatpush1.bf16.msra.mxu0 0
      %1353 = vmatprep.subr.bf16.mxu0 0
      %1354 = vmatpush1.bf16.msra.mxu0 0
      %1355 = vmatprep.subr.bf16.mxu0 0
      %1356 = vmatpush1.bf16.msra.mxu0 0
      %1357 = vmatprep.subr.bf16.mxu0 0
      %1358 = vmatpush1.bf16.msra.mxu0 0
      %1359 = vmatprep.mubr.bf16.mxu0 0
      %1360 = vmatmul.mubr.bf16.gmra.mrb[0].mxu0 %v1322
      %v1361 = vpop.f32.mrb[0].mxu0
      %v1362 = vadd.f32 0.0, %v1361
      %v1363 = vpop.f32.mrb[0].mxu0
      %v1364 = vpop.f32.mrb[0].mxu0
      %v1365 = vpop.f32.mrb[0].mxu0
      %1366 = vdwg.mxu0
      %v1367 = vpack.c.bf16 %v1362, %v1362
      %s1368 = scalar_lea.vmem %s9, 4
      %v1369 = vld [vmem:[%s1368] sm:$0xf]
      %v1371 = vsel %vm812, %v1367, 0
      %v1374 = vsel %vm875, %v1369, 0
      %1376 = vmatprep.subr.bf16.mxu0 0
      %1377 = vmatpush1.bf16.msra.mxu0 %v1374
      %1378 = vmatprep.subr.bf16.mxu0 0
      %1379 = vmatpush1.bf16.msra.mxu0 0
      %1380 = vmatprep.subr.bf16.mxu0 0
      %1381 = vmatpush1.bf16.msra.mxu0 0
      %1382 = vmatprep.subr.bf16.mxu0 0
      %1383 = vmatpush1.bf16.msra.mxu0 0
      %1384 = vmatprep.subr.bf16.mxu0 0
      %1385 = vmatpush1.bf16.msra.mxu0 0
      %1386 = vmatprep.subr.bf16.mxu0 0
      %1387 = vmatpush1.bf16.msra.mxu0 0
      %1388 = vmatprep.subr.bf16.mxu0 0
      %1389 = vmatpush1.bf16.msra.mxu0 0
      %1390 = vmatprep.subr.bf16.mxu0 0
      %1391 = vmatpush1.bf16.msra.mxu0 0
      %1392 = vmatprep.subr.bf16.mxu0 0
      %1393 = vmatpush1.bf16.msra.mxu0 0
      %1394 = vmatprep.subr.bf16.mxu0 0
      %1395 = vmatpush1.bf16.msra.mxu0 0
      %1396 = vmatprep.subr.bf16.mxu0 0
      %1397 = vmatpush1.bf16.msra.mxu0 0
      %1398 = vmatprep.subr.bf16.mxu0 0
      %1399 = vmatpush1.bf16.msra.mxu0 0
      %1400 = vmatprep.subr.bf16.mxu0 0
      %1401 = vmatpush1.bf16.msra.mxu0 0
      %1402 = vmatprep.subr.bf16.mxu0 0
      %1403 = vmatpush1.bf16.msra.mxu0 0
      %1404 = vmatprep.subr.bf16.mxu0 0
      %1405 = vmatpush1.bf16.msra.mxu0 0
      %1406 = vmatprep.subr.bf16.mxu0 0
      %1407 = vmatpush1.bf16.msra.mxu0 0
      %1408 = vmatprep.mubr.bf16.mxu0 0
      %1409 = vmatmul.mubr.bf16.gmra.mrb[0].mxu0 %v1371
      %v1410 = vpop.f32.mrb[0].mxu0
      %v1411 = vadd.f32 0.0, %v1410
      %v1412 = vpop.f32.mrb[0].mxu0
      %v1413 = vpop.f32.mrb[0].mxu0
      %v1414 = vpop.f32.mrb[0].mxu0
      %1415 = vdwg.mxu0
      %v1417 = vsel %vm812, %v919, 0
      %v1420 = vsel %vm875, %v920, 0
      %1422 = vmatprep.subr.bf16.mxu0 0
      %1423 = vmatpush1.bf16.msra.mxu0 %v1420
      %1424 = vmatprep.subr.bf16.mxu0 0
      %1425 = vmatpush1.bf16.msra.mxu0 0
      %1426 = vmatprep.subr.bf16.mxu0 0
      %1427 = vmatpush1.bf16.msra.mxu0 0
      %1428 = vmatprep.subr.bf16.mxu0 0
      %1429 = vmatpush1.bf16.msra.mxu0 0
      %1430 = vmatprep.subr.bf16.mxu0 0
      %1431 = vmatpush1.bf16.msra.mxu0 0
      %1432 = vmatprep.subr.bf16.mxu0 0
      %1433 = vmatpush1.bf16.msra.mxu0 0
      %1434 = vmatprep.subr.bf16.mxu0 0
      %1435 = vmatpush1.bf16.msra.mxu0 0
      %1436 = vmatprep.subr.bf16.mxu0 0
      %1437 = vmatpush1.bf16.msra.mxu0 0
      %1438 = vmatprep.subr.bf16.mxu0 0
      %1439 = vmatpush1.bf16.msra.mxu0 0
      %1440 = vmatprep.subr.bf16.mxu0 0
      %1441 = vmatpush1.bf16.msra.mxu0 0
      %1442 = vmatprep.subr.bf16.mxu0 0
      %1443 = vmatpush1.bf16.msra.mxu0 0
      %1444 = vmatprep.subr.bf16.mxu0 0
      %1445 = vmatpush1.bf16.msra.mxu0 0
      %1446 = vmatprep.subr.bf16.mxu0 0
      %1447 = vmatpush1.bf16.msra.mxu0 0
      %1448 = vmatprep.subr.bf16.mxu0 0
      %1449 = vmatpush1.bf16.msra.mxu0 0
      %1450 = vmatprep.subr.bf16.mxu0 0
      %1451 = vmatpush1.bf16.msra.mxu0 0
      %1452 = vmatprep.subr.bf16.mxu0 0
      %1453 = vmatpush1.bf16.msra.mxu0 0
      %1454 = vmatprep.mubr.bf16.mxu0 0
      %1455 = vmatmul.mubr.bf16.gmra.mrb[0].mxu0 %v1417
      %v1456 = vpop.f32.mrb[0].mxu0
      %v1457 = vadd.f32 %v1411, %v1456
      %v1458 = vpop.f32.mrb[0].mxu0
      %v1459 = vpop.f32.mrb[0].mxu0
      %v1460 = vpop.f32.mrb[0].mxu0
      %1461 = vdwg.mxu0
      %s1462 = scalar_lea.vmem %s3, 128
      %v1463 = vld [vmem:[%s1462] sm:$0xf]
      %v1464 = vld [vmem:[%s1462 + $0x4] sm:$0xf]
      %v1465 = vld [vmem:[%s1462 + $0x8] sm:$0xf]
      %v1466 = vld [vmem:[%s1462 + $0xc] sm:$0xf]
      %v1467 = vld [vmem:[%s1462 + $0x10] sm:$0xf]
      %v1468 = vld [vmem:[%s1462 + $0x14] sm:$0xf]
      %v1469 = vld [vmem:[%s1462 + $0x18] sm:$0xf]
      %v1470 = vld [vmem:[%s1462 + $0x1c] sm:$0xf]
      %v1471 = vld [vmem:[%s1462 + $0x20] sm:$0xf]
      %v1472 = vld [vmem:[%s1462 + $0x24] sm:$0xf]
      %v1473 = vld [vmem:[%s1462 + $0x28] sm:$0xf]
      %v1474 = vld [vmem:[%s1462 + $0x2c] sm:$0xf]
      %v1475 = vld [vmem:[%s1462 + $0x30] sm:$0xf]
      %v1476 = vld [vmem:[%s1462 + $0x34] sm:$0xf]
      %v1477 = vld [vmem:[%s1462 + $0x38] sm:$0xf]
      %v1478 = vld [vmem:[%s1462 + $0x3c] sm:$0xf]
      %s1479 = scalar_lea.vmem %s4, 2
      %v1480 = vld [vmem:[%s1479] sm:$0x1]
      %v1482 = vlaneseq
      %v1483 = vshrl.u32 %v1482, 7
      %v1484 = vsub.s32 0, %v1483
      %v1485 = vrot.slane %v1480, %v1484
      %v1503 = vunpack.c.l.b16 %v1463
      %v1504 = vunpack.c.l.b16 %v1464
      %v1505 = vunpack.c.l.b16 %v1465
      %v1506 = vunpack.c.l.b16 %v1466
      %v1507 = vunpack.c.l.b16 %v1467
      %v1508 = vunpack.c.l.b16 %v1468
      %v1509 = vunpack.c.l.b16 %v1469
      %v1510 = vunpack.c.l.b16 %v1470
      %v1511 = vunpack.c.l.b16 %v1471
      %v1512 = vunpack.c.l.b16 %v1472
      %v1513 = vunpack.c.l.b16 %v1473
      %v1514 = vunpack.c.l.b16 %v1474
      %v1515 = vunpack.c.l.b16 %v1475
      %v1516 = vunpack.c.l.b16 %v1476
      %v1517 = vunpack.c.l.b16 %v1477
      %v1518 = vunpack.c.l.b16 %v1478
      %v1519 = vpack.c.b16 %v1504, %v1503
      %v1520 = vpack.c.b16 %v1506, %v1505
      %v1521 = vpack.c.b16 %v1508, %v1507
      %v1522 = vpack.c.b16 %v1510, %v1509
      %v1523 = vpack.c.b16 %v1512, %v1511
      %v1524 = vpack.c.b16 %v1514, %v1513
      %v1525 = vpack.c.b16 %v1516, %v1515
      %v1526 = vpack.c.b16 %v1518, %v1517
      %1535 = vmatprep.subr.bf16.mxu0 0
      %1536 = vmatpush1.bf16.msra.mxu0 %v1519
      %1537 = vmatprep.subr.bf16.mxu0 0
      %1538 = vmatpush1.bf16.msra.mxu0 %v1520
      %1539 = vmatprep.subr.bf16.mxu0 0
      %1540 = vmatpush1.bf16.msra.mxu0 %v1521
      %1541 = vmatprep.subr.bf16.mxu0 0
      %1542 = vmatpush1.bf16.msra.mxu0 %v1522
      %1543 = vmatprep.subr.bf16.mxu0 0
      %1544 = vmatpush1.bf16.msra.mxu0 %v1523
      %1545 = vmatprep.subr.bf16.mxu0 0
      %1546 = vmatpush1.bf16.msra.mxu0 %v1524
      %1547 = vmatprep.subr.bf16.mxu0 0
      %1548 = vmatpush1.bf16.msra.mxu0 %v1525
      %1549 = vmatprep.subr.bf16.mxu0 0
      %1550 = vmatpush1.bf16.msra.mxu0 %v1526
      %1551 = vmatprep.subr.bf16.mxu0 0
      %1552 = vmatpush1.bf16.msra.mxu0 0
      %1553 = vmatprep.subr.bf16.mxu0 0
      %1554 = vmatpush1.bf16.msra.mxu0 0
      %1555 = vmatprep.subr.bf16.mxu0 0
      %1556 = vmatpush1.bf16.msra.mxu0 0
      %1557 = vmatprep.subr.bf16.mxu0 0
      %1558 = vmatpush1.bf16.msra.mxu0 0
      %1559 = vmatprep.subr.bf16.mxu0 0
      %1560 = vmatpush1.bf16.msra.mxu0 0
      %1561 = vmatprep.subr.bf16.mxu0 0
      %1562 = vmatpush1.bf16.msra.mxu0 0
      %1563 = vmatprep.subr.bf16.mxu0 0
      %1564 = vmatpush1.bf16.msra.mxu0 0
      %1565 = vmatprep.subr.bf16.mxu0 0
      %1566 = vmatpush1.bf16.msra.mxu0 0
      %1567 = vmatprep.mubr.bf16.mxu0 0
      %1568 = vmatmul.mubr.bf16.gmra.mrb[0].mxu0 %v468
      %v1569 = vpop.f32.mrb[0].mxu0
      %v1570 = vadd.f32 %v1485, %v1569
      %v1571 = vpop.f32.mrb[0].mxu0
      %v1572 = vpop.f32.mrb[0].mxu0
      %v1573 = vpop.f32.mrb[0].mxu0
      %1574 = vdwg.mxu0
      %s1575 = scalar_lea.vmem %s5, 128
      %v1576 = vld [vmem:[%s1575] sm:$0xf]
      %v1577 = vld [vmem:[%s1575 + $0x4] sm:$0xf]
      %v1578 = vld [vmem:[%s1575 + $0x8] sm:$0xf]
      %v1579 = vld [vmem:[%s1575 + $0xc] sm:$0xf]
      %v1580 = vld [vmem:[%s1575 + $0x10] sm:$0xf]
      %v1581 = vld [vmem:[%s1575 + $0x14] sm:$0xf]
      %v1582 = vld [vmem:[%s1575 + $0x18] sm:$0xf]
      %v1583 = vld [vmem:[%s1575 + $0x1c] sm:$0xf]
      %v1584 = vld [vmem:[%s1575 + $0x20] sm:$0xf]
      %v1585 = vld [vmem:[%s1575 + $0x24] sm:$0xf]
      %v1586 = vld [vmem:[%s1575 + $0x28] sm:$0xf]
      %v1587 = vld [vmem:[%s1575 + $0x2c] sm:$0xf]
      %v1588 = vld [vmem:[%s1575 + $0x30] sm:$0xf]
      %v1589 = vld [vmem:[%s1575 + $0x34] sm:$0xf]
      %v1590 = vld [vmem:[%s1575 + $0x38] sm:$0xf]
      %v1591 = vld [vmem:[%s1575 + $0x3c] sm:$0xf]
      %s1592 = scalar_lea.vmem %s6, 2
      %v1593 = vld [vmem:[%s1592] sm:$0x1]
      %v1595 = vlaneseq
      %v1596 = vshrl.u32 %v1595, 7
      %v1597 = vsub.s32 0, %v1596
      %v1598 = vrot.slane %v1593, %v1597
      %v1616 = vunpack.c.l.b16 %v1576
      %v1617 = vunpack.c.l.b16 %v1577
      %v1618 = vunpack.c.l.b16 %v1578
      %v1619 = vunpack.c.l.b16 %v1579
      %v1620 = vunpack.c.l.b16 %v1580
      %v1621 = vunpack.c.l.b16 %v1581
      %v1622 = vunpack.c.l.b16 %v1582
      %v1623 = vunpack.c.l.b16 %v1583
      %v1624 = vunpack.c.l.b16 %v1584
      %v1625 = vunpack.c.l.b16 %v1585
      %v1626 = vunpack.c.l.b16 %v1586
      %v1627 = vunpack.c.l.b16 %v1587
      %v1628 = vunpack.c.l.b16 %v1588
      %v1629 = vunpack.c.l.b16 %v1589
      %v1630 = vunpack.c.l.b16 %v1590
      %v1631 = vunpack.c.l.b16 %v1591
      %v1632 = vpack.c.b16 %v1617, %v1616
      %v1633 = vpack.c.b16 %v1619, %v1618
      %v1634 = vpack.c.b16 %v1621, %v1620
      %v1635 = vpack.c.b16 %v1623, %v1622
      %v1636 = vpack.c.b16 %v1625, %v1624
      %v1637 = vpack.c.b16 %v1627, %v1626
      %v1638 = vpack.c.b16 %v1629, %v1628
      %v1639 = vpack.c.b16 %v1631, %v1630
      %1648 = vmatprep.subr.bf16.mxu0 0
      %1649 = vmatpush1.bf16.msra.mxu0 %v1632
      %1650 = vmatprep.subr.bf16.mxu0 0
      %1651 = vmatpush1.bf16.msra.mxu0 %v1633
      %1652 = vmatprep.subr.bf16.mxu0 0
      %1653 = vmatpush1.bf16.msra.mxu0 %v1634
      %1654 = vmatprep.subr.bf16.mxu0 0
      %1655 = vmatpush1.bf16.msra.mxu0 %v1635
      %1656 = vmatprep.subr.bf16.mxu0 0
      %1657 = vmatpush1.bf16.msra.mxu0 %v1636
      %1658 = vmatprep.subr.bf16.mxu0 0
      %1659 = vmatpush1.bf16.msra.mxu0 %v1637
      %1660 = vmatprep.subr.bf16.mxu0 0
      %1661 = vmatpush1.bf16.msra.mxu0 %v1638
      %1662 = vmatprep.subr.bf16.mxu0 0
      %1663 = vmatpush1.bf16.msra.mxu0 %v1639
      %1664 = vmatprep.subr.bf16.mxu0 0
      %1665 = vmatpush1.bf16.msra.mxu0 0
      %1666 = vmatprep.subr.bf16.mxu0 0
      %1667 = vmatpush1.bf16.msra.mxu0 0
      %1668 = vmatprep.subr.bf16.mxu0 0
      %1669 = vmatpush1.bf16.msra.mxu0 0
      %1670 = vmatprep.subr.bf16.mxu0 0
      %1671 = vmatpush1.bf16.msra.mxu0 0
      %1672 = vmatprep.subr.bf16.mxu0 0
      %1673 = vmatpush1.bf16.msra.mxu0 0
      %1674 = vmatprep.subr.bf16.mxu0 0
      %1675 = vmatpush1.bf16.msra.mxu0 0
      %1676 = vmatprep.subr.bf16.mxu0 0
      %1677 = vmatpush1.bf16.msra.mxu0 0
      %1678 = vmatprep.subr.bf16.mxu0 0
      %1679 = vmatpush1.bf16.msra.mxu0 0
      %1680 = vmatprep.mubr.bf16.mxu0 0
      %1681 = vmatmul.mubr.bf16.gmra.mrb[0].mxu0 %v469
      %v1682 = vpop.f32.mrb[0].mxu0
      %v1683 = vadd.f32 %v1598, %v1682
      %v1684 = vpop.f32.mrb[0].mxu0
      %v1685 = vpop.f32.mrb[0].mxu0
      %v1686 = vpop.f32.mrb[0].mxu0
      %1687 = vdwg.mxu0
      %s1688 = scalar_lea.vmem %s7, 128
      %v1689 = vld [vmem:[%s1688] sm:$0xf]
      %v1690 = vld [vmem:[%s1688 + $0x4] sm:$0xf]
      %v1691 = vld [vmem:[%s1688 + $0x8] sm:$0xf]
      %v1692 = vld [vmem:[%s1688 + $0xc] sm:$0xf]
      %v1693 = vld [vmem:[%s1688 + $0x10] sm:$0xf]
      %v1694 = vld [vmem:[%s1688 + $0x14] sm:$0xf]
      %v1695 = vld [vmem:[%s1688 + $0x18] sm:$0xf]
      %v1696 = vld [vmem:[%s1688 + $0x1c] sm:$0xf]
      %v1697 = vld [vmem:[%s1688 + $0x20] sm:$0xf]
      %v1698 = vld [vmem:[%s1688 + $0x24] sm:$0xf]
      %v1699 = vld [vmem:[%s1688 + $0x28] sm:$0xf]
      %v1700 = vld [vmem:[%s1688 + $0x2c] sm:$0xf]
      %v1701 = vld [vmem:[%s1688 + $0x30] sm:$0xf]
      %v1702 = vld [vmem:[%s1688 + $0x34] sm:$0xf]
      %v1703 = vld [vmem:[%s1688 + $0x38] sm:$0xf]
      %v1704 = vld [vmem:[%s1688 + $0x3c] sm:$0xf]
      %s1705 = scalar_lea.vmem %s8, 2
      %v1706 = vld [vmem:[%s1705] sm:$0x1]
      %v1708 = vlaneseq
      %v1709 = vshrl.u32 %v1708, 7
      %v1710 = vsub.s32 0, %v1709
      %v1711 = vrot.slane %v1706, %v1710
      %v1729 = vunpack.c.l.b16 %v1689
      %v1730 = vunpack.c.l.b16 %v1690
      %v1731 = vunpack.c.l.b16 %v1691
      %v1732 = vunpack.c.l.b16 %v1692
      %v1733 = vunpack.c.l.b16 %v1693
      %v1734 = vunpack.c.l.b16 %v1694
      %v1735 = vunpack.c.l.b16 %v1695
      %v1736 = vunpack.c.l.b16 %v1696
      %v1737 = vunpack.c.l.b16 %v1697
      %v1738 = vunpack.c.l.b16 %v1698
      %v1739 = vunpack.c.l.b16 %v1699
      %v1740 = vunpack.c.l.b16 %v1700
      %v1741 = vunpack.c.l.b16 %v1701
      %v1742 = vunpack.c.l.b16 %v1702
      %v1743 = vunpack.c.l.b16 %v1703
      %v1744 = vunpack.c.l.b16 %v1704
      %v1745 = vpack.c.b16 %v1730, %v1729
      %v1746 = vpack.c.b16 %v1732, %v1731
      %v1747 = vpack.c.b16 %v1734, %v1733
      %v1748 = vpack.c.b16 %v1736, %v1735
      %v1749 = vpack.c.b16 %v1738, %v1737
      %v1750 = vpack.c.b16 %v1740, %v1739
      %v1751 = vpack.c.b16 %v1742, %v1741
      %v1752 = vpack.c.b16 %v1744, %v1743
      %1761 = vmatprep.subr.bf16.mxu0 0
      %1762 = vmatpush1.bf16.msra.mxu0 %v1745
      %1763 = vmatprep.subr.bf16.mxu0 0
      %1764 = vmatpush1.bf16.msra.mxu0 %v1746
      %1765 = vmatprep.subr.bf16.mxu0 0
      %1766 = vmatpush1.bf16.msra.mxu0 %v1747
      %1767 = vmatprep.subr.bf16.mxu0 0
      %1768 = vmatpush1.bf16.msra.mxu0 %v1748
      %1769 = vmatprep.subr.bf16.mxu0 0
      %1770 = vmatpush1.bf16.msra.mxu0 %v1749
      %1771 = vmatprep.subr.bf16.mxu0 0
      %1772 = vmatpush1.bf16.msra.mxu0 %v1750
      %1773 = vmatprep.subr.bf16.mxu0 0
      %1774 = vmatpush1.bf16.msra.mxu0 %v1751
      %1775 = vmatprep.subr.bf16.mxu0 0
      %1776 = vmatpush1.bf16.msra.mxu0 %v1752
      %1777 = vmatprep.subr.bf16.mxu0 0
      %1778 = vmatpush1.bf16.msra.mxu0 0
      %1779 = vmatprep.subr.bf16.mxu0 0
      %1780 = vmatpush1.bf16.msra.mxu0 0
      %1781 = vmatprep.subr.bf16.mxu0 0
      %1782 = vmatpush1.bf16.msra.mxu0 0
      %1783 = vmatprep.subr.bf16.mxu0 0
      %1784 = vmatpush1.bf16.msra.mxu0 0
      %1785 = vmatprep.subr.bf16.mxu0 0
      %1786 = vmatpush1.bf16.msra.mxu0 0
      %1787 = vmatprep.subr.bf16.mxu0 0
      %1788 = vmatpush1.bf16.msra.mxu0 0
      %1789 = vmatprep.subr.bf16.mxu0 0
      %1790 = vmatpush1.bf16.msra.mxu0 0
      %1791 = vmatprep.subr.bf16.mxu0 0
      %1792 = vmatpush1.bf16.msra.mxu0 0
      %1793 = vmatprep.mubr.bf16.mxu0 0
      %1794 = vmatmul.mubr.bf16.gmra.mrb[0].mxu0 %v469
      %v1795 = vpop.f32.mrb[0].mxu0
      %v1796 = vadd.f32 %v1711, %v1795
      %v1797 = vpop.f32.mrb[0].mxu0
      %v1798 = vpop.f32.mrb[0].mxu0
      %v1799 = vpop.f32.mrb[0].mxu0
      %1800 = vdwg.mxu0
      %v1801 = vpack.c.bf16 %v1570, %v1570
      %v1802 = vpack.c.bf16 %v1683, %v1683
      %v1804 = vsel %vm812, %v1801, 0
      %v1807 = vsel %vm812, %v1802, 0
      %1809 = vmatprep.subr.bf16.mxu0 0
      %1810 = vmatpush1.bf16.xpose.msra.mxu0 %v1807
      %1811 = vmatprep.subr.bf16.mxu0 0
      %1812 = vmatpush1.bf16.xpose.msra.mxu0 0
      %1813 = vmatprep.subr.bf16.mxu0 0
      %1814 = vmatpush1.bf16.xpose.msra.mxu0 0
      %1815 = vmatprep.subr.bf16.mxu0 0
      %1816 = vmatpush1.bf16.xpose.msra.mxu0 0
      %1817 = vmatprep.subr.bf16.mxu0 0
      %1818 = vmatpush1.bf16.xpose.msra.mxu0 0
      %1819 = vmatprep.subr.bf16.mxu0 0
      %1820 = vmatpush1.bf16.xpose.msra.mxu0 0
      %1821 = vmatprep.subr.bf16.mxu0 0
      %1822 = vmatpush1.bf16.xpose.msra.mxu0 0
      %1823 = vmatprep.subr.bf16.mxu0 0
      %1824 = vmatpush1.bf16.xpose.msra.mxu0 0
      %1825 = vmatprep.subr.bf16.mxu0 0
      %1826 = vmatpush1.bf16.xpose.msra.mxu0 0
      %1827 = vmatprep.subr.bf16.mxu0 0
      %1828 = vmatpush1.bf16.xpose.msra.mxu0 0
      %1829 = vmatprep.subr.bf16.mxu0 0
      %1830 = vmatpush1.bf16.xpose.msra.mxu0 0
      %1831 = vmatprep.subr.bf16.mxu0 0
      %1832 = vmatpush1.bf16.xpose.msra.mxu0 0
      %1833 = vmatprep.subr.bf16.mxu0 0
      %1834 = vmatpush1.bf16.xpose.msra.mxu0 0
      %1835 = vmatprep.subr.bf16.mxu0 0
      %1836 = vmatpush1.bf16.xpose.msra.mxu0 0
      %1837 = vmatprep.subr.bf16.mxu0 0
      %1838 = vmatpush1.bf16.xpose.msra.mxu0 0
      %1839 = vmatprep.subr.bf16.mxu0 0
      %1840 = vmatpush1.bf16.xpose.msra.mxu0 0
      %1841 = vmatprep.mubr.bf16.mxu0 0
      %1842 = vmatmul.mubr.bf16.gmra.mrb[0].mxu0 %v1804
      %v1843 = vpop.f32.mrb[0].mxu0
      %v1844 = vadd.f32 %v810, %v1843
      %v1845 = vpop.f32.mrb[0].mxu0
      %v1846 = vpop.f32.mrb[0].mxu0
      %v1847 = vpop.f32.mrb[0].mxu0
      %1848 = vdwg.mxu0
      %v1849 = vsel %vm812, %v1844, -inf
      %1850 = vmax.xlane.f32.xlu0 %v1849
      %v1851 = vpop.xlane.xlu0 %1850
      %v1852 = vsub.f32 %v1844, %v1851
      %v1853 = vmul.f32 %v1852, 1.442695
      %v1854 = vpow.pop %v1853
      %v1855 = vsel %vm812, %v1854, 0.0
      %1856 = vadd.xlane.f32.xlu0 %v1855
      %v1857 = vpop.xlane.xlu0 %1856
      %v1858 = vrcp.pop %v1857
      %v1859 = vmul.f32 %v1854, %v1858
      %v1860 = vpack.c.bf16 %v1859, %v1859
      %v1861 = vpack.c.bf16 %v1796, %v1796
      %v1863 = vsel %vm812, %v1860, 0
      %v1866 = vsel %vm875, %v1861, 0
      %1868 = vmatprep.subr.bf16.mxu0 0
      %1869 = vmatpush1.bf16.msra.mxu0 %v1866
      %1870 = vmatprep.subr.bf16.mxu0 0
      %1871 = vmatpush1.bf16.msra.mxu0 0
      %1872 = vmatprep.subr.bf16.mxu0 0
      %1873 = vmatpush1.bf16.msra.mxu0 0
      %1874 = vmatprep.subr.bf16.mxu0 0
      %1875 = vmatpush1.bf16.msra.mxu0 0
      %1876 = vmatprep.subr.bf16.mxu0 0
      %1877 = vmatpush1.bf16.msra.mxu0 0
      %1878 = vmatprep.subr.bf16.mxu0 0
      %1879 = vmatpush1.bf16.msra.mxu0 0
      %1880 = vmatprep.subr.bf16.mxu0 0
      %1881 = vmatpush1.bf16.msra.mxu0 0
      %1882 = vmatprep.subr.bf16.mxu0 0
      %1883 = vmatpush1.bf16.msra.mxu0 0
      %1884 = vmatprep.subr.bf16.mxu0 0
      %1885 = vmatpush1.bf16.msra.mxu0 0
      %1886 = vmatprep.subr.bf16.mxu0 0
      %1887 = vmatpush1.bf16.msra.mxu0 0
      %1888 = vmatprep.subr.bf16.mxu0 0
      %1889 = vmatpush1.bf16.msra.mxu0 0
      %1890 = vmatprep.subr.bf16.mxu0 0
      %1891 = vmatpush1.bf16.msra.mxu0 0
      %1892 = vmatprep.subr.bf16.mxu0 0
      %1893 = vmatpush1.bf16.msra.mxu0 0
      %1894 = vmatprep.subr.bf16.mxu0 0
      %1895 = vmatpush1.bf16.msra.mxu0 0
      %1896 = vmatprep.subr.bf16.mxu0 0
      %1897 = vmatpush1.bf16.msra.mxu0 0
      %1898 = vmatprep.subr.bf16.mxu0 0
      %1899 = vmatpush1.bf16.msra.mxu0 0
      %1900 = vmatprep.mubr.bf16.mxu0 0
      %1901 = vmatmul.mubr.bf16.gmra.mrb[0].mxu0 %v1863
      %v1902 = vpop.f32.mrb[0].mxu0
      %v1903 = vadd.f32 0.0, %v1902
      %v1904 = vpop.f32.mrb[0].mxu0
      %v1905 = vpop.f32.mrb[0].mxu0
      %v1906 = vpop.f32.mrb[0].mxu0
      %1907 = vdwg.mxu0
      %v1908 = vpack.c.bf16 %v1903, %v1903
      %s1909 = scalar_lea.vmem %s9, 8
      %v1910 = vld [vmem:[%s1909] sm:$0xf]
      %v1912 = vsel %vm812, %v1908, 0
      %v1915 = vsel %vm875, %v1910, 0
      %1917 = vmatprep.subr.bf16.mxu0 0
      %1918 = vmatpush1.bf16.msra.mxu0 %v1915
      %1919 = vmatprep.subr.bf16.mxu0 0
      %1920 = vmatpush1.bf16.msra.mxu0 0
      %1921 = vmatprep.subr.bf16.mxu0 0
      %1922 = vmatpush1.bf16.msra.mxu0 0
      %1923 = vmatprep.subr.bf16.mxu0 0
      %1924 = vmatpush1.bf16.msra.mxu0 0
      %1925 = vmatprep.subr.bf16.mxu0 0
      %1926 = vmatpush1.bf16.msra.mxu0 0
      %1927 = vmatprep.subr.bf16.mxu0 0
      %1928 = vmatpush1.bf16.msra.mxu0 0
      %1929 = vmatprep.subr.bf16.mxu0 0
      %1930 = vmatpush1.bf16.msra.mxu0 0
      %1931 = vmatprep.subr.bf16.mxu0 0
      %1932 = vmatpush1.bf16.msra.mxu0 0
      %1933 = vmatprep.subr.bf16.mxu0 0
      %1934 = vmatpush1.bf16.msra.mxu0 0
      %1935 = vmatprep.subr.bf16.mxu0 0
      %1936 = vmatpush1.bf16.msra.mxu0 0
      %1937 = vmatprep.subr.bf16.mxu0 0
      %1938 = vmatpush1.bf16.msra.mxu0 0
      %1939 = vmatprep.subr.bf16.mxu0 0
      %1940 = vmatpush1.bf16.msra.mxu0 0
      %1941 = vmatprep.subr.bf16.mxu0 0
      %1942 = vmatpush1.bf16.msra.mxu0 0
      %1943 = vmatprep.subr.bf16.mxu0 0
      %1944 = vmatpush1.bf16.msra.mxu0 0
      %1945 = vmatprep.subr.bf16.mxu0 0
      %1946 = vmatpush1.bf16.msra.mxu0 0
      %1947 = vmatprep.subr.bf16.mxu0 0
      %1948 = vmatpush1.bf16.msra.mxu0 0
      %1949 = vmatprep.mubr.bf16.mxu0 0
      %1950 = vmatmul.mubr.bf16.gmra.mrb[0].mxu0 %v1912
      %v1951 = vpop.f32.mrb[0].mxu0
      %v1952 = vadd.f32 0.0, %v1951
      %v1953 = vpop.f32.mrb[0].mxu0
      %v1954 = vpop.f32.mrb[0].mxu0
      %v1955 = vpop.f32.mrb[0].mxu0
      %1956 = vdwg.mxu0
      %v1957 = vadd.f32 %v1457, %v1952
      %s1958 = scalar_lea.vmem %s3, 192
      %v1959 = vld [vmem:[%s1958] sm:$0xf]
      %v1960 = vld [vmem:[%s1958 + $0x4] sm:$0xf]
      %v1961 = vld [vmem:[%s1958 + $0x8] sm:$0xf]
      %v1962 = vld [vmem:[%s1958 + $0xc] sm:$0xf]
      %v1963 = vld [vmem:[%s1958 + $0x10] sm:$0xf]
      %v1964 = vld [vmem:[%s1958 + $0x14] sm:$0xf]
      %v1965 = vld [vmem:[%s1958 + $0x18] sm:$0xf]
      %v1966 = vld [vmem:[%s1958 + $0x1c] sm:$0xf]
      %v1967 = vld [vmem:[%s1958 + $0x20] sm:$0xf]
      %v1968 = vld [vmem:[%s1958 + $0x24] sm:$0xf]
      %v1969 = vld [vmem:[%s1958 + $0x28] sm:$0xf]
      %v1970 = vld [vmem:[%s1958 + $0x2c] sm:$0xf]
      %v1971 = vld [vmem:[%s1958 + $0x30] sm:$0xf]
      %v1972 = vld [vmem:[%s1958 + $0x34] sm:$0xf]
      %v1973 = vld [vmem:[%s1958 + $0x38] sm:$0xf]
      %v1974 = vld [vmem:[%s1958 + $0x3c] sm:$0xf]
      %s1975 = scalar_lea.vmem %s4, 3
      %v1976 = vld [vmem:[%s1975] sm:$0x1]
      %v1978 = vlaneseq
      %v1979 = vshrl.u32 %v1978, 7
      %v1980 = vsub.s32 0, %v1979
      %v1981 = vrot.slane %v1976, %v1980
      %v1999 = vunpack.c.l.b16 %v1959
      %v2000 = vunpack.c.l.b16 %v1960
      %v2001 = vunpack.c.l.b16 %v1961
      %v2002 = vunpack.c.l.b16 %v1962
      %v2003 = vunpack.c.l.b16 %v1963
      %v2004 = vunpack.c.l.b16 %v1964
      %v2005 = vunpack.c.l.b16 %v1965
      %v2006 = vunpack.c.l.b16 %v1966
      %v2007 = vunpack.c.l.b16 %v1967
      %v2008 = vunpack.c.l.b16 %v1968
      %v2009 = vunpack.c.l.b16 %v1969
      %v2010 = vunpack.c.l.b16 %v1970
      %v2011 = vunpack.c.l.b16 %v1971
      %v2012 = vunpack.c.l.b16 %v1972
      %v2013 = vunpack.c.l.b16 %v1973
      %v2014 = vunpack.c.l.b16 %v1974
      %v2015 = vpack.c.b16 %v2000, %v1999
      %v2016 = vpack.c.b16 %v2002, %v2001
      %v2017 = vpack.c.b16 %v2004, %v2003
      %v2018 = vpack.c.b16 %v2006, %v2005
      %v2019 = vpack.c.b16 %v2008, %v2007
      %v2020 = vpack.c.b16 %v2010, %v2009
      %v2021 = vpack.c.b16 %v2012, %v2011
      %v2022 = vpack.c.b16 %v2014, %v2013
      %2031 = vmatprep.subr.bf16.mxu0 0
      %2032 = vmatpush1.bf16.msra.mxu0 %v2015
      %2033 = vmatprep.subr.bf16.mxu0 0
      %2034 = vmatpush1.bf16.msra.mxu0 %v2016
      %2035 = vmatprep.subr.bf16.mxu0 0
      %2036 = vmatpush1.bf16.msra.mxu0 %v2017
      %2037 = vmatprep.subr.bf16.mxu0 0
      %2038 = vmatpush1.bf16.msra.mxu0 %v2018
      %2039 = vmatprep.subr.bf16.mxu0 0
      %2040 = vmatpush1.bf16.msra.mxu0 %v2019
      %2041 = vmatprep.subr.bf16.mxu0 0
      %2042 = vmatpush1.bf16.msra.mxu0 %v2020
      %2043 = vmatprep.subr.bf16.mxu0 0
      %2044 = vmatpush1.bf16.msra.mxu0 %v2021
      %2045 = vmatprep.subr.bf16.mxu0 0
      %2046 = vmatpush1.bf16.msra.mxu0 %v2022
      %2047 = vmatprep.subr.bf16.mxu0 0
      %2048 = vmatpush1.bf16.msra.mxu0 0
      %2049 = vmatprep.subr.bf16.mxu0 0
      %2050 = vmatpush1.bf16.msra.mxu0 0
      %2051 = vmatprep.subr.bf16.mxu0 0
      %2052 = vmatpush1.bf16.msra.mxu0 0
      %2053 = vmatprep.subr.bf16.mxu0 0
      %2054 = vmatpush1.bf16.msra.mxu0 0
      %2055 = vmatprep.subr.bf16.mxu0 0
      %2056 = vmatpush1.bf16.msra.mxu0 0
      %2057 = vmatprep.subr.bf16.mxu0 0
      %2058 = vmatpush1.bf16.msra.mxu0 0
      %2059 = vmatprep.subr.bf16.mxu0 0
      %2060 = vmatpush1.bf16.msra.mxu0 0
      %2061 = vmatprep.subr.bf16.mxu0 0
      %2062 = vmatpush1.bf16.msra.mxu0 0
      %2063 = vmatprep.mubr.bf16.mxu0 0
      %2064 = vmatmul.mubr.bf16.gmra.mrb[0].mxu0 %v468
      %v2065 = vpop.f32.mrb[0].mxu0
      %v2066 = vadd.f32 %v1981, %v2065
      %v2067 = vpop.f32.mrb[0].mxu0
      %v2068 = vpop.f32.mrb[0].mxu0
      %v2069 = vpop.f32.mrb[0].mxu0
      %2070 = vdwg.mxu0
      %s2071 = scalar_lea.vmem %s5, 192
      %v2072 = vld [vmem:[%s2071] sm:$0xf]
      %v2073 = vld [vmem:[%s2071 + $0x4] sm:$0xf]
      %v2074 = vld [vmem:[%s2071 + $0x8] sm:$0xf]
      %v2075 = vld [vmem:[%s2071 + $0xc] sm:$0xf]
      %v2076 = vld [vmem:[%s2071 + $0x10] sm:$0xf]
      %v2077 = vld [vmem:[%s2071 + $0x14] sm:$0xf]
      %v2078 = vld [vmem:[%s2071 + $0x18] sm:$0xf]
      %v2079 = vld [vmem:[%s2071 + $0x1c] sm:$0xf]
      %v2080 = vld [vmem:[%s2071 + $0x20] sm:$0xf]
      %v2081 = vld [vmem:[%s2071 + $0x24] sm:$0xf]
      %v2082 = vld [vmem:[%s2071 + $0x28] sm:$0xf]
      %v2083 = vld [vmem:[%s2071 + $0x2c] sm:$0xf]
      %v2084 = vld [vmem:[%s2071 + $0x30] sm:$0xf]
      %v2085 = vld [vmem:[%s2071 + $0x34] sm:$0xf]
      %v2086 = vld [vmem:[%s2071 + $0x38] sm:$0xf]
      %v2087 = vld [vmem:[%s2071 + $0x3c] sm:$0xf]
      %s2088 = scalar_lea.vmem %s6, 3
      %v2089 = vld [vmem:[%s2088] sm:$0x1]
      %v2091 = vlaneseq
      %v2092 = vshrl.u32 %v2091, 7
      %v2093 = vsub.s32 0, %v2092
      %v2094 = vrot.slane %v2089, %v2093
      %v2112 = vunpack.c.l.b16 %v2072
      %v2113 = vunpack.c.l.b16 %v2073
      %v2114 = vunpack.c.l.b16 %v2074
      %v2115 = vunpack.c.l.b16 %v2075
      %v2116 = vunpack.c.l.b16 %v2076
      %v2117 = vunpack.c.l.b16 %v2077
      %v2118 = vunpack.c.l.b16 %v2078
      %v2119 = vunpack.c.l.b16 %v2079
      %v2120 = vunpack.c.l.b16 %v2080
      %v2121 = vunpack.c.l.b16 %v2081
      %v2122 = vunpack.c.l.b16 %v2082
      %v2123 = vunpack.c.l.b16 %v2083
      %v2124 = vunpack.c.l.b16 %v2084
      %v2125 = vunpack.c.l.b16 %v2085
      %v2126 = vunpack.c.l.b16 %v2086
      %v2127 = vunpack.c.l.b16 %v2087
      %v2128 = vpack.c.b16 %v2113, %v2112
      %v2129 = vpack.c.b16 %v2115, %v2114
      %v2130 = vpack.c.b16 %v2117, %v2116
      %v2131 = vpack.c.b16 %v2119, %v2118
      %v2132 = vpack.c.b16 %v2121, %v2120
      %v2133 = vpack.c.b16 %v2123, %v2122
      %v2134 = vpack.c.b16 %v2125, %v2124
      %v2135 = vpack.c.b16 %v2127, %v2126
      %2144 = vmatprep.subr.bf16.mxu0 0
      %2145 = vmatpush1.bf16.msra.mxu0 %v2128
      %2146 = vmatprep.subr.bf16.mxu0 0
      %2147 = vmatpush1.bf16.msra.mxu0 %v2129
      %2148 = vmatprep.subr.bf16.mxu0 0
      %2149 = vmatpush1.bf16.msra.mxu0 %v2130
      %2150 = vmatprep.subr.bf16.mxu0 0
      %2151 = vmatpush1.bf16.msra.mxu0 %v2131
      %2152 = vmatprep.subr.bf16.mxu0 0
      %2153 = vmatpush1.bf16.msra.mxu0 %v2132
      %2154 = vmatprep.subr.bf16.mxu0 0
      %2155 = vmatpush1.bf16.msra.mxu0 %v2133
      %2156 = vmatprep.subr.bf16.mxu0 0
      %2157 = vmatpush1.bf16.msra.mxu0 %v2134
      %2158 = vmatprep.subr.bf16.mxu0 0
      %2159 = vmatpush1.bf16.msra.mxu0 %v2135
      %2160 = vmatprep.subr.bf16.mxu0 0
      %2161 = vmatpush1.bf16.msra.mxu0 0
      %2162 = vmatprep.subr.bf16.mxu0 0
      %2163 = vmatpush1.bf16.msra.mxu0 0
      %2164 = vmatprep.subr.bf16.mxu0 0
      %2165 = vmatpush1.bf16.msra.mxu0 0
      %2166 = vmatprep.subr.bf16.mxu0 0
      %2167 = vmatpush1.bf16.msra.mxu0 0
      %2168 = vmatprep.subr.bf16.mxu0 0
      %2169 = vmatpush1.bf16.msra.mxu0 0
      %2170 = vmatprep.subr.bf16.mxu0 0
      %2171 = vmatpush1.bf16.msra.mxu0 0
      %2172 = vmatprep.subr.bf16.mxu0 0
      %2173 = vmatpush1.bf16.msra.mxu0 0
      %2174 = vmatprep.subr.bf16.mxu0 0
      %2175 = vmatpush1.bf16.msra.mxu0 0
      %2176 = vmatprep.mubr.bf16.mxu0 0
      %2177 = vmatmul.mubr.bf16.gmra.mrb[0].mxu0 %v469
      %v2178 = vpop.f32.mrb[0].mxu0
      %v2179 = vadd.f32 %v2094, %v2178
      %v2180 = vpop.f32.mrb[0].mxu0
      %v2181 = vpop.f32.mrb[0].mxu0
      %v2182 = vpop.f32.mrb[0].mxu0
      %2183 = vdwg.mxu0
      %s2184 = scalar_lea.vmem %s7, 192
      %v2185 = vld [vmem:[%s2184] sm:$0xf]
      %v2186 = vld [vmem:[%s2184 + $0x4] sm:$0xf]
      %v2187 = vld [vmem:[%s2184 + $0x8] sm:$0xf]
      %v2188 = vld [vmem:[%s2184 + $0xc] sm:$0xf]
      %v2189 = vld [vmem:[%s2184 + $0x10] sm:$0xf]
      %v2190 = vld [vmem:[%s2184 + $0x14] sm:$0xf]
      %v2191 = vld [vmem:[%s2184 + $0x18] sm:$0xf]
      %v2192 = vld [vmem:[%s2184 + $0x1c] sm:$0xf]
      %v2193 = vld [vmem:[%s2184 + $0x20] sm:$0xf]
      %v2194 = vld [vmem:[%s2184 + $0x24] sm:$0xf]
      %v2195 = vld [vmem:[%s2184 + $0x28] sm:$0xf]
      %v2196 = vld [vmem:[%s2184 + $0x2c] sm:$0xf]
      %v2197 = vld [vmem:[%s2184 + $0x30] sm:$0xf]
      %v2198 = vld [vmem:[%s2184 + $0x34] sm:$0xf]
      %v2199 = vld [vmem:[%s2184 + $0x38] sm:$0xf]
      %v2200 = vld [vmem:[%s2184 + $0x3c] sm:$0xf]
      %s2201 = scalar_lea.vmem %s8, 3
      %v2202 = vld [vmem:[%s2201] sm:$0x1]
      %v2204 = vlaneseq
      %v2205 = vshrl.u32 %v2204, 7
      %v2206 = vsub.s32 0, %v2205
      %v2207 = vrot.slane %v2202, %v2206
      %v2225 = vunpack.c.l.b16 %v2185
      %v2226 = vunpack.c.l.b16 %v2186
      %v2227 = vunpack.c.l.b16 %v2187
      %v2228 = vunpack.c.l.b16 %v2188
      %v2229 = vunpack.c.l.b16 %v2189
      %v2230 = vunpack.c.l.b16 %v2190
      %v2231 = vunpack.c.l.b16 %v2191
      %v2232 = vunpack.c.l.b16 %v2192
      %v2233 = vunpack.c.l.b16 %v2193
      %v2234 = vunpack.c.l.b16 %v2194
      %v2235 = vunpack.c.l.b16 %v2195
      %v2236 = vunpack.c.l.b16 %v2196
      %v2237 = vunpack.c.l.b16 %v2197
      %v2238 = vunpack.c.l.b16 %v2198
      %v2239 = vunpack.c.l.b16 %v2199
      %v2240 = vunpack.c.l.b16 %v2200
      %v2241 = vpack.c.b16 %v2226, %v2225
      %v2242 = vpack.c.b16 %v2228, %v2227
      %v2243 = vpack.c.b16 %v2230, %v2229
      %v2244 = vpack.c.b16 %v2232, %v2231
      %v2245 = vpack.c.b16 %v2234, %v2233
      %v2246 = vpack.c.b16 %v2236, %v2235
      %v2247 = vpack.c.b16 %v2238, %v2237
      %v2248 = vpack.c.b16 %v2240, %v2239
      %2257 = vmatprep.subr.bf16.mxu0 0
      %2258 = vmatpush1.bf16.msra.mxu0 %v2241
      %2259 = vmatprep.subr.bf16.mxu0 0
      %2260 = vmatpush1.bf16.msra.mxu0 %v2242
      %2261 = vmatprep.subr.bf16.mxu0 0
      %2262 = vmatpush1.bf16.msra.mxu0 %v2243
      %2263 = vmatprep.subr.bf16.mxu0 0
      %2264 = vmatpush1.bf16.msra.mxu0 %v2244
      %2265 = vmatprep.subr.bf16.mxu0 0
      %2266 = vmatpush1.bf16.msra.mxu0 %v2245
      %2267 = vmatprep.subr.bf16.mxu0 0
      %2268 = vmatpush1.bf16.msra.mxu0 %v2246
      %2269 = vmatprep.subr.bf16.mxu0 0
      %2270 = vmatpush1.bf16.msra.mxu0 %v2247
      %2271 = vmatprep.subr.bf16.mxu0 0
      %2272 = vmatpush1.bf16.msra.mxu0 %v2248
      %2273 = vmatprep.subr.bf16.mxu0 0
      %2274 = vmatpush1.bf16.msra.mxu0 0
      %2275 = vmatprep.subr.bf16.mxu0 0
      %2276 = vmatpush1.bf16.msra.mxu0 0
      %2277 = vmatprep.subr.bf16.mxu0 0
      %2278 = vmatpush1.bf16.msra.mxu0 0
      %2279 = vmatprep.subr.bf16.mxu0 0
      %2280 = vmatpush1.bf16.msra.mxu0 0
      %2281 = vmatprep.subr.bf16.mxu0 0
      %2282 = vmatpush1.bf16.msra.mxu0 0
      %2283 = vmatprep.subr.bf16.mxu0 0
      %2284 = vmatpush1.bf16.msra.mxu0 0
      %2285 = vmatprep.subr.bf16.mxu0 0
      %2286 = vmatpush1.bf16.msra.mxu0 0
      %2287 = vmatprep.subr.bf16.mxu0 0
      %2288 = vmatpush1.bf16.msra.mxu0 0
      %2289 = vmatprep.mubr.bf16.mxu0 0
      %2290 = vmatmul.mubr.bf16.gmra.mrb[0].mxu0 %v469
      %v2291 = vpop.f32.mrb[0].mxu0
      %v2292 = vadd.f32 %v2207, %v2291
      %v2293 = vpop.f32.mrb[0].mxu0
      %v2294 = vpop.f32.mrb[0].mxu0
      %v2295 = vpop.f32.mrb[0].mxu0
      %2296 = vdwg.mxu0
      %v2297 = vpack.c.bf16 %v2066, %v2066
      %v2298 = vpack.c.bf16 %v2179, %v2179
      %v2300 = vsel %vm812, %v2297, 0
      %v2303 = vsel %vm812, %v2298, 0
      %2305 = vmatprep.subr.bf16.mxu0 0
      %2306 = vmatpush1.bf16.xpose.msra.mxu0 %v2303
      %2307 = vmatprep.subr.bf16.mxu0 0
      %2308 = vmatpush1.bf16.xpose.msra.mxu0 0
      %2309 = vmatprep.subr.bf16.mxu0 0
      %2310 = vmatpush1.bf16.xpose.msra.mxu0 0
      %2311 = vmatprep.subr.bf16.mxu0 0
      %2312 = vmatpush1.bf16.xpose.msra.mxu0 0
      %2313 = vmatprep.subr.bf16.mxu0 0
      %2314 = vmatpush1.bf16.xpose.msra.mxu0 0
      %2315 = vmatprep.subr.bf16.mxu0 0
      %2316 = vmatpush1.bf16.xpose.msra.mxu0 0
      %2317 = vmatprep.subr.bf16.mxu0 0
      %2318 = vmatpush1.bf16.xpose.msra.mxu0 0
      %2319 = vmatprep.subr.bf16.mxu0 0
      %2320 = vmatpush1.bf16.xpose.msra.mxu0 0
      %2321 = vmatprep.subr.bf16.mxu0 0
      %2322 = vmatpush1.bf16.xpose.msra.mxu0 0
      %2323 = vmatprep.subr.bf16.mxu0 0
      %2324 = vmatpush1.bf16.xpose.msra.mxu0 0
      %2325 = vmatprep.subr.bf16.mxu0 0
      %2326 = vmatpush1.bf16.xpose.msra.mxu0 0
      %2327 = vmatprep.subr.bf16.mxu0 0
      %2328 = vmatpush1.bf16.xpose.msra.mxu0 0
      %2329 = vmatprep.subr.bf16.mxu0 0
      %2330 = vmatpush1.bf16.xpose.msra.mxu0 0
      %2331 = vmatprep.subr.bf16.mxu0 0
      %2332 = vmatpush1.bf16.xpose.msra.mxu0 0
      %2333 = vmatprep.subr.bf16.mxu0 0
      %2334 = vmatpush1.bf16.xpose.msra.mxu0 0
      %2335 = vmatprep.subr.bf16.mxu0 0
      %2336 = vmatpush1.bf16.xpose.msra.mxu0 0
      %2337 = vmatprep.mubr.bf16.mxu0 0
      %2338 = vmatmul.mubr.bf16.gmra.mrb[0].mxu0 %v2300
      %v2339 = vpop.f32.mrb[0].mxu0
      %v2340 = vadd.f32 %v810, %v2339
      %v2341 = vpop.f32.mrb[0].mxu0
      %v2342 = vpop.f32.mrb[0].mxu0
      %v2343 = vpop.f32.mrb[0].mxu0
      %2344 = vdwg.mxu0
      %v2345 = vsel %vm812, %v2340, -inf
      %2346 = vmax.xlane.f32.xlu0 %v2345
      %v2347 = vpop.xlane.xlu0 %2346
      %v2348 = vsub.f32 %v2340, %v2347
      %v2349 = vmul.f32 %v2348, 1.442695
      %v2350 = vpow.pop %v2349
      %v2351 = vsel %vm812, %v2350, 0.0
      %2352 = vadd.xlane.f32.xlu0 %v2351
      %v2353 = vpop.xlane.xlu0 %2352
      %v2354 = vrcp.pop %v2353
      %v2355 = vmul.f32 %v2350, %v2354
      %v2356 = vpack.c.bf16 %v2355, %v2355
      %v2357 = vpack.c.bf16 %v2292, %v2292
      %v2359 = vsel %vm812, %v2356, 0
      %v2362 = vsel %vm875, %v2357, 0
      %2364 = vmatprep.subr.bf16.mxu0 0
      %2365 = vmatpush1.bf16.msra.mxu0 %v2362
      %2366 = vmatprep.subr.bf16.mxu0 0
      %2367 = vmatpush1.bf16.msra.mxu0 0
      %2368 = vmatprep.subr.bf16.mxu0 0
      %2369 = vmatpush1.bf16.msra.mxu0 0
      %2370 = vmatprep.subr.bf16.mxu0 0
      %2371 = vmatpush1.bf16.msra.mxu0 0
      %2372 = vmatprep.subr.bf16.mxu0 0
      %2373 = vmatpush1.bf16.msra.mxu0 0
      %2374 = vmatprep.subr.bf16.mxu0 0
      %2375 = vmatpush1.bf16.msra.mxu0 0
      %2376 = vmatprep.subr.bf16.mxu0 0
      %2377 = vmatpush1.bf16.msra.mxu0 0
      %2378 = vmatprep.subr.bf16.mxu0 0
      %2379 = vmatpush1.bf16.msra.mxu0 0
      %2380 = vmatprep.subr.bf16.mxu0 0
      %2381 = vmatpush1.bf16.msra.mxu0 0
      %2382 = vmatprep.subr.bf16.mxu0 0
      %2383 = vmatpush1.bf16.msra.mxu0 0
      %2384 = vmatprep.subr.bf16.mxu0 0
      %2385 = vmatpush1.bf16.msra.mxu0 0
      %2386 = vmatprep.subr.bf16.mxu0 0
      %2387 = vmatpush1.bf16.msra.mxu0 0
      %2388 = vmatprep.subr.bf16.mxu0 0
      %2389 = vmatpush1.bf16.msra.mxu0 0
      %2390 = vmatprep.subr.bf16.mxu0 0
      %2391 = vmatpush1.bf16.msra.mxu0 0
      %2392 = vmatprep.subr.bf16.mxu0 0
      %2393 = vmatpush1.bf16.msra.mxu0 0
      %2394 = vmatprep.subr.bf16.mxu0 0
      %2395 = vmatpush1.bf16.msra.mxu0 0
      %2396 = vmatprep.mubr.bf16.mxu0 0
      %2397 = vmatmul.mubr.bf16.gmra.mrb[0].mxu0 %v2359
      %v2398 = vpop.f32.mrb[0].mxu0
      %v2399 = vadd.f32 0.0, %v2398
      %v2400 = vpop.f32.mrb[0].mxu0
      %v2401 = vpop.f32.mrb[0].mxu0
      %v2402 = vpop.f32.mrb[0].mxu0
      %2403 = vdwg.mxu0
      %v2404 = vpack.c.bf16 %v2399, %v2399
      %s2405 = scalar_lea.vmem %s9, 12
      %v2406 = vld [vmem:[%s2405] sm:$0xf]
      %v2408 = vsel %vm812, %v2404, 0
      %v2411 = vsel %vm875, %v2406, 0
      %2413 = vmatprep.subr.bf16.mxu0 0
      %2414 = vmatpush1.bf16.msra.mxu0 %v2411
      %2415 = vmatprep.subr.bf16.mxu0 0
      %2416 = vmatpush1.bf16.msra.mxu0 0
      %2417 = vmatprep.subr.bf16.mxu0 0
      %2418 = vmatpush1.bf16.msra.mxu0 0
      %2419 = vmatprep.subr.bf16.mxu0 0
      %2420 = vmatpush1.bf16.msra.mxu0 0
      %2421 = vmatprep.subr.bf16.mxu0 0
      %2422 = vmatpush1.bf16.msra.mxu0 0
      %2423 = vmatprep.subr.bf16.mxu0 0
      %2424 = vmatpush1.bf16.msra.mxu0 0
      %2425 = vmatprep.subr.bf16.mxu0 0
      %2426 = vmatpush1.bf16.msra.mxu0 0
      %2427 = vmatprep.subr.bf16.mxu0 0
      %2428 = vmatpush1.bf16.msra.mxu0 0
      %2429 = vmatprep.subr.bf16.mxu0 0
      %2430 = vmatpush1.bf16.msra.mxu0 0
      %2431 = vmatprep.subr.bf16.mxu0 0
      %2432 = vmatpush1.bf16.msra.mxu0 0
      %2433 = vmatprep.subr.bf16.mxu0 0
      %2434 = vmatpush1.bf16.msra.mxu0 0
      %2435 = vmatprep.subr.bf16.mxu0 0
      %2436 = vmatpush1.bf16.msra.mxu0 0
      %2437 = vmatprep.subr.bf16.mxu0 0
      %2438 = vmatpush1.bf16.msra.mxu0 0
      %2439 = vmatprep.subr.bf16.mxu0 0
      %2440 = vmatpush1.bf16.msra.mxu0 0
      %2441 = vmatprep.subr.bf16.mxu0 0
      %2442 = vmatpush1.bf16.msra.mxu0 0
      %2443 = vmatprep.subr.bf16.mxu0 0
      %2444 = vmatpush1.bf16.msra.mxu0 0
      %2445 = vmatprep.mubr.bf16.mxu0 0
      %2446 = vmatmul.mubr.bf16.gmra.mrb[0].mxu0 %v2408
      %v2447 = vpop.f32.mrb[0].mxu0
      %v2448 = vadd.f32 0.0, %v2447
      %v2449 = vpop.f32.mrb[0].mxu0
      %v2450 = vpop.f32.mrb[0].mxu0
      %v2451 = vpop.f32.mrb[0].mxu0
      %2452 = vdwg.mxu0
      %v2453 = vadd.f32 %v1957, %v2448
      %v2454 = vld [vmem:[%s10] sm:$0x1]
      %v2456 = vlaneseq
      %v2457 = vshrl.u32 %v2456, 7
      %v2458 = vsub.s32 0, %v2457
      %v2459 = vrot.slane %v2454, %v2458
      %v2461 = vadd.f32 %v2453, %v2459
      %v2462 = vunpack.c.l.bf16 %v468
      %v2463 = vadd.f32 %v2462, %v2461
      %v2464 = vld [vmem:[%s11] sm:$0x1]
      %v2465 = vld [vmem:[%s12] sm:$0x1]
      %2466 = vadd.xlane.f32.xlu0 %v2463
      %v2467 = vpop.xlane.xlu0 %2466
      %v2468 = vmul.f32 %v2463, %v2463
      %2469 = vadd.xlane.f32.xlu0 %v2468
      %v2470 = vpop.xlane.xlu0 %2469
      %v2471 = vmul.f32 %v2467, 0.03125
      %v2472 = vmul.f32 %v2471, 32.0
      %v2473 = vmul.f32 %v2472, %v2471
      %v2474 = vsub.f32 %v2470, %v2473
      %v2475 = vmul.f32 %v2474, 0.032258064
      %v2476 = vmax.f32 %v2475, 0.0
      %v2477 = vrsqrt.pop %v2476
      %v2478 = vmul.f32 %v2476, %v2477
      %vm2479 = vcmp.eq.f32.partialorder %v2476, inf
      %v2480 = vsel %vm2479, %v2476, %v2478
      %vm2481 = vcmp.eq.f32.partialorder %v2476, 0.0
      %v2482 = vand.u32 %v2476, 2147483648
      %v2483 = vsel %vm2481, %v2482, %v2480
      %v2484 = vadd.f32 %v2483, 1e-06
      %v2485 = vrcp.pop %v2484
      %v2486 = vsub.f32 %v2463, %v2471
      %v2488 = vlaneseq
      %v2489 = vshrl.u32 %v2488, 7
      %v2490 = vsub.s32 0, %v2489
      %v2491 = vrot.slane %v2464, %v2490
      %v2493 = vmul.f32 %v2491, %v2486
      %v2494 = vmul.f32 %v2493, %v2485
      %v2496 = vlaneseq
      %v2497 = vshrl.u32 %v2496, 7
      %v2498 = vsub.s32 0, %v2497
      %v2499 = vrot.slane %v2465, %v2498
      %v2501 = vadd.f32 %v2494, %v2499
      %v2502 = vpack.c.bf16 %v2501, %v2501
      %2503 = vst [vmem:[%s466] sm:$0xf] %v2502
      %p2504 = scmp.lt.s32.totalorder %s24, 1
      %s2505 = scalar_select %p2504, %s24, 1
      %s2506 = smul.addr %s2505, 4
      %s2507 = scalar_lea.vmem %s13, %s2506
      // Predicated region
      $region73: #{transformer_fwd.19} parent=71 // pred_check
        %p2508 = pneg %p330
      $region74: #{transformer_fwd.19} parent=71 // pred_check_branch
        %2510 = sbr.rel (%p2508) target = $region76
      $region75: #{transformer_fwd.19} parent=71 // pred_region
        _
      $region76: #{transformer_fwd.19} parent=71 // pred_fallthru
        _
    $region72: #{transformer_fwd.19} parent=5 // pred_fallthru
      _
    %p2511 = scmp.le.s32.totalorder 2, %s19
    // Predicated region
    $region77: #{transformer_fwd.19} parent=5 // pred_check
      %p2512 = pneg %p2511
    $region78: #{transformer_fwd.19} parent=5 // pred_check_branch
      %2514 = sbr.rel (%p2512) target = $region80
    $region79: #{transformer_fwd.19} parent=5 // pred_region
      %s2515 = ssub.s32 %s19, 2
      // Predicated region
      $region81: #{transformer_fwd.19} parent=79 // pred_check
        %p2516 = pneg %p336
      $region82: #{transformer_fwd.19} parent=79 // pred_check_branch
        %2518 = sbr.rel (%p2516) target = $region84
      $region83: #{transformer_fwd.19} parent=79 // pred_region
        %p2519 = scmp.lt.s32.totalorder %s25, 1
        %s2520 = scalar_select %p2519, %s25, 1
        %s2521 = smul.addr %s2520, 4
        %s2522 = scalar_lea.vmem %s13, %s2521
      $region84: #{transformer_fwd.19} parent=79 // pred_fallthru
        _
    $region80: #{transformer_fwd.19} parent=5 // pred_fallthru
      _
  $region6: #{transformer_fwd.19} parent=0 // loop_footer
    %s23 = sadd.s32 1, %s19
  $region7: #{transformer_fwd.19} parent=0 // loop_footer_branch
    %18 = sbr.rel target = $region3
  $region8: #{transformer_fwd.19} parent=0 // loop_exit
    _

</llo_original>
